<compile_context>
chip_gen: v7x
topology: tpu7x:2x2x1
jax: 0.10.0
libtpu: 0.0.40
codegen_flags: <defaults>
</compile_context>

<pallas_src>
import functools

import jax
import jax.numpy as jnp
from jax import lax
from jax.experimental import pallas as pl
from jax.experimental.pallas import tpu as pltpu


def _round_up(x, m):
    return (x + m - 1) // m * m


def _interp_matrix(si, so):
    """1-D bilinear (align_corners=True) interpolation matrix, shape (so, si)."""
    if so == 1 or si == 1:
        return jnp.zeros((so, si), jnp.float32).at[:, 0].set(1.0)
    pos = jnp.arange(so, dtype=jnp.float32) * ((si - 1) / (so - 1))
    lo = jnp.clip(jnp.floor(pos).astype(jnp.int32), 0, si - 1)
    hi = jnp.minimum(lo + 1, si - 1)
    frac = pos - lo.astype(jnp.float32)
    m = jnp.zeros((so, si), jnp.float32)
    m = m.at[jnp.arange(so), lo].add(1.0 - frac)
    m = m.at[jnp.arange(so), hi].add(frac)
    return m


# ---------------------------------------------------------------------------
# Fused kernel: 2x bilinear upsample -> conv3x3+BN+ReLU -> conv3x3+BN+ReLU
# ---------------------------------------------------------------------------
def _inplace_up_kernel(x_ref, rh_ref, rwt_ref, w1_ref, s1_ref, w2_ref, s2_ref,
                       o_ref, *, c, th, ho, wo):
    # x_ref:   (1, C, H, W)     original input, resident per batch element
    # rh_ref:  (Ho_pad+4, H)    row-interp matrix, 2 zero halo rows each side
    # rwt_ref: (W, Wo+4)        col-interp matrix^T, 2 zero halo cols each side
    # w1_ref/w2_ref: (C*C*9,)   BN-scale-folded conv weights (SMEM scalars)
    # s1_ref/s2_ref: (C,)       folded BN shifts incl. conv bias (SMEM scalars)
    # o_ref:   (1, C, TH, Wo)   output tile (W on the lane axis)
    rb = pl.program_id(1)
    r0 = rb * th
    if th % 8 == 0:
        r0 = pl.multiple_of(r0, 8)

    # ---- Stage A: 2x bilinear upsample (align_corners=True), fused in-kernel.
    # us[ci][q, p] = upsampled value at (row r0-2+q, col p-2); exact zeros
    # outside the image (zero rows/cols of rh/rwt = conv1 'same' padding).
    rh_blk = rh_ref[pl.ds(r0, th + 4), :]                     # (TH+4, H)
    rwt = rwt_ref[...]                                        # (W, Wo+4)
    us = []
    for ci in range(c):
        x_c = x_ref[0, ci, :, :]                              # (H, W)
        t = jnp.dot(rh_blk, x_c, preferred_element_type=jnp.float32)
        us.append(jnp.dot(t, rwt, preferred_element_type=jnp.float32))

    # ---- Stage B: conv1 + BN1 + ReLU on rows r0-1 .. r0+TH (TH+2 halo rows).
    taps1 = [[us[ci][kh:kh + th + 2, kw:kw + wo + 2]
              for kh in range(3) for kw in range(3)] for ci in range(c)]
    row_ids = r0 - 1 + lax.broadcasted_iota(jnp.int32, (th + 2, wo + 2), 0)
    col_ids = lax.broadcasted_iota(jnp.int32, (th + 2, wo + 2), 1)
    keep = (row_ids >= 0) & (row_ids < ho) & (col_ids >= 1) & (col_ids <= wo)

    y1 = []
    for co in range(c):
        acc = None
        for ci in range(c):
            base = (co * c + ci) * 9
            for t in range(9):
                term = taps1[ci][t] * w1_ref[base + t]
                acc = term if acc is None else acc + term
        z = jnp.maximum(acc + s1_ref[co], 0.0)
        # Positions outside the image must be exact zeros for conv2's padding.
        y1.append(jnp.where(keep, z, 0.0))

    # ---- Stage C: conv2 + BN2 + ReLU on rows r0 .. r0+TH-1.
    taps2 = [[y1[ci][kh:kh + th, kw:kw + wo]
              for kh in range(3) for kw in range(3)] for ci in range(c)]
    for co in range(c):
        acc = None
        for ci in range(c):
            base = (co * c + ci) * 9
            for t in range(9):
                term = taps2[ci][t] * w2_ref[base + t]
                acc = term if acc is None else acc + term
        z = jnp.maximum(acc + s2_ref[co], 0.0)
        o_ref[0, co, :, :] = z.astype(o_ref.dtype)


# ---------------------------------------------------------------------------
# Tiling / VMEM budget selection (explicit vmem_limit_bytes, derived TH).
# ---------------------------------------------------------------------------
def _select_tiling(c, h, w, ho, wo, row_block):
    def footprint(th):
        ho_pad = _round_up(ho, th)
        b = 2 * c * h * w * 4                       # resident input (2 bufs)
        b += 2 * c * th * wo * 4                    # output tile (2 bufs)
        b += 2 * (ho_pad + 4) * h * 4 + 2 * w * (wo + 4) * 4
        b += 26 * c * (th + 4) * (wo + 4) * 4       # in-kernel temporaries
        return b

    budget = 44 * 1024 * 1024
    cands = [ho] if ho <= row_block else []
    t = (min(row_block, ho) // 8) * 8
    while t >= 8:
        cands.append(t)
        t -= 8
    th = cands[-1]
    for cand in cands:
        if footprint(cand) <= budget:
            th = cand
            break
    vmem_limit = int(min(max(footprint(th) * 1.25, 32 * 1024 * 1024),
                         56 * 1024 * 1024))
    return th, vmem_limit


# ---------------------------------------------------------------------------
# Wrapper: BN/bias folding, interp-matrix construction, pallas_call.
# ---------------------------------------------------------------------------
def inplace_up_forward(x_nchw, params, *, eps=1e-5, row_block=32):
    """Pallas implementation of InPlaceUp.forward (NCHW in, NCHW out)."""
    n, c, h, w = map(int, x_nchw.shape)
    ho, wo = 2 * h, 2 * w
    if c > 16:
        # TODO(synk): large-C path (channels-on-lanes MXU conv) not implemented.
        raise NotImplementedError("inplace_up_forward: C > 16 needs an MXU path")

    th, vmem_limit = _select_tiling(c, h, w, ho, wo, row_block)
    ho_pad = _round_up(ho, th)
    n_rb = ho_pad // th

    # Interpolation matrices with conv1's spatial 'same' padding baked in.
    rh = _interp_matrix(h, ho)                                     # (Ho, H)
    rh_pad = jnp.zeros((ho_pad + 4, h), jnp.float32).at[2:2 + ho, :].set(rh)
    rw = _interp_matrix(w, wo)                                     # (Wo, W)
    rwt_pad = jnp.zeros((w, wo + 4), jnp.float32).at[:, 2:2 + wo].set(rw.T)

    # Fold conv bias + BatchNorm(eval) into weight scale and per-channel shift.
    def fold(wk, bias, g, b, m, v):
        sc = (g / jnp.sqrt(v + eps)).astype(jnp.float32)
        wf = (wk.astype(jnp.float32) * sc[:, None, None, None]).reshape(-1)
        sh = (b + (bias - m) * sc).astype(jnp.float32)
        return wf, sh

    w1f, s1 = fold(params["w1"], params["bias1"], params["g1"], params["b1"],
                   params["m1"], params["v1"])
    w2f, s2 = fold(params["w2"], params["bias2"], params["g2"], params["b2"],
                   params["m2"], params["v2"])

    kernel = functools.partial(_inplace_up_kernel, c=c, th=th, ho=ho, wo=wo)
    smem = pl.BlockSpec(memory_space=pltpu.MemorySpace.SMEM)

    out = pl.pallas_call(
        kernel,
        out_shape=jax.ShapeDtypeStruct((n, c, ho_pad, wo), jnp.float32),
        grid=(n, n_rb),
        in_specs=[
            pl.BlockSpec((1, c, h, w), lambda i, j: (i, 0, 0, 0)),  # x resident per n
            pl.BlockSpec((ho_pad + 4, h), lambda i, j: (0, 0)),     # rh (resident)
            pl.BlockSpec((w, wo + 4), lambda i, j: (0, 0)),         # rw^T (resident)
            smem, smem, smem, smem,                                 # w1, s1, w2, s2
        ],
        out_specs=pl.BlockSpec((1, c, th, wo), lambda i, j: (i, 0, j, 0)),
        compiler_params=pltpu.CompilerParams(
            dimension_semantics=("parallel", "parallel"),
            vmem_limit_bytes=vmem_limit),
    )(x_nchw.astype(jnp.float32), rh_pad, rwt_pad, w1f, s1, w2f, s2)

    return out if ho_pad == ho else out[:, :, :ho, :]


# ---------------------------------------------------------------------------
# Pure-JAX reference (HIGHEST precision) for validation.
# ---------------------------------------------------------------------------
def _reference(x_nchw, params, eps=1e-5):
    _, _, h, w = x_nchw.shape
    rh = _interp_matrix(h, 2 * h)
    rw = _interp_matrix(w, 2 * w)
    xu = jnp.einsum("oh,nchw,pw->ncop", rh, x_nchw.astype(jnp.float32), rw,
                    precision=lax.Precision.HIGHEST)

    def cbr(xx, wt, bias, g, b, m, v):
        y = lax.conv_general_dilated(
            xx, wt.astype(jnp.float32), (1, 1), ((1, 1), (1, 1)),
            dimension_numbers=("NCHW", "OIHW", "NCHW"),
            precision=lax.Precision.HIGHEST)
        y = y + bias.reshape(1, -1, 1, 1)
        sc = g / jnp.sqrt(v + eps)
        y = y * sc.reshape(1, -1, 1, 1) + (b - m * sc).reshape(1, -1, 1, 1)
        return jnp.maximum(y, 0.0)

    y = cbr(xu, params["w1"], params["bias1"], params["g1"], params["b1"],
            params["m1"], params["v1"])
    y = cbr(y, params["w2"], params["bias2"], params["g2"], params["b2"],
            params["m2"], params["v2"])
    return y


if __name__ == "__main__":
    key = jax.random.PRNGKey(0)
    keys = jax.random.split(key, 13)

    # InPlaceUp(in_channels=4) on a small feature map.
    N, C, H, W = 2, 4, 16, 16
    x = jax.random.normal(keys[0], (N, C, H, W), dtype=jnp.float32)

    params = {
        "w1": 0.1 * jax.random.normal(keys[1], (C, C, 3, 3), jnp.float32),
        "bias1": 0.05 * jax.random.normal(keys[2], (C,), jnp.float32),
        "g1": 1.0 + 0.1 * jax.random.normal(keys[3], (C,), jnp.float32),
        "b1": 0.1 * jax.random.normal(keys[4], (C,), jnp.float32),
        "m1": 0.1 * jax.random.normal(keys[5], (C,), jnp.float32),
        "v1": jnp.abs(jax.random.normal(keys[6], (C,), jnp.float32)) + 0.5,
        "w2": 0.1 * jax.random.normal(keys[7], (C, C, 3, 3), jnp.float32),
        "bias2": 0.05 * jax.random.normal(keys[8], (C,), jnp.float32),
        "g2": 1.0 + 0.1 * jax.random.normal(keys[9], (C,), jnp.float32),
        "b2": 0.1 * jax.random.normal(keys[10], (C,), jnp.float32),
        "m2": 0.1 * jax.random.normal(keys[11], (C,), jnp.float32),
        "v2": jnp.abs(jax.random.normal(keys[12], (C,), jnp.float32)) + 0.5,
    }

    out = inplace_up_forward(x, params)
    out = jax.block_until_ready(out)

    ref = _reference(x, params)
    assert out.shape == (N, C, 2 * H, 2 * W), out.shape
    max_err = float(jnp.max(jnp.abs(out - ref)))
    assert jnp.allclose(out, ref, atol=2e-3, rtol=2e-3), \
        f"mismatch vs reference (max abs err {max_err})"

    print("KERNEL_OK")
</pallas_src>

<mosaic_0001>
module attributes {stable_mosaic.version = 11 : i64} {
  func.func @_inplace_up_kernel(%arg0: i32, %arg1: i32, %arg2: memref<1x4x16x16xf32, #tpu.memory_space<vmem>>, %arg3: memref<36x16xf32, #tpu.memory_space<vmem>>, %arg4: memref<16x36xf32, #tpu.memory_space<vmem>>, %arg5: memref<144xf32, #tpu.memory_space<smem>>, %arg6: memref<4xf32, #tpu.memory_space<smem>>, %arg7: memref<144xf32, #tpu.memory_space<smem>>, %arg8: memref<4xf32, #tpu.memory_space<smem>>, %arg9: memref<1x4x32x32xf32, #tpu.memory_space<vmem>>) attributes {dimension_semantics = [#tpu.dimension_semantics<parallel>, #tpu.dimension_semantics<parallel>], iteration_bounds = array<i64: 2, 1>, scalar_prefetch = 0 : i64, scratch_operands = 0 : i64, tpu.core_type = #tpu.core_type<tc>, window_params = [{transform_indices = @transform_0, window_bounds = array<i64: 1, 4, 16, 16>}, {pipeline_mode = #tpu.pipeline_mode<synchronous>, transform_indices = @transform_1, window_bounds = array<i64: 36, 16>}, {pipeline_mode = #tpu.pipeline_mode<synchronous>, transform_indices = @transform_2, window_bounds = array<i64: 16, 36>}, {transform_indices = @transform_3, window_bounds = array<i64: 144>}, {transform_indices = @transform_4, window_bounds = array<i64: 4>}, {transform_indices = @transform_5, window_bounds = array<i64: 144>}, {transform_indices = @transform_6, window_bounds = array<i64: 4>}, {transform_indices = @transform_7, window_bounds = array<i64: 1, 4, 32, 32>}]} {
    %c32_i32 = arith.constant 32 : i32
    %0 = arith.muli %arg1, %c32_i32 : i32
    %1 = tpu.assume_multiple %0, 8 : i32
    %2 = arith.index_cast %1 : i32 to index
    %c0 = arith.constant 0 : index
    %3 = vector.load %arg3[%2, %c0] : memref<36x16xf32, #tpu.memory_space<vmem>>, vector<36x16xf32>
    %c0_0 = arith.constant 0 : index
    %c0_1 = arith.constant 0 : index
    %4 = vector.load %arg4[%c0_0, %c0_1] : memref<16x36xf32, #tpu.memory_space<vmem>>, vector<16x36xf32>
    %c0_2 = arith.constant 0 : index
    %c0_3 = arith.constant 0 : index
    %c0_4 = arith.constant 0 : index
    %c0_5 = arith.constant 0 : index
    %5 = vector.load %arg2[%c0_2, %c0_3, %c0_4, %c0_5] : memref<1x4x16x16xf32, #tpu.memory_space<vmem>>, vector<1x1x16x16xf32>
    %6 = vector.shape_cast %5 : vector<1x1x16x16xf32> to vector<16x16xf32>
    %cst = arith.constant dense<0.000000e+00> : vector<36x16xf32>
    %7 = tpu.matmul %3, %6, %cst {dimension_numbers = #tpu.dot_dimension_numbers<[1], [0], [0], [1], [0, 0, 1, 1], [], []>} : vector<36x16xf32>, vector<16x16xf32>, vector<36x16xf32> -> vector<36x16xf32>
    %cst_6 = arith.constant dense<0.000000e+00> : vector<36x36xf32>
    %8 = tpu.matmul %7, %4, %cst_6 {dimension_numbers = #tpu.dot_dimension_numbers<[1], [0], [0], [1], [0, 0, 1, 1], [], []>} : vector<36x16xf32>, vector<16x36xf32>, vector<36x36xf32> -> vector<36x36xf32>
    %c0_7 = arith.constant 0 : index
    %c1 = arith.constant 1 : index
    %c0_8 = arith.constant 0 : index
    %c0_9 = arith.constant 0 : index
    %9 = vector.load %arg2[%c0_7, %c1, %c0_8, %c0_9] : memref<1x4x16x16xf32, #tpu.memory_space<vmem>>, vector<1x1x16x16xf32>
    %10 = vector.shape_cast %9 : vector<1x1x16x16xf32> to vector<16x16xf32>
    %cst_10 = arith.constant dense<0.000000e+00> : vector<36x16xf32>
    %11 = tpu.matmul %3, %10, %cst_10 {dimension_numbers = #tpu.dot_dimension_numbers<[1], [0], [0], [1], [0, 0, 1, 1], [], []>} : vector<36x16xf32>, vector<16x16xf32>, vector<36x16xf32> -> vector<36x16xf32>
    %cst_11 = arith.constant dense<0.000000e+00> : vector<36x36xf32>
    %12 = tpu.matmul %11, %4, %cst_11 {dimension_numbers = #tpu.dot_dimension_numbers<[1], [0], [0], [1], [0, 0, 1, 1], [], []>} : vector<36x16xf32>, vector<16x36xf32>, vector<36x36xf32> -> vector<36x36xf32>
    %c0_12 = arith.constant 0 : index
    %c2 = arith.constant 2 : index
    %c0_13 = arith.constant 0 : index
    %c0_14 = arith.constant 0 : index
    %13 = vector.load %arg2[%c0_12, %c2, %c0_13, %c0_14] : memref<1x4x16x16xf32, #tpu.memory_space<vmem>>, vector<1x1x16x16xf32>
    %14 = vector.shape_cast %13 : vector<1x1x16x16xf32> to vector<16x16xf32>
    %cst_15 = arith.constant dense<0.000000e+00> : vector<36x16xf32>
    %15 = tpu.matmul %3, %14, %cst_15 {dimension_numbers = #tpu.dot_dimension_numbers<[1], [0], [0], [1], [0, 0, 1, 1], [], []>} : vector<36x16xf32>, vector<16x16xf32>, vector<36x16xf32> -> vector<36x16xf32>
    %cst_16 = arith.constant dense<0.000000e+00> : vector<36x36xf32>
    %16 = tpu.matmul %15, %4, %cst_16 {dimension_numbers = #tpu.dot_dimension_numbers<[1], [0], [0], [1], [0, 0, 1, 1], [], []>} : vector<36x16xf32>, vector<16x36xf32>, vector<36x36xf32> -> vector<36x36xf32>
    %c0_17 = arith.constant 0 : index
    %c3 = arith.constant 3 : index
    %c0_18 = arith.constant 0 : index
    %c0_19 = arith.constant 0 : index
    %17 = vector.load %arg2[%c0_17, %c3, %c0_18, %c0_19] : memref<1x4x16x16xf32, #tpu.memory_space<vmem>>, vector<1x1x16x16xf32>
    %18 = vector.shape_cast %17 : vector<1x1x16x16xf32> to vector<16x16xf32>
    %cst_20 = arith.constant dense<0.000000e+00> : vector<36x16xf32>
    %19 = tpu.matmul %3, %18, %cst_20 {dimension_numbers = #tpu.dot_dimension_numbers<[1], [0], [0], [1], [0, 0, 1, 1], [], []>} : vector<36x16xf32>, vector<16x16xf32>, vector<36x16xf32> -> vector<36x16xf32>
    %cst_21 = arith.constant dense<0.000000e+00> : vector<36x36xf32>
    %20 = tpu.matmul %19, %4, %cst_21 {dimension_numbers = #tpu.dot_dimension_numbers<[1], [0], [0], [1], [0, 0, 1, 1], [], []>} : vector<36x16xf32>, vector<16x36xf32>, vector<36x36xf32> -> vector<36x36xf32>
    %21 = vector.extract_strided_slice %8 {offsets = [0, 0], sizes = [34, 34], strides = [1, 1]} : vector<36x36xf32> to vector<34x34xf32>
    %22 = vector.extract_strided_slice %8 {offsets = [0, 1], sizes = [34, 34], strides = [1, 1]} : vector<36x36xf32> to vector<34x34xf32>
    %23 = vector.extract_strided_slice %8 {offsets = [0, 2], sizes = [34, 34], strides = [1, 1]} : vector<36x36xf32> to vector<34x34xf32>
    %24 = vector.extract_strided_slice %8 {offsets = [1, 0], sizes = [34, 34], strides = [1, 1]} : vector<36x36xf32> to vector<34x34xf32>
    %25 = vector.extract_strided_slice %8 {offsets = [1, 1], sizes = [34, 34], strides = [1, 1]} : vector<36x36xf32> to vector<34x34xf32>
    %26 = vector.extract_strided_slice %8 {offsets = [1, 2], sizes = [34, 34], strides = [1, 1]} : vector<36x36xf32> to vector<34x34xf32>
    %27 = vector.extract_strided_slice %8 {offsets = [2, 0], sizes = [34, 34], strides = [1, 1]} : vector<36x36xf32> to vector<34x34xf32>
    %28 = vector.extract_strided_slice %8 {offsets = [2, 1], sizes = [34, 34], strides = [1, 1]} : vector<36x36xf32> to vector<34x34xf32>
    %29 = vector.extract_strided_slice %8 {offsets = [2, 2], sizes = [34, 34], strides = [1, 1]} : vector<36x36xf32> to vector<34x34xf32>
    %30 = vector.extract_strided_slice %12 {offsets = [0, 0], sizes = [34, 34], strides = [1, 1]} : vector<36x36xf32> to vector<34x34xf32>
    %31 = vector.extract_strided_slice %12 {offsets = [0, 1], sizes = [34, 34], strides = [1, 1]} : vector<36x36xf32> to vector<34x34xf32>
    %32 = vector.extract_strided_slice %12 {offsets = [0, 2], sizes = [34, 34], strides = [1, 1]} : vector<36x36xf32> to vector<34x34xf32>
    %33 = vector.extract_strided_slice %12 {offsets = [1, 0], sizes = [34, 34], strides = [1, 1]} : vector<36x36xf32> to vector<34x34xf32>
    %34 = vector.extract_strided_slice %12 {offsets = [1, 1], sizes = [34, 34], strides = [1, 1]} : vector<36x36xf32> to vector<34x34xf32>
    %35 = vector.extract_strided_slice %12 {offsets = [1, 2], sizes = [34, 34], strides = [1, 1]} : vector<36x36xf32> to vector<34x34xf32>
    %36 = vector.extract_strided_slice %12 {offsets = [2, 0], sizes = [34, 34], strides = [1, 1]} : vector<36x36xf32> to vector<34x34xf32>
    %37 = vector.extract_strided_slice %12 {offsets = [2, 1], sizes = [34, 34], strides = [1, 1]} : vector<36x36xf32> to vector<34x34xf32>
    %38 = vector.extract_strided_slice %12 {offsets = [2, 2], sizes = [34, 34], strides = [1, 1]} : vector<36x36xf32> to vector<34x34xf32>
    %39 = vector.extract_strided_slice %16 {offsets = [0, 0], sizes = [34, 34], strides = [1, 1]} : vector<36x36xf32> to vector<34x34xf32>
    %40 = vector.extract_strided_slice %16 {offsets = [0, 1], sizes = [34, 34], strides = [1, 1]} : vector<36x36xf32> to vector<34x34xf32>
    %41 = vector.extract_strided_slice %16 {offsets = [0, 2], sizes = [34, 34], strides = [1, 1]} : vector<36x36xf32> to vector<34x34xf32>
    %42 = vector.extract_strided_slice %16 {offsets = [1, 0], sizes = [34, 34], strides = [1, 1]} : vector<36x36xf32> to vector<34x34xf32>
    %43 = vector.extract_strided_slice %16 {offsets = [1, 1], sizes = [34, 34], strides = [1, 1]} : vector<36x36xf32> to vector<34x34xf32>
    %44 = vector.extract_strided_slice %16 {offsets = [1, 2], sizes = [34, 34], strides = [1, 1]} : vector<36x36xf32> to vector<34x34xf32>
    %45 = vector.extract_strided_slice %16 {offsets = [2, 0], sizes = [34, 34], strides = [1, 1]} : vector<36x36xf32> to vector<34x34xf32>
    %46 = vector.extract_strided_slice %16 {offsets = [2, 1], sizes = [34, 34], strides = [1, 1]} : vector<36x36xf32> to vector<34x34xf32>
    %47 = vector.extract_strided_slice %16 {offsets = [2, 2], sizes = [34, 34], strides = [1, 1]} : vector<36x36xf32> to vector<34x34xf32>
    %48 = vector.extract_strided_slice %20 {offsets = [0, 0], sizes = [34, 34], strides = [1, 1]} : vector<36x36xf32> to vector<34x34xf32>
    %49 = vector.extract_strided_slice %20 {offsets = [0, 1], sizes = [34, 34], strides = [1, 1]} : vector<36x36xf32> to vector<34x34xf32>
    %50 = vector.extract_strided_slice %20 {offsets = [0, 2], sizes = [34, 34], strides = [1, 1]} : vector<36x36xf32> to vector<34x34xf32>
    %51 = vector.extract_strided_slice %20 {offsets = [1, 0], sizes = [34, 34], strides = [1, 1]} : vector<36x36xf32> to vector<34x34xf32>
    %52 = vector.extract_strided_slice %20 {offsets = [1, 1], sizes = [34, 34], strides = [1, 1]} : vector<36x36xf32> to vector<34x34xf32>
    %53 = vector.extract_strided_slice %20 {offsets = [1, 2], sizes = [34, 34], strides = [1, 1]} : vector<36x36xf32> to vector<34x34xf32>
    %54 = vector.extract_strided_slice %20 {offsets = [2, 0], sizes = [34, 34], strides = [1, 1]} : vector<36x36xf32> to vector<34x34xf32>
    %55 = vector.extract_strided_slice %20 {offsets = [2, 1], sizes = [34, 34], strides = [1, 1]} : vector<36x36xf32> to vector<34x34xf32>
    %56 = vector.extract_strided_slice %20 {offsets = [2, 2], sizes = [34, 34], strides = [1, 1]} : vector<36x36xf32> to vector<34x34xf32>
    %c1_i32 = arith.constant 1 : i32
    %57 = arith.subi %1, %c1_i32 : i32
    %58 = tpu.iota {dimensions = array<i32: 0>} : vector<34x34xi32>
    %59 = vector.broadcast %57 : i32 to vector<34x34xi32>
    %60 = arith.addi %59, %58 : vector<34x34xi32>
    %61 = tpu.iota {dimensions = array<i32: 1>} : vector<34x34xi32>
    %c0_i32 = arith.constant 0 : i32
    %62 = vector.broadcast %c0_i32 : i32 to vector<34x34xi32>
    %63 = arith.cmpi sge, %60, %62 : vector<34x34xi32>
    %c32_i32_22 = arith.constant 32 : i32
    %64 = vector.broadcast %c32_i32_22 : i32 to vector<34x34xi32>
    %65 = arith.cmpi slt, %60, %64 : vector<34x34xi32>
    %66 = arith.andi %63, %65 : vector<34x34xi1>
    %c1_i32_23 = arith.constant 1 : i32
    %67 = vector.broadcast %c1_i32_23 : i32 to vector<34x34xi32>
    %68 = arith.cmpi sge, %61, %67 : vector<34x34xi32>
    %69 = arith.andi %66, %68 : vector<34x34xi1>
    %c32_i32_24 = arith.constant 32 : i32
    %70 = vector.broadcast %c32_i32_24 : i32 to vector<34x34xi32>
    %71 = arith.cmpi sle, %61, %70 : vector<34x34xi32>
    %72 = arith.andi %69, %71 : vector<34x34xi1>
    %c0_25 = arith.constant 0 : index
    %73 = memref.load %arg5[%c0_25] : memref<144xf32, #tpu.memory_space<smem>>
    %74 = vector.broadcast %73 : f32 to vector<34x34xf32>
    %75 = arith.mulf %21, %74 : vector<34x34xf32>
    %c1_26 = arith.constant 1 : index
    %76 = memref.load %arg5[%c1_26] : memref<144xf32, #tpu.memory_space<smem>>
    %77 = vector.broadcast %76 : f32 to vector<34x34xf32>
    %78 = arith.mulf %22, %77 : vector<34x34xf32>
    %79 = arith.addf %75, %78 : vector<34x34xf32>
    %c2_27 = arith.constant 2 : index
    %80 = memref.load %arg5[%c2_27] : memref<144xf32, #tpu.memory_space<smem>>
    %81 = vector.broadcast %80 : f32 to vector<34x34xf32>
    %82 = arith.mulf %23, %81 : vector<34x34xf32>
    %83 = arith.addf %79, %82 : vector<34x34xf32>
    %c3_28 = arith.constant 3 : index
    %84 = memref.load %arg5[%c3_28] : memref<144xf32, #tpu.memory_space<smem>>
    %85 = vector.broadcast %84 : f32 to vector<34x34xf32>
    %86 = arith.mulf %24, %85 : vector<34x34xf32>
    %87 = arith.addf %83, %86 : vector<34x34xf32>
    %c4 = arith.constant 4 : index
    %88 = memref.load %arg5[%c4] : memref<144xf32, #tpu.memory_space<smem>>
    %89 = vector.broadcast %88 : f32 to vector<34x34xf32>
    %90 = arith.mulf %25, %89 : vector<34x34xf32>
    %91 = arith.addf %87, %90 : vector<34x34xf32>
    %c5 = arith.constant 5 : index
    %92 = memref.load %arg5[%c5] : memref<144xf32, #tpu.memory_space<smem>>
    %93 = vector.broadcast %92 : f32 to vector<34x34xf32>
    %94 = arith.mulf %26, %93 : vector<34x34xf32>
    %95 = arith.addf %91, %94 : vector<34x34xf32>
    %c6 = arith.constant 6 : index
    %96 = memref.load %arg5[%c6] : memref<144xf32, #tpu.memory_space<smem>>
    %97 = vector.broadcast %96 : f32 to vector<34x34xf32>
    %98 = arith.mulf %27, %97 : vector<34x34xf32>
    %99 = arith.addf %95, %98 : vector<34x34xf32>
    %c7 = arith.constant 7 : index
    %100 = memref.load %arg5[%c7] : memref<144xf32, #tpu.memory_space<smem>>
    %101 = vector.broadcast %100 : f32 to vector<34x34xf32>
    %102 = arith.mulf %28, %101 : vector<34x34xf32>
    %103 = arith.addf %99, %102 : vector<34x34xf32>
    %c8 = arith.constant 8 : index
    %104 = memref.load %arg5[%c8] : memref<144xf32, #tpu.memory_space<smem>>
    %105 = vector.broadcast %104 : f32 to vector<34x34xf32>
    %106 = arith.mulf %29, %105 : vector<34x34xf32>
    %107 = arith.addf %103, %106 : vector<34x34xf32>
    %c9 = arith.constant 9 : index
    %108 = memref.load %arg5[%c9] : memref<144xf32, #tpu.memory_space<smem>>
    %109 = vector.broadcast %108 : f32 to vector<34x34xf32>
    %110 = arith.mulf %30, %109 : vector<34x34xf32>
    %111 = arith.addf %107, %110 : vector<34x34xf32>
    %c10 = arith.constant 10 : index
    %112 = memref.load %arg5[%c10] : memref<144xf32, #tpu.memory_space<smem>>
    %113 = vector.broadcast %112 : f32 to vector<34x34xf32>
    %114 = arith.mulf %31, %113 : vector<34x34xf32>
    %115 = arith.addf %111, %114 : vector<34x34xf32>
    %c11 = arith.constant 11 : index
    %116 = memref.load %arg5[%c11] : memref<144xf32, #tpu.memory_space<smem>>
    %117 = vector.broadcast %116 : f32 to vector<34x34xf32>
    %118 = arith.mulf %32, %117 : vector<34x34xf32>
    %119 = arith.addf %115, %118 : vector<34x34xf32>
    %c12 = arith.constant 12 : index
    %120 = memref.load %arg5[%c12] : memref<144xf32, #tpu.memory_space<smem>>
    %121 = vector.broadcast %120 : f32 to vector<34x34xf32>
    %122 = arith.mulf %33, %121 : vector<34x34xf32>
    %123 = arith.addf %119, %122 : vector<34x34xf32>
    %c13 = arith.constant 13 : index
    %124 = memref.load %arg5[%c13] : memref<144xf32, #tpu.memory_space<smem>>
    %125 = vector.broadcast %124 : f32 to vector<34x34xf32>
    %126 = arith.mulf %34, %125 : vector<34x34xf32>
    %127 = arith.addf %123, %126 : vector<34x34xf32>
    %c14 = arith.constant 14 : index
    %128 = memref.load %arg5[%c14] : memref<144xf32, #tpu.memory_space<smem>>
    %129 = vector.broadcast %128 : f32 to vector<34x34xf32>
    %130 = arith.mulf %35, %129 : vector<34x34xf32>
    %131 = arith.addf %127, %130 : vector<34x34xf32>
    %c15 = arith.constant 15 : index
    %132 = memref.load %arg5[%c15] : memref<144xf32, #tpu.memory_space<smem>>
    %133 = vector.broadcast %132 : f32 to vector<34x34xf32>
    %134 = arith.mulf %36, %133 : vector<34x34xf32>
    %135 = arith.addf %131, %134 : vector<34x34xf32>
    %c16 = arith.constant 16 : index
    %136 = memref.load %arg5[%c16] : memref<144xf32, #tpu.memory_space<smem>>
    %137 = vector.broadcast %136 : f32 to vector<34x34xf32>
    %138 = arith.mulf %37, %137 : vector<34x34xf32>
    %139 = arith.addf %135, %138 : vector<34x34xf32>
    %c17 = arith.constant 17 : index
    %140 = memref.load %arg5[%c17] : memref<144xf32, #tpu.memory_space<smem>>
    %141 = vector.broadcast %140 : f32 to vector<34x34xf32>
    %142 = arith.mulf %38, %141 : vector<34x34xf32>
    %143 = arith.addf %139, %142 : vector<34x34xf32>
    %c18 = arith.constant 18 : index
    %144 = memref.load %arg5[%c18] : memref<144xf32, #tpu.memory_space<smem>>
    %145 = vector.broadcast %144 : f32 to vector<34x34xf32>
    %146 = arith.mulf %39, %145 : vector<34x34xf32>
    %147 = arith.addf %143, %146 : vector<34x34xf32>
    %c19 = arith.constant 19 : index
    %148 = memref.load %arg5[%c19] : memref<144xf32, #tpu.memory_space<smem>>
    %149 = vector.broadcast %148 : f32 to vector<34x34xf32>
    %150 = arith.mulf %40, %149 : vector<34x34xf32>
    %151 = arith.addf %147, %150 : vector<34x34xf32>
    %c20 = arith.constant 20 : index
    %152 = memref.load %arg5[%c20] : memref<144xf32, #tpu.memory_space<smem>>
    %153 = vector.broadcast %152 : f32 to vector<34x34xf32>
    %154 = arith.mulf %41, %153 : vector<34x34xf32>
    %155 = arith.addf %151, %154 : vector<34x34xf32>
    %c21 = arith.constant 21 : index
    %156 = memref.load %arg5[%c21] : memref<144xf32, #tpu.memory_space<smem>>
    %157 = vector.broadcast %156 : f32 to vector<34x34xf32>
    %158 = arith.mulf %42, %157 : vector<34x34xf32>
    %159 = arith.addf %155, %158 : vector<34x34xf32>
    %c22 = arith.constant 22 : index
    %160 = memref.load %arg5[%c22] : memref<144xf32, #tpu.memory_space<smem>>
    %161 = vector.broadcast %160 : f32 to vector<34x34xf32>
    %162 = arith.mulf %43, %161 : vector<34x34xf32>
    %163 = arith.addf %159, %162 : vector<34x34xf32>
    %c23 = arith.constant 23 : index
    %164 = memref.load %arg5[%c23] : memref<144xf32, #tpu.memory_space<smem>>
    %165 = vector.broadcast %164 : f32 to vector<34x34xf32>
    %166 = arith.mulf %44, %165 : vector<34x34xf32>
    %167 = arith.addf %163, %166 : vector<34x34xf32>
    %c24 = arith.constant 24 : index
    %168 = memref.load %arg5[%c24] : memref<144xf32, #tpu.memory_space<smem>>
    %169 = vector.broadcast %168 : f32 to vector<34x34xf32>
    %170 = arith.mulf %45, %169 : vector<34x34xf32>
    %171 = arith.addf %167, %170 : vector<34x34xf32>
    %c25 = arith.constant 25 : index
    %172 = memref.load %arg5[%c25] : memref<144xf32, #tpu.memory_space<smem>>
    %173 = vector.broadcast %172 : f32 to vector<34x34xf32>
    %174 = arith.mulf %46, %173 : vector<34x34xf32>
    %175 = arith.addf %171, %174 : vector<34x34xf32>
    %c26 = arith.constant 26 : index
    %176 = memref.load %arg5[%c26] : memref<144xf32, #tpu.memory_space<smem>>
    %177 = vector.broadcast %176 : f32 to vector<34x34xf32>
    %178 = arith.mulf %47, %177 : vector<34x34xf32>
    %179 = arith.addf %175, %178 : vector<34x34xf32>
    %c27 = arith.constant 27 : index
    %180 = memref.load %arg5[%c27] : memref<144xf32, #tpu.memory_space<smem>>
    %181 = vector.broadcast %180 : f32 to vector<34x34xf32>
    %182 = arith.mulf %48, %181 : vector<34x34xf32>
    %183 = arith.addf %179, %182 : vector<34x34xf32>
    %c28 = arith.constant 28 : index
    %184 = memref.load %arg5[%c28] : memref<144xf32, #tpu.memory_space<smem>>
    %185 = vector.broadcast %184 : f32 to vector<34x34xf32>
    %186 = arith.mulf %49, %185 : vector<34x34xf32>
    %187 = arith.addf %183, %186 : vector<34x34xf32>
    %c29 = arith.constant 29 : index
    %188 = memref.load %arg5[%c29] : memref<144xf32, #tpu.memory_space<smem>>
    %189 = vector.broadcast %188 : f32 to vector<34x34xf32>
    %190 = arith.mulf %50, %189 : vector<34x34xf32>
    %191 = arith.addf %187, %190 : vector<34x34xf32>
    %c30 = arith.constant 30 : index
    %192 = memref.load %arg5[%c30] : memref<144xf32, #tpu.memory_space<smem>>
    %193 = vector.broadcast %192 : f32 to vector<34x34xf32>
    %194 = arith.mulf %51, %193 : vector<34x34xf32>
    %195 = arith.addf %191, %194 : vector<34x34xf32>
    %c31 = arith.constant 31 : index
    %196 = memref.load %arg5[%c31] : memref<144xf32, #tpu.memory_space<smem>>
    %197 = vector.broadcast %196 : f32 to vector<34x34xf32>
    %198 = arith.mulf %52, %197 : vector<34x34xf32>
    %199 = arith.addf %195, %198 : vector<34x34xf32>
    %c32 = arith.constant 32 : index
    %200 = memref.load %arg5[%c32] : memref<144xf32, #tpu.memory_space<smem>>
    %201 = vector.broadcast %200 : f32 to vector<34x34xf32>
    %202 = arith.mulf %53, %201 : vector<34x34xf32>
    %203 = arith.addf %199, %202 : vector<34x34xf32>
    %c33 = arith.constant 33 : index
    %204 = memref.load %arg5[%c33] : memref<144xf32, #tpu.memory_space<smem>>
    %205 = vector.broadcast %204 : f32 to vector<34x34xf32>
    %206 = arith.mulf %54, %205 : vector<34x34xf32>
    %207 = arith.addf %203, %206 : vector<34x34xf32>
    %c34 = arith.constant 34 : index
    %208 = memref.load %arg5[%c34] : memref<144xf32, #tpu.memory_space<smem>>
    %209 = vector.broadcast %208 : f32 to vector<34x34xf32>
    %210 = arith.mulf %55, %209 : vector<34x34xf32>
    %211 = arith.addf %207, %210 : vector<34x34xf32>
    %c35 = arith.constant 35 : index
    %212 = memref.load %arg5[%c35] : memref<144xf32, #tpu.memory_space<smem>>
    %213 = vector.broadcast %212 : f32 to vector<34x34xf32>
    %214 = arith.mulf %56, %213 : vector<34x34xf32>
    %215 = arith.addf %211, %214 : vector<34x34xf32>
    %c0_29 = arith.constant 0 : index
    %216 = memref.load %arg6[%c0_29] : memref<4xf32, #tpu.memory_space<smem>>
    %217 = vector.broadcast %216 : f32 to vector<34x34xf32>
    %218 = arith.addf %215, %217 : vector<34x34xf32>
    %cst_30 = arith.constant 0.000000e+00 : f32
    %219 = vector.broadcast %cst_30 : f32 to vector<34x34xf32>
    %220 = arith.maximumf %218, %219 : vector<34x34xf32>
    %cst_31 = arith.constant 0.000000e+00 : f32
    %221 = vector.broadcast %cst_31 : f32 to vector<34x34xf32>
    %222 = arith.select %72, %220, %221 : vector<34x34xi1>, vector<34x34xf32>
    %c36 = arith.constant 36 : index
    %223 = memref.load %arg5[%c36] : memref<144xf32, #tpu.memory_space<smem>>
    %224 = vector.broadcast %223 : f32 to vector<34x34xf32>
    %225 = arith.mulf %21, %224 : vector<34x34xf32>
    %c37 = arith.constant 37 : index
    %226 = memref.load %arg5[%c37] : memref<144xf32, #tpu.memory_space<smem>>
    %227 = vector.broadcast %226 : f32 to vector<34x34xf32>
    %228 = arith.mulf %22, %227 : vector<34x34xf32>
    %229 = arith.addf %225, %228 : vector<34x34xf32>
    %c38 = arith.constant 38 : index
    %230 = memref.load %arg5[%c38] : memref<144xf32, #tpu.memory_space<smem>>
    %231 = vector.broadcast %230 : f32 to vector<34x34xf32>
    %232 = arith.mulf %23, %231 : vector<34x34xf32>
    %233 = arith.addf %229, %232 : vector<34x34xf32>
    %c39 = arith.constant 39 : index
    %234 = memref.load %arg5[%c39] : memref<144xf32, #tpu.memory_space<smem>>
    %235 = vector.broadcast %234 : f32 to vector<34x34xf32>
    %236 = arith.mulf %24, %235 : vector<34x34xf32>
    %237 = arith.addf %233, %236 : vector<34x34xf32>
    %c40 = arith.constant 40 : index
    %238 = memref.load %arg5[%c40] : memref<144xf32, #tpu.memory_space<smem>>
    %239 = vector.broadcast %238 : f32 to vector<34x34xf32>
    %240 = arith.mulf %25, %239 : vector<34x34xf32>
    %241 = arith.addf %237, %240 : vector<34x34xf32>
    %c41 = arith.constant 41 : index
    %242 = memref.load %arg5[%c41] : memref<144xf32, #tpu.memory_space<smem>>
    %243 = vector.broadcast %242 : f32 to vector<34x34xf32>
    %244 = arith.mulf %26, %243 : vector<34x34xf32>
    %245 = arith.addf %241, %244 : vector<34x34xf32>
    %c42 = arith.constant 42 : index
    %246 = memref.load %arg5[%c42] : memref<144xf32, #tpu.memory_space<smem>>
    %247 = vector.broadcast %246 : f32 to vector<34x34xf32>
    %248 = arith.mulf %27, %247 : vector<34x34xf32>
    %249 = arith.addf %245, %248 : vector<34x34xf32>
    %c43 = arith.constant 43 : index
    %250 = memref.load %arg5[%c43] : memref<144xf32, #tpu.memory_space<smem>>
    %251 = vector.broadcast %250 : f32 to vector<34x34xf32>
    %252 = arith.mulf %28, %251 : vector<34x34xf32>
    %253 = arith.addf %249, %252 : vector<34x34xf32>
    %c44 = arith.constant 44 : index
    %254 = memref.load %arg5[%c44] : memref<144xf32, #tpu.memory_space<smem>>
    %255 = vector.broadcast %254 : f32 to vector<34x34xf32>
    %256 = arith.mulf %29, %255 : vector<34x34xf32>
    %257 = arith.addf %253, %256 : vector<34x34xf32>
    %c45 = arith.constant 45 : index
    %258 = memref.load %arg5[%c45] : memref<144xf32, #tpu.memory_space<smem>>
    %259 = vector.broadcast %258 : f32 to vector<34x34xf32>
    %260 = arith.mulf %30, %259 : vector<34x34xf32>
    %261 = arith.addf %257, %260 : vector<34x34xf32>
    %c46 = arith.constant 46 : index
    %262 = memref.load %arg5[%c46] : memref<144xf32, #tpu.memory_space<smem>>
    %263 = vector.broadcast %262 : f32 to vector<34x34xf32>
    %264 = arith.mulf %31, %263 : vector<34x34xf32>
    %265 = arith.addf %261, %264 : vector<34x34xf32>
    %c47 = arith.constant 47 : index
    %266 = memref.load %arg5[%c47] : memref<144xf32, #tpu.memory_space<smem>>
    %267 = vector.broadcast %266 : f32 to vector<34x34xf32>
    %268 = arith.mulf %32, %267 : vector<34x34xf32>
    %269 = arith.addf %265, %268 : vector<34x34xf32>
    %c48 = arith.constant 48 : index
    %270 = memref.load %arg5[%c48] : memref<144xf32, #tpu.memory_space<smem>>
    %271 = vector.broadcast %270 : f32 to vector<34x34xf32>
    %272 = arith.mulf %33, %271 : vector<34x34xf32>
    %273 = arith.addf %269, %272 : vector<34x34xf32>
    %c49 = arith.constant 49 : index
    %274 = memref.load %arg5[%c49] : memref<144xf32, #tpu.memory_space<smem>>
    %275 = vector.broadcast %274 : f32 to vector<34x34xf32>
    %276 = arith.mulf %34, %275 : vector<34x34xf32>
    %277 = arith.addf %273, %276 : vector<34x34xf32>
    %c50 = arith.constant 50 : index
    %278 = memref.load %arg5[%c50] : memref<144xf32, #tpu.memory_space<smem>>
    %279 = vector.broadcast %278 : f32 to vector<34x34xf32>
    %280 = arith.mulf %35, %279 : vector<34x34xf32>
    %281 = arith.addf %277, %280 : vector<34x34xf32>
    %c51 = arith.constant 51 : index
    %282 = memref.load %arg5[%c51] : memref<144xf32, #tpu.memory_space<smem>>
    %283 = vector.broadcast %282 : f32 to vector<34x34xf32>
    %284 = arith.mulf %36, %283 : vector<34x34xf32>
    %285 = arith.addf %281, %284 : vector<34x34xf32>
    %c52 = arith.constant 52 : index
    %286 = memref.load %arg5[%c52] : memref<144xf32, #tpu.memory_space<smem>>
    %287 = vector.broadcast %286 : f32 to vector<34x34xf32>
    %288 = arith.mulf %37, %287 : vector<34x34xf32>
    %289 = arith.addf %285, %288 : vector<34x34xf32>
    %c53 = arith.constant 53 : index
    %290 = memref.load %arg5[%c53] : memref<144xf32, #tpu.memory_space<smem>>
    %291 = vector.broadcast %290 : f32 to vector<34x34xf32>
    %292 = arith.mulf %38, %291 : vector<34x34xf32>
    %293 = arith.addf %289, %292 : vector<34x34xf32>
    %c54 = arith.constant 54 : index
    %294 = memref.load %arg5[%c54] : memref<144xf32, #tpu.memory_space<smem>>
    %295 = vector.broadcast %294 : f32 to vector<34x34xf32>
    %296 = arith.mulf %39, %295 : vector<34x34xf32>
    %297 = arith.addf %293, %296 : vector<34x34xf32>
    %c55 = arith.constant 55 : index
    %298 = memref.load %arg5[%c55] : memref<144xf32, #tpu.memory_space<smem>>
    %299 = vector.broadcast %298 : f32 to vector<34x34xf32>
    %300 = arith.mulf %40, %299 : vector<34x34xf32>
    %301 = arith.addf %297, %300 : vector<34x34xf32>
    %c56 = arith.constant 56 : index
    %302 = memref.load %arg5[%c56] : memref<144xf32, #tpu.memory_space<smem>>
    %303 = vector.broadcast %302 : f32 to vector<34x34xf32>
    %304 = arith.mulf %41, %303 : vector<34x34xf32>
    %305 = arith.addf %301, %304 : vector<34x34xf32>
    %c57 = arith.constant 57 : index
    %306 = memref.load %arg5[%c57] : memref<144xf32, #tpu.memory_space<smem>>
    %307 = vector.broadcast %306 : f32 to vector<34x34xf32>
    %308 = arith.mulf %42, %307 : vector<34x34xf32>
    %309 = arith.addf %305, %308 : vector<34x34xf32>
    %c58 = arith.constant 58 : index
    %310 = memref.load %arg5[%c58] : memref<144xf32, #tpu.memory_space<smem>>
    %311 = vector.broadcast %310 : f32 to vector<34x34xf32>
    %312 = arith.mulf %43, %311 : vector<34x34xf32>
    %313 = arith.addf %309, %312 : vector<34x34xf32>
    %c59 = arith.constant 59 : index
    %314 = memref.load %arg5[%c59] : memref<144xf32, #tpu.memory_space<smem>>
    %315 = vector.broadcast %314 : f32 to vector<34x34xf32>
    %316 = arith.mulf %44, %315 : vector<34x34xf32>
    %317 = arith.addf %313, %316 : vector<34x34xf32>
    %c60 = arith.constant 60 : index
    %318 = memref.load %arg5[%c60] : memref<144xf32, #tpu.memory_space<smem>>
    %319 = vector.broadcast %318 : f32 to vector<34x34xf32>
    %320 = arith.mulf %45, %319 : vector<34x34xf32>
    %321 = arith.addf %317, %320 : vector<34x34xf32>
    %c61 = arith.constant 61 : index
    %322 = memref.load %arg5[%c61] : memref<144xf32, #tpu.memory_space<smem>>
    %323 = vector.broadcast %322 : f32 to vector<34x34xf32>
    %324 = arith.mulf %46, %323 : vector<34x34xf32>
    %325 = arith.addf %321, %324 : vector<34x34xf32>
    %c62 = arith.constant 62 : index
    %326 = memref.load %arg5[%c62] : memref<144xf32, #tpu.memory_space<smem>>
    %327 = vector.broadcast %326 : f32 to vector<34x34xf32>
    %328 = arith.mulf %47, %327 : vector<34x34xf32>
    %329 = arith.addf %325, %328 : vector<34x34xf32>
    %c63 = arith.constant 63 : index
    %330 = memref.load %arg5[%c63] : memref<144xf32, #tpu.memory_space<smem>>
    %331 = vector.broadcast %330 : f32 to vector<34x34xf32>
    %332 = arith.mulf %48, %331 : vector<34x34xf32>
    %333 = arith.addf %329, %332 : vector<34x34xf32>
    %c64 = arith.constant 64 : index
    %334 = memref.load %arg5[%c64] : memref<144xf32, #tpu.memory_space<smem>>
    %335 = vector.broadcast %334 : f32 to vector<34x34xf32>
    %336 = arith.mulf %49, %335 : vector<34x34xf32>
    %337 = arith.addf %333, %336 : vector<34x34xf32>
    %c65 = arith.constant 65 : index
    %338 = memref.load %arg5[%c65] : memref<144xf32, #tpu.memory_space<smem>>
    %339 = vector.broadcast %338 : f32 to vector<34x34xf32>
    %340 = arith.mulf %50, %339 : vector<34x34xf32>
    %341 = arith.addf %337, %340 : vector<34x34xf32>
    %c66 = arith.constant 66 : index
    %342 = memref.load %arg5[%c66] : memref<144xf32, #tpu.memory_space<smem>>
    %343 = vector.broadcast %342 : f32 to vector<34x34xf32>
    %344 = arith.mulf %51, %343 : vector<34x34xf32>
    %345 = arith.addf %341, %344 : vector<34x34xf32>
    %c67 = arith.constant 67 : index
    %346 = memref.load %arg5[%c67] : memref<144xf32, #tpu.memory_space<smem>>
    %347 = vector.broadcast %346 : f32 to vector<34x34xf32>
    %348 = arith.mulf %52, %347 : vector<34x34xf32>
    %349 = arith.addf %345, %348 : vector<34x34xf32>
    %c68 = arith.constant 68 : index
    %350 = memref.load %arg5[%c68] : memref<144xf32, #tpu.memory_space<smem>>
    %351 = vector.broadcast %350 : f32 to vector<34x34xf32>
    %352 = arith.mulf %53, %351 : vector<34x34xf32>
    %353 = arith.addf %349, %352 : vector<34x34xf32>
    %c69 = arith.constant 69 : index
    %354 = memref.load %arg5[%c69] : memref<144xf32, #tpu.memory_space<smem>>
    %355 = vector.broadcast %354 : f32 to vector<34x34xf32>
    %356 = arith.mulf %54, %355 : vector<34x34xf32>
    %357 = arith.addf %353, %356 : vector<34x34xf32>
    %c70 = arith.constant 70 : index
    %358 = memref.load %arg5[%c70] : memref<144xf32, #tpu.memory_space<smem>>
    %359 = vector.broadcast %358 : f32 to vector<34x34xf32>
    %360 = arith.mulf %55, %359 : vector<34x34xf32>
    %361 = arith.addf %357, %360 : vector<34x34xf32>
    %c71 = arith.constant 71 : index
    %362 = memref.load %arg5[%c71] : memref<144xf32, #tpu.memory_space<smem>>
    %363 = vector.broadcast %362 : f32 to vector<34x34xf32>
    %364 = arith.mulf %56, %363 : vector<34x34xf32>
    %365 = arith.addf %361, %364 : vector<34x34xf32>
    %c1_32 = arith.constant 1 : index
    %366 = memref.load %arg6[%c1_32] : memref<4xf32, #tpu.memory_space<smem>>
    %367 = vector.broadcast %366 : f32 to vector<34x34xf32>
    %368 = arith.addf %365, %367 : vector<34x34xf32>
    %cst_33 = arith.constant 0.000000e+00 : f32
    %369 = vector.broadcast %cst_33 : f32 to vector<34x34xf32>
    %370 = arith.maximumf %368, %369 : vector<34x34xf32>
    %cst_34 = arith.constant 0.000000e+00 : f32
    %371 = vector.broadcast %cst_34 : f32 to vector<34x34xf32>
    %372 = arith.select %72, %370, %371 : vector<34x34xi1>, vector<34x34xf32>
    %c72 = arith.constant 72 : index
    %373 = memref.load %arg5[%c72] : memref<144xf32, #tpu.memory_space<smem>>
    %374 = vector.broadcast %373 : f32 to vector<34x34xf32>
    %375 = arith.mulf %21, %374 : vector<34x34xf32>
    %c73 = arith.constant 73 : index
    %376 = memref.load %arg5[%c73] : memref<144xf32, #tpu.memory_space<smem>>
    %377 = vector.broadcast %376 : f32 to vector<34x34xf32>
    %378 = arith.mulf %22, %377 : vector<34x34xf32>
    %379 = arith.addf %375, %378 : vector<34x34xf32>
    %c74 = arith.constant 74 : index
    %380 = memref.load %arg5[%c74] : memref<144xf32, #tpu.memory_space<smem>>
    %381 = vector.broadcast %380 : f32 to vector<34x34xf32>
    %382 = arith.mulf %23, %381 : vector<34x34xf32>
    %383 = arith.addf %379, %382 : vector<34x34xf32>
    %c75 = arith.constant 75 : index
    %384 = memref.load %arg5[%c75] : memref<144xf32, #tpu.memory_space<smem>>
    %385 = vector.broadcast %384 : f32 to vector<34x34xf32>
    %386 = arith.mulf %24, %385 : vector<34x34xf32>
    %387 = arith.addf %383, %386 : vector<34x34xf32>
    %c76 = arith.constant 76 : index
    %388 = memref.load %arg5[%c76] : memref<144xf32, #tpu.memory_space<smem>>
    %389 = vector.broadcast %388 : f32 to vector<34x34xf32>
    %390 = arith.mulf %25, %389 : vector<34x34xf32>
    %391 = arith.addf %387, %390 : vector<34x34xf32>
    %c77 = arith.constant 77 : index
    %392 = memref.load %arg5[%c77] : memref<144xf32, #tpu.memory_space<smem>>
    %393 = vector.broadcast %392 : f32 to vector<34x34xf32>
    %394 = arith.mulf %26, %393 : vector<34x34xf32>
    %395 = arith.addf %391, %394 : vector<34x34xf32>
    %c78 = arith.constant 78 : index
    %396 = memref.load %arg5[%c78] : memref<144xf32, #tpu.memory_space<smem>>
    %397 = vector.broadcast %396 : f32 to vector<34x34xf32>
    %398 = arith.mulf %27, %397 : vector<34x34xf32>
    %399 = arith.addf %395, %398 : vector<34x34xf32>
    %c79 = arith.constant 79 : index
    %400 = memref.load %arg5[%c79] : memref<144xf32, #tpu.memory_space<smem>>
    %401 = vector.broadcast %400 : f32 to vector<34x34xf32>
    %402 = arith.mulf %28, %401 : vector<34x34xf32>
    %403 = arith.addf %399, %402 : vector<34x34xf32>
    %c80 = arith.constant 80 : index
    %404 = memref.load %arg5[%c80] : memref<144xf32, #tpu.memory_space<smem>>
    %405 = vector.broadcast %404 : f32 to vector<34x34xf32>
    %406 = arith.mulf %29, %405 : vector<34x34xf32>
    %407 = arith.addf %403, %406 : vector<34x34xf32>
    %c81 = arith.constant 81 : index
    %408 = memref.load %arg5[%c81] : memref<144xf32, #tpu.memory_space<smem>>
    %409 = vector.broadcast %408 : f32 to vector<34x34xf32>
    %410 = arith.mulf %30, %409 : vector<34x34xf32>
    %411 = arith.addf %407, %410 : vector<34x34xf32>
    %c82 = arith.constant 82 : index
    %412 = memref.load %arg5[%c82] : memref<144xf32, #tpu.memory_space<smem>>
    %413 = vector.broadcast %412 : f32 to vector<34x34xf32>
    %414 = arith.mulf %31, %413 : vector<34x34xf32>
    %415 = arith.addf %411, %414 : vector<34x34xf32>
    %c83 = arith.constant 83 : index
    %416 = memref.load %arg5[%c83] : memref<144xf32, #tpu.memory_space<smem>>
    %417 = vector.broadcast %416 : f32 to vector<34x34xf32>
    %418 = arith.mulf %32, %417 : vector<34x34xf32>
    %419 = arith.addf %415, %418 : vector<34x34xf32>
    %c84 = arith.constant 84 : index
    %420 = memref.load %arg5[%c84] : memref<144xf32, #tpu.memory_space<smem>>
    %421 = vector.broadcast %420 : f32 to vector<34x34xf32>
    %422 = arith.mulf %33, %421 : vector<34x34xf32>
    %423 = arith.addf %419, %422 : vector<34x34xf32>
    %c85 = arith.constant 85 : index
    %424 = memref.load %arg5[%c85] : memref<144xf32, #tpu.memory_space<smem>>
    %425 = vector.broadcast %424 : f32 to vector<34x34xf32>
    %426 = arith.mulf %34, %425 : vector<34x34xf32>
    %427 = arith.addf %423, %426 : vector<34x34xf32>
    %c86 = arith.constant 86 : index
    %428 = memref.load %arg5[%c86] : memref<144xf32, #tpu.memory_space<smem>>
    %429 = vector.broadcast %428 : f32 to vector<34x34xf32>
    %430 = arith.mulf %35, %429 : vector<34x34xf32>
    %431 = arith.addf %427, %430 : vector<34x34xf32>
    %c87 = arith.constant 87 : index
    %432 = memref.load %arg5[%c87] : memref<144xf32, #tpu.memory_space<smem>>
    %433 = vector.broadcast %432 : f32 to vector<34x34xf32>
    %434 = arith.mulf %36, %433 : vector<34x34xf32>
    %435 = arith.addf %431, %434 : vector<34x34xf32>
    %c88 = arith.constant 88 : index
    %436 = memref.load %arg5[%c88] : memref<144xf32, #tpu.memory_space<smem>>
    %437 = vector.broadcast %436 : f32 to vector<34x34xf32>
    %438 = arith.mulf %37, %437 : vector<34x34xf32>
    %439 = arith.addf %435, %438 : vector<34x34xf32>
    %c89 = arith.constant 89 : index
    %440 = memref.load %arg5[%c89] : memref<144xf32, #tpu.memory_space<smem>>
    %441 = vector.broadcast %440 : f32 to vector<34x34xf32>
    %442 = arith.mulf %38, %441 : vector<34x34xf32>
    %443 = arith.addf %439, %442 : vector<34x34xf32>
    %c90 = arith.constant 90 : index
    %444 = memref.load %arg5[%c90] : memref<144xf32, #tpu.memory_space<smem>>
    %445 = vector.broadcast %444 : f32 to vector<34x34xf32>
    %446 = arith.mulf %39, %445 : vector<34x34xf32>
    %447 = arith.addf %443, %446 : vector<34x34xf32>
    %c91 = arith.constant 91 : index
    %448 = memref.load %arg5[%c91] : memref<144xf32, #tpu.memory_space<smem>>
    %449 = vector.broadcast %448 : f32 to vector<34x34xf32>
    %450 = arith.mulf %40, %449 : vector<34x34xf32>
    %451 = arith.addf %447, %450 : vector<34x34xf32>
    %c92 = arith.constant 92 : index
    %452 = memref.load %arg5[%c92] : memref<144xf32, #tpu.memory_space<smem>>
    %453 = vector.broadcast %452 : f32 to vector<34x34xf32>
    %454 = arith.mulf %41, %453 : vector<34x34xf32>
    %455 = arith.addf %451, %454 : vector<34x34xf32>
    %c93 = arith.constant 93 : index
    %456 = memref.load %arg5[%c93] : memref<144xf32, #tpu.memory_space<smem>>
    %457 = vector.broadcast %456 : f32 to vector<34x34xf32>
    %458 = arith.mulf %42, %457 : vector<34x34xf32>
    %459 = arith.addf %455, %458 : vector<34x34xf32>
    %c94 = arith.constant 94 : index
    %460 = memref.load %arg5[%c94] : memref<144xf32, #tpu.memory_space<smem>>
    %461 = vector.broadcast %460 : f32 to vector<34x34xf32>
    %462 = arith.mulf %43, %461 : vector<34x34xf32>
    %463 = arith.addf %459, %462 : vector<34x34xf32>
    %c95 = arith.constant 95 : index
    %464 = memref.load %arg5[%c95] : memref<144xf32, #tpu.memory_space<smem>>
    %465 = vector.broadcast %464 : f32 to vector<34x34xf32>
    %466 = arith.mulf %44, %465 : vector<34x34xf32>
    %467 = arith.addf %463, %466 : vector<34x34xf32>
    %c96 = arith.constant 96 : index
    %468 = memref.load %arg5[%c96] : memref<144xf32, #tpu.memory_space<smem>>
    %469 = vector.broadcast %468 : f32 to vector<34x34xf32>
    %470 = arith.mulf %45, %469 : vector<34x34xf32>
    %471 = arith.addf %467, %470 : vector<34x34xf32>
    %c97 = arith.constant 97 : index
    %472 = memref.load %arg5[%c97] : memref<144xf32, #tpu.memory_space<smem>>
    %473 = vector.broadcast %472 : f32 to vector<34x34xf32>
    %474 = arith.mulf %46, %473 : vector<34x34xf32>
    %475 = arith.addf %471, %474 : vector<34x34xf32>
    %c98 = arith.constant 98 : index
    %476 = memref.load %arg5[%c98] : memref<144xf32, #tpu.memory_space<smem>>
    %477 = vector.broadcast %476 : f32 to vector<34x34xf32>
    %478 = arith.mulf %47, %477 : vector<34x34xf32>
    %479 = arith.addf %475, %478 : vector<34x34xf32>
    %c99 = arith.constant 99 : index
    %480 = memref.load %arg5[%c99] : memref<144xf32, #tpu.memory_space<smem>>
    %481 = vector.broadcast %480 : f32 to vector<34x34xf32>
    %482 = arith.mulf %48, %481 : vector<34x34xf32>
    %483 = arith.addf %479, %482 : vector<34x34xf32>
    %c100 = arith.constant 100 : index
    %484 = memref.load %arg5[%c100] : memref<144xf32, #tpu.memory_space<smem>>
    %485 = vector.broadcast %484 : f32 to vector<34x34xf32>
    %486 = arith.mulf %49, %485 : vector<34x34xf32>
    %487 = arith.addf %483, %486 : vector<34x34xf32>
    %c101 = arith.constant 101 : index
    %488 = memref.load %arg5[%c101] : memref<144xf32, #tpu.memory_space<smem>>
    %489 = vector.broadcast %488 : f32 to vector<34x34xf32>
    %490 = arith.mulf %50, %489 : vector<34x34xf32>
    %491 = arith.addf %487, %490 : vector<34x34xf32>
    %c102 = arith.constant 102 : index
    %492 = memref.load %arg5[%c102] : memref<144xf32, #tpu.memory_space<smem>>
    %493 = vector.broadcast %492 : f32 to vector<34x34xf32>
    %494 = arith.mulf %51, %493 : vector<34x34xf32>
    %495 = arith.addf %491, %494 : vector<34x34xf32>
    %c103 = arith.constant 103 : index
    %496 = memref.load %arg5[%c103] : memref<144xf32, #tpu.memory_space<smem>>
    %497 = vector.broadcast %496 : f32 to vector<34x34xf32>
    %498 = arith.mulf %52, %497 : vector<34x34xf32>
    %499 = arith.addf %495, %498 : vector<34x34xf32>
    %c104 = arith.constant 104 : index
    %500 = memref.load %arg5[%c104] : memref<144xf32, #tpu.memory_space<smem>>
    %501 = vector.broadcast %500 : f32 to vector<34x34xf32>
    %502 = arith.mulf %53, %501 : vector<34x34xf32>
    %503 = arith.addf %499, %502 : vector<34x34xf32>
    %c105 = arith.constant 105 : index
    %504 = memref.load %arg5[%c105] : memref<144xf32, #tpu.memory_space<smem>>
    %505 = vector.broadcast %504 : f32 to vector<34x34xf32>
    %506 = arith.mulf %54, %505 : vector<34x34xf32>
    %507 = arith.addf %503, %506 : vector<34x34xf32>
    %c106 = arith.constant 106 : index
    %508 = memref.load %arg5[%c106] : memref<144xf32, #tpu.memory_space<smem>>
    %509 = vector.broadcast %508 : f32 to vector<34x34xf32>
    %510 = arith.mulf %55, %509 : vector<34x34xf32>
    %511 = arith.addf %507, %510 : vector<34x34xf32>
    %c107 = arith.constant 107 : index
    %512 = memref.load %arg5[%c107] : memref<144xf32, #tpu.memory_space<smem>>
    %513 = vector.broadcast %512 : f32 to vector<34x34xf32>
    %514 = arith.mulf %56, %513 : vector<34x34xf32>
    %515 = arith.addf %511, %514 : vector<34x34xf32>
    %c2_35 = arith.constant 2 : index
    %516 = memref.load %arg6[%c2_35] : memref<4xf32, #tpu.memory_space<smem>>
    %517 = vector.broadcast %516 : f32 to vector<34x34xf32>
    %518 = arith.addf %515, %517 : vector<34x34xf32>
    %cst_36 = arith.constant 0.000000e+00 : f32
    %519 = vector.broadcast %cst_36 : f32 to vector<34x34xf32>
    %520 = arith.maximumf %518, %519 : vector<34x34xf32>
    %cst_37 = arith.constant 0.000000e+00 : f32
    %521 = vector.broadcast %cst_37 : f32 to vector<34x34xf32>
    %522 = arith.select %72, %520, %521 : vector<34x34xi1>, vector<34x34xf32>
    %c108 = arith.constant 108 : index
    %523 = memref.load %arg5[%c108] : memref<144xf32, #tpu.memory_space<smem>>
    %524 = vector.broadcast %523 : f32 to vector<34x34xf32>
    %525 = arith.mulf %21, %524 : vector<34x34xf32>
    %c109 = arith.constant 109 : index
    %526 = memref.load %arg5[%c109] : memref<144xf32, #tpu.memory_space<smem>>
    %527 = vector.broadcast %526 : f32 to vector<34x34xf32>
    %528 = arith.mulf %22, %527 : vector<34x34xf32>
    %529 = arith.addf %525, %528 : vector<34x34xf32>
    %c110 = arith.constant 110 : index
    %530 = memref.load %arg5[%c110] : memref<144xf32, #tpu.memory_space<smem>>
    %531 = vector.broadcast %530 : f32 to vector<34x34xf32>
    %532 = arith.mulf %23, %531 : vector<34x34xf32>
    %533 = arith.addf %529, %532 : vector<34x34xf32>
    %c111 = arith.constant 111 : index
    %534 = memref.load %arg5[%c111] : memref<144xf32, #tpu.memory_space<smem>>
    %535 = vector.broadcast %534 : f32 to vector<34x34xf32>
    %536 = arith.mulf %24, %535 : vector<34x34xf32>
    %537 = arith.addf %533, %536 : vector<34x34xf32>
    %c112 = arith.constant 112 : index
    %538 = memref.load %arg5[%c112] : memref<144xf32, #tpu.memory_space<smem>>
    %539 = vector.broadcast %538 : f32 to vector<34x34xf32>
    %540 = arith.mulf %25, %539 : vector<34x34xf32>
    %541 = arith.addf %537, %540 : vector<34x34xf32>
    %c113 = arith.constant 113 : index
    %542 = memref.load %arg5[%c113] : memref<144xf32, #tpu.memory_space<smem>>
    %543 = vector.broadcast %542 : f32 to vector<34x34xf32>
    %544 = arith.mulf %26, %543 : vector<34x34xf32>
    %545 = arith.addf %541, %544 : vector<34x34xf32>
    %c114 = arith.constant 114 : index
    %546 = memref.load %arg5[%c114] : memref<144xf32, #tpu.memory_space<smem>>
    %547 = vector.broadcast %546 : f32 to vector<34x34xf32>
    %548 = arith.mulf %27, %547 : vector<34x34xf32>
    %549 = arith.addf %545, %548 : vector<34x34xf32>
    %c115 = arith.constant 115 : index
    %550 = memref.load %arg5[%c115] : memref<144xf32, #tpu.memory_space<smem>>
    %551 = vector.broadcast %550 : f32 to vector<34x34xf32>
    %552 = arith.mulf %28, %551 : vector<34x34xf32>
    %553 = arith.addf %549, %552 : vector<34x34xf32>
    %c116 = arith.constant 116 : index
    %554 = memref.load %arg5[%c116] : memref<144xf32, #tpu.memory_space<smem>>
    %555 = vector.broadcast %554 : f32 to vector<34x34xf32>
    %556 = arith.mulf %29, %555 : vector<34x34xf32>
    %557 = arith.addf %553, %556 : vector<34x34xf32>
    %c117 = arith.constant 117 : index
    %558 = memref.load %arg5[%c117] : memref<144xf32, #tpu.memory_space<smem>>
    %559 = vector.broadcast %558 : f32 to vector<34x34xf32>
    %560 = arith.mulf %30, %559 : vector<34x34xf32>
    %561 = arith.addf %557, %560 : vector<34x34xf32>
    %c118 = arith.constant 118 : index
    %562 = memref.load %arg5[%c118] : memref<144xf32, #tpu.memory_space<smem>>
    %563 = vector.broadcast %562 : f32 to vector<34x34xf32>
    %564 = arith.mulf %31, %563 : vector<34x34xf32>
    %565 = arith.addf %561, %564 : vector<34x34xf32>
    %c119 = arith.constant 119 : index
    %566 = memref.load %arg5[%c119] : memref<144xf32, #tpu.memory_space<smem>>
    %567 = vector.broadcast %566 : f32 to vector<34x34xf32>
    %568 = arith.mulf %32, %567 : vector<34x34xf32>
    %569 = arith.addf %565, %568 : vector<34x34xf32>
    %c120 = arith.constant 120 : index
    %570 = memref.load %arg5[%c120] : memref<144xf32, #tpu.memory_space<smem>>
    %571 = vector.broadcast %570 : f32 to vector<34x34xf32>
    %572 = arith.mulf %33, %571 : vector<34x34xf32>
    %573 = arith.addf %569, %572 : vector<34x34xf32>
    %c121 = arith.constant 121 : index
    %574 = memref.load %arg5[%c121] : memref<144xf32, #tpu.memory_space<smem>>
    %575 = vector.broadcast %574 : f32 to vector<34x34xf32>
    %576 = arith.mulf %34, %575 : vector<34x34xf32>
    %577 = arith.addf %573, %576 : vector<34x34xf32>
    %c122 = arith.constant 122 : index
    %578 = memref.load %arg5[%c122] : memref<144xf32, #tpu.memory_space<smem>>
    %579 = vector.broadcast %578 : f32 to vector<34x34xf32>
    %580 = arith.mulf %35, %579 : vector<34x34xf32>
    %581 = arith.addf %577, %580 : vector<34x34xf32>
    %c123 = arith.constant 123 : index
    %582 = memref.load %arg5[%c123] : memref<144xf32, #tpu.memory_space<smem>>
    %583 = vector.broadcast %582 : f32 to vector<34x34xf32>
    %584 = arith.mulf %36, %583 : vector<34x34xf32>
    %585 = arith.addf %581, %584 : vector<34x34xf32>
    %c124 = arith.constant 124 : index
    %586 = memref.load %arg5[%c124] : memref<144xf32, #tpu.memory_space<smem>>
    %587 = vector.broadcast %586 : f32 to vector<34x34xf32>
    %588 = arith.mulf %37, %587 : vector<34x34xf32>
    %589 = arith.addf %585, %588 : vector<34x34xf32>
    %c125 = arith.constant 125 : index
    %590 = memref.load %arg5[%c125] : memref<144xf32, #tpu.memory_space<smem>>
    %591 = vector.broadcast %590 : f32 to vector<34x34xf32>
    %592 = arith.mulf %38, %591 : vector<34x34xf32>
    %593 = arith.addf %589, %592 : vector<34x34xf32>
    %c126 = arith.constant 126 : index
    %594 = memref.load %arg5[%c126] : memref<144xf32, #tpu.memory_space<smem>>
    %595 = vector.broadcast %594 : f32 to vector<34x34xf32>
    %596 = arith.mulf %39, %595 : vector<34x34xf32>
    %597 = arith.addf %593, %596 : vector<34x34xf32>
    %c127 = arith.constant 127 : index
    %598 = memref.load %arg5[%c127] : memref<144xf32, #tpu.memory_space<smem>>
    %599 = vector.broadcast %598 : f32 to vector<34x34xf32>
    %600 = arith.mulf %40, %599 : vector<34x34xf32>
    %601 = arith.addf %597, %600 : vector<34x34xf32>
    %c128 = arith.constant 128 : index
    %602 = memref.load %arg5[%c128] : memref<144xf32, #tpu.memory_space<smem>>
    %603 = vector.broadcast %602 : f32 to vector<34x34xf32>
    %604 = arith.mulf %41, %603 : vector<34x34xf32>
    %605 = arith.addf %601, %604 : vector<34x34xf32>
    %c129 = arith.constant 129 : index
    %606 = memref.load %arg5[%c129] : memref<144xf32, #tpu.memory_space<smem>>
    %607 = vector.broadcast %606 : f32 to vector<34x34xf32>
    %608 = arith.mulf %42, %607 : vector<34x34xf32>
    %609 = arith.addf %605, %608 : vector<34x34xf32>
    %c130 = arith.constant 130 : index
    %610 = memref.load %arg5[%c130] : memref<144xf32, #tpu.memory_space<smem>>
    %611 = vector.broadcast %610 : f32 to vector<34x34xf32>
    %612 = arith.mulf %43, %611 : vector<34x34xf32>
    %613 = arith.addf %609, %612 : vector<34x34xf32>
    %c131 = arith.constant 131 : index
    %614 = memref.load %arg5[%c131] : memref<144xf32, #tpu.memory_space<smem>>
    %615 = vector.broadcast %614 : f32 to vector<34x34xf32>
    %616 = arith.mulf %44, %615 : vector<34x34xf32>
    %617 = arith.addf %613, %616 : vector<34x34xf32>
    %c132 = arith.constant 132 : index
    %618 = memref.load %arg5[%c132] : memref<144xf32, #tpu.memory_space<smem>>
    %619 = vector.broadcast %618 : f32 to vector<34x34xf32>
    %620 = arith.mulf %45, %619 : vector<34x34xf32>
    %621 = arith.addf %617, %620 : vector<34x34xf32>
    %c133 = arith.constant 133 : index
    %622 = memref.load %arg5[%c133] : memref<144xf32, #tpu.memory_space<smem>>
    %623 = vector.broadcast %622 : f32 to vector<34x34xf32>
    %624 = arith.mulf %46, %623 : vector<34x34xf32>
    %625 = arith.addf %621, %624 : vector<34x34xf32>
    %c134 = arith.constant 134 : index
    %626 = memref.load %arg5[%c134] : memref<144xf32, #tpu.memory_space<smem>>
    %627 = vector.broadcast %626 : f32 to vector<34x34xf32>
    %628 = arith.mulf %47, %627 : vector<34x34xf32>
    %629 = arith.addf %625, %628 : vector<34x34xf32>
    %c135 = arith.constant 135 : index
    %630 = memref.load %arg5[%c135] : memref<144xf32, #tpu.memory_space<smem>>
    %631 = vector.broadcast %630 : f32 to vector<34x34xf32>
    %632 = arith.mulf %48, %631 : vector<34x34xf32>
    %633 = arith.addf %629, %632 : vector<34x34xf32>
    %c136 = arith.constant 136 : index
    %634 = memref.load %arg5[%c136] : memref<144xf32, #tpu.memory_space<smem>>
    %635 = vector.broadcast %634 : f32 to vector<34x34xf32>
    %636 = arith.mulf %49, %635 : vector<34x34xf32>
    %637 = arith.addf %633, %636 : vector<34x34xf32>
    %c137 = arith.constant 137 : index
    %638 = memref.load %arg5[%c137] : memref<144xf32, #tpu.memory_space<smem>>
    %639 = vector.broadcast %638 : f32 to vector<34x34xf32>
    %640 = arith.mulf %50, %639 : vector<34x34xf32>
    %641 = arith.addf %637, %640 : vector<34x34xf32>
    %c138 = arith.constant 138 : index
    %642 = memref.load %arg5[%c138] : memref<144xf32, #tpu.memory_space<smem>>
    %643 = vector.broadcast %642 : f32 to vector<34x34xf32>
    %644 = arith.mulf %51, %643 : vector<34x34xf32>
    %645 = arith.addf %641, %644 : vector<34x34xf32>
    %c139 = arith.constant 139 : index
    %646 = memref.load %arg5[%c139] : memref<144xf32, #tpu.memory_space<smem>>
    %647 = vector.broadcast %646 : f32 to vector<34x34xf32>
    %648 = arith.mulf %52, %647 : vector<34x34xf32>
    %649 = arith.addf %645, %648 : vector<34x34xf32>
    %c140 = arith.constant 140 : index
    %650 = memref.load %arg5[%c140] : memref<144xf32, #tpu.memory_space<smem>>
    %651 = vector.broadcast %650 : f32 to vector<34x34xf32>
    %652 = arith.mulf %53, %651 : vector<34x34xf32>
    %653 = arith.addf %649, %652 : vector<34x34xf32>
    %c141 = arith.constant 141 : index
    %654 = memref.load %arg5[%c141] : memref<144xf32, #tpu.memory_space<smem>>
    %655 = vector.broadcast %654 : f32 to vector<34x34xf32>
    %656 = arith.mulf %54, %655 : vector<34x34xf32>
    %657 = arith.addf %653, %656 : vector<34x34xf32>
    %c142 = arith.constant 142 : index
    %658 = memref.load %arg5[%c142] : memref<144xf32, #tpu.memory_space<smem>>
    %659 = vector.broadcast %658 : f32 to vector<34x34xf32>
    %660 = arith.mulf %55, %659 : vector<34x34xf32>
    %661 = arith.addf %657, %660 : vector<34x34xf32>
    %c143 = arith.constant 143 : index
    %662 = memref.load %arg5[%c143] : memref<144xf32, #tpu.memory_space<smem>>
    %663 = vector.broadcast %662 : f32 to vector<34x34xf32>
    %664 = arith.mulf %56, %663 : vector<34x34xf32>
    %665 = arith.addf %661, %664 : vector<34x34xf32>
    %c3_38 = arith.constant 3 : index
    %666 = memref.load %arg6[%c3_38] : memref<4xf32, #tpu.memory_space<smem>>
    %667 = vector.broadcast %666 : f32 to vector<34x34xf32>
    %668 = arith.addf %665, %667 : vector<34x34xf32>
    %cst_39 = arith.constant 0.000000e+00 : f32
    %669 = vector.broadcast %cst_39 : f32 to vector<34x34xf32>
    %670 = arith.maximumf %668, %669 : vector<34x34xf32>
    %cst_40 = arith.constant 0.000000e+00 : f32
    %671 = vector.broadcast %cst_40 : f32 to vector<34x34xf32>
    %672 = arith.select %72, %670, %671 : vector<34x34xi1>, vector<34x34xf32>
    %673 = vector.extract_strided_slice %222 {offsets = [0, 0], sizes = [32, 32], strides = [1, 1]} : vector<34x34xf32> to vector<32x32xf32>
    %674 = vector.extract_strided_slice %222 {offsets = [0, 1], sizes = [32, 32], strides = [1, 1]} : vector<34x34xf32> to vector<32x32xf32>
    %675 = vector.extract_strided_slice %222 {offsets = [0, 2], sizes = [32, 32], strides = [1, 1]} : vector<34x34xf32> to vector<32x32xf32>
    %676 = vector.extract_strided_slice %222 {offsets = [1, 0], sizes = [32, 32], strides = [1, 1]} : vector<34x34xf32> to vector<32x32xf32>
    %677 = vector.extract_strided_slice %222 {offsets = [1, 1], sizes = [32, 32], strides = [1, 1]} : vector<34x34xf32> to vector<32x32xf32>
    %678 = vector.extract_strided_slice %222 {offsets = [1, 2], sizes = [32, 32], strides = [1, 1]} : vector<34x34xf32> to vector<32x32xf32>
    %679 = vector.extract_strided_slice %222 {offsets = [2, 0], sizes = [32, 32], strides = [1, 1]} : vector<34x34xf32> to vector<32x32xf32>
    %680 = vector.extract_strided_slice %222 {offsets = [2, 1], sizes = [32, 32], strides = [1, 1]} : vector<34x34xf32> to vector<32x32xf32>
    %681 = vector.extract_strided_slice %222 {offsets = [2, 2], sizes = [32, 32], strides = [1, 1]} : vector<34x34xf32> to vector<32x32xf32>
    %682 = vector.extract_strided_slice %372 {offsets = [0, 0], sizes = [32, 32], strides = [1, 1]} : vector<34x34xf32> to vector<32x32xf32>
    %683 = vector.extract_strided_slice %372 {offsets = [0, 1], sizes = [32, 32], strides = [1, 1]} : vector<34x34xf32> to vector<32x32xf32>
    %684 = vector.extract_strided_slice %372 {offsets = [0, 2], sizes = [32, 32], strides = [1, 1]} : vector<34x34xf32> to vector<32x32xf32>
    %685 = vector.extract_strided_slice %372 {offsets = [1, 0], sizes = [32, 32], strides = [1, 1]} : vector<34x34xf32> to vector<32x32xf32>
    %686 = vector.extract_strided_slice %372 {offsets = [1, 1], sizes = [32, 32], strides = [1, 1]} : vector<34x34xf32> to vector<32x32xf32>
    %687 = vector.extract_strided_slice %372 {offsets = [1, 2], sizes = [32, 32], strides = [1, 1]} : vector<34x34xf32> to vector<32x32xf32>
    %688 = vector.extract_strided_slice %372 {offsets = [2, 0], sizes = [32, 32], strides = [1, 1]} : vector<34x34xf32> to vector<32x32xf32>
    %689 = vector.extract_strided_slice %372 {offsets = [2, 1], sizes = [32, 32], strides = [1, 1]} : vector<34x34xf32> to vector<32x32xf32>
    %690 = vector.extract_strided_slice %372 {offsets = [2, 2], sizes = [32, 32], strides = [1, 1]} : vector<34x34xf32> to vector<32x32xf32>
    %691 = vector.extract_strided_slice %522 {offsets = [0, 0], sizes = [32, 32], strides = [1, 1]} : vector<34x34xf32> to vector<32x32xf32>
    %692 = vector.extract_strided_slice %522 {offsets = [0, 1], sizes = [32, 32], strides = [1, 1]} : vector<34x34xf32> to vector<32x32xf32>
    %693 = vector.extract_strided_slice %522 {offsets = [0, 2], sizes = [32, 32], strides = [1, 1]} : vector<34x34xf32> to vector<32x32xf32>
    %694 = vector.extract_strided_slice %522 {offsets = [1, 0], sizes = [32, 32], strides = [1, 1]} : vector<34x34xf32> to vector<32x32xf32>
    %695 = vector.extract_strided_slice %522 {offsets = [1, 1], sizes = [32, 32], strides = [1, 1]} : vector<34x34xf32> to vector<32x32xf32>
    %696 = vector.extract_strided_slice %522 {offsets = [1, 2], sizes = [32, 32], strides = [1, 1]} : vector<34x34xf32> to vector<32x32xf32>
    %697 = vector.extract_strided_slice %522 {offsets = [2, 0], sizes = [32, 32], strides = [1, 1]} : vector<34x34xf32> to vector<32x32xf32>
    %698 = vector.extract_strided_slice %522 {offsets = [2, 1], sizes = [32, 32], strides = [1, 1]} : vector<34x34xf32> to vector<32x32xf32>
    %699 = vector.extract_strided_slice %522 {offsets = [2, 2], sizes = [32, 32], strides = [1, 1]} : vector<34x34xf32> to vector<32x32xf32>
    %700 = vector.extract_strided_slice %672 {offsets = [0, 0], sizes = [32, 32], strides = [1, 1]} : vector<34x34xf32> to vector<32x32xf32>
    %701 = vector.extract_strided_slice %672 {offsets = [0, 1], sizes = [32, 32], strides = [1, 1]} : vector<34x34xf32> to vector<32x32xf32>
    %702 = vector.extract_strided_slice %672 {offsets = [0, 2], sizes = [32, 32], strides = [1, 1]} : vector<34x34xf32> to vector<32x32xf32>
    %703 = vector.extract_strided_slice %672 {offsets = [1, 0], sizes = [32, 32], strides = [1, 1]} : vector<34x34xf32> to vector<32x32xf32>
    %704 = vector.extract_strided_slice %672 {offsets = [1, 1], sizes = [32, 32], strides = [1, 1]} : vector<34x34xf32> to vector<32x32xf32>
    %705 = vector.extract_strided_slice %672 {offsets = [1, 2], sizes = [32, 32], strides = [1, 1]} : vector<34x34xf32> to vector<32x32xf32>
    %706 = vector.extract_strided_slice %672 {offsets = [2, 0], sizes = [32, 32], strides = [1, 1]} : vector<34x34xf32> to vector<32x32xf32>
    %707 = vector.extract_strided_slice %672 {offsets = [2, 1], sizes = [32, 32], strides = [1, 1]} : vector<34x34xf32> to vector<32x32xf32>
    %708 = vector.extract_strided_slice %672 {offsets = [2, 2], sizes = [32, 32], strides = [1, 1]} : vector<34x34xf32> to vector<32x32xf32>
    %c0_41 = arith.constant 0 : index
    %709 = memref.load %arg7[%c0_41] : memref<144xf32, #tpu.memory_space<smem>>
    %710 = vector.broadcast %709 : f32 to vector<32x32xf32>
    %711 = arith.mulf %673, %710 : vector<32x32xf32>
    %c1_42 = arith.constant 1 : index
    %712 = memref.load %arg7[%c1_42] : memref<144xf32, #tpu.memory_space<smem>>
    %713 = vector.broadcast %712 : f32 to vector<32x32xf32>
    %714 = arith.mulf %674, %713 : vector<32x32xf32>
    %715 = arith.addf %711, %714 : vector<32x32xf32>
    %c2_43 = arith.constant 2 : index
    %716 = memref.load %arg7[%c2_43] : memref<144xf32, #tpu.memory_space<smem>>
    %717 = vector.broadcast %716 : f32 to vector<32x32xf32>
    %718 = arith.mulf %675, %717 : vector<32x32xf32>
    %719 = arith.addf %715, %718 : vector<32x32xf32>
    %c3_44 = arith.constant 3 : index
    %720 = memref.load %arg7[%c3_44] : memref<144xf32, #tpu.memory_space<smem>>
    %721 = vector.broadcast %720 : f32 to vector<32x32xf32>
    %722 = arith.mulf %676, %721 : vector<32x32xf32>
    %723 = arith.addf %719, %722 : vector<32x32xf32>
    %c4_45 = arith.constant 4 : index
    %724 = memref.load %arg7[%c4_45] : memref<144xf32, #tpu.memory_space<smem>>
    %725 = vector.broadcast %724 : f32 to vector<32x32xf32>
    %726 = arith.mulf %677, %725 : vector<32x32xf32>
    %727 = arith.addf %723, %726 : vector<32x32xf32>
    %c5_46 = arith.constant 5 : index
    %728 = memref.load %arg7[%c5_46] : memref<144xf32, #tpu.memory_space<smem>>
    %729 = vector.broadcast %728 : f32 to vector<32x32xf32>
    %730 = arith.mulf %678, %729 : vector<32x32xf32>
    %731 = arith.addf %727, %730 : vector<32x32xf32>
    %c6_47 = arith.constant 6 : index
    %732 = memref.load %arg7[%c6_47] : memref<144xf32, #tpu.memory_space<smem>>
    %733 = vector.broadcast %732 : f32 to vector<32x32xf32>
    %734 = arith.mulf %679, %733 : vector<32x32xf32>
    %735 = arith.addf %731, %734 : vector<32x32xf32>
    %c7_48 = arith.constant 7 : index
    %736 = memref.load %arg7[%c7_48] : memref<144xf32, #tpu.memory_space<smem>>
    %737 = vector.broadcast %736 : f32 to vector<32x32xf32>
    %738 = arith.mulf %680, %737 : vector<32x32xf32>
    %739 = arith.addf %735, %738 : vector<32x32xf32>
    %c8_49 = arith.constant 8 : index
    %740 = memref.load %arg7[%c8_49] : memref<144xf32, #tpu.memory_space<smem>>
    %741 = vector.broadcast %740 : f32 to vector<32x32xf32>
    %742 = arith.mulf %681, %741 : vector<32x32xf32>
    %743 = arith.addf %739, %742 : vector<32x32xf32>
    %c9_50 = arith.constant 9 : index
    %744 = memref.load %arg7[%c9_50] : memref<144xf32, #tpu.memory_space<smem>>
    %745 = vector.broadcast %744 : f32 to vector<32x32xf32>
    %746 = arith.mulf %682, %745 : vector<32x32xf32>
    %747 = arith.addf %743, %746 : vector<32x32xf32>
    %c10_51 = arith.constant 10 : index
    %748 = memref.load %arg7[%c10_51] : memref<144xf32, #tpu.memory_space<smem>>
    %749 = vector.broadcast %748 : f32 to vector<32x32xf32>
    %750 = arith.mulf %683, %749 : vector<32x32xf32>
    %751 = arith.addf %747, %750 : vector<32x32xf32>
    %c11_52 = arith.constant 11 : index
    %752 = memref.load %arg7[%c11_52] : memref<144xf32, #tpu.memory_space<smem>>
    %753 = vector.broadcast %752 : f32 to vector<32x32xf32>
    %754 = arith.mulf %684, %753 : vector<32x32xf32>
    %755 = arith.addf %751, %754 : vector<32x32xf32>
    %c12_53 = arith.constant 12 : index
    %756 = memref.load %arg7[%c12_53] : memref<144xf32, #tpu.memory_space<smem>>
    %757 = vector.broadcast %756 : f32 to vector<32x32xf32>
    %758 = arith.mulf %685, %757 : vector<32x32xf32>
    %759 = arith.addf %755, %758 : vector<32x32xf32>
    %c13_54 = arith.constant 13 : index
    %760 = memref.load %arg7[%c13_54] : memref<144xf32, #tpu.memory_space<smem>>
    %761 = vector.broadcast %760 : f32 to vector<32x32xf32>
    %762 = arith.mulf %686, %761 : vector<32x32xf32>
    %763 = arith.addf %759, %762 : vector<32x32xf32>
    %c14_55 = arith.constant 14 : index
    %764 = memref.load %arg7[%c14_55] : memref<144xf32, #tpu.memory_space<smem>>
    %765 = vector.broadcast %764 : f32 to vector<32x32xf32>
    %766 = arith.mulf %687, %765 : vector<32x32xf32>
    %767 = arith.addf %763, %766 : vector<32x32xf32>
    %c15_56 = arith.constant 15 : index
    %768 = memref.load %arg7[%c15_56] : memref<144xf32, #tpu.memory_space<smem>>
    %769 = vector.broadcast %768 : f32 to vector<32x32xf32>
    %770 = arith.mulf %688, %769 : vector<32x32xf32>
    %771 = arith.addf %767, %770 : vector<32x32xf32>
    %c16_57 = arith.constant 16 : index
    %772 = memref.load %arg7[%c16_57] : memref<144xf32, #tpu.memory_space<smem>>
    %773 = vector.broadcast %772 : f32 to vector<32x32xf32>
    %774 = arith.mulf %689, %773 : vector<32x32xf32>
    %775 = arith.addf %771, %774 : vector<32x32xf32>
    %c17_58 = arith.constant 17 : index
    %776 = memref.load %arg7[%c17_58] : memref<144xf32, #tpu.memory_space<smem>>
    %777 = vector.broadcast %776 : f32 to vector<32x32xf32>
    %778 = arith.mulf %690, %777 : vector<32x32xf32>
    %779 = arith.addf %775, %778 : vector<32x32xf32>
    %c18_59 = arith.constant 18 : index
    %780 = memref.load %arg7[%c18_59] : memref<144xf32, #tpu.memory_space<smem>>
    %781 = vector.broadcast %780 : f32 to vector<32x32xf32>
    %782 = arith.mulf %691, %781 : vector<32x32xf32>
    %783 = arith.addf %779, %782 : vector<32x32xf32>
    %c19_60 = arith.constant 19 : index
    %784 = memref.load %arg7[%c19_60] : memref<144xf32, #tpu.memory_space<smem>>
    %785 = vector.broadcast %784 : f32 to vector<32x32xf32>
    %786 = arith.mulf %692, %785 : vector<32x32xf32>
    %787 = arith.addf %783, %786 : vector<32x32xf32>
    %c20_61 = arith.constant 20 : index
    %788 = memref.load %arg7[%c20_61] : memref<144xf32, #tpu.memory_space<smem>>
    %789 = vector.broadcast %788 : f32 to vector<32x32xf32>
    %790 = arith.mulf %693, %789 : vector<32x32xf32>
    %791 = arith.addf %787, %790 : vector<32x32xf32>
    %c21_62 = arith.constant 21 : index
    %792 = memref.load %arg7[%c21_62] : memref<144xf32, #tpu.memory_space<smem>>
    %793 = vector.broadcast %792 : f32 to vector<32x32xf32>
    %794 = arith.mulf %694, %793 : vector<32x32xf32>
    %795 = arith.addf %791, %794 : vector<32x32xf32>
    %c22_63 = arith.constant 22 : index
    %796 = memref.load %arg7[%c22_63] : memref<144xf32, #tpu.memory_space<smem>>
    %797 = vector.broadcast %796 : f32 to vector<32x32xf32>
    %798 = arith.mulf %695, %797 : vector<32x32xf32>
    %799 = arith.addf %795, %798 : vector<32x32xf32>
    %c23_64 = arith.constant 23 : index
    %800 = memref.load %arg7[%c23_64] : memref<144xf32, #tpu.memory_space<smem>>
    %801 = vector.broadcast %800 : f32 to vector<32x32xf32>
    %802 = arith.mulf %696, %801 : vector<32x32xf32>
    %803 = arith.addf %799, %802 : vector<32x32xf32>
    %c24_65 = arith.constant 24 : index
    %804 = memref.load %arg7[%c24_65] : memref<144xf32, #tpu.memory_space<smem>>
    %805 = vector.broadcast %804 : f32 to vector<32x32xf32>
    %806 = arith.mulf %697, %805 : vector<32x32xf32>
    %807 = arith.addf %803, %806 : vector<32x32xf32>
    %c25_66 = arith.constant 25 : index
    %808 = memref.load %arg7[%c25_66] : memref<144xf32, #tpu.memory_space<smem>>
    %809 = vector.broadcast %808 : f32 to vector<32x32xf32>
    %810 = arith.mulf %698, %809 : vector<32x32xf32>
    %811 = arith.addf %807, %810 : vector<32x32xf32>
    %c26_67 = arith.constant 26 : index
    %812 = memref.load %arg7[%c26_67] : memref<144xf32, #tpu.memory_space<smem>>
    %813 = vector.broadcast %812 : f32 to vector<32x32xf32>
    %814 = arith.mulf %699, %813 : vector<32x32xf32>
    %815 = arith.addf %811, %814 : vector<32x32xf32>
    %c27_68 = arith.constant 27 : index
    %816 = memref.load %arg7[%c27_68] : memref<144xf32, #tpu.memory_space<smem>>
    %817 = vector.broadcast %816 : f32 to vector<32x32xf32>
    %818 = arith.mulf %700, %817 : vector<32x32xf32>
    %819 = arith.addf %815, %818 : vector<32x32xf32>
    %c28_69 = arith.constant 28 : index
    %820 = memref.load %arg7[%c28_69] : memref<144xf32, #tpu.memory_space<smem>>
    %821 = vector.broadcast %820 : f32 to vector<32x32xf32>
    %822 = arith.mulf %701, %821 : vector<32x32xf32>
    %823 = arith.addf %819, %822 : vector<32x32xf32>
    %c29_70 = arith.constant 29 : index
    %824 = memref.load %arg7[%c29_70] : memref<144xf32, #tpu.memory_space<smem>>
    %825 = vector.broadcast %824 : f32 to vector<32x32xf32>
    %826 = arith.mulf %702, %825 : vector<32x32xf32>
    %827 = arith.addf %823, %826 : vector<32x32xf32>
    %c30_71 = arith.constant 30 : index
    %828 = memref.load %arg7[%c30_71] : memref<144xf32, #tpu.memory_space<smem>>
    %829 = vector.broadcast %828 : f32 to vector<32x32xf32>
    %830 = arith.mulf %703, %829 : vector<32x32xf32>
    %831 = arith.addf %827, %830 : vector<32x32xf32>
    %c31_72 = arith.constant 31 : index
    %832 = memref.load %arg7[%c31_72] : memref<144xf32, #tpu.memory_space<smem>>
    %833 = vector.broadcast %832 : f32 to vector<32x32xf32>
    %834 = arith.mulf %704, %833 : vector<32x32xf32>
    %835 = arith.addf %831, %834 : vector<32x32xf32>
    %c32_73 = arith.constant 32 : index
    %836 = memref.load %arg7[%c32_73] : memref<144xf32, #tpu.memory_space<smem>>
    %837 = vector.broadcast %836 : f32 to vector<32x32xf32>
    %838 = arith.mulf %705, %837 : vector<32x32xf32>
    %839 = arith.addf %835, %838 : vector<32x32xf32>
    %c33_74 = arith.constant 33 : index
    %840 = memref.load %arg7[%c33_74] : memref<144xf32, #tpu.memory_space<smem>>
    %841 = vector.broadcast %840 : f32 to vector<32x32xf32>
    %842 = arith.mulf %706, %841 : vector<32x32xf32>
    %843 = arith.addf %839, %842 : vector<32x32xf32>
    %c34_75 = arith.constant 34 : index
    %844 = memref.load %arg7[%c34_75] : memref<144xf32, #tpu.memory_space<smem>>
    %845 = vector.broadcast %844 : f32 to vector<32x32xf32>
    %846 = arith.mulf %707, %845 : vector<32x32xf32>
    %847 = arith.addf %843, %846 : vector<32x32xf32>
    %c35_76 = arith.constant 35 : index
    %848 = memref.load %arg7[%c35_76] : memref<144xf32, #tpu.memory_space<smem>>
    %849 = vector.broadcast %848 : f32 to vector<32x32xf32>
    %850 = arith.mulf %708, %849 : vector<32x32xf32>
    %851 = arith.addf %847, %850 : vector<32x32xf32>
    %c0_77 = arith.constant 0 : index
    %852 = memref.load %arg8[%c0_77] : memref<4xf32, #tpu.memory_space<smem>>
    %853 = vector.broadcast %852 : f32 to vector<32x32xf32>
    %854 = arith.addf %851, %853 : vector<32x32xf32>
    %cst_78 = arith.constant 0.000000e+00 : f32
    %855 = vector.broadcast %cst_78 : f32 to vector<32x32xf32>
    %856 = arith.maximumf %854, %855 : vector<32x32xf32>
    %c0_79 = arith.constant 0 : index
    %c0_80 = arith.constant 0 : index
    %c0_81 = arith.constant 0 : index
    %c0_82 = arith.constant 0 : index
    %857 = vector.load %arg9[%c0_79, %c0_80, %c0_81, %c0_82] : memref<1x4x32x32xf32, #tpu.memory_space<vmem>>, vector<1x1x32x32xf32>
    %858 = vector.shape_cast %857 : vector<1x1x32x32xf32> to vector<32x32xf32>
    %859 = vector.shape_cast %856 : vector<32x32xf32> to vector<1x1x32x32xf32>
    tpu.vector_store %arg9[%c0_79, %c0_80, %c0_81, %c0_82], %859 {strides = array<i32>} : memref<1x4x32x32xf32, #tpu.memory_space<vmem>>, vector<1x1x32x32xf32>,
    %c36_83 = arith.constant 36 : index
    %860 = memref.load %arg7[%c36_83] : memref<144xf32, #tpu.memory_space<smem>>
    %861 = vector.broadcast %860 : f32 to vector<32x32xf32>
    %862 = arith.mulf %673, %861 : vector<32x32xf32>
    %c37_84 = arith.constant 37 : index
    %863 = memref.load %arg7[%c37_84] : memref<144xf32, #tpu.memory_space<smem>>
    %864 = vector.broadcast %863 : f32 to vector<32x32xf32>
    %865 = arith.mulf %674, %864 : vector<32x32xf32>
    %866 = arith.addf %862, %865 : vector<32x32xf32>
    %c38_85 = arith.constant 38 : index
    %867 = memref.load %arg7[%c38_85] : memref<144xf32, #tpu.memory_space<smem>>
    %868 = vector.broadcast %867 : f32 to vector<32x32xf32>
    %869 = arith.mulf %675, %868 : vector<32x32xf32>
    %870 = arith.addf %866, %869 : vector<32x32xf32>
    %c39_86 = arith.constant 39 : index
    %871 = memref.load %arg7[%c39_86] : memref<144xf32, #tpu.memory_space<smem>>
    %872 = vector.broadcast %871 : f32 to vector<32x32xf32>
    %873 = arith.mulf %676, %872 : vector<32x32xf32>
    %874 = arith.addf %870, %873 : vector<32x32xf32>
    %c40_87 = arith.constant 40 : index
    %875 = memref.load %arg7[%c40_87] : memref<144xf32, #tpu.memory_space<smem>>
    %876 = vector.broadcast %875 : f32 to vector<32x32xf32>
    %877 = arith.mulf %677, %876 : vector<32x32xf32>
    %878 = arith.addf %874, %877 : vector<32x32xf32>
    %c41_88 = arith.constant 41 : index
    %879 = memref.load %arg7[%c41_88] : memref<144xf32, #tpu.memory_space<smem>>
    %880 = vector.broadcast %879 : f32 to vector<32x32xf32>
    %881 = arith.mulf %678, %880 : vector<32x32xf32>
    %882 = arith.addf %878, %881 : vector<32x32xf32>
    %c42_89 = arith.constant 42 : index
    %883 = memref.load %arg7[%c42_89] : memref<144xf32, #tpu.memory_space<smem>>
    %884 = vector.broadcast %883 : f32 to vector<32x32xf32>
    %885 = arith.mulf %679, %884 : vector<32x32xf32>
    %886 = arith.addf %882, %885 : vector<32x32xf32>
    %c43_90 = arith.constant 43 : index
    %887 = memref.load %arg7[%c43_90] : memref<144xf32, #tpu.memory_space<smem>>
    %888 = vector.broadcast %887 : f32 to vector<32x32xf32>
    %889 = arith.mulf %680, %888 : vector<32x32xf32>
    %890 = arith.addf %886, %889 : vector<32x32xf32>
    %c44_91 = arith.constant 44 : index
    %891 = memref.load %arg7[%c44_91] : memref<144xf32, #tpu.memory_space<smem>>
    %892 = vector.broadcast %891 : f32 to vector<32x32xf32>
    %893 = arith.mulf %681, %892 : vector<32x32xf32>
    %894 = arith.addf %890, %893 : vector<32x32xf32>
    %c45_92 = arith.constant 45 : index
    %895 = memref.load %arg7[%c45_92] : memref<144xf32, #tpu.memory_space<smem>>
    %896 = vector.broadcast %895 : f32 to vector<32x32xf32>
    %897 = arith.mulf %682, %896 : vector<32x32xf32>
    %898 = arith.addf %894, %897 : vector<32x32xf32>
    %c46_93 = arith.constant 46 : index
    %899 = memref.load %arg7[%c46_93] : memref<144xf32, #tpu.memory_space<smem>>
    %900 = vector.broadcast %899 : f32 to vector<32x32xf32>
    %901 = arith.mulf %683, %900 : vector<32x32xf32>
    %902 = arith.addf %898, %901 : vector<32x32xf32>
    %c47_94 = arith.constant 47 : index
    %903 = memref.load %arg7[%c47_94] : memref<144xf32, #tpu.memory_space<smem>>
    %904 = vector.broadcast %903 : f32 to vector<32x32xf32>
    %905 = arith.mulf %684, %904 : vector<32x32xf32>
    %906 = arith.addf %902, %905 : vector<32x32xf32>
    %c48_95 = arith.constant 48 : index
    %907 = memref.load %arg7[%c48_95] : memref<144xf32, #tpu.memory_space<smem>>
    %908 = vector.broadcast %907 : f32 to vector<32x32xf32>
    %909 = arith.mulf %685, %908 : vector<32x32xf32>
    %910 = arith.addf %906, %909 : vector<32x32xf32>
    %c49_96 = arith.constant 49 : index
    %911 = memref.load %arg7[%c49_96] : memref<144xf32, #tpu.memory_space<smem>>
    %912 = vector.broadcast %911 : f32 to vector<32x32xf32>
    %913 = arith.mulf %686, %912 : vector<32x32xf32>
    %914 = arith.addf %910, %913 : vector<32x32xf32>
    %c50_97 = arith.constant 50 : index
    %915 = memref.load %arg7[%c50_97] : memref<144xf32, #tpu.memory_space<smem>>
    %916 = vector.broadcast %915 : f32 to vector<32x32xf32>
    %917 = arith.mulf %687, %916 : vector<32x32xf32>
    %918 = arith.addf %914, %917 : vector<32x32xf32>
    %c51_98 = arith.constant 51 : index
    %919 = memref.load %arg7[%c51_98] : memref<144xf32, #tpu.memory_space<smem>>
    %920 = vector.broadcast %919 : f32 to vector<32x32xf32>
    %921 = arith.mulf %688, %920 : vector<32x32xf32>
    %922 = arith.addf %918, %921 : vector<32x32xf32>
    %c52_99 = arith.constant 52 : index
    %923 = memref.load %arg7[%c52_99] : memref<144xf32, #tpu.memory_space<smem>>
    %924 = vector.broadcast %923 : f32 to vector<32x32xf32>
    %925 = arith.mulf %689, %924 : vector<32x32xf32>
    %926 = arith.addf %922, %925 : vector<32x32xf32>
    %c53_100 = arith.constant 53 : index
    %927 = memref.load %arg7[%c53_100] : memref<144xf32, #tpu.memory_space<smem>>
    %928 = vector.broadcast %927 : f32 to vector<32x32xf32>
    %929 = arith.mulf %690, %928 : vector<32x32xf32>
    %930 = arith.addf %926, %929 : vector<32x32xf32>
    %c54_101 = arith.constant 54 : index
    %931 = memref.load %arg7[%c54_101] : memref<144xf32, #tpu.memory_space<smem>>
    %932 = vector.broadcast %931 : f32 to vector<32x32xf32>
    %933 = arith.mulf %691, %932 : vector<32x32xf32>
    %934 = arith.addf %930, %933 : vector<32x32xf32>
    %c55_102 = arith.constant 55 : index
    %935 = memref.load %arg7[%c55_102] : memref<144xf32, #tpu.memory_space<smem>>
    %936 = vector.broadcast %935 : f32 to vector<32x32xf32>
    %937 = arith.mulf %692, %936 : vector<32x32xf32>
    %938 = arith.addf %934, %937 : vector<32x32xf32>
    %c56_103 = arith.constant 56 : index
    %939 = memref.load %arg7[%c56_103] : memref<144xf32, #tpu.memory_space<smem>>
    %940 = vector.broadcast %939 : f32 to vector<32x32xf32>
    %941 = arith.mulf %693, %940 : vector<32x32xf32>
    %942 = arith.addf %938, %941 : vector<32x32xf32>
    %c57_104 = arith.constant 57 : index
    %943 = memref.load %arg7[%c57_104] : memref<144xf32, #tpu.memory_space<smem>>
    %944 = vector.broadcast %943 : f32 to vector<32x32xf32>
    %945 = arith.mulf %694, %944 : vector<32x32xf32>
    %946 = arith.addf %942, %945 : vector<32x32xf32>
    %c58_105 = arith.constant 58 : index
    %947 = memref.load %arg7[%c58_105] : memref<144xf32, #tpu.memory_space<smem>>
    %948 = vector.broadcast %947 : f32 to vector<32x32xf32>
    %949 = arith.mulf %695, %948 : vector<32x32xf32>
    %950 = arith.addf %946, %949 : vector<32x32xf32>
    %c59_106 = arith.constant 59 : index
    %951 = memref.load %arg7[%c59_106] : memref<144xf32, #tpu.memory_space<smem>>
    %952 = vector.broadcast %951 : f32 to vector<32x32xf32>
    %953 = arith.mulf %696, %952 : vector<32x32xf32>
    %954 = arith.addf %950, %953 : vector<32x32xf32>
    %c60_107 = arith.constant 60 : index
    %955 = memref.load %arg7[%c60_107] : memref<144xf32, #tpu.memory_space<smem>>
    %956 = vector.broadcast %955 : f32 to vector<32x32xf32>
    %957 = arith.mulf %697, %956 : vector<32x32xf32>
    %958 = arith.addf %954, %957 : vector<32x32xf32>
    %c61_108 = arith.constant 61 : index
    %959 = memref.load %arg7[%c61_108] : memref<144xf32, #tpu.memory_space<smem>>
    %960 = vector.broadcast %959 : f32 to vector<32x32xf32>
    %961 = arith.mulf %698, %960 : vector<32x32xf32>
    %962 = arith.addf %958, %961 : vector<32x32xf32>
    %c62_109 = arith.constant 62 : index
    %963 = memref.load %arg7[%c62_109] : memref<144xf32, #tpu.memory_space<smem>>
    %964 = vector.broadcast %963 : f32 to vector<32x32xf32>
    %965 = arith.mulf %699, %964 : vector<32x32xf32>
    %966 = arith.addf %962, %965 : vector<32x32xf32>
    %c63_110 = arith.constant 63 : index
    %967 = memref.load %arg7[%c63_110] : memref<144xf32, #tpu.memory_space<smem>>
    %968 = vector.broadcast %967 : f32 to vector<32x32xf32>
    %969 = arith.mulf %700, %968 : vector<32x32xf32>
    %970 = arith.addf %966, %969 : vector<32x32xf32>
    %c64_111 = arith.constant 64 : index
    %971 = memref.load %arg7[%c64_111] : memref<144xf32, #tpu.memory_space<smem>>
    %972 = vector.broadcast %971 : f32 to vector<32x32xf32>
    %973 = arith.mulf %701, %972 : vector<32x32xf32>
    %974 = arith.addf %970, %973 : vector<32x32xf32>
    %c65_112 = arith.constant 65 : index
    %975 = memref.load %arg7[%c65_112] : memref<144xf32, #tpu.memory_space<smem>>
    %976 = vector.broadcast %975 : f32 to vector<32x32xf32>
    %977 = arith.mulf %702, %976 : vector<32x32xf32>
    %978 = arith.addf %974, %977 : vector<32x32xf32>
    %c66_113 = arith.constant 66 : index
    %979 = memref.load %arg7[%c66_113] : memref<144xf32, #tpu.memory_space<smem>>
    %980 = vector.broadcast %979 : f32 to vector<32x32xf32>
    %981 = arith.mulf %703, %980 : vector<32x32xf32>
    %982 = arith.addf %978, %981 : vector<32x32xf32>
    %c67_114 = arith.constant 67 : index
    %983 = memref.load %arg7[%c67_114] : memref<144xf32, #tpu.memory_space<smem>>
    %984 = vector.broadcast %983 : f32 to vector<32x32xf32>
    %985 = arith.mulf %704, %984 : vector<32x32xf32>
    %986 = arith.addf %982, %985 : vector<32x32xf32>
    %c68_115 = arith.constant 68 : index
    %987 = memref.load %arg7[%c68_115] : memref<144xf32, #tpu.memory_space<smem>>
    %988 = vector.broadcast %987 : f32 to vector<32x32xf32>
    %989 = arith.mulf %705, %988 : vector<32x32xf32>
    %990 = arith.addf %986, %989 : vector<32x32xf32>
    %c69_116 = arith.constant 69 : index
    %991 = memref.load %arg7[%c69_116] : memref<144xf32, #tpu.memory_space<smem>>
    %992 = vector.broadcast %991 : f32 to vector<32x32xf32>
    %993 = arith.mulf %706, %992 : vector<32x32xf32>
    %994 = arith.addf %990, %993 : vector<32x32xf32>
    %c70_117 = arith.constant 70 : index
    %995 = memref.load %arg7[%c70_117] : memref<144xf32, #tpu.memory_space<smem>>
    %996 = vector.broadcast %995 : f32 to vector<32x32xf32>
    %997 = arith.mulf %707, %996 : vector<32x32xf32>
    %998 = arith.addf %994, %997 : vector<32x32xf32>
    %c71_118 = arith.constant 71 : index
    %999 = memref.load %arg7[%c71_118] : memref<144xf32, #tpu.memory_space<smem>>
    %1000 = vector.broadcast %999 : f32 to vector<32x32xf32>
    %1001 = arith.mulf %708, %1000 : vector<32x32xf32>
    %1002 = arith.addf %998, %1001 : vector<32x32xf32>
    %c1_119 = arith.constant 1 : index
    %1003 = memref.load %arg8[%c1_119] : memref<4xf32, #tpu.memory_space<smem>>
    %1004 = vector.broadcast %1003 : f32 to vector<32x32xf32>
    %1005 = arith.addf %1002, %1004 : vector<32x32xf32>
    %cst_120 = arith.constant 0.000000e+00 : f32
    %1006 = vector.broadcast %cst_120 : f32 to vector<32x32xf32>
    %1007 = arith.maximumf %1005, %1006 : vector<32x32xf32>
    %c0_121 = arith.constant 0 : index
    %c1_122 = arith.constant 1 : index
    %c0_123 = arith.constant 0 : index
    %c0_124 = arith.constant 0 : index
    %1008 = vector.load %arg9[%c0_121, %c1_122, %c0_123, %c0_124] : memref<1x4x32x32xf32, #tpu.memory_space<vmem>>, vector<1x1x32x32xf32>
    %1009 = vector.shape_cast %1008 : vector<1x1x32x32xf32> to vector<32x32xf32>
    %1010 = vector.shape_cast %1007 : vector<32x32xf32> to vector<1x1x32x32xf32>
    tpu.vector_store %arg9[%c0_121, %c1_122, %c0_123, %c0_124], %1010 {strides = array<i32>} : memref<1x4x32x32xf32, #tpu.memory_space<vmem>>, vector<1x1x32x32xf32>,
    %c72_125 = arith.constant 72 : index
    %1011 = memref.load %arg7[%c72_125] : memref<144xf32, #tpu.memory_space<smem>>
    %1012 = vector.broadcast %1011 : f32 to vector<32x32xf32>
    %1013 = arith.mulf %673, %1012 : vector<32x32xf32>
    %c73_126 = arith.constant 73 : index
    %1014 = memref.load %arg7[%c73_126] : memref<144xf32, #tpu.memory_space<smem>>
    %1015 = vector.broadcast %1014 : f32 to vector<32x32xf32>
    %1016 = arith.mulf %674, %1015 : vector<32x32xf32>
    %1017 = arith.addf %1013, %1016 : vector<32x32xf32>
    %c74_127 = arith.constant 74 : index
    %1018 = memref.load %arg7[%c74_127] : memref<144xf32, #tpu.memory_space<smem>>
    %1019 = vector.broadcast %1018 : f32 to vector<32x32xf32>
    %1020 = arith.mulf %675, %1019 : vector<32x32xf32>
    %1021 = arith.addf %1017, %1020 : vector<32x32xf32>
    %c75_128 = arith.constant 75 : index
    %1022 = memref.load %arg7[%c75_128] : memref<144xf32, #tpu.memory_space<smem>>
    %1023 = vector.broadcast %1022 : f32 to vector<32x32xf32>
    %1024 = arith.mulf %676, %1023 : vector<32x32xf32>
    %1025 = arith.addf %1021, %1024 : vector<32x32xf32>
    %c76_129 = arith.constant 76 : index
    %1026 = memref.load %arg7[%c76_129] : memref<144xf32, #tpu.memory_space<smem>>
    %1027 = vector.broadcast %1026 : f32 to vector<32x32xf32>
    %1028 = arith.mulf %677, %1027 : vector<32x32xf32>
    %1029 = arith.addf %1025, %1028 : vector<32x32xf32>
    %c77_130 = arith.constant 77 : index
    %1030 = memref.load %arg7[%c77_130] : memref<144xf32, #tpu.memory_space<smem>>
    %1031 = vector.broadcast %1030 : f32 to vector<32x32xf32>
    %1032 = arith.mulf %678, %1031 : vector<32x32xf32>
    %1033 = arith.addf %1029, %1032 : vector<32x32xf32>
    %c78_131 = arith.constant 78 : index
    %1034 = memref.load %arg7[%c78_131] : memref<144xf32, #tpu.memory_space<smem>>
    %1035 = vector.broadcast %1034 : f32 to vector<32x32xf32>
    %1036 = arith.mulf %679, %1035 : vector<32x32xf32>
    %1037 = arith.addf %1033, %1036 : vector<32x32xf32>
    %c79_132 = arith.constant 79 : index
    %1038 = memref.load %arg7[%c79_132] : memref<144xf32, #tpu.memory_space<smem>>
    %1039 = vector.broadcast %1038 : f32 to vector<32x32xf32>
    %1040 = arith.mulf %680, %1039 : vector<32x32xf32>
    %1041 = arith.addf %1037, %1040 : vector<32x32xf32>
    %c80_133 = arith.constant 80 : index
    %1042 = memref.load %arg7[%c80_133] : memref<144xf32, #tpu.memory_space<smem>>
    %1043 = vector.broadcast %1042 : f32 to vector<32x32xf32>
    %1044 = arith.mulf %681, %1043 : vector<32x32xf32>
    %1045 = arith.addf %1041, %1044 : vector<32x32xf32>
    %c81_134 = arith.constant 81 : index
    %1046 = memref.load %arg7[%c81_134] : memref<144xf32, #tpu.memory_space<smem>>
    %1047 = vector.broadcast %1046 : f32 to vector<32x32xf32>
    %1048 = arith.mulf %682, %1047 : vector<32x32xf32>
    %1049 = arith.addf %1045, %1048 : vector<32x32xf32>
    %c82_135 = arith.constant 82 : index
    %1050 = memref.load %arg7[%c82_135] : memref<144xf32, #tpu.memory_space<smem>>
    %1051 = vector.broadcast %1050 : f32 to vector<32x32xf32>
    %1052 = arith.mulf %683, %1051 : vector<32x32xf32>
    %1053 = arith.addf %1049, %1052 : vector<32x32xf32>
    %c83_136 = arith.constant 83 : index
    %1054 = memref.load %arg7[%c83_136] : memref<144xf32, #tpu.memory_space<smem>>
    %1055 = vector.broadcast %1054 : f32 to vector<32x32xf32>
    %1056 = arith.mulf %684, %1055 : vector<32x32xf32>
    %1057 = arith.addf %1053, %1056 : vector<32x32xf32>
    %c84_137 = arith.constant 84 : index
    %1058 = memref.load %arg7[%c84_137] : memref<144xf32, #tpu.memory_space<smem>>
    %1059 = vector.broadcast %1058 : f32 to vector<32x32xf32>
    %1060 = arith.mulf %685, %1059 : vector<32x32xf32>
    %1061 = arith.addf %1057, %1060 : vector<32x32xf32>
    %c85_138 = arith.constant 85 : index
    %1062 = memref.load %arg7[%c85_138] : memref<144xf32, #tpu.memory_space<smem>>
    %1063 = vector.broadcast %1062 : f32 to vector<32x32xf32>
    %1064 = arith.mulf %686, %1063 : vector<32x32xf32>
    %1065 = arith.addf %1061, %1064 : vector<32x32xf32>
    %c86_139 = arith.constant 86 : index
    %1066 = memref.load %arg7[%c86_139] : memref<144xf32, #tpu.memory_space<smem>>
    %1067 = vector.broadcast %1066 : f32 to vector<32x32xf32>
    %1068 = arith.mulf %687, %1067 : vector<32x32xf32>
    %1069 = arith.addf %1065, %1068 : vector<32x32xf32>
    %c87_140 = arith.constant 87 : index
    %1070 = memref.load %arg7[%c87_140] : memref<144xf32, #tpu.memory_space<smem>>
    %1071 = vector.broadcast %1070 : f32 to vector<32x32xf32>
    %1072 = arith.mulf %688, %1071 : vector<32x32xf32>
    %1073 = arith.addf %1069, %1072 : vector<32x32xf32>
    %c88_141 = arith.constant 88 : index
    %1074 = memref.load %arg7[%c88_141] : memref<144xf32, #tpu.memory_space<smem>>
    %1075 = vector.broadcast %1074 : f32 to vector<32x32xf32>
    %1076 = arith.mulf %689, %1075 : vector<32x32xf32>
    %1077 = arith.addf %1073, %1076 : vector<32x32xf32>
    %c89_142 = arith.constant 89 : index
    %1078 = memref.load %arg7[%c89_142] : memref<144xf32, #tpu.memory_space<smem>>
    %1079 = vector.broadcast %1078 : f32 to vector<32x32xf32>
    %1080 = arith.mulf %690, %1079 : vector<32x32xf32>
    %1081 = arith.addf %1077, %1080 : vector<32x32xf32>
    %c90_143 = arith.constant 90 : index
    %1082 = memref.load %arg7[%c90_143] : memref<144xf32, #tpu.memory_space<smem>>
    %1083 = vector.broadcast %1082 : f32 to vector<32x32xf32>
    %1084 = arith.mulf %691, %1083 : vector<32x32xf32>
    %1085 = arith.addf %1081, %1084 : vector<32x32xf32>
    %c91_144 = arith.constant 91 : index
    %1086 = memref.load %arg7[%c91_144] : memref<144xf32, #tpu.memory_space<smem>>
    %1087 = vector.broadcast %1086 : f32 to vector<32x32xf32>
    %1088 = arith.mulf %692, %1087 : vector<32x32xf32>
    %1089 = arith.addf %1085, %1088 : vector<32x32xf32>
    %c92_145 = arith.constant 92 : index
    %1090 = memref.load %arg7[%c92_145] : memref<144xf32, #tpu.memory_space<smem>>
    %1091 = vector.broadcast %1090 : f32 to vector<32x32xf32>
    %1092 = arith.mulf %693, %1091 : vector<32x32xf32>
    %1093 = arith.addf %1089, %1092 : vector<32x32xf32>
    %c93_146 = arith.constant 93 : index
    %1094 = memref.load %arg7[%c93_146] : memref<144xf32, #tpu.memory_space<smem>>
    %1095 = vector.broadcast %1094 : f32 to vector<32x32xf32>
    %1096 = arith.mulf %694, %1095 : vector<32x32xf32>
    %1097 = arith.addf %1093, %1096 : vector<32x32xf32>
    %c94_147 = arith.constant 94 : index
    %1098 = memref.load %arg7[%c94_147] : memref<144xf32, #tpu.memory_space<smem>>
    %1099 = vector.broadcast %1098 : f32 to vector<32x32xf32>
    %1100 = arith.mulf %695, %1099 : vector<32x32xf32>
    %1101 = arith.addf %1097, %1100 : vector<32x32xf32>
    %c95_148 = arith.constant 95 : index
    %1102 = memref.load %arg7[%c95_148] : memref<144xf32, #tpu.memory_space<smem>>
    %1103 = vector.broadcast %1102 : f32 to vector<32x32xf32>
    %1104 = arith.mulf %696, %1103 : vector<32x32xf32>
    %1105 = arith.addf %1101, %1104 : vector<32x32xf32>
    %c96_149 = arith.constant 96 : index
    %1106 = memref.load %arg7[%c96_149] : memref<144xf32, #tpu.memory_space<smem>>
    %1107 = vector.broadcast %1106 : f32 to vector<32x32xf32>
    %1108 = arith.mulf %697, %1107 : vector<32x32xf32>
    %1109 = arith.addf %1105, %1108 : vector<32x32xf32>
    %c97_150 = arith.constant 97 : index
    %1110 = memref.load %arg7[%c97_150] : memref<144xf32, #tpu.memory_space<smem>>
    %1111 = vector.broadcast %1110 : f32 to vector<32x32xf32>
    %1112 = arith.mulf %698, %1111 : vector<32x32xf32>
    %1113 = arith.addf %1109, %1112 : vector<32x32xf32>
    %c98_151 = arith.constant 98 : index
    %1114 = memref.load %arg7[%c98_151] : memref<144xf32, #tpu.memory_space<smem>>
    %1115 = vector.broadcast %1114 : f32 to vector<32x32xf32>
    %1116 = arith.mulf %699, %1115 : vector<32x32xf32>
    %1117 = arith.addf %1113, %1116 : vector<32x32xf32>
    %c99_152 = arith.constant 99 : index
    %1118 = memref.load %arg7[%c99_152] : memref<144xf32, #tpu.memory_space<smem>>
    %1119 = vector.broadcast %1118 : f32 to vector<32x32xf32>
    %1120 = arith.mulf %700, %1119 : vector<32x32xf32>
    %1121 = arith.addf %1117, %1120 : vector<32x32xf32>
    %c100_153 = arith.constant 100 : index
    %1122 = memref.load %arg7[%c100_153] : memref<144xf32, #tpu.memory_space<smem>>
    %1123 = vector.broadcast %1122 : f32 to vector<32x32xf32>
    %1124 = arith.mulf %701, %1123 : vector<32x32xf32>
    %1125 = arith.addf %1121, %1124 : vector<32x32xf32>
    %c101_154 = arith.constant 101 : index
    %1126 = memref.load %arg7[%c101_154] : memref<144xf32, #tpu.memory_space<smem>>
    %1127 = vector.broadcast %1126 : f32 to vector<32x32xf32>
    %1128 = arith.mulf %702, %1127 : vector<32x32xf32>
    %1129 = arith.addf %1125, %1128 : vector<32x32xf32>
    %c102_155 = arith.constant 102 : index
    %1130 = memref.load %arg7[%c102_155] : memref<144xf32, #tpu.memory_space<smem>>
    %1131 = vector.broadcast %1130 : f32 to vector<32x32xf32>
    %1132 = arith.mulf %703, %1131 : vector<32x32xf32>
    %1133 = arith.addf %1129, %1132 : vector<32x32xf32>
    %c103_156 = arith.constant 103 : index
    %1134 = memref.load %arg7[%c103_156] : memref<144xf32, #tpu.memory_space<smem>>
    %1135 = vector.broadcast %1134 : f32 to vector<32x32xf32>
    %1136 = arith.mulf %704, %1135 : vector<32x32xf32>
    %1137 = arith.addf %1133, %1136 : vector<32x32xf32>
    %c104_157 = arith.constant 104 : index
    %1138 = memref.load %arg7[%c104_157] : memref<144xf32, #tpu.memory_space<smem>>
    %1139 = vector.broadcast %1138 : f32 to vector<32x32xf32>
    %1140 = arith.mulf %705, %1139 : vector<32x32xf32>
    %1141 = arith.addf %1137, %1140 : vector<32x32xf32>
    %c105_158 = arith.constant 105 : index
    %1142 = memref.load %arg7[%c105_158] : memref<144xf32, #tpu.memory_space<smem>>
    %1143 = vector.broadcast %1142 : f32 to vector<32x32xf32>
    %1144 = arith.mulf %706, %1143 : vector<32x32xf32>
    %1145 = arith.addf %1141, %1144 : vector<32x32xf32>
    %c106_159 = arith.constant 106 : index
    %1146 = memref.load %arg7[%c106_159] : memref<144xf32, #tpu.memory_space<smem>>
    %1147 = vector.broadcast %1146 : f32 to vector<32x32xf32>
    %1148 = arith.mulf %707, %1147 : vector<32x32xf32>
    %1149 = arith.addf %1145, %1148 : vector<32x32xf32>
    %c107_160 = arith.constant 107 : index
    %1150 = memref.load %arg7[%c107_160] : memref<144xf32, #tpu.memory_space<smem>>
    %1151 = vector.broadcast %1150 : f32 to vector<32x32xf32>
    %1152 = arith.mulf %708, %1151 : vector<32x32xf32>
    %1153 = arith.addf %1149, %1152 : vector<32x32xf32>
    %c2_161 = arith.constant 2 : index
    %1154 = memref.load %arg8[%c2_161] : memref<4xf32, #tpu.memory_space<smem>>
    %1155 = vector.broadcast %1154 : f32 to vector<32x32xf32>
    %1156 = arith.addf %1153, %1155 : vector<32x32xf32>
    %cst_162 = arith.constant 0.000000e+00 : f32
    %1157 = vector.broadcast %cst_162 : f32 to vector<32x32xf32>
    %1158 = arith.maximumf %1156, %1157 : vector<32x32xf32>
    %c0_163 = arith.constant 0 : index
    %c2_164 = arith.constant 2 : index
    %c0_165 = arith.constant 0 : index
    %c0_166 = arith.constant 0 : index
    %1159 = vector.load %arg9[%c0_163, %c2_164, %c0_165, %c0_166] : memref<1x4x32x32xf32, #tpu.memory_space<vmem>>, vector<1x1x32x32xf32>
    %1160 = vector.shape_cast %1159 : vector<1x1x32x32xf32> to vector<32x32xf32>
    %1161 = vector.shape_cast %1158 : vector<32x32xf32> to vector<1x1x32x32xf32>
    tpu.vector_store %arg9[%c0_163, %c2_164, %c0_165, %c0_166], %1161 {strides = array<i32>} : memref<1x4x32x32xf32, #tpu.memory_space<vmem>>, vector<1x1x32x32xf32>,
    %c108_167 = arith.constant 108 : index
    %1162 = memref.load %arg7[%c108_167] : memref<144xf32, #tpu.memory_space<smem>>
    %1163 = vector.broadcast %1162 : f32 to vector<32x32xf32>
    %1164 = arith.mulf %673, %1163 : vector<32x32xf32>
    %c109_168 = arith.constant 109 : index
    %1165 = memref.load %arg7[%c109_168] : memref<144xf32, #tpu.memory_space<smem>>
    %1166 = vector.broadcast %1165 : f32 to vector<32x32xf32>
    %1167 = arith.mulf %674, %1166 : vector<32x32xf32>
    %1168 = arith.addf %1164, %1167 : vector<32x32xf32>
    %c110_169 = arith.constant 110 : index
    %1169 = memref.load %arg7[%c110_169] : memref<144xf32, #tpu.memory_space<smem>>
    %1170 = vector.broadcast %1169 : f32 to vector<32x32xf32>
    %1171 = arith.mulf %675, %1170 : vector<32x32xf32>
    %1172 = arith.addf %1168, %1171 : vector<32x32xf32>
    %c111_170 = arith.constant 111 : index
    %1173 = memref.load %arg7[%c111_170] : memref<144xf32, #tpu.memory_space<smem>>
    %1174 = vector.broadcast %1173 : f32 to vector<32x32xf32>
    %1175 = arith.mulf %676, %1174 : vector<32x32xf32>
    %1176 = arith.addf %1172, %1175 : vector<32x32xf32>
    %c112_171 = arith.constant 112 : index
    %1177 = memref.load %arg7[%c112_171] : memref<144xf32, #tpu.memory_space<smem>>
    %1178 = vector.broadcast %1177 : f32 to vector<32x32xf32>
    %1179 = arith.mulf %677, %1178 : vector<32x32xf32>
    %1180 = arith.addf %1176, %1179 : vector<32x32xf32>
    %c113_172 = arith.constant 113 : index
    %1181 = memref.load %arg7[%c113_172] : memref<144xf32, #tpu.memory_space<smem>>
    %1182 = vector.broadcast %1181 : f32 to vector<32x32xf32>
    %1183 = arith.mulf %678, %1182 : vector<32x32xf32>
    %1184 = arith.addf %1180, %1183 : vector<32x32xf32>
    %c114_173 = arith.constant 114 : index
    %1185 = memref.load %arg7[%c114_173] : memref<144xf32, #tpu.memory_space<smem>>
    %1186 = vector.broadcast %1185 : f32 to vector<32x32xf32>
    %1187 = arith.mulf %679, %1186 : vector<32x32xf32>
    %1188 = arith.addf %1184, %1187 : vector<32x32xf32>
    %c115_174 = arith.constant 115 : index
    %1189 = memref.load %arg7[%c115_174] : memref<144xf32, #tpu.memory_space<smem>>
    %1190 = vector.broadcast %1189 : f32 to vector<32x32xf32>
    %1191 = arith.mulf %680, %1190 : vector<32x32xf32>
    %1192 = arith.addf %1188, %1191 : vector<32x32xf32>
    %c116_175 = arith.constant 116 : index
    %1193 = memref.load %arg7[%c116_175] : memref<144xf32, #tpu.memory_space<smem>>
    %1194 = vector.broadcast %1193 : f32 to vector<32x32xf32>
    %1195 = arith.mulf %681, %1194 : vector<32x32xf32>
    %1196 = arith.addf %1192, %1195 : vector<32x32xf32>
    %c117_176 = arith.constant 117 : index
    %1197 = memref.load %arg7[%c117_176] : memref<144xf32, #tpu.memory_space<smem>>
    %1198 = vector.broadcast %1197 : f32 to vector<32x32xf32>
    %1199 = arith.mulf %682, %1198 : vector<32x32xf32>
    %1200 = arith.addf %1196, %1199 : vector<32x32xf32>
    %c118_177 = arith.constant 118 : index
    %1201 = memref.load %arg7[%c118_177] : memref<144xf32, #tpu.memory_space<smem>>
    %1202 = vector.broadcast %1201 : f32 to vector<32x32xf32>
    %1203 = arith.mulf %683, %1202 : vector<32x32xf32>
    %1204 = arith.addf %1200, %1203 : vector<32x32xf32>
    %c119_178 = arith.constant 119 : index
    %1205 = memref.load %arg7[%c119_178] : memref<144xf32, #tpu.memory_space<smem>>
    %1206 = vector.broadcast %1205 : f32 to vector<32x32xf32>
    %1207 = arith.mulf %684, %1206 : vector<32x32xf32>
    %1208 = arith.addf %1204, %1207 : vector<32x32xf32>
    %c120_179 = arith.constant 120 : index
    %1209 = memref.load %arg7[%c120_179] : memref<144xf32, #tpu.memory_space<smem>>
    %1210 = vector.broadcast %1209 : f32 to vector<32x32xf32>
    %1211 = arith.mulf %685, %1210 : vector<32x32xf32>
    %1212 = arith.addf %1208, %1211 : vector<32x32xf32>
    %c121_180 = arith.constant 121 : index
    %1213 = memref.load %arg7[%c121_180] : memref<144xf32, #tpu.memory_space<smem>>
    %1214 = vector.broadcast %1213 : f32 to vector<32x32xf32>
    %1215 = arith.mulf %686, %1214 : vector<32x32xf32>
    %1216 = arith.addf %1212, %1215 : vector<32x32xf32>
    %c122_181 = arith.constant 122 : index
    %1217 = memref.load %arg7[%c122_181] : memref<144xf32, #tpu.memory_space<smem>>
    %1218 = vector.broadcast %1217 : f32 to vector<32x32xf32>
    %1219 = arith.mulf %687, %1218 : vector<32x32xf32>
    %1220 = arith.addf %1216, %1219 : vector<32x32xf32>
    %c123_182 = arith.constant 123 : index
    %1221 = memref.load %arg7[%c123_182] : memref<144xf32, #tpu.memory_space<smem>>
    %1222 = vector.broadcast %1221 : f32 to vector<32x32xf32>
    %1223 = arith.mulf %688, %1222 : vector<32x32xf32>
    %1224 = arith.addf %1220, %1223 : vector<32x32xf32>
    %c124_183 = arith.constant 124 : index
    %1225 = memref.load %arg7[%c124_183] : memref<144xf32, #tpu.memory_space<smem>>
    %1226 = vector.broadcast %1225 : f32 to vector<32x32xf32>
    %1227 = arith.mulf %689, %1226 : vector<32x32xf32>
    %1228 = arith.addf %1224, %1227 : vector<32x32xf32>
    %c125_184 = arith.constant 125 : index
    %1229 = memref.load %arg7[%c125_184] : memref<144xf32, #tpu.memory_space<smem>>
    %1230 = vector.broadcast %1229 : f32 to vector<32x32xf32>
    %1231 = arith.mulf %690, %1230 : vector<32x32xf32>
    %1232 = arith.addf %1228, %1231 : vector<32x32xf32>
    %c126_185 = arith.constant 126 : index
    %1233 = memref.load %arg7[%c126_185] : memref<144xf32, #tpu.memory_space<smem>>
    %1234 = vector.broadcast %1233 : f32 to vector<32x32xf32>
    %1235 = arith.mulf %691, %1234 : vector<32x32xf32>
    %1236 = arith.addf %1232, %1235 : vector<32x32xf32>
    %c127_186 = arith.constant 127 : index
    %1237 = memref.load %arg7[%c127_186] : memref<144xf32, #tpu.memory_space<smem>>
    %1238 = vector.broadcast %1237 : f32 to vector<32x32xf32>
    %1239 = arith.mulf %692, %1238 : vector<32x32xf32>
    %1240 = arith.addf %1236, %1239 : vector<32x32xf32>
    %c128_187 = arith.constant 128 : index
    %1241 = memref.load %arg7[%c128_187] : memref<144xf32, #tpu.memory_space<smem>>
    %1242 = vector.broadcast %1241 : f32 to vector<32x32xf32>
    %1243 = arith.mulf %693, %1242 : vector<32x32xf32>
    %1244 = arith.addf %1240, %1243 : vector<32x32xf32>
    %c129_188 = arith.constant 129 : index
    %1245 = memref.load %arg7[%c129_188] : memref<144xf32, #tpu.memory_space<smem>>
    %1246 = vector.broadcast %1245 : f32 to vector<32x32xf32>
    %1247 = arith.mulf %694, %1246 : vector<32x32xf32>
    %1248 = arith.addf %1244, %1247 : vector<32x32xf32>
    %c130_189 = arith.constant 130 : index
    %1249 = memref.load %arg7[%c130_189] : memref<144xf32, #tpu.memory_space<smem>>
    %1250 = vector.broadcast %1249 : f32 to vector<32x32xf32>
    %1251 = arith.mulf %695, %1250 : vector<32x32xf32>
    %1252 = arith.addf %1248, %1251 : vector<32x32xf32>
    %c131_190 = arith.constant 131 : index
    %1253 = memref.load %arg7[%c131_190] : memref<144xf32, #tpu.memory_space<smem>>
    %1254 = vector.broadcast %1253 : f32 to vector<32x32xf32>
    %1255 = arith.mulf %696, %1254 : vector<32x32xf32>
    %1256 = arith.addf %1252, %1255 : vector<32x32xf32>
    %c132_191 = arith.constant 132 : index
    %1257 = memref.load %arg7[%c132_191] : memref<144xf32, #tpu.memory_space<smem>>
    %1258 = vector.broadcast %1257 : f32 to vector<32x32xf32>
    %1259 = arith.mulf %697, %1258 : vector<32x32xf32>
    %1260 = arith.addf %1256, %1259 : vector<32x32xf32>
    %c133_192 = arith.constant 133 : index
    %1261 = memref.load %arg7[%c133_192] : memref<144xf32, #tpu.memory_space<smem>>
    %1262 = vector.broadcast %1261 : f32 to vector<32x32xf32>
    %1263 = arith.mulf %698, %1262 : vector<32x32xf32>
    %1264 = arith.addf %1260, %1263 : vector<32x32xf32>
    %c134_193 = arith.constant 134 : index
    %1265 = memref.load %arg7[%c134_193] : memref<144xf32, #tpu.memory_space<smem>>
    %1266 = vector.broadcast %1265 : f32 to vector<32x32xf32>
    %1267 = arith.mulf %699, %1266 : vector<32x32xf32>
    %1268 = arith.addf %1264, %1267 : vector<32x32xf32>
    %c135_194 = arith.constant 135 : index
    %1269 = memref.load %arg7[%c135_194] : memref<144xf32, #tpu.memory_space<smem>>
    %1270 = vector.broadcast %1269 : f32 to vector<32x32xf32>
    %1271 = arith.mulf %700, %1270 : vector<32x32xf32>
    %1272 = arith.addf %1268, %1271 : vector<32x32xf32>
    %c136_195 = arith.constant 136 : index
    %1273 = memref.load %arg7[%c136_195] : memref<144xf32, #tpu.memory_space<smem>>
    %1274 = vector.broadcast %1273 : f32 to vector<32x32xf32>
    %1275 = arith.mulf %701, %1274 : vector<32x32xf32>
    %1276 = arith.addf %1272, %1275 : vector<32x32xf32>
    %c137_196 = arith.constant 137 : index
    %1277 = memref.load %arg7[%c137_196] : memref<144xf32, #tpu.memory_space<smem>>
    %1278 = vector.broadcast %1277 : f32 to vector<32x32xf32>
    %1279 = arith.mulf %702, %1278 : vector<32x32xf32>
    %1280 = arith.addf %1276, %1279 : vector<32x32xf32>
    %c138_197 = arith.constant 138 : index
    %1281 = memref.load %arg7[%c138_197] : memref<144xf32, #tpu.memory_space<smem>>
    %1282 = vector.broadcast %1281 : f32 to vector<32x32xf32>
    %1283 = arith.mulf %703, %1282 : vector<32x32xf32>
    %1284 = arith.addf %1280, %1283 : vector<32x32xf32>
    %c139_198 = arith.constant 139 : index
    %1285 = memref.load %arg7[%c139_198] : memref<144xf32, #tpu.memory_space<smem>>
    %1286 = vector.broadcast %1285 : f32 to vector<32x32xf32>
    %1287 = arith.mulf %704, %1286 : vector<32x32xf32>
    %1288 = arith.addf %1284, %1287 : vector<32x32xf32>
    %c140_199 = arith.constant 140 : index
    %1289 = memref.load %arg7[%c140_199] : memref<144xf32, #tpu.memory_space<smem>>
    %1290 = vector.broadcast %1289 : f32 to vector<32x32xf32>
    %1291 = arith.mulf %705, %1290 : vector<32x32xf32>
    %1292 = arith.addf %1288, %1291 : vector<32x32xf32>
    %c141_200 = arith.constant 141 : index
    %1293 = memref.load %arg7[%c141_200] : memref<144xf32, #tpu.memory_space<smem>>
    %1294 = vector.broadcast %1293 : f32 to vector<32x32xf32>
    %1295 = arith.mulf %706, %1294 : vector<32x32xf32>
    %1296 = arith.addf %1292, %1295 : vector<32x32xf32>
    %c142_201 = arith.constant 142 : index
    %1297 = memref.load %arg7[%c142_201] : memref<144xf32, #tpu.memory_space<smem>>
    %1298 = vector.broadcast %1297 : f32 to vector<32x32xf32>
    %1299 = arith.mulf %707, %1298 : vector<32x32xf32>
    %1300 = arith.addf %1296, %1299 : vector<32x32xf32>
    %c143_202 = arith.constant 143 : index
    %1301 = memref.load %arg7[%c143_202] : memref<144xf32, #tpu.memory_space<smem>>
    %1302 = vector.broadcast %1301 : f32 to vector<32x32xf32>
    %1303 = arith.mulf %708, %1302 : vector<32x32xf32>
    %1304 = arith.addf %1300, %1303 : vector<32x32xf32>
    %c3_203 = arith.constant 3 : index
    %1305 = memref.load %arg8[%c3_203] : memref<4xf32, #tpu.memory_space<smem>>
    %1306 = vector.broadcast %1305 : f32 to vector<32x32xf32>
    %1307 = arith.addf %1304, %1306 : vector<32x32xf32>
    %cst_204 = arith.constant 0.000000e+00 : f32
    %1308 = vector.broadcast %cst_204 : f32 to vector<32x32xf32>
    %1309 = arith.maximumf %1307, %1308 : vector<32x32xf32>
    %c0_205 = arith.constant 0 : index
    %c3_206 = arith.constant 3 : index
    %c0_207 = arith.constant 0 : index
    %c0_208 = arith.constant 0 : index
    %1310 = vector.load %arg9[%c0_205, %c3_206, %c0_207, %c0_208] : memref<1x4x32x32xf32, #tpu.memory_space<vmem>>, vector<1x1x32x32xf32>
    %1311 = vector.shape_cast %1310 : vector<1x1x32x32xf32> to vector<32x32xf32>
    %1312 = vector.shape_cast %1309 : vector<32x32xf32> to vector<1x1x32x32xf32>
    tpu.vector_store %arg9[%c0_205, %c3_206, %c0_207, %c0_208], %1312 {strides = array<i32>} : memref<1x4x32x32xf32, #tpu.memory_space<vmem>>, vector<1x1x32x32xf32>,
    return
  }
  func.func @transform_0(%arg0: i32, %arg1: i32) -> (i32, i32, i32, i32) {
    %c0_i32 = arith.constant 0 : i32
    %c0_i32_0 = arith.constant 0 : i32
    %c0_i32_1 = arith.constant 0 : i32
    %c0_i32_2 = arith.constant 0 : i32
    return %arg0, %c0_i32, %c0_i32_0, %c0_i32_1 : i32, i32, i32, i32
  }
  func.func @transform_1(%arg0: i32, %arg1: i32) -> (i32, i32) {
    %c0_i32 = arith.constant 0 : i32
    %c0_i32_0 = arith.constant 0 : i32
    %c0_i32_1 = arith.constant 0 : i32
    return %c0_i32, %c0_i32_0 : i32, i32
  }
  func.func @transform_2(%arg0: i32, %arg1: i32) -> (i32, i32) {
    %c0_i32 = arith.constant 0 : i32
    %c0_i32_0 = arith.constant 0 : i32
    %c0_i32_1 = arith.constant 0 : i32
    return %c0_i32, %c0_i32_0 : i32, i32
  }
  func.func @transform_3(%arg0: i32, %arg1: i32) -> i32 {
    %c0_i32 = arith.constant 0 : i32
    %c0_i32_0 = arith.constant 0 : i32
    return %c0_i32 : i32
  }
  func.func @transform_4(%arg0: i32, %arg1: i32) -> i32 {
    %c0_i32 = arith.constant 0 : i32
    %c0_i32_0 = arith.constant 0 : i32
    return %c0_i32 : i32
  }
  func.func @transform_5(%arg0: i32, %arg1: i32) -> i32 {
    %c0_i32 = arith.constant 0 : i32
    %c0_i32_0 = arith.constant 0 : i32
    return %c0_i32 : i32
  }
  func.func @transform_6(%arg0: i32, %arg1: i32) -> i32 {
    %c0_i32 = arith.constant 0 : i32
    %c0_i32_0 = arith.constant 0 : i32
    return %c0_i32 : i32
  }
  func.func @transform_7(%arg0: i32, %arg1: i32) -> (i32, i32, i32, i32) {
    %c0_i32 = arith.constant 0 : i32
    %c0_i32_0 = arith.constant 0 : i32
    %c0_i32_1 = arith.constant 0 : i32
    return %arg0, %c0_i32, %arg1, %c0_i32_0 : i32, i32, i32, i32
  }
}

</mosaic_0001>

<llo_original>
// kernel: tpu_custom_call.1
$region0: #{tpu_custom_call.1}
  #allocation0 [shape = 'u32[]', space=smem, size = 0x4, offset = 0x4, fixed_abs, tag = 'smem constant byte address 0x4 - core index']
  #allocation1 [shape = 'u32[144,128]{1,0:T(1,128)}', space=vmem, size = 0x12000, scoped, tag = 'internal scratch']
  %s0 = inlined_call_operand.hbm [shape: f32[2,4,16,16], index: 0, kind: input, shape index: {}]
  %s1 = inlined_call_operand.vmem [shape: f32[36,16], index: 1, kind: input, shape index: {}]
  %s2 = inlined_call_operand.vmem [shape: f32[16,36], index: 2, kind: input, shape index: {}]
  %s3 = inlined_call_operand.vmem [shape: f32[144], index: 3, kind: input, shape index: {}]
  %s4 = inlined_call_operand.vmem [shape: f32[4], index: 4, kind: input, shape index: {}]
  %s5 = inlined_call_operand.vmem [shape: f32[144], index: 5, kind: input, shape index: {}]
  %s6 = inlined_call_operand.vmem [shape: f32[4], index: 6, kind: input, shape index: {}]
  %s7 = inlined_call_operand.hbm [shape: f32[2,4,32,32], index: 7, kind: output, shape index: {}]
  %s8 = sld [smem:[#allocation0]]
  $region81: #{tpu_custom_call.1} parent=0
    _
  %s10 = ssub.s32 1, %s8
  %s11 = scalar_select 0, %s10, %s8
  $region1: #{tpu_custom_call.1} parent=0
    #allocation2 [shape = 'u8[65536]{0}', space=vmem, size = 0x10000, scoped, tag = 'input window, operand 0']
    #allocation3 [shape = 's32[2]{0}', space=sflag, size = 0x8, scoped, tag = 'scoped memory for tpu_custom_call.1']
    #allocation4 [shape = 's32[2]{0}', space=sflag, size = 0x8, scoped, tag = 'scoped memory for tpu_custom_call.1']
    #allocation5 [shape = 's32[2]{0}', space=sflag, size = 0x8, scoped, tag = 'scoped memory for tpu_custom_call.1']
    #allocation6 [shape = 'u8[1024]{0}', space=smem, size = 0x400, scoped, tag = 'input window, operand 3, single buffered']
    #allocation7 [shape = 'u8[512]{0}', space=smem, size = 0x200, scoped, tag = 'input window, operand 4, single buffered']
    #allocation8 [shape = 's32[1]{0}', space=sflag, size = 0x4, scoped, tag = 'scoped memory for tpu_custom_call.1']
    #allocation9 [shape = 'u8[1024]{0}', space=smem, size = 0x400, scoped, tag = 'input window, operand 5, single buffered']
    #allocation10 [shape = 'u8[512]{0}', space=smem, size = 0x200, scoped, tag = 'input window, operand 6, single buffered']
    #allocation11 [shape = 's32[1]{0}', space=sflag, size = 0x4, scoped, tag = 'scoped memory for tpu_custom_call.1']
    #allocation12 [shape = 'u8[131072]{0}', space=vmem, size = 0x20000, scoped, tag = 'output window, operand 0']
    %12 = vsyncpa [#allocation3], 0
    %s13 = scalar_lea.sflag [#allocation3], 1
    %14 = vsyncpa %s13, 0
    %15 = vsyncpa [#allocation5], 0
    %16 = vsyncpa [#allocation8], 0
    %17 = vsyncpa [#allocation11], 0
    %18 = vsyncpa [#allocation4], 0
    %s19 = scalar_lea.sflag [#allocation4], 1
    %20 = vsyncpa %s19, 0
    loop: start=0, step=1, limit=4
    $region2: #{tpu_custom_call.1} parent=1 // loop_pre_header
      _
    $region3: #{tpu_custom_call.1} parent=1 // loop_header
      %s22 = sphi 0, %s26
      %p23 = scmp.ge.s32.totalorder %s22, 4
      %s29 = sphi 0, %s41
      %s30 = sphi 0, %s37
      %s31 = sphi 0, %s29
      %s32 = sphi 0, %s30
      %s33 = sphi 0, %s31
      %s34 = sphi 0, %s32
      %s44 = sphi 0, %s46
      %s47 = sphi 0, %s44
      %s48 = sphi 0, %s47
      %s64 = sphi 0, %s48
      %s68 = sphi 0, %s68
      %s70 = sphi 0, %s68
      %s71 = sphi 0, %s70
      %s85 = sphi 0, %s71
      %s89 = sphi 0, %s89
      %s91 = sphi 0, %s89
      %s92 = sphi 0, %s91
      %s106 = sphi 0, %s92
      %s110 = sphi 0, %s110
      %s112 = sphi 0, %s110
      %s113 = sphi 0, %s112
      %s127 = sphi 0, %s113
      %s131 = sphi 0, %s131
      %s133 = sphi 0, %s131
      %s134 = sphi 0, %s133
      %s148 = sphi 0, %s134
      %s152 = sphi 0, %s152
      %s154 = sphi 0, %s152
      %s155 = sphi 0, %s154
      %s169 = sphi 0, %s155
      %s173 = sphi 0, %s173
      %s175 = sphi 0, %s173
      %s176 = sphi 0, %s175
      %s190 = sphi 0, %s176
      %s198 = sphi 0, %s200
      %s201 = sphi 0, %s198
      %s202 = sphi 0, %s201
      %s218 = sphi 0, %s202
    $region4: #{tpu_custom_call.1} parent=1 // loop_header_branch
      %25 = sbr.rel (%p23) target = $region8
    $region5: #{tpu_custom_call.1} parent=1 // loop_body
      %s27 = ssub.s32 %s22, 1
      %s28 = ssub.s32 %s22, 2
      %s35 = sadd.s32 1, %s30
      %p36 = scmp.ge.s32.totalorder %s35, 1
      %s37 = scalar_select %p36, 0, %s35
      %s38 = sadd.s32 1, %s29
      %s39 = scalar_select %p36, %s38, %s29
      %p40 = scmp.ge.s32.totalorder %s39, 2
      %s41 = scalar_select %p40, 0, %s39
      %s42 = ssub.s32 %s29, %s41
      %p43 = scmp.eq.s32.totalorder %s42, 0
      %s45 = sadd.s32 %s44, 1
      %s46 = scalar_select %p43, %s44, %s45
      %p49 = pneg %p43
      %p50 = scmp.eq.s32.totalorder %s22, 1
      %p51 = por %p49, %p50
      %p52 = scmp.ne.s32.totalorder %s44, %s47
      %p53 = scmp.eq.s32.totalorder %s22, 0
      %p54 = por %p52, %p53
      %p55 = scmp.ne.s32.totalorder %s44, %s47
      %p56 = scmp.eq.s32.totalorder %s27, 1
      %p57 = por %p55, %p56
      %p58 = scmp.ne.s32.totalorder %s47, %s48
      %p59 = scmp.eq.s32.totalorder %s27, 0
      %p60 = por %p58, %p59
      %p61 = scmp.ne.s32.totalorder %s47, %s48
      %p62 = scmp.eq.s32.totalorder %s28, 1
      %p63 = por %p61, %p62
      %p65 = scmp.ne.s32.totalorder %s48, %s64
      %p66 = scmp.eq.s32.totalorder %s28, 0
      %p67 = por %p65, %p66
      %s69 = sadd.s32 %s68, 1
      %p72 = scmp.eq.s32.totalorder %s22, 1
      %p73 = scmp.ne.s32.totalorder %s68, %s70
      %p74 = scmp.eq.s32.totalorder %s22, 0
      %p75 = por %p73, %p74
      %p76 = scmp.ne.s32.totalorder %s68, %s70
      %p77 = scmp.eq.s32.totalorder %s27, 1
      %p78 = por %p76, %p77
      %p79 = scmp.ne.s32.totalorder %s70, %s71
      %p80 = scmp.eq.s32.totalorder %s27, 0
      %p81 = por %p79, %p80
      %p82 = scmp.ne.s32.totalorder %s70, %s71
      %p83 = scmp.eq.s32.totalorder %s28, 1
      %p84 = por %p82, %p83
      %p86 = scmp.ne.s32.totalorder %s71, %s85
      %p87 = scmp.eq.s32.totalorder %s28, 0
      %p88 = por %p86, %p87
      %s90 = sadd.s32 %s89, 1
      %p93 = scmp.eq.s32.totalorder %s22, 1
      %p94 = scmp.ne.s32.totalorder %s89, %s91
      %p95 = scmp.eq.s32.totalorder %s22, 0
      %p96 = por %p94, %p95
      %p97 = scmp.ne.s32.totalorder %s89, %s91
      %p98 = scmp.eq.s32.totalorder %s27, 1
      %p99 = por %p97, %p98
      %p100 = scmp.ne.s32.totalorder %s91, %s92
      %p101 = scmp.eq.s32.totalorder %s27, 0
      %p102 = por %p100, %p101
      %p103 = scmp.ne.s32.totalorder %s91, %s92
      %p104 = scmp.eq.s32.totalorder %s28, 1
      %p105 = por %p103, %p104
      %p107 = scmp.ne.s32.totalorder %s92, %s106
      %p108 = scmp.eq.s32.totalorder %s28, 0
      %p109 = por %p107, %p108
      %s111 = sadd.s32 %s110, 1
      %p114 = scmp.eq.s32.totalorder %s22, 1
      %p115 = scmp.ne.s32.totalorder %s110, %s112
      %p116 = scmp.eq.s32.totalorder %s22, 0
      %p117 = por %p115, %p116
      %p118 = scmp.ne.s32.totalorder %s110, %s112
      %p119 = scmp.eq.s32.totalorder %s27, 1
      %p120 = por %p118, %p119
      %p121 = scmp.ne.s32.totalorder %s112, %s113
      %p122 = scmp.eq.s32.totalorder %s27, 0
      %p123 = por %p121, %p122
      %p124 = scmp.ne.s32.totalorder %s112, %s113
      %p125 = scmp.eq.s32.totalorder %s28, 1
      %p126 = por %p124, %p125
      %p128 = scmp.ne.s32.totalorder %s113, %s127
      %p129 = scmp.eq.s32.totalorder %s28, 0
      %p130 = por %p128, %p129
      %s132 = sadd.s32 %s131, 1
      %p135 = scmp.eq.s32.totalorder %s22, 1
      %p136 = scmp.ne.s32.totalorder %s131, %s133
      %p137 = scmp.eq.s32.totalorder %s22, 0
      %p138 = por %p136, %p137
      %p139 = scmp.ne.s32.totalorder %s131, %s133
      %p140 = scmp.eq.s32.totalorder %s27, 1
      %p141 = por %p139, %p140
      %p142 = scmp.ne.s32.totalorder %s133, %s134
      %p143 = scmp.eq.s32.totalorder %s27, 0
      %p144 = por %p142, %p143
      %p145 = scmp.ne.s32.totalorder %s133, %s134
      %p146 = scmp.eq.s32.totalorder %s28, 1
      %p147 = por %p145, %p146
      %p149 = scmp.ne.s32.totalorder %s134, %s148
      %p150 = scmp.eq.s32.totalorder %s28, 0
      %p151 = por %p149, %p150
      %s153 = sadd.s32 %s152, 1
      %p156 = scmp.eq.s32.totalorder %s22, 1
      %p157 = scmp.ne.s32.totalorder %s152, %s154
      %p158 = scmp.eq.s32.totalorder %s22, 0
      %p159 = por %p157, %p158
      %p160 = scmp.ne.s32.totalorder %s152, %s154
      %p161 = scmp.eq.s32.totalorder %s27, 1
      %p162 = por %p160, %p161
      %p163 = scmp.ne.s32.totalorder %s154, %s155
      %p164 = scmp.eq.s32.totalorder %s27, 0
      %p165 = por %p163, %p164
      %p166 = scmp.ne.s32.totalorder %s154, %s155
      %p167 = scmp.eq.s32.totalorder %s28, 1
      %p168 = por %p166, %p167
      %p170 = scmp.ne.s32.totalorder %s155, %s169
      %p171 = scmp.eq.s32.totalorder %s28, 0
      %p172 = por %p170, %p171
      %s174 = sadd.s32 %s173, 1
      %p177 = scmp.eq.s32.totalorder %s22, 1
      %p178 = scmp.ne.s32.totalorder %s173, %s175
      %p179 = scmp.eq.s32.totalorder %s22, 0
      %p180 = por %p178, %p179
      %p181 = scmp.ne.s32.totalorder %s173, %s175
      %p182 = scmp.eq.s32.totalorder %s27, 1
      %p183 = por %p181, %p182
      %p184 = scmp.ne.s32.totalorder %s175, %s176
      %p185 = scmp.eq.s32.totalorder %s27, 0
      %p186 = por %p184, %p185
      %p187 = scmp.ne.s32.totalorder %s175, %s176
      %p188 = scmp.eq.s32.totalorder %s28, 1
      %p189 = por %p187, %p188
      %p191 = scmp.ne.s32.totalorder %s176, %s190
      %p192 = scmp.eq.s32.totalorder %s28, 0
      %p193 = por %p191, %p192
      %s194 = ssub.s32 %s29, %s41
      %s195 = ssub.s32 %s30, %s37
      %s196 = sor.u32 %s194, %s195
      %p197 = scmp.eq.s32.totalorder %s196, 0
      %s199 = sadd.s32 %s198, 1
      %s200 = scalar_select %p197, %s198, %s199
      %p203 = pneg %p197
      %p204 = scmp.eq.s32.totalorder %s22, 1
      %p205 = por %p203, %p204
      %p206 = scmp.ne.s32.totalorder %s198, %s201
      %p207 = scmp.eq.s32.totalorder %s22, 0
      %p208 = por %p206, %p207
      %p209 = scmp.ne.s32.totalorder %s198, %s201
      %p210 = scmp.eq.s32.totalorder %s27, 1
      %p211 = por %p209, %p210
      %p212 = scmp.ne.s32.totalorder %s201, %s202
      %p213 = scmp.eq.s32.totalorder %s27, 0
      %p214 = por %p212, %p213
      %p215 = scmp.ne.s32.totalorder %s201, %s202
      %p216 = scmp.eq.s32.totalorder %s28, 1
      %p217 = por %p215, %p216
      %p219 = scmp.ne.s32.totalorder %s202, %s218
      %p220 = scmp.eq.s32.totalorder %s28, 0
      %p221 = por %p219, %p220
      %p222 = scmp.le.s32.totalorder 1, %s22
      %p223 = scmp.lt.s32.totalorder %s22, 3
      %p224 = pnand %p222, %p223
      %p225 = pneg %p224
      // Predicated region
      $region9: #{tpu_custom_call.1} parent=5 // pred_check
        _
      $region10: #{tpu_custom_call.1} parent=5 // pred_check_branch
        %227 = sbr.rel (%p224) target = $region12
      $region11: #{tpu_custom_call.1} parent=5 // pred_region
        %s228 = ssub.s32 %s22, 1
        // Predicated region
        $region13: #{tpu_custom_call.1} parent=11 // pred_check
          %p229 = pneg %p81
        $region14: #{tpu_custom_call.1} parent=11 // pred_check_branch
          %231 = sbr.rel (%p229) target = $region16
        $region15: #{tpu_custom_call.1} parent=11 // pred_region
          _
        $region16: #{tpu_custom_call.1} parent=11 // pred_fallthru
          _
        // Predicated region
        $region17: #{tpu_custom_call.1} parent=11 // pred_check
          %p232 = pneg %p102
        $region18: #{tpu_custom_call.1} parent=11 // pred_check_branch
          %234 = sbr.rel (%p232) target = $region20
        $region19: #{tpu_custom_call.1} parent=11 // pred_region
          _
        $region20: #{tpu_custom_call.1} parent=11 // pred_fallthru
          _
        // Predicated region
        $region21: #{tpu_custom_call.1} parent=11 // pred_check
          %p235 = pneg %p123
        $region22: #{tpu_custom_call.1} parent=11 // pred_check_branch
          %237 = sbr.rel (%p235) target = $region24
        $region23: #{tpu_custom_call.1} parent=11 // pred_region
          %s239 = ssub.s32 32, 32
          %240 = vsyncadd [#allocation5], %s239
          %s242 = sshll.u32 %s3, 4
          %s243 = int_to_ptr.vmem [resolvable:$true] %s242
          %245 = dma.vmem_to_smem %s243, 32, [#allocation6], [#allocation5]
        $region24: #{tpu_custom_call.1} parent=11 // pred_fallthru
          _
        // Predicated region
        $region25: #{tpu_custom_call.1} parent=11 // pred_check
          %p246 = pneg %p144
        $region26: #{tpu_custom_call.1} parent=11 // pred_check_branch
          %248 = sbr.rel (%p246) target = $region28
        $region27: #{tpu_custom_call.1} parent=11 // pred_region
          %s250 = ssub.s32 16, 16
          %251 = vsyncadd [#allocation8], %s250
          %s253 = sshll.u32 %s4, 4
          %s254 = int_to_ptr.vmem [resolvable:$true] %s253
          %256 = dma.vmem_to_smem %s254, 16, [#allocation7], [#allocation8]
        $region28: #{tpu_custom_call.1} parent=11 // pred_fallthru
          _
        // Predicated region
        $region29: #{tpu_custom_call.1} parent=11 // pred_check
          %p257 = pneg %p165
        $region30: #{tpu_custom_call.1} parent=11 // pred_check_branch
          %259 = sbr.rel (%p257) target = $region32
        $region31: #{tpu_custom_call.1} parent=11 // pred_region
          %s261 = ssub.s32 32, 32
          %262 = vsyncadd [#allocation8], %s261
          %s264 = sshll.u32 %s5, 4
          %s265 = int_to_ptr.vmem [resolvable:$true] %s264
          %267 = dma.vmem_to_smem %s265, 32, [#allocation9], [#allocation8]
        $region32: #{tpu_custom_call.1} parent=11 // pred_fallthru
          _
        // Predicated region
        $region33: #{tpu_custom_call.1} parent=11 // pred_check
          %p268 = pneg %p186
        $region34: #{tpu_custom_call.1} parent=11 // pred_check_branch
          %270 = sbr.rel (%p268) target = $region36
        $region35: #{tpu_custom_call.1} parent=11 // pred_region
          %s272 = ssub.s32 16, 16
          %273 = vsyncadd [#allocation11], %s272
          %s275 = sshll.u32 %s6, 4
          %s276 = int_to_ptr.vmem [resolvable:$true] %s275
          %278 = dma.vmem_to_smem %s276, 16, [#allocation10], [#allocation11]
        $region36: #{tpu_custom_call.1} parent=11 // pred_fallthru
          _
      $region12: #{tpu_custom_call.1} parent=5 // pred_fallthru
        _
      %p279 = scmp.lt.s32.totalorder %s22, 2
      // Predicated region
      $region37: #{tpu_custom_call.1} parent=5 // pred_check
        %p280 = pneg %p279
      $region38: #{tpu_custom_call.1} parent=5 // pred_check_branch
        %282 = sbr.rel (%p280) target = $region40
      $region39: #{tpu_custom_call.1} parent=5 // pred_region
        // Predicated region
        $region41: #{tpu_custom_call.1} parent=39 // pred_check
          %p283 = pneg %p54
        $region42: #{tpu_custom_call.1} parent=39 // pred_check_branch
          %285 = sbr.rel (%p283) target = $region44
        $region43: #{tpu_custom_call.1} parent=39 // pred_region
          %s286 = sand.u32 %s44, 1
          %s287 = scalar_lea.sflag [#allocation3], %s286
          %s288 = sand.u32 %s44, 1
          %s289 = smul.addr %s288, 64
          %s290 = scalar_lea.vmem [#allocation2], %s289
          %s292 = ssub.s32 1024, 1024
          %293 = vsyncadd %s287, %s292
          %s294 = smul.addr %s29, 8
          %s295 = smul.addr %s294, 128
          %s296 = scalar_lea.hbm %s0, %s295
          %s297 = sshll.u32 %s290, 4
          %s298 = int_to_ptr.vmem [resolvable:$true] %s297
          %303 = dma.hbm_to_vmem [thread:$0]  %s296, 1024, %s298, %s287, 128, 128, 8
        $region44: #{tpu_custom_call.1} parent=39 // pred_fallthru
          _
      $region40: #{tpu_custom_call.1} parent=5 // pred_fallthru
        _
      %p304 = scmp.le.s32.totalorder 1, %s22
      %p305 = scmp.lt.s32.totalorder %s22, 3
      %p306 = pnand %p304, %p305
      %p307 = pneg %p306
      // Predicated region
      $region45: #{tpu_custom_call.1} parent=5 // pred_check
        _
      $region46: #{tpu_custom_call.1} parent=5 // pred_check_branch
        %309 = sbr.rel (%p306) target = $region48
      $region47: #{tpu_custom_call.1} parent=5 // pred_region
        %s310 = ssub.s32 %s22, 1
        %s311 = sand.u32 %s47, 1
        %s312 = scalar_lea.sflag [#allocation3], %s311
        %s313 = sand.u32 %s47, 1
        %s314 = smul.addr %s313, 64
        %s315 = scalar_lea.vmem [#allocation2], %s314
        // Predicated region
        $region49: #{tpu_custom_call.1} parent=47 // pred_check
          %p316 = pneg %p60
        $region50: #{tpu_custom_call.1} parent=47 // pred_check_branch
          %318 = sbr.rel (%p316) target = $region52
        $region51: #{tpu_custom_call.1} parent=47 // pred_region
          %319 = dma.done %s312, 1024
        $region52: #{tpu_custom_call.1} parent=47 // pred_fallthru
          _
        // Predicated region
        $region53: #{tpu_custom_call.1} parent=47 // pred_check
          %p320 = pneg %p123
        $region54: #{tpu_custom_call.1} parent=47 // pred_check_branch
          %322 = sbr.rel (%p320) target = $region56
        $region55: #{tpu_custom_call.1} parent=47 // pred_region
          %323 = dma.done [#allocation5], 32
        $region56: #{tpu_custom_call.1} parent=47 // pred_fallthru
          _
        // Predicated region
        $region57: #{tpu_custom_call.1} parent=47 // pred_check
          %p324 = pneg %p144
        $region58: #{tpu_custom_call.1} parent=47 // pred_check_branch
          %326 = sbr.rel (%p324) target = $region60
        $region59: #{tpu_custom_call.1} parent=47 // pred_region
          %327 = dma.done [#allocation8], 16
        $region60: #{tpu_custom_call.1} parent=47 // pred_fallthru
          _
        // Predicated region
        $region61: #{tpu_custom_call.1} parent=47 // pred_check
          %p328 = pneg %p165
        $region62: #{tpu_custom_call.1} parent=47 // pred_check_branch
          %330 = sbr.rel (%p328) target = $region64
        $region63: #{tpu_custom_call.1} parent=47 // pred_region
          %331 = dma.done [#allocation8], 32
        $region64: #{tpu_custom_call.1} parent=47 // pred_fallthru
          _
        // Predicated region
        $region65: #{tpu_custom_call.1} parent=47 // pred_check
          %p332 = pneg %p186
        $region66: #{tpu_custom_call.1} parent=47 // pred_check_branch
          %334 = sbr.rel (%p332) target = $region68
        $region67: #{tpu_custom_call.1} parent=47 // pred_region
          %335 = dma.done [#allocation11], 16
        $region68: #{tpu_custom_call.1} parent=47 // pred_fallthru
          _
        %336 = sfence
        %s337 = sand.u32 %s47, 1
        %s338 = scalar_lea.sflag [#allocation3], %s337
        %s339 = sand.u32 %s47, 1
        %s340 = smul.addr %s339, 64
        %s341 = scalar_lea.vmem [#allocation2], %s340
        %p342 = pneg %p60
        %p343 = pneg %p57
        %p344 = pneg %p81
        %p345 = pneg %p78
        %p346 = pneg %p102
        %p347 = pneg %p99
        %p348 = pneg %p123
        %p349 = pneg %p120
        %p350 = pneg %p144
        %p351 = pneg %p141
        %p352 = pneg %p165
        %p353 = pneg %p162
        %p354 = pneg %p186
        %p355 = pneg %p183
        %p356 = pneg %p214
        %p357 = pneg %p211
        %s358 = sand.u32 %s201, 1
        %s359 = scalar_lea.sflag [#allocation4], %s358
        %s360 = sand.u32 %s201, 1
        %s361 = smul.addr %s360, 128
        %s362 = scalar_lea.vmem [#allocation12], %s361
        %s363 = smul.u32 4, %s32
        %s364 = smul.u32 %s32, 32
        %s365 = scalar_lea.vmem %s1, %s364
        %v366 = vld [vmem:[%s365] sm:$0xff]
        %v367 = vld [vmem:[%s365 + $0x8] sm:$0xff]
        %v368 = vld [vmem:[%s365 + $0x10] sm:$0xff]
        %v369 = vld [vmem:[%s365 + $0x18] sm:$0xff]
        %v370 = vld [vmem:[%s365 + $0x20] sm:$0xf]
        %v371 = vld [vmem:[%s2] sm:$0xff]
        %v372 = vld [vmem:[%s2 + $0x8] sm:$0xff]
        %v373 = vld [vmem:[%s315] sm:$0xff]
        %v374 = vld [vmem:[%s315 + $0x8] sm:$0xff]
        %vm375 = vcmask 130048
        %v377 = vsel %vm375, %v366, 0
        %v380 = vsel %vm375, %v367, 0
        %v383 = vsel %vm375, %v368, 0
        %v386 = vsel %vm375, %v369, 0
        %v389 = vsel %vm375, %v370, 0
        %391 = vmatprep.subr.mxu0 0.0
        %392 = vmatpush1.msra.mxu0 %v373
        %393 = vmatprep.subr.mxu0 0.0
        %394 = vmatpush1.msra.mxu0 %v374
        %395 = vmatprep.subr.mxu0 0.0
        %396 = vmatpush1.msra.mxu0 0.0
        %397 = vmatprep.subr.mxu0 0.0
        %398 = vmatpush1.msra.mxu0 0.0
        %399 = vmatprep.subr.mxu0 0.0
        %400 = vmatpush1.msra.mxu0 0.0
        %401 = vmatprep.subr.mxu0 0.0
        %402 = vmatpush1.msra.mxu0 0.0
        %403 = vmatprep.subr.mxu0 0.0
        %404 = vmatpush1.msra.mxu0 0.0
        %405 = vmatprep.subr.mxu0 0.0
        %406 = vmatpush1.msra.mxu0 0.0
        %407 = vmatprep.subr.mxu0 0.0
        %408 = vmatpush1.msra.mxu0 0.0
        %409 = vmatprep.subr.mxu0 0.0
        %410 = vmatpush1.msra.mxu0 0.0
        %411 = vmatprep.subr.mxu0 0.0
        %412 = vmatpush1.msra.mxu0 0.0
        %413 = vmatprep.subr.mxu0 0.0
        %414 = vmatpush1.msra.mxu0 0.0
        %415 = vmatprep.subr.mxu0 0.0
        %416 = vmatpush1.msra.mxu0 0.0
        %417 = vmatprep.subr.mxu0 0.0
        %418 = vmatpush1.msra.mxu0 0.0
        %419 = vmatprep.subr.mxu0 0.0
        %420 = vmatpush1.msra.mxu0 0.0
        %421 = vmatprep.subr.mxu0 0.0
        %422 = vmatpush1.msra.mxu0 0.0
        %423 = vmatprep.subr.mxu0 0.0
        %424 = vmatpush1.msra.mxu0 0.0
        %425 = vmatprep.subr.mxu0 0.0
        %426 = vmatpush1.msra.mxu0 0.0
        %427 = vmatprep.subr.mxu0 0.0
        %428 = vmatpush1.msra.mxu0 0.0
        %429 = vmatprep.subr.mxu0 0.0
        %430 = vmatpush1.msra.mxu0 0.0
        %431 = vmatprep.subr.mxu0 0.0
        %432 = vmatpush1.msra.mxu0 0.0
        %433 = vmatprep.subr.mxu0 0.0
        %434 = vmatpush1.msra.mxu0 0.0
        %435 = vmatprep.subr.mxu0 0.0
        %436 = vmatpush1.msra.mxu0 0.0
        %437 = vmatprep.subr.mxu0 0.0
        %438 = vmatpush1.msra.mxu0 0.0
        %439 = vmatprep.subr.mxu0 0.0
        %440 = vmatpush1.msra.mxu0 0.0
        %441 = vmatprep.subr.mxu0 0.0
        %442 = vmatpush1.msra.mxu0 0.0
        %443 = vmatprep.subr.mxu0 0.0
        %444 = vmatpush1.msra.mxu0 0.0
        %445 = vmatprep.subr.mxu0 0.0
        %446 = vmatpush1.msra.mxu0 0.0
        %447 = vmatprep.subr.mxu0 0.0
        %448 = vmatpush1.msra.mxu0 0.0
        %449 = vmatprep.subr.mxu0 0.0
        %450 = vmatpush1.msra.mxu0 0.0
        %451 = vmatprep.subr.mxu0 0.0
        %452 = vmatpush1.msra.mxu0 0.0
        %453 = vmatprep.subr.mxu0 0.0
        %454 = vmatpush1.msra.mxu0 0.0
        %455 = vmatprep.mubr.f32.mxu0 0.0
        %456 = vmatmul.mubr.f32.gmra.mrb[0].mxu0 %v377
        %v457 = vpop.f32.mrb[0].mxu0
        %v458 = vadd.f32 0.0, %v457
        %v459 = vpop.f32.mrb[0].mxu0
        %460 = vmatprep.mubr.f32.mxu0 0.0
        %461 = vmatmul.mubr.f32.gmra.mrb[0].mxu0 %v380
        %v462 = vpop.f32.mrb[0].mxu0
        %v463 = vadd.f32 0.0, %v462
        %v464 = vpop.f32.mrb[0].mxu0
        %465 = vmatprep.mubr.f32.mxu0 0.0
        %466 = vmatmul.mubr.f32.gmra.mrb[0].mxu0 %v383
        %v467 = vpop.f32.mrb[0].mxu0
        %v468 = vadd.f32 0.0, %v467
        %v469 = vpop.f32.mrb[0].mxu0
        %470 = vmatprep.mubr.f32.mxu0 0.0
        %471 = vmatmul.mubr.f32.gmra.mrb[0].mxu0 %v386
        %v472 = vpop.f32.mrb[0].mxu0
        %v473 = vadd.f32 0.0, %v472
        %v474 = vpop.f32.mrb[0].mxu0
        %475 = vmatprep.mubr.f32.mxu0 0.0
        %476 = vmatmul.mubr.f32.gmra.mrb[0].mxu0 %v389
        %v477 = vpop.f32.mrb[0].mxu0
        %v478 = vadd.f32 0.0, %v477
        %v479 = vpop.f32.mrb[0].mxu0
        %480 = vdwg.mxu0
        %v482 = vsel %vm375, %v458, 0
        %v485 = vsel %vm375, %v463, 0
        %v488 = vsel %vm375, %v468, 0
        %v491 = vsel %vm375, %v473, 0
        %v494 = vsel %vm375, %v478, 0
        %496 = vmatprep.subr.mxu0 0.0
        %497 = vmatpush1.msra.mxu0 %v371
        %498 = vmatprep.subr.mxu0 0.0
        %499 = vmatpush1.msra.mxu0 %v372
        %500 = vmatprep.subr.mxu0 0.0
        %501 = vmatpush1.msra.mxu0 0.0
        %502 = vmatprep.subr.mxu0 0.0
        %503 = vmatpush1.msra.mxu0 0.0
        %504 = vmatprep.subr.mxu0 0.0
        %505 = vmatpush1.msra.mxu0 0.0
        %506 = vmatprep.subr.mxu0 0.0
        %507 = vmatpush1.msra.mxu0 0.0
        %508 = vmatprep.subr.mxu0 0.0
        %509 = vmatpush1.msra.mxu0 0.0
        %510 = vmatprep.subr.mxu0 0.0
        %511 = vmatpush1.msra.mxu0 0.0
        %512 = vmatprep.subr.mxu0 0.0
        %513 = vmatpush1.msra.mxu0 0.0
        %514 = vmatprep.subr.mxu0 0.0
        %515 = vmatpush1.msra.mxu0 0.0
        %516 = vmatprep.subr.mxu0 0.0
        %517 = vmatpush1.msra.mxu0 0.0
        %518 = vmatprep.subr.mxu0 0.0
        %519 = vmatpush1.msra.mxu0 0.0
        %520 = vmatprep.subr.mxu0 0.0
        %521 = vmatpush1.msra.mxu0 0.0
        %522 = vmatprep.subr.mxu0 0.0
        %523 = vmatpush1.msra.mxu0 0.0
        %524 = vmatprep.subr.mxu0 0.0
        %525 = vmatpush1.msra.mxu0 0.0
        %526 = vmatprep.subr.mxu0 0.0
        %527 = vmatpush1.msra.mxu0 0.0
        %528 = vmatprep.subr.mxu0 0.0
        %529 = vmatpush1.msra.mxu0 0.0
        %530 = vmatprep.subr.mxu0 0.0
        %531 = vmatpush1.msra.mxu0 0.0
        %532 = vmatprep.subr.mxu0 0.0
        %533 = vmatpush1.msra.mxu0 0.0
        %534 = vmatprep.subr.mxu0 0.0
        %535 = vmatpush1.msra.mxu0 0.0
        %536 = vmatprep.subr.mxu0 0.0
        %537 = vmatpush1.msra.mxu0 0.0
        %538 = vmatprep.subr.mxu0 0.0
        %539 = vmatpush1.msra.mxu0 0.0
        %540 = vmatprep.subr.mxu0 0.0
        %541 = vmatpush1.msra.mxu0 0.0
        %542 = vmatprep.subr.mxu0 0.0
        %543 = vmatpush1.msra.mxu0 0.0
        %544 = vmatprep.subr.mxu0 0.0
        %545 = vmatpush1.msra.mxu0 0.0
        %546 = vmatprep.subr.mxu0 0.0
        %547 = vmatpush1.msra.mxu0 0.0
        %548 = vmatprep.subr.mxu0 0.0
        %549 = vmatpush1.msra.mxu0 0.0
        %550 = vmatprep.subr.mxu0 0.0
        %551 = vmatpush1.msra.mxu0 0.0
        %552 = vmatprep.subr.mxu0 0.0
        %553 = vmatpush1.msra.mxu0 0.0
        %554 = vmatprep.subr.mxu0 0.0
        %555 = vmatpush1.msra.mxu0 0.0
        %556 = vmatprep.subr.mxu0 0.0
        %557 = vmatpush1.msra.mxu0 0.0
        %558 = vmatprep.subr.mxu0 0.0
        %559 = vmatpush1.msra.mxu0 0.0
        %560 = vmatprep.mubr.f32.mxu0 0.0
        %561 = vmatmul.mubr.f32.gmra.mrb[0].mxu0 %v482
        %v562 = vpop.f32.mrb[0].mxu0
        %v563 = vadd.f32 0.0, %v562
        %v564 = vpop.f32.mrb[0].mxu0
        %565 = vmatprep.mubr.f32.mxu0 0.0
        %566 = vmatmul.mubr.f32.gmra.mrb[0].mxu0 %v485
        %v567 = vpop.f32.mrb[0].mxu0
        %v568 = vadd.f32 0.0, %v567
        %v569 = vpop.f32.mrb[0].mxu0
        %570 = vmatprep.mubr.f32.mxu0 0.0
        %571 = vmatmul.mubr.f32.gmra.mrb[0].mxu0 %v488
        %v572 = vpop.f32.mrb[0].mxu0
        %v573 = vadd.f32 0.0, %v572
        %v574 = vpop.f32.mrb[0].mxu0
        %575 = vmatprep.mubr.f32.mxu0 0.0
        %576 = vmatmul.mubr.f32.gmra.mrb[0].mxu0 %v491
        %v577 = vpop.f32.mrb[0].mxu0
        %v578 = vadd.f32 0.0, %v577
        %v579 = vpop.f32.mrb[0].mxu0
        %580 = vmatprep.mubr.f32.mxu0 0.0
        %581 = vmatmul.mubr.f32.gmra.mrb[0].mxu0 %v494
        %v582 = vpop.f32.mrb[0].mxu0
        %v583 = vadd.f32 0.0, %v582
        %v584 = vpop.f32.mrb[0].mxu0
        %585 = vdwg.mxu0
        %s586 = scalar_lea.vmem %s315, 16 [#allocation2]
        %v587 = vld [vmem:[%s586] sm:$0xff]
        %v588 = vld [vmem:[%s586 + $0x8] sm:$0xff]
        %589 = vmatprep.subr.mxu0 0.0
        %590 = vmatpush1.msra.mxu0 %v587
        %591 = vmatprep.subr.mxu0 0.0
        %592 = vmatpush1.msra.mxu0 %v588
        %593 = vmatprep.subr.mxu0 0.0
        %594 = vmatpush1.msra.mxu0 0.0
        %595 = vmatprep.subr.mxu0 0.0
        %596 = vmatpush1.msra.mxu0 0.0
        %597 = vmatprep.subr.mxu0 0.0
        %598 = vmatpush1.msra.mxu0 0.0
        %599 = vmatprep.subr.mxu0 0.0
        %600 = vmatpush1.msra.mxu0 0.0
        %601 = vmatprep.subr.mxu0 0.0
        %602 = vmatpush1.msra.mxu0 0.0
        %603 = vmatprep.subr.mxu0 0.0
        %604 = vmatpush1.msra.mxu0 0.0
        %605 = vmatprep.subr.mxu0 0.0
        %606 = vmatpush1.msra.mxu0 0.0
        %607 = vmatprep.subr.mxu0 0.0
        %608 = vmatpush1.msra.mxu0 0.0
        %609 = vmatprep.subr.mxu0 0.0
        %610 = vmatpush1.msra.mxu0 0.0
        %611 = vmatprep.subr.mxu0 0.0
        %612 = vmatpush1.msra.mxu0 0.0
        %613 = vmatprep.subr.mxu0 0.0
        %614 = vmatpush1.msra.mxu0 0.0
        %615 = vmatprep.subr.mxu0 0.0
        %616 = vmatpush1.msra.mxu0 0.0
        %617 = vmatprep.subr.mxu0 0.0
        %618 = vmatpush1.msra.mxu0 0.0
        %619 = vmatprep.subr.mxu0 0.0
        %620 = vmatpush1.msra.mxu0 0.0
        %621 = vmatprep.subr.mxu0 0.0
        %622 = vmatpush1.msra.mxu0 0.0
        %623 = vmatprep.subr.mxu0 0.0
        %624 = vmatpush1.msra.mxu0 0.0
        %625 = vmatprep.subr.mxu0 0.0
        %626 = vmatpush1.msra.mxu0 0.0
        %627 = vmatprep.subr.mxu0 0.0
        %628 = vmatpush1.msra.mxu0 0.0
        %629 = vmatprep.subr.mxu0 0.0
        %630 = vmatpush1.msra.mxu0 0.0
        %631 = vmatprep.subr.mxu0 0.0
        %632 = vmatpush1.msra.mxu0 0.0
        %633 = vmatprep.subr.mxu0 0.0
        %634 = vmatpush1.msra.mxu0 0.0
        %635 = vmatprep.subr.mxu0 0.0
        %636 = vmatpush1.msra.mxu0 0.0
        %637 = vmatprep.subr.mxu0 0.0
        %638 = vmatpush1.msra.mxu0 0.0
        %639 = vmatprep.subr.mxu0 0.0
        %640 = vmatpush1.msra.mxu0 0.0
        %641 = vmatprep.subr.mxu0 0.0
        %642 = vmatpush1.msra.mxu0 0.0
        %643 = vmatprep.subr.mxu0 0.0
        %644 = vmatpush1.msra.mxu0 0.0
        %645 = vmatprep.subr.mxu0 0.0
        %646 = vmatpush1.msra.mxu0 0.0
        %647 = vmatprep.subr.mxu0 0.0
        %648 = vmatpush1.msra.mxu0 0.0
        %649 = vmatprep.subr.mxu0 0.0
        %650 = vmatpush1.msra.mxu0 0.0
        %651 = vmatprep.subr.mxu0 0.0
        %652 = vmatpush1.msra.mxu0 0.0
        %653 = vmatprep.mubr.f32.mxu0 0.0
        %654 = vmatmul.mubr.f32.gmra.mrb[0].mxu0 %v377
        %v655 = vpop.f32.mrb[0].mxu0
        %v656 = vadd.f32 0.0, %v655
        %v657 = vpop.f32.mrb[0].mxu0
        %658 = vmatprep.mubr.f32.mxu0 0.0
        %659 = vmatmul.mubr.f32.gmra.mrb[0].mxu0 %v380
        %v660 = vpop.f32.mrb[0].mxu0
        %v661 = vadd.f32 0.0, %v660
        %v662 = vpop.f32.mrb[0].mxu0
        %663 = vmatprep.mubr.f32.mxu0 0.0
        %664 = vmatmul.mubr.f32.gmra.mrb[0].mxu0 %v383
        %v665 = vpop.f32.mrb[0].mxu0
        %v666 = vadd.f32 0.0, %v665
        %v667 = vpop.f32.mrb[0].mxu0
        %668 = vmatprep.mubr.f32.mxu0 0.0
        %669 = vmatmul.mubr.f32.gmra.mrb[0].mxu0 %v386
        %v670 = vpop.f32.mrb[0].mxu0
        %v671 = vadd.f32 0.0, %v670
        %v672 = vpop.f32.mrb[0].mxu0
        %673 = vmatprep.mubr.f32.mxu0 0.0
        %674 = vmatmul.mubr.f32.gmra.mrb[0].mxu0 %v389
        %v675 = vpop.f32.mrb[0].mxu0
        %v676 = vadd.f32 0.0, %v675
        %v677 = vpop.f32.mrb[0].mxu0
        %678 = vdwg.mxu0
        %v680 = vsel %vm375, %v656, 0
        %v683 = vsel %vm375, %v661, 0
        %v686 = vsel %vm375, %v666, 0
        %v689 = vsel %vm375, %v671, 0
        %v692 = vsel %vm375, %v676, 0
        %694 = vmatprep.subr.mxu0 0.0
        %695 = vmatpush1.msra.mxu0 %v371
        %696 = vmatprep.subr.mxu0 0.0
        %697 = vmatpush1.msra.mxu0 %v372
        %698 = vmatprep.subr.mxu0 0.0
        %699 = vmatpush1.msra.mxu0 0.0
        %700 = vmatprep.subr.mxu0 0.0
        %701 = vmatpush1.msra.mxu0 0.0
        %702 = vmatprep.subr.mxu0 0.0
        %703 = vmatpush1.msra.mxu0 0.0
        %704 = vmatprep.subr.mxu0 0.0
        %705 = vmatpush1.msra.mxu0 0.0
        %706 = vmatprep.subr.mxu0 0.0
        %707 = vmatpush1.msra.mxu0 0.0
        %708 = vmatprep.subr.mxu0 0.0
        %709 = vmatpush1.msra.mxu0 0.0
        %710 = vmatprep.subr.mxu0 0.0
        %711 = vmatpush1.msra.mxu0 0.0
        %712 = vmatprep.subr.mxu0 0.0
        %713 = vmatpush1.msra.mxu0 0.0
        %714 = vmatprep.subr.mxu0 0.0
        %715 = vmatpush1.msra.mxu0 0.0
        %716 = vmatprep.subr.mxu0 0.0
        %717 = vmatpush1.msra.mxu0 0.0
        %718 = vmatprep.subr.mxu0 0.0
        %719 = vmatpush1.msra.mxu0 0.0
        %720 = vmatprep.subr.mxu0 0.0
        %721 = vmatpush1.msra.mxu0 0.0
        %722 = vmatprep.subr.mxu0 0.0
        %723 = vmatpush1.msra.mxu0 0.0
        %724 = vmatprep.subr.mxu0 0.0
        %725 = vmatpush1.msra.mxu0 0.0
        %726 = vmatprep.subr.mxu0 0.0
        %727 = vmatpush1.msra.mxu0 0.0
        %728 = vmatprep.subr.mxu0 0.0
        %729 = vmatpush1.msra.mxu0 0.0
        %730 = vmatprep.subr.mxu0 0.0
        %731 = vmatpush1.msra.mxu0 0.0
        %732 = vmatprep.subr.mxu0 0.0
        %733 = vmatpush1.msra.mxu0 0.0
        %734 = vmatprep.subr.mxu0 0.0
        %735 = vmatpush1.msra.mxu0 0.0
        %736 = vmatprep.subr.mxu0 0.0
        %737 = vmatpush1.msra.mxu0 0.0
        %738 = vmatprep.subr.mxu0 0.0
        %739 = vmatpush1.msra.mxu0 0.0
        %740 = vmatprep.subr.mxu0 0.0
        %741 = vmatpush1.msra.mxu0 0.0
        %742 = vmatprep.subr.mxu0 0.0
        %743 = vmatpush1.msra.mxu0 0.0
        %744 = vmatprep.subr.mxu0 0.0
        %745 = vmatpush1.msra.mxu0 0.0
        %746 = vmatprep.subr.mxu0 0.0
        %747 = vmatpush1.msra.mxu0 0.0
        %748 = vmatprep.subr.mxu0 0.0
        %749 = vmatpush1.msra.mxu0 0.0
        %750 = vmatprep.subr.mxu0 0.0
        %751 = vmatpush1.msra.mxu0 0.0
        %752 = vmatprep.subr.mxu0 0.0
        %753 = vmatpush1.msra.mxu0 0.0
        %754 = vmatprep.subr.mxu0 0.0
        %755 = vmatpush1.msra.mxu0 0.0
        %756 = vmatprep.subr.mxu0 0.0
        %757 = vmatpush1.msra.mxu0 0.0
        %758 = vmatprep.mubr.f32.mxu0 0.0
        %759 = vmatmul.mubr.f32.gmra.mrb[0].mxu0 %v680
        %v760 = vpop.f32.mrb[0].mxu0
        %v761 = vadd.f32 0.0, %v760
        %v762 = vpop.f32.mrb[0].mxu0
        %763 = vmatprep.mubr.f32.mxu0 0.0
        %764 = vmatmul.mubr.f32.gmra.mrb[0].mxu0 %v683
        %v765 = vpop.f32.mrb[0].mxu0
        %v766 = vadd.f32 0.0, %v765
        %v767 = vpop.f32.mrb[0].mxu0
        %768 = vmatprep.mubr.f32.mxu0 0.0
        %769 = vmatmul.mubr.f32.gmra.mrb[0].mxu0 %v686
        %v770 = vpop.f32.mrb[0].mxu0
        %v771 = vadd.f32 0.0, %v770
        %v772 = vpop.f32.mrb[0].mxu0
        %773 = vmatprep.mubr.f32.mxu0 0.0
        %774 = vmatmul.mubr.f32.gmra.mrb[0].mxu0 %v689
        %v775 = vpop.f32.mrb[0].mxu0
        %v776 = vadd.f32 0.0, %v775
        %v777 = vpop.f32.mrb[0].mxu0
        %778 = vmatprep.mubr.f32.mxu0 0.0
        %779 = vmatmul.mubr.f32.gmra.mrb[0].mxu0 %v692
        %v780 = vpop.f32.mrb[0].mxu0
        %v781 = vadd.f32 0.0, %v780
        %v782 = vpop.f32.mrb[0].mxu0
        %783 = vdwg.mxu0
        %s784 = scalar_lea.vmem %s315, 32 [#allocation2]
        %v785 = vld [vmem:[%s784] sm:$0xff]
        %v786 = vld [vmem:[%s784 + $0x8] sm:$0xff]
        %787 = vmatprep.subr.mxu0 0.0
        %788 = vmatpush1.msra.mxu0 %v785
        %789 = vmatprep.subr.mxu0 0.0
        %790 = vmatpush1.msra.mxu0 %v786
        %791 = vmatprep.subr.mxu0 0.0
        %792 = vmatpush1.msra.mxu0 0.0
        %793 = vmatprep.subr.mxu0 0.0
        %794 = vmatpush1.msra.mxu0 0.0
        %795 = vmatprep.subr.mxu0 0.0
        %796 = vmatpush1.msra.mxu0 0.0
        %797 = vmatprep.subr.mxu0 0.0
        %798 = vmatpush1.msra.mxu0 0.0
        %799 = vmatprep.subr.mxu0 0.0
        %800 = vmatpush1.msra.mxu0 0.0
        %801 = vmatprep.subr.mxu0 0.0
        %802 = vmatpush1.msra.mxu0 0.0
        %803 = vmatprep.subr.mxu0 0.0
        %804 = vmatpush1.msra.mxu0 0.0
        %805 = vmatprep.subr.mxu0 0.0
        %806 = vmatpush1.msra.mxu0 0.0
        %807 = vmatprep.subr.mxu0 0.0
        %808 = vmatpush1.msra.mxu0 0.0
        %809 = vmatprep.subr.mxu0 0.0
        %810 = vmatpush1.msra.mxu0 0.0
        %811 = vmatprep.subr.mxu0 0.0
        %812 = vmatpush1.msra.mxu0 0.0
        %813 = vmatprep.subr.mxu0 0.0
        %814 = vmatpush1.msra.mxu0 0.0
        %815 = vmatprep.subr.mxu0 0.0
        %816 = vmatpush1.msra.mxu0 0.0
        %817 = vmatprep.subr.mxu0 0.0
        %818 = vmatpush1.msra.mxu0 0.0
        %819 = vmatprep.subr.mxu0 0.0
        %820 = vmatpush1.msra.mxu0 0.0
        %821 = vmatprep.subr.mxu0 0.0
        %822 = vmatpush1.msra.mxu0 0.0
        %823 = vmatprep.subr.mxu0 0.0
        %824 = vmatpush1.msra.mxu0 0.0
        %825 = vmatprep.subr.mxu0 0.0
        %826 = vmatpush1.msra.mxu0 0.0
        %827 = vmatprep.subr.mxu0 0.0
        %828 = vmatpush1.msra.mxu0 0.0
        %829 = vmatprep.subr.mxu0 0.0
        %830 = vmatpush1.msra.mxu0 0.0
        %831 = vmatprep.subr.mxu0 0.0
        %832 = vmatpush1.msra.mxu0 0.0
        %833 = vmatprep.subr.mxu0 0.0
        %834 = vmatpush1.msra.mxu0 0.0
        %835 = vmatprep.subr.mxu0 0.0
        %836 = vmatpush1.msra.mxu0 0.0
        %837 = vmatprep.subr.mxu0 0.0
        %838 = vmatpush1.msra.mxu0 0.0
        %839 = vmatprep.subr.mxu0 0.0
        %840 = vmatpush1.msra.mxu0 0.0
        %841 = vmatprep.subr.mxu0 0.0
        %842 = vmatpush1.msra.mxu0 0.0
        %843 = vmatprep.subr.mxu0 0.0
        %844 = vmatpush1.msra.mxu0 0.0
        %845 = vmatprep.subr.mxu0 0.0
        %846 = vmatpush1.msra.mxu0 0.0
        %847 = vmatprep.subr.mxu0 0.0
        %848 = vmatpush1.msra.mxu0 0.0
        %849 = vmatprep.subr.mxu0 0.0
        %850 = vmatpush1.msra.mxu0 0.0
        %851 = vmatprep.mubr.f32.mxu0 0.0
        %852 = vmatmul.mubr.f32.gmra.mrb[0].mxu0 %v377
        %v853 = vpop.f32.mrb[0].mxu0
        %v854 = vadd.f32 0.0, %v853
        %v855 = vpop.f32.mrb[0].mxu0
        %856 = vmatprep.mubr.f32.mxu0 0.0
        %857 = vmatmul.mubr.f32.gmra.mrb[0].mxu0 %v380
        %v858 = vpop.f32.mrb[0].mxu0
        %v859 = vadd.f32 0.0, %v858
        %v860 = vpop.f32.mrb[0].mxu0
        %861 = vmatprep.mubr.f32.mxu0 0.0
        %862 = vmatmul.mubr.f32.gmra.mrb[0].mxu0 %v383
        %v863 = vpop.f32.mrb[0].mxu0
        %v864 = vadd.f32 0.0, %v863
        %v865 = vpop.f32.mrb[0].mxu0
        %866 = vmatprep.mubr.f32.mxu0 0.0
        %867 = vmatmul.mubr.f32.gmra.mrb[0].mxu0 %v386
        %v868 = vpop.f32.mrb[0].mxu0
        %v869 = vadd.f32 0.0, %v868
        %v870 = vpop.f32.mrb[0].mxu0
        %871 = vmatprep.mubr.f32.mxu0 0.0
        %872 = vmatmul.mubr.f32.gmra.mrb[0].mxu0 %v389
        %v873 = vpop.f32.mrb[0].mxu0
        %v874 = vadd.f32 0.0, %v873
        %v875 = vpop.f32.mrb[0].mxu0
        %876 = vdwg.mxu0
        %v878 = vsel %vm375, %v854, 0
        %v881 = vsel %vm375, %v859, 0
        %v884 = vsel %vm375, %v864, 0
        %v887 = vsel %vm375, %v869, 0
        %v890 = vsel %vm375, %v874, 0
        %892 = vmatprep.subr.mxu0 0.0
        %893 = vmatpush1.msra.mxu0 %v371
        %894 = vmatprep.subr.mxu0 0.0
        %895 = vmatpush1.msra.mxu0 %v372
        %896 = vmatprep.subr.mxu0 0.0
        %897 = vmatpush1.msra.mxu0 0.0
        %898 = vmatprep.subr.mxu0 0.0
        %899 = vmatpush1.msra.mxu0 0.0
        %900 = vmatprep.subr.mxu0 0.0
        %901 = vmatpush1.msra.mxu0 0.0
        %902 = vmatprep.subr.mxu0 0.0
        %903 = vmatpush1.msra.mxu0 0.0
        %904 = vmatprep.subr.mxu0 0.0
        %905 = vmatpush1.msra.mxu0 0.0
        %906 = vmatprep.subr.mxu0 0.0
        %907 = vmatpush1.msra.mxu0 0.0
        %908 = vmatprep.subr.mxu0 0.0
        %909 = vmatpush1.msra.mxu0 0.0
        %910 = vmatprep.subr.mxu0 0.0
        %911 = vmatpush1.msra.mxu0 0.0
        %912 = vmatprep.subr.mxu0 0.0
        %913 = vmatpush1.msra.mxu0 0.0
        %914 = vmatprep.subr.mxu0 0.0
        %915 = vmatpush1.msra.mxu0 0.0
        %916 = vmatprep.subr.mxu0 0.0
        %917 = vmatpush1.msra.mxu0 0.0
        %918 = vmatprep.subr.mxu0 0.0
        %919 = vmatpush1.msra.mxu0 0.0
        %920 = vmatprep.subr.mxu0 0.0
        %921 = vmatpush1.msra.mxu0 0.0
        %922 = vmatprep.subr.mxu0 0.0
        %923 = vmatpush1.msra.mxu0 0.0
        %924 = vmatprep.subr.mxu0 0.0
        %925 = vmatpush1.msra.mxu0 0.0
        %926 = vmatprep.subr.mxu0 0.0
        %927 = vmatpush1.msra.mxu0 0.0
        %928 = vmatprep.subr.mxu0 0.0
        %929 = vmatpush1.msra.mxu0 0.0
        %930 = vmatprep.subr.mxu0 0.0
        %931 = vmatpush1.msra.mxu0 0.0
        %932 = vmatprep.subr.mxu0 0.0
        %933 = vmatpush1.msra.mxu0 0.0
        %934 = vmatprep.subr.mxu0 0.0
        %935 = vmatpush1.msra.mxu0 0.0
        %936 = vmatprep.subr.mxu0 0.0
        %937 = vmatpush1.msra.mxu0 0.0
        %938 = vmatprep.subr.mxu0 0.0
        %939 = vmatpush1.msra.mxu0 0.0
        %940 = vmatprep.subr.mxu0 0.0
        %941 = vmatpush1.msra.mxu0 0.0
        %942 = vmatprep.subr.mxu0 0.0
        %943 = vmatpush1.msra.mxu0 0.0
        %944 = vmatprep.subr.mxu0 0.0
        %945 = vmatpush1.msra.mxu0 0.0
        %946 = vmatprep.subr.mxu0 0.0
        %947 = vmatpush1.msra.mxu0 0.0
        %948 = vmatprep.subr.mxu0 0.0
        %949 = vmatpush1.msra.mxu0 0.0
        %950 = vmatprep.subr.mxu0 0.0
        %951 = vmatpush1.msra.mxu0 0.0
        %952 = vmatprep.subr.mxu0 0.0
        %953 = vmatpush1.msra.mxu0 0.0
        %954 = vmatprep.subr.mxu0 0.0
        %955 = vmatpush1.msra.mxu0 0.0
        %956 = vmatprep.mubr.f32.mxu0 0.0
        %957 = vmatmul.mubr.f32.gmra.mrb[0].mxu0 %v878
        %v958 = vpop.f32.mrb[0].mxu0
        %v959 = vadd.f32 0.0, %v958
        %v960 = vpop.f32.mrb[0].mxu0
        %961 = vmatprep.mubr.f32.mxu0 0.0
        %962 = vmatmul.mubr.f32.gmra.mrb[0].mxu0 %v881
        %v963 = vpop.f32.mrb[0].mxu0
        %v964 = vadd.f32 0.0, %v963
        %v965 = vpop.f32.mrb[0].mxu0
        %966 = vmatprep.mubr.f32.mxu0 0.0
        %967 = vmatmul.mubr.f32.gmra.mrb[0].mxu0 %v884
        %v968 = vpop.f32.mrb[0].mxu0
        %v969 = vadd.f32 0.0, %v968
        %v970 = vpop.f32.mrb[0].mxu0
        %971 = vmatprep.mubr.f32.mxu0 0.0
        %972 = vmatmul.mubr.f32.gmra.mrb[0].mxu0 %v887
        %v973 = vpop.f32.mrb[0].mxu0
        %v974 = vadd.f32 0.0, %v973
        %v975 = vpop.f32.mrb[0].mxu0
        %976 = vmatprep.mubr.f32.mxu0 0.0
        %977 = vmatmul.mubr.f32.gmra.mrb[0].mxu0 %v890
        %v978 = vpop.f32.mrb[0].mxu0
        %v979 = vadd.f32 0.0, %v978
        %v980 = vpop.f32.mrb[0].mxu0
        %981 = vdwg.mxu0
        %s982 = scalar_lea.vmem %s315, 48 [#allocation2]
        %v983 = vld [vmem:[%s982] sm:$0xff]
        %v984 = vld [vmem:[%s982 + $0x8] sm:$0xff]
        %985 = vmatprep.subr.mxu0 0.0
        %986 = vmatpush1.msra.mxu0 %v983
        %987 = vmatprep.subr.mxu0 0.0
        %988 = vmatpush1.msra.mxu0 %v984
        %989 = vmatprep.subr.mxu0 0.0
        %990 = vmatpush1.msra.mxu0 0.0
        %991 = vmatprep.subr.mxu0 0.0
        %992 = vmatpush1.msra.mxu0 0.0
        %993 = vmatprep.subr.mxu0 0.0
        %994 = vmatpush1.msra.mxu0 0.0
        %995 = vmatprep.subr.mxu0 0.0
        %996 = vmatpush1.msra.mxu0 0.0
        %997 = vmatprep.subr.mxu0 0.0
        %998 = vmatpush1.msra.mxu0 0.0
        %999 = vmatprep.subr.mxu0 0.0
        %1000 = vmatpush1.msra.mxu0 0.0
        %1001 = vmatprep.subr.mxu0 0.0
        %1002 = vmatpush1.msra.mxu0 0.0
        %1003 = vmatprep.subr.mxu0 0.0
        %1004 = vmatpush1.msra.mxu0 0.0
        %1005 = vmatprep.subr.mxu0 0.0
        %1006 = vmatpush1.msra.mxu0 0.0
        %1007 = vmatprep.subr.mxu0 0.0
        %1008 = vmatpush1.msra.mxu0 0.0
        %1009 = vmatprep.subr.mxu0 0.0
        %1010 = vmatpush1.msra.mxu0 0.0
        %1011 = vmatprep.subr.mxu0 0.0
        %1012 = vmatpush1.msra.mxu0 0.0
        %1013 = vmatprep.subr.mxu0 0.0
        %1014 = vmatpush1.msra.mxu0 0.0
        %1015 = vmatprep.subr.mxu0 0.0
        %1016 = vmatpush1.msra.mxu0 0.0
        %1017 = vmatprep.subr.mxu0 0.0
        %1018 = vmatpush1.msra.mxu0 0.0
        %1019 = vmatprep.subr.mxu0 0.0
        %1020 = vmatpush1.msra.mxu0 0.0
        %1021 = vmatprep.subr.mxu0 0.0
        %1022 = vmatpush1.msra.mxu0 0.0
        %1023 = vmatprep.subr.mxu0 0.0
        %1024 = vmatpush1.msra.mxu0 0.0
        %1025 = vmatprep.subr.mxu0 0.0
        %1026 = vmatpush1.msra.mxu0 0.0
        %1027 = vmatprep.subr.mxu0 0.0
        %1028 = vmatpush1.msra.mxu0 0.0
        %1029 = vmatprep.subr.mxu0 0.0
        %1030 = vmatpush1.msra.mxu0 0.0
        %1031 = vmatprep.subr.mxu0 0.0
        %1032 = vmatpush1.msra.mxu0 0.0
        %1033 = vmatprep.subr.mxu0 0.0
        %1034 = vmatpush1.msra.mxu0 0.0
        %1035 = vmatprep.subr.mxu0 0.0
        %1036 = vmatpush1.msra.mxu0 0.0
        %1037 = vmatprep.subr.mxu0 0.0
        %1038 = vmatpush1.msra.mxu0 0.0
        %1039 = vmatprep.subr.mxu0 0.0
        %1040 = vmatpush1.msra.mxu0 0.0
        %1041 = vmatprep.subr.mxu0 0.0
        %1042 = vmatpush1.msra.mxu0 0.0
        %1043 = vmatprep.subr.mxu0 0.0
        %1044 = vmatpush1.msra.mxu0 0.0
        %1045 = vmatprep.subr.mxu0 0.0
        %1046 = vmatpush1.msra.mxu0 0.0
        %1047 = vmatprep.subr.mxu0 0.0
        %1048 = vmatpush1.msra.mxu0 0.0
        %1049 = vmatprep.mubr.f32.mxu0 0.0
        %1050 = vmatmul.mubr.f32.gmra.mrb[0].mxu0 %v377
        %v1051 = vpop.f32.mrb[0].mxu0
        %v1052 = vadd.f32 0.0, %v1051
        %v1053 = vpop.f32.mrb[0].mxu0
        %1054 = vmatprep.mubr.f32.mxu0 0.0
        %1055 = vmatmul.mubr.f32.gmra.mrb[0].mxu0 %v380
        %v1056 = vpop.f32.mrb[0].mxu0
        %v1057 = vadd.f32 0.0, %v1056
        %v1058 = vpop.f32.mrb[0].mxu0
        %1059 = vmatprep.mubr.f32.mxu0 0.0
        %1060 = vmatmul.mubr.f32.gmra.mrb[0].mxu0 %v383
        %v1061 = vpop.f32.mrb[0].mxu0
        %v1062 = vadd.f32 0.0, %v1061
        %v1063 = vpop.f32.mrb[0].mxu0
        %1064 = vmatprep.mubr.f32.mxu0 0.0
        %1065 = vmatmul.mubr.f32.gmra.mrb[0].mxu0 %v386
        %v1066 = vpop.f32.mrb[0].mxu0
        %v1067 = vadd.f32 0.0, %v1066
        %v1068 = vpop.f32.mrb[0].mxu0
        %1069 = vmatprep.mubr.f32.mxu0 0.0
        %1070 = vmatmul.mubr.f32.gmra.mrb[0].mxu0 %v389
        %v1071 = vpop.f32.mrb[0].mxu0
        %v1072 = vadd.f32 0.0, %v1071
        %v1073 = vpop.f32.mrb[0].mxu0
        %1074 = vdwg.mxu0
        %v1076 = vsel %vm375, %v1052, 0
        %v1079 = vsel %vm375, %v1057, 0
        %v1082 = vsel %vm375, %v1062, 0
        %v1085 = vsel %vm375, %v1067, 0
        %v1088 = vsel %vm375, %v1072, 0
        %1090 = vmatprep.subr.mxu0 0.0
        %1091 = vmatpush1.msra.mxu0 %v371
        %1092 = vmatprep.subr.mxu0 0.0
        %1093 = vmatpush1.msra.mxu0 %v372
        %1094 = vmatprep.subr.mxu0 0.0
        %1095 = vmatpush1.msra.mxu0 0.0
        %1096 = vmatprep.subr.mxu0 0.0
        %1097 = vmatpush1.msra.mxu0 0.0
        %1098 = vmatprep.subr.mxu0 0.0
        %1099 = vmatpush1.msra.mxu0 0.0
        %1100 = vmatprep.subr.mxu0 0.0
        %1101 = vmatpush1.msra.mxu0 0.0
        %1102 = vmatprep.subr.mxu0 0.0
        %1103 = vmatpush1.msra.mxu0 0.0
        %1104 = vmatprep.subr.mxu0 0.0
        %1105 = vmatpush1.msra.mxu0 0.0
        %1106 = vmatprep.subr.mxu0 0.0
        %1107 = vmatpush1.msra.mxu0 0.0
        %1108 = vmatprep.subr.mxu0 0.0
        %1109 = vmatpush1.msra.mxu0 0.0
        %1110 = vmatprep.subr.mxu0 0.0
        %1111 = vmatpush1.msra.mxu0 0.0
        %1112 = vmatprep.subr.mxu0 0.0
        %1113 = vmatpush1.msra.mxu0 0.0
        %1114 = vmatprep.subr.mxu0 0.0
        %1115 = vmatpush1.msra.mxu0 0.0
        %1116 = vmatprep.subr.mxu0 0.0
        %1117 = vmatpush1.msra.mxu0 0.0
        %1118 = vmatprep.subr.mxu0 0.0
        %1119 = vmatpush1.msra.mxu0 0.0
        %1120 = vmatprep.subr.mxu0 0.0
        %1121 = vmatpush1.msra.mxu0 0.0
        %1122 = vmatprep.subr.mxu0 0.0
        %1123 = vmatpush1.msra.mxu0 0.0
        %1124 = vmatprep.subr.mxu0 0.0
        %1125 = vmatpush1.msra.mxu0 0.0
        %1126 = vmatprep.subr.mxu0 0.0
        %1127 = vmatpush1.msra.mxu0 0.0
        %1128 = vmatprep.subr.mxu0 0.0
        %1129 = vmatpush1.msra.mxu0 0.0
        %1130 = vmatprep.subr.mxu0 0.0
        %1131 = vmatpush1.msra.mxu0 0.0
        %1132 = vmatprep.subr.mxu0 0.0
        %1133 = vmatpush1.msra.mxu0 0.0
        %1134 = vmatprep.subr.mxu0 0.0
        %1135 = vmatpush1.msra.mxu0 0.0
        %1136 = vmatprep.subr.mxu0 0.0
        %1137 = vmatpush1.msra.mxu0 0.0
        %1138 = vmatprep.subr.mxu0 0.0
        %1139 = vmatpush1.msra.mxu0 0.0
        %1140 = vmatprep.subr.mxu0 0.0
        %1141 = vmatpush1.msra.mxu0 0.0
        %1142 = vmatprep.subr.mxu0 0.0
        %1143 = vmatpush1.msra.mxu0 0.0
        %1144 = vmatprep.subr.mxu0 0.0
        %1145 = vmatpush1.msra.mxu0 0.0
        %1146 = vmatprep.subr.mxu0 0.0
        %1147 = vmatpush1.msra.mxu0 0.0
        %1148 = vmatprep.subr.mxu0 0.0
        %1149 = vmatpush1.msra.mxu0 0.0
        %1150 = vmatprep.subr.mxu0 0.0
        %1151 = vmatpush1.msra.mxu0 0.0
        %1152 = vmatprep.subr.mxu0 0.0
        %1153 = vmatpush1.msra.mxu0 0.0
        %1154 = vmatprep.mubr.f32.mxu0 0.0
        %1155 = vmatmul.mubr.f32.gmra.mrb[0].mxu0 %v1076
        %v1156 = vpop.f32.mrb[0].mxu0
        %v1157 = vadd.f32 0.0, %v1156
        %v1158 = vpop.f32.mrb[0].mxu0
        %1159 = vmatprep.mubr.f32.mxu0 0.0
        %1160 = vmatmul.mubr.f32.gmra.mrb[0].mxu0 %v1079
        %v1161 = vpop.f32.mrb[0].mxu0
        %v1162 = vadd.f32 0.0, %v1161
        %v1163 = vpop.f32.mrb[0].mxu0
        %1164 = vmatprep.mubr.f32.mxu0 0.0
        %1165 = vmatmul.mubr.f32.gmra.mrb[0].mxu0 %v1082
        %v1166 = vpop.f32.mrb[0].mxu0
        %v1167 = vadd.f32 0.0, %v1166
        %v1168 = vpop.f32.mrb[0].mxu0
        %1169 = vmatprep.mubr.f32.mxu0 0.0
        %1170 = vmatmul.mubr.f32.gmra.mrb[0].mxu0 %v1085
        %v1171 = vpop.f32.mrb[0].mxu0
        %v1172 = vadd.f32 0.0, %v1171
        %v1173 = vpop.f32.mrb[0].mxu0
        %1174 = vmatprep.mubr.f32.mxu0 0.0
        %1175 = vmatmul.mubr.f32.gmra.mrb[0].mxu0 %v1088
        %v1176 = vpop.f32.mrb[0].mxu0
        %v1177 = vadd.f32 0.0, %v1176
        %v1178 = vpop.f32.mrb[0].mxu0
        %1179 = vdwg.mxu0
        %s1180 = ssub.s32 %s364, 1
        %v1181 = vlaneseq
        %v1182 = vshrl.u32 %v1181, 7
        %v1183 = vadd.s32 %v1182, 8
        %v1184 = vadd.s32 %v1182, 16
        %v1185 = vadd.s32 %v1182, 24
        %v1186 = vadd.s32 %v1182, 32
        %v1187 = vstv %s1180
        %v1188 = vadd.s32 %v1187, %v1182
        %v1189 = vadd.s32 %v1187, %v1183
        %v1190 = vadd.s32 %v1187, %v1184
        %v1191 = vadd.s32 %v1187, %v1185
        %v1192 = vadd.s32 %v1187, %v1186
        %v1193 = vlaneseq
        %v1194 = vand.u32 %v1193, 127
        %vm1195 = vcmp.ge.s32.totalorder %v1188, 0
        %vm1196 = vcmp.ge.s32.totalorder %v1189, 0
        %vm1197 = vcmp.ge.s32.totalorder %v1190, 0
        %vm1198 = vcmp.ge.s32.totalorder %v1191, 0
        %vm1199 = vcmp.ge.s32.totalorder %v1192, 0
        %vm1200 = vcmp.lt.s32.totalorder %v1188, 32
        %vm1201 = vcmp.lt.s32.totalorder %v1189, 32
        %vm1202 = vcmp.lt.s32.totalorder %v1190, 32
        %vm1203 = vcmp.lt.s32.totalorder %v1191, 32
        %vm1204 = vcmp.lt.s32.totalorder %v1192, 32
        %vm1205 = vmand %vm1195, %vm1200
        %vm1206 = vmand %vm1196, %vm1201
        %vm1207 = vmand %vm1197, %vm1202
        %vm1208 = vmand %vm1198, %vm1203
        %vm1209 = vmand %vm1199, %vm1204
        %vm1210 = vcmp.ge.s32.totalorder %v1194, 1
        %vm1211 = vmand %vm1205, %vm1210
        %vm1212 = vmand %vm1206, %vm1210
        %vm1213 = vmand %vm1207, %vm1210
        %vm1214 = vmand %vm1208, %vm1210
        %vm1215 = vmand %vm1209, %vm1210
        %vm1216 = vcmp.le.s32.totalorder %v1194, 32
        %vm1217 = vmand %vm1211, %vm1216
        %vm1218 = vmand %vm1212, %vm1216
        %vm1219 = vmand %vm1213, %vm1216
        %vm1220 = vmand %vm1214, %vm1216
        %vm1221 = vmand %vm1215, %vm1216
        %s1222 = sld [smem:[#allocation6]]
        %v1223 = vstv %s1222
        %v1224 = vmul.f32 %v563, %v1223
        %v1225 = vmul.f32 %v568, %v1223
        %v1226 = vmul.f32 %v573, %v1223
        %v1227 = vmul.f32 %v578, %v1223
        %v1228 = vmul.f32 %v583, %v1223
        %s1229 = sld [smem:[#allocation6 + $0x1]]
        %v1230 = vstv %s1229
        %v1231 = vmul.f32 %v563, %v1230
        %v1232 = vmul.f32 %v568, %v1230
        %v1233 = vmul.f32 %v573, %v1230
        %v1234 = vmul.f32 %v578, %v1230
        %v1235 = vmul.f32 %v583, %v1230
        %1241 = vrot.lane.b32.xlu0 %v1231, 127
        %v1242 = vpop.permute.xlu0 %1241
        %1243 = vrot.lane.b32.xlu0 %v1232, 127
        %v1244 = vpop.permute.xlu0 %1243
        %1245 = vrot.lane.b32.xlu0 %v1233, 127
        %v1246 = vpop.permute.xlu0 %1245
        %1247 = vrot.lane.b32.xlu0 %v1234, 127
        %v1248 = vpop.permute.xlu0 %1247
        %1249 = vrot.lane.b32.xlu0 %v1235, 127
        %v1250 = vpop.permute.xlu0 %1249
        %v1256 = vadd.f32 %v1224, %v1242
        %v1257 = vadd.f32 %v1225, %v1244
        %v1258 = vadd.f32 %v1226, %v1246
        %v1259 = vadd.f32 %v1227, %v1248
        %v1260 = vadd.f32 %v1228, %v1250
        %s1261 = sld [smem:[#allocation6 + $0x2]]
        %v1262 = vstv %s1261
        %v1263 = vmul.f32 %v563, %v1262
        %v1264 = vmul.f32 %v568, %v1262
        %v1265 = vmul.f32 %v573, %v1262
        %v1266 = vmul.f32 %v578, %v1262
        %v1267 = vmul.f32 %v583, %v1262
        %1273 = vrot.lane.b32.xlu0 %v1263, 126
        %v1274 = vpop.permute.xlu0 %1273
        %1275 = vrot.lane.b32.xlu0 %v1264, 126
        %v1276 = vpop.permute.xlu0 %1275
        %1277 = vrot.lane.b32.xlu0 %v1265, 126
        %v1278 = vpop.permute.xlu0 %1277
        %1279 = vrot.lane.b32.xlu0 %v1266, 126
        %v1280 = vpop.permute.xlu0 %1279
        %1281 = vrot.lane.b32.xlu0 %v1267, 126
        %v1282 = vpop.permute.xlu0 %1281
        %v1288 = vadd.f32 %v1256, %v1274
        %v1289 = vadd.f32 %v1257, %v1276
        %v1290 = vadd.f32 %v1258, %v1278
        %v1291 = vadd.f32 %v1259, %v1280
        %v1292 = vadd.f32 %v1260, %v1282
        %s1293 = sld [smem:[#allocation6 + $0x3]]
        %v1294 = vstv %s1293
        %v1295 = vmul.f32 %v563, %v1294
        %v1296 = vmul.f32 %v568, %v1294
        %v1297 = vmul.f32 %v573, %v1294
        %v1298 = vmul.f32 %v578, %v1294
        %v1299 = vmul.f32 %v583, %v1294
        %vm1305 = vcmask 1046528
        %v1306 = vrot.slane %v1295, 1
        %v1307 = vrot.slane %v1296, 1
        %v1308 = vsel %vm1305, %v1306, %v1307
        %v1309 = vrot.slane %v1297, 1
        %v1310 = vsel %vm1305, %v1307, %v1309
        %v1311 = vrot.slane %v1298, 1
        %v1312 = vsel %vm1305, %v1309, %v1311
        %v1313 = vrot.slane %v1299, 1
        %v1314 = vsel %vm1305, %v1311, %v1313
        %v1320 = vadd.f32 %v1288, %v1308
        %v1321 = vadd.f32 %v1289, %v1310
        %v1322 = vadd.f32 %v1290, %v1312
        %v1323 = vadd.f32 %v1291, %v1314
        %v1324 = vadd.f32 %v1292, %v1313
        %s1325 = sld [smem:[#allocation6 + $0x4]]
        %v1326 = vstv %s1325
        %v1327 = vmul.f32 %v563, %v1326
        %v1328 = vmul.f32 %v568, %v1326
        %v1329 = vmul.f32 %v573, %v1326
        %v1330 = vmul.f32 %v578, %v1326
        %v1331 = vmul.f32 %v583, %v1326
        %v1337 = vrot.slane %v1327, 1
        %v1338 = vrot.slane %v1328, 1
        %v1339 = vsel %vm1305, %v1337, %v1338
        %v1340 = vrot.slane %v1329, 1
        %v1341 = vsel %vm1305, %v1338, %v1340
        %v1342 = vrot.slane %v1330, 1
        %v1343 = vsel %vm1305, %v1340, %v1342
        %v1344 = vrot.slane %v1331, 1
        %v1345 = vsel %vm1305, %v1342, %v1344
        %1346 = vrot.lane.b32.xlu0 %v1339, 127
        %v1347 = vpop.permute.xlu0 %1346
        %1348 = vrot.lane.b32.xlu0 %v1341, 127
        %v1349 = vpop.permute.xlu0 %1348
        %1350 = vrot.lane.b32.xlu0 %v1343, 127
        %v1351 = vpop.permute.xlu0 %1350
        %1352 = vrot.lane.b32.xlu0 %v1345, 127
        %v1353 = vpop.permute.xlu0 %1352
        %1354 = vrot.lane.b32.xlu0 %v1344, 127
        %v1355 = vpop.permute.xlu0 %1354
        %v1361 = vadd.f32 %v1320, %v1347
        %v1362 = vadd.f32 %v1321, %v1349
        %v1363 = vadd.f32 %v1322, %v1351
        %v1364 = vadd.f32 %v1323, %v1353
        %v1365 = vadd.f32 %v1324, %v1355
        %s1366 = sld [smem:[#allocation6 + $0x5]]
        %v1367 = vstv %s1366
        %v1368 = vmul.f32 %v563, %v1367
        %v1369 = vmul.f32 %v568, %v1367
        %v1370 = vmul.f32 %v573, %v1367
        %v1371 = vmul.f32 %v578, %v1367
        %v1372 = vmul.f32 %v583, %v1367
        %v1378 = vrot.slane %v1368, 1
        %v1379 = vrot.slane %v1369, 1
        %v1380 = vsel %vm1305, %v1378, %v1379
        %v1381 = vrot.slane %v1370, 1
        %v1382 = vsel %vm1305, %v1379, %v1381
        %v1383 = vrot.slane %v1371, 1
        %v1384 = vsel %vm1305, %v1381, %v1383
        %v1385 = vrot.slane %v1372, 1
        %v1386 = vsel %vm1305, %v1383, %v1385
        %1387 = vrot.lane.b32.xlu0 %v1380, 126
        %v1388 = vpop.permute.xlu0 %1387
        %1389 = vrot.lane.b32.xlu0 %v1382, 126
        %v1390 = vpop.permute.xlu0 %1389
        %1391 = vrot.lane.b32.xlu0 %v1384, 126
        %v1392 = vpop.permute.xlu0 %1391
        %1393 = vrot.lane.b32.xlu0 %v1386, 126
        %v1394 = vpop.permute.xlu0 %1393
        %1395 = vrot.lane.b32.xlu0 %v1385, 126
        %v1396 = vpop.permute.xlu0 %1395
        %v1402 = vadd.f32 %v1361, %v1388
        %v1403 = vadd.f32 %v1362, %v1390
        %v1404 = vadd.f32 %v1363, %v1392
        %v1405 = vadd.f32 %v1364, %v1394
        %v1406 = vadd.f32 %v1365, %v1396
        %s1407 = sld [smem:[#allocation6 + $0x6]]
        %v1408 = vstv %s1407
        %v1409 = vmul.f32 %v563, %v1408
        %v1410 = vmul.f32 %v568, %v1408
        %v1411 = vmul.f32 %v573, %v1408
        %v1412 = vmul.f32 %v578, %v1408
        %v1413 = vmul.f32 %v583, %v1408
        %vm1419 = vcmask 1045504
        %v1420 = vrot.slane %v1409, 2
        %v1421 = vrot.slane %v1410, 2
        %v1422 = vsel %vm1419, %v1420, %v1421
        %v1423 = vrot.slane %v1411, 2
        %v1424 = vsel %vm1419, %v1421, %v1423
        %v1425 = vrot.slane %v1412, 2
        %v1426 = vsel %vm1419, %v1423, %v1425
        %v1427 = vrot.slane %v1413, 2
        %v1428 = vsel %vm1419, %v1425, %v1427
        %v1434 = vadd.f32 %v1402, %v1422
        %v1435 = vadd.f32 %v1403, %v1424
        %v1436 = vadd.f32 %v1404, %v1426
        %v1437 = vadd.f32 %v1405, %v1428
        %v1438 = vadd.f32 %v1406, %v1427
        %s1439 = sld [smem:[#allocation6 + $0x7]]
        %v1440 = vstv %s1439
        %v1441 = vmul.f32 %v563, %v1440
        %v1442 = vmul.f32 %v568, %v1440
        %v1443 = vmul.f32 %v573, %v1440
        %v1444 = vmul.f32 %v578, %v1440
        %v1445 = vmul.f32 %v583, %v1440
        %v1451 = vrot.slane %v1441, 2
        %v1452 = vrot.slane %v1442, 2
        %v1453 = vsel %vm1419, %v1451, %v1452
        %v1454 = vrot.slane %v1443, 2
        %v1455 = vsel %vm1419, %v1452, %v1454
        %v1456 = vrot.slane %v1444, 2
        %v1457 = vsel %vm1419, %v1454, %v1456
        %v1458 = vrot.slane %v1445, 2
        %v1459 = vsel %vm1419, %v1456, %v1458
        %1460 = vrot.lane.b32.xlu0 %v1453, 127
        %v1461 = vpop.permute.xlu0 %1460
        %1462 = vrot.lane.b32.xlu0 %v1455, 127
        %v1463 = vpop.permute.xlu0 %1462
        %1464 = vrot.lane.b32.xlu0 %v1457, 127
        %v1465 = vpop.permute.xlu0 %1464
        %1466 = vrot.lane.b32.xlu0 %v1459, 127
        %v1467 = vpop.permute.xlu0 %1466
        %1468 = vrot.lane.b32.xlu0 %v1458, 127
        %v1469 = vpop.permute.xlu0 %1468
        %v1475 = vadd.f32 %v1434, %v1461
        %v1476 = vadd.f32 %v1435, %v1463
        %v1477 = vadd.f32 %v1436, %v1465
        %v1478 = vadd.f32 %v1437, %v1467
        %v1479 = vadd.f32 %v1438, %v1469
        %s1480 = sld [smem:[#allocation6 + $0x8]]
        %v1481 = vstv %s1480
        %v1482 = vmul.f32 %v563, %v1481
        %v1483 = vmul.f32 %v568, %v1481
        %v1484 = vmul.f32 %v573, %v1481
        %v1485 = vmul.f32 %v578, %v1481
        %v1486 = vmul.f32 %v583, %v1481
        %v1492 = vrot.slane %v1482, 2
        %v1493 = vrot.slane %v1483, 2
        %v1494 = vsel %vm1419, %v1492, %v1493
        %v1495 = vrot.slane %v1484, 2
        %v1496 = vsel %vm1419, %v1493, %v1495
        %v1497 = vrot.slane %v1485, 2
        %v1498 = vsel %vm1419, %v1495, %v1497
        %v1499 = vrot.slane %v1486, 2
        %v1500 = vsel %vm1419, %v1497, %v1499
        %1501 = vrot.lane.b32.xlu0 %v1494, 126
        %v1502 = vpop.permute.xlu0 %1501
        %1503 = vrot.lane.b32.xlu0 %v1496, 126
        %v1504 = vpop.permute.xlu0 %1503
        %1505 = vrot.lane.b32.xlu0 %v1498, 126
        %v1506 = vpop.permute.xlu0 %1505
        %1507 = vrot.lane.b32.xlu0 %v1500, 126
        %v1508 = vpop.permute.xlu0 %1507
        %1509 = vrot.lane.b32.xlu0 %v1499, 126
        %v1510 = vpop.permute.xlu0 %1509
        %v1516 = vadd.f32 %v1475, %v1502
        %v1517 = vadd.f32 %v1476, %v1504
        %v1518 = vadd.f32 %v1477, %v1506
        %v1519 = vadd.f32 %v1478, %v1508
        %v1520 = vadd.f32 %v1479, %v1510
        %s1521 = sld [smem:[#allocation6 + $0x9]]
        %v1522 = vstv %s1521
        %v1523 = vmul.f32 %v761, %v1522
        %v1524 = vmul.f32 %v766, %v1522
        %v1525 = vmul.f32 %v771, %v1522
        %v1526 = vmul.f32 %v776, %v1522
        %v1527 = vmul.f32 %v781, %v1522
        %v1528 = vadd.f32 %v1516, %v1523
        %v1529 = vadd.f32 %v1517, %v1524
        %v1530 = vadd.f32 %v1518, %v1525
        %v1531 = vadd.f32 %v1519, %v1526
        %v1532 = vadd.f32 %v1520, %v1527
        %s1533 = sld [smem:[#allocation6 + $0xa]]
        %v1534 = vstv %s1533
        %v1535 = vmul.f32 %v761, %v1534
        %v1536 = vmul.f32 %v766, %v1534
        %v1537 = vmul.f32 %v771, %v1534
        %v1538 = vmul.f32 %v776, %v1534
        %v1539 = vmul.f32 %v781, %v1534
        %1545 = vrot.lane.b32.xlu0 %v1535, 127
        %v1546 = vpop.permute.xlu0 %1545
        %1547 = vrot.lane.b32.xlu0 %v1536, 127
        %v1548 = vpop.permute.xlu0 %1547
        %1549 = vrot.lane.b32.xlu0 %v1537, 127
        %v1550 = vpop.permute.xlu0 %1549
        %1551 = vrot.lane.b32.xlu0 %v1538, 127
        %v1552 = vpop.permute.xlu0 %1551
        %1553 = vrot.lane.b32.xlu0 %v1539, 127
        %v1554 = vpop.permute.xlu0 %1553
        %v1560 = vadd.f32 %v1528, %v1546
        %v1561 = vadd.f32 %v1529, %v1548
        %v1562 = vadd.f32 %v1530, %v1550
        %v1563 = vadd.f32 %v1531, %v1552
        %v1564 = vadd.f32 %v1532, %v1554
        %s1565 = sld [smem:[#allocation6 + $0xb]]
        %v1566 = vstv %s1565
        %v1567 = vmul.f32 %v761, %v1566
        %v1568 = vmul.f32 %v766, %v1566
        %v1569 = vmul.f32 %v771, %v1566
        %v1570 = vmul.f32 %v776, %v1566
        %v1571 = vmul.f32 %v781, %v1566
        %1577 = vrot.lane.b32.xlu0 %v1567, 126
        %v1578 = vpop.permute.xlu0 %1577
        %1579 = vrot.lane.b32.xlu0 %v1568, 126
        %v1580 = vpop.permute.xlu0 %1579
        %1581 = vrot.lane.b32.xlu0 %v1569, 126
        %v1582 = vpop.permute.xlu0 %1581
        %1583 = vrot.lane.b32.xlu0 %v1570, 126
        %v1584 = vpop.permute.xlu0 %1583
        %1585 = vrot.lane.b32.xlu0 %v1571, 126
        %v1586 = vpop.permute.xlu0 %1585
        %v1592 = vadd.f32 %v1560, %v1578
        %v1593 = vadd.f32 %v1561, %v1580
        %v1594 = vadd.f32 %v1562, %v1582
        %v1595 = vadd.f32 %v1563, %v1584
        %v1596 = vadd.f32 %v1564, %v1586
        %s1597 = sld [smem:[#allocation6 + $0xc]]
        %v1598 = vstv %s1597
        %v1599 = vmul.f32 %v761, %v1598
        %v1600 = vmul.f32 %v766, %v1598
        %v1601 = vmul.f32 %v771, %v1598
        %v1602 = vmul.f32 %v776, %v1598
        %v1603 = vmul.f32 %v781, %v1598
        %v1609 = vrot.slane %v1599, 1
        %v1610 = vrot.slane %v1600, 1
        %v1611 = vsel %vm1305, %v1609, %v1610
        %v1612 = vrot.slane %v1601, 1
        %v1613 = vsel %vm1305, %v1610, %v1612
        %v1614 = vrot.slane %v1602, 1
        %v1615 = vsel %vm1305, %v1612, %v1614
        %v1616 = vrot.slane %v1603, 1
        %v1617 = vsel %vm1305, %v1614, %v1616
        %v1623 = vadd.f32 %v1592, %v1611
        %v1624 = vadd.f32 %v1593, %v1613
        %v1625 = vadd.f32 %v1594, %v1615
        %v1626 = vadd.f32 %v1595, %v1617
        %v1627 = vadd.f32 %v1596, %v1616
        %s1628 = sld [smem:[#allocation6 + $0xd]]
        %v1629 = vstv %s1628
        %v1630 = vmul.f32 %v761, %v1629
        %v1631 = vmul.f32 %v766, %v1629
        %v1632 = vmul.f32 %v771, %v1629
        %v1633 = vmul.f32 %v776, %v1629
        %v1634 = vmul.f32 %v781, %v1629
        %v1640 = vrot.slane %v1630, 1
        %v1641 = vrot.slane %v1631, 1
        %v1642 = vsel %vm1305, %v1640, %v1641
        %v1643 = vrot.slane %v1632, 1
        %v1644 = vsel %vm1305, %v1641, %v1643
        %v1645 = vrot.slane %v1633, 1
        %v1646 = vsel %vm1305, %v1643, %v1645
        %v1647 = vrot.slane %v1634, 1
        %v1648 = vsel %vm1305, %v1645, %v1647
        %1649 = vrot.lane.b32.xlu0 %v1642, 127
        %v1650 = vpop.permute.xlu0 %1649
        %1651 = vrot.lane.b32.xlu0 %v1644, 127
        %v1652 = vpop.permute.xlu0 %1651
        %1653 = vrot.lane.b32.xlu0 %v1646, 127
        %v1654 = vpop.permute.xlu0 %1653
        %1655 = vrot.lane.b32.xlu0 %v1648, 127
        %v1656 = vpop.permute.xlu0 %1655
        %1657 = vrot.lane.b32.xlu0 %v1647, 127
        %v1658 = vpop.permute.xlu0 %1657
        %v1664 = vadd.f32 %v1623, %v1650
        %v1665 = vadd.f32 %v1624, %v1652
        %v1666 = vadd.f32 %v1625, %v1654
        %v1667 = vadd.f32 %v1626, %v1656
        %v1668 = vadd.f32 %v1627, %v1658
        %s1669 = sld [smem:[#allocation6 + $0xe]]
        %v1670 = vstv %s1669
        %v1671 = vmul.f32 %v761, %v1670
        %v1672 = vmul.f32 %v766, %v1670
        %v1673 = vmul.f32 %v771, %v1670
        %v1674 = vmul.f32 %v776, %v1670
        %v1675 = vmul.f32 %v781, %v1670
        %v1681 = vrot.slane %v1671, 1
        %v1682 = vrot.slane %v1672, 1
        %v1683 = vsel %vm1305, %v1681, %v1682
        %v1684 = vrot.slane %v1673, 1
        %v1685 = vsel %vm1305, %v1682, %v1684
        %v1686 = vrot.slane %v1674, 1
        %v1687 = vsel %vm1305, %v1684, %v1686
        %v1688 = vrot.slane %v1675, 1
        %v1689 = vsel %vm1305, %v1686, %v1688
        %1690 = vrot.lane.b32.xlu0 %v1683, 126
        %v1691 = vpop.permute.xlu0 %1690
        %1692 = vrot.lane.b32.xlu0 %v1685, 126
        %v1693 = vpop.permute.xlu0 %1692
        %1694 = vrot.lane.b32.xlu0 %v1687, 126
        %v1695 = vpop.permute.xlu0 %1694
        %1696 = vrot.lane.b32.xlu0 %v1689, 126
        %v1697 = vpop.permute.xlu0 %1696
        %1698 = vrot.lane.b32.xlu0 %v1688, 126
        %v1699 = vpop.permute.xlu0 %1698
        %v1705 = vadd.f32 %v1664, %v1691
        %v1706 = vadd.f32 %v1665, %v1693
        %v1707 = vadd.f32 %v1666, %v1695
        %v1708 = vadd.f32 %v1667, %v1697
        %v1709 = vadd.f32 %v1668, %v1699
        %s1710 = sld [smem:[#allocation6 + $0xf]]
        %v1711 = vstv %s1710
        %v1712 = vmul.f32 %v761, %v1711
        %v1713 = vmul.f32 %v766, %v1711
        %v1714 = vmul.f32 %v771, %v1711
        %v1715 = vmul.f32 %v776, %v1711
        %v1716 = vmul.f32 %v781, %v1711
        %v1722 = vrot.slane %v1712, 2
        %v1723 = vrot.slane %v1713, 2
        %v1724 = vsel %vm1419, %v1722, %v1723
        %v1725 = vrot.slane %v1714, 2
        %v1726 = vsel %vm1419, %v1723, %v1725
        %v1727 = vrot.slane %v1715, 2
        %v1728 = vsel %vm1419, %v1725, %v1727
        %v1729 = vrot.slane %v1716, 2
        %v1730 = vsel %vm1419, %v1727, %v1729
        %v1736 = vadd.f32 %v1705, %v1724
        %v1737 = vadd.f32 %v1706, %v1726
        %v1738 = vadd.f32 %v1707, %v1728
        %v1739 = vadd.f32 %v1708, %v1730
        %v1740 = vadd.f32 %v1709, %v1729
        %s1741 = sld [smem:[#allocation6 + $0x10]]
        %v1742 = vstv %s1741
        %v1743 = vmul.f32 %v761, %v1742
        %v1744 = vmul.f32 %v766, %v1742
        %v1745 = vmul.f32 %v771, %v1742
        %v1746 = vmul.f32 %v776, %v1742
        %v1747 = vmul.f32 %v781, %v1742
        %v1753 = vrot.slane %v1743, 2
        %v1754 = vrot.slane %v1744, 2
        %v1755 = vsel %vm1419, %v1753, %v1754
        %v1756 = vrot.slane %v1745, 2
        %v1757 = vsel %vm1419, %v1754, %v1756
        %v1758 = vrot.slane %v1746, 2
        %v1759 = vsel %vm1419, %v1756, %v1758
        %v1760 = vrot.slane %v1747, 2
        %v1761 = vsel %vm1419, %v1758, %v1760
        %1762 = vrot.lane.b32.xlu0 %v1755, 127
        %v1763 = vpop.permute.xlu0 %1762
        %1764 = vrot.lane.b32.xlu0 %v1757, 127
        %v1765 = vpop.permute.xlu0 %1764
        %1766 = vrot.lane.b32.xlu0 %v1759, 127
        %v1767 = vpop.permute.xlu0 %1766
        %1768 = vrot.lane.b32.xlu0 %v1761, 127
        %v1769 = vpop.permute.xlu0 %1768
        %1770 = vrot.lane.b32.xlu0 %v1760, 127
        %v1771 = vpop.permute.xlu0 %1770
        %v1777 = vadd.f32 %v1736, %v1763
        %v1778 = vadd.f32 %v1737, %v1765
        %v1779 = vadd.f32 %v1738, %v1767
        %v1780 = vadd.f32 %v1739, %v1769
        %v1781 = vadd.f32 %v1740, %v1771
        %s1782 = sld [smem:[#allocation6 + $0x11]]
        %v1783 = vstv %s1782
        %v1784 = vmul.f32 %v761, %v1783
        %v1785 = vmul.f32 %v766, %v1783
        %v1786 = vmul.f32 %v771, %v1783
        %v1787 = vmul.f32 %v776, %v1783
        %v1788 = vmul.f32 %v781, %v1783
        %v1794 = vrot.slane %v1784, 2
        %v1795 = vrot.slane %v1785, 2
        %v1796 = vsel %vm1419, %v1794, %v1795
        %v1797 = vrot.slane %v1786, 2
        %v1798 = vsel %vm1419, %v1795, %v1797
        %v1799 = vrot.slane %v1787, 2
        %v1800 = vsel %vm1419, %v1797, %v1799
        %v1801 = vrot.slane %v1788, 2
        %v1802 = vsel %vm1419, %v1799, %v1801
        %1803 = vrot.lane.b32.xlu0 %v1796, 126
        %v1804 = vpop.permute.xlu0 %1803
        %1805 = vrot.lane.b32.xlu0 %v1798, 126
        %v1806 = vpop.permute.xlu0 %1805
        %1807 = vrot.lane.b32.xlu0 %v1800, 126
        %v1808 = vpop.permute.xlu0 %1807
        %1809 = vrot.lane.b32.xlu0 %v1802, 126
        %v1810 = vpop.permute.xlu0 %1809
        %1811 = vrot.lane.b32.xlu0 %v1801, 126
        %v1812 = vpop.permute.xlu0 %1811
        %v1818 = vadd.f32 %v1777, %v1804
        %v1819 = vadd.f32 %v1778, %v1806
        %v1820 = vadd.f32 %v1779, %v1808
        %v1821 = vadd.f32 %v1780, %v1810
        %v1822 = vadd.f32 %v1781, %v1812
        %s1823 = sld [smem:[#allocation6 + $0x12]]
        %v1824 = vstv %s1823
        %v1825 = vmul.f32 %v959, %v1824
        %v1826 = vmul.f32 %v964, %v1824
        %v1827 = vmul.f32 %v969, %v1824
        %v1828 = vmul.f32 %v974, %v1824
        %v1829 = vmul.f32 %v979, %v1824
        %v1830 = vadd.f32 %v1818, %v1825
        %v1831 = vadd.f32 %v1819, %v1826
        %v1832 = vadd.f32 %v1820, %v1827
        %v1833 = vadd.f32 %v1821, %v1828
        %v1834 = vadd.f32 %v1822, %v1829
        %s1835 = sld [smem:[#allocation6 + $0x13]]
        %v1836 = vstv %s1835
        %v1837 = vmul.f32 %v959, %v1836
        %v1838 = vmul.f32 %v964, %v1836
        %v1839 = vmul.f32 %v969, %v1836
        %v1840 = vmul.f32 %v974, %v1836
        %v1841 = vmul.f32 %v979, %v1836
        %1847 = vrot.lane.b32.xlu0 %v1837, 127
        %v1848 = vpop.permute.xlu0 %1847
        %1849 = vrot.lane.b32.xlu0 %v1838, 127
        %v1850 = vpop.permute.xlu0 %1849
        %1851 = vrot.lane.b32.xlu0 %v1839, 127
        %v1852 = vpop.permute.xlu0 %1851
        %1853 = vrot.lane.b32.xlu0 %v1840, 127
        %v1854 = vpop.permute.xlu0 %1853
        %1855 = vrot.lane.b32.xlu0 %v1841, 127
        %v1856 = vpop.permute.xlu0 %1855
        %v1862 = vadd.f32 %v1830, %v1848
        %v1863 = vadd.f32 %v1831, %v1850
        %v1864 = vadd.f32 %v1832, %v1852
        %v1865 = vadd.f32 %v1833, %v1854
        %v1866 = vadd.f32 %v1834, %v1856
        %s1867 = sld [smem:[#allocation6 + $0x14]]
        %v1868 = vstv %s1867
        %v1869 = vmul.f32 %v959, %v1868
        %v1870 = vmul.f32 %v964, %v1868
        %v1871 = vmul.f32 %v969, %v1868
        %v1872 = vmul.f32 %v974, %v1868
        %v1873 = vmul.f32 %v979, %v1868
        %1879 = vrot.lane.b32.xlu0 %v1869, 126
        %v1880 = vpop.permute.xlu0 %1879
        %1881 = vrot.lane.b32.xlu0 %v1870, 126
        %v1882 = vpop.permute.xlu0 %1881
        %1883 = vrot.lane.b32.xlu0 %v1871, 126
        %v1884 = vpop.permute.xlu0 %1883
        %1885 = vrot.lane.b32.xlu0 %v1872, 126
        %v1886 = vpop.permute.xlu0 %1885
        %1887 = vrot.lane.b32.xlu0 %v1873, 126
        %v1888 = vpop.permute.xlu0 %1887
        %v1894 = vadd.f32 %v1862, %v1880
        %v1895 = vadd.f32 %v1863, %v1882
        %v1896 = vadd.f32 %v1864, %v1884
        %v1897 = vadd.f32 %v1865, %v1886
        %v1898 = vadd.f32 %v1866, %v1888
        %s1899 = sld [smem:[#allocation6 + $0x15]]
        %v1900 = vstv %s1899
        %v1901 = vmul.f32 %v959, %v1900
        %v1902 = vmul.f32 %v964, %v1900
        %v1903 = vmul.f32 %v969, %v1900
        %v1904 = vmul.f32 %v974, %v1900
        %v1905 = vmul.f32 %v979, %v1900
        %v1911 = vrot.slane %v1901, 1
        %v1912 = vrot.slane %v1902, 1
        %v1913 = vsel %vm1305, %v1911, %v1912
        %v1914 = vrot.slane %v1903, 1
        %v1915 = vsel %vm1305, %v1912, %v1914
        %v1916 = vrot.slane %v1904, 1
        %v1917 = vsel %vm1305, %v1914, %v1916
        %v1918 = vrot.slane %v1905, 1
        %v1919 = vsel %vm1305, %v1916, %v1918
        %v1925 = vadd.f32 %v1894, %v1913
        %v1926 = vadd.f32 %v1895, %v1915
        %v1927 = vadd.f32 %v1896, %v1917
        %v1928 = vadd.f32 %v1897, %v1919
        %v1929 = vadd.f32 %v1898, %v1918
        %s1930 = sld [smem:[#allocation6 + $0x16]]
        %v1931 = vstv %s1930
        %v1932 = vmul.f32 %v959, %v1931
        %v1933 = vmul.f32 %v964, %v1931
        %v1934 = vmul.f32 %v969, %v1931
        %v1935 = vmul.f32 %v974, %v1931
        %v1936 = vmul.f32 %v979, %v1931
        %v1942 = vrot.slane %v1932, 1
        %v1943 = vrot.slane %v1933, 1
        %v1944 = vsel %vm1305, %v1942, %v1943
        %v1945 = vrot.slane %v1934, 1
        %v1946 = vsel %vm1305, %v1943, %v1945
        %v1947 = vrot.slane %v1935, 1
        %v1948 = vsel %vm1305, %v1945, %v1947
        %v1949 = vrot.slane %v1936, 1
        %v1950 = vsel %vm1305, %v1947, %v1949
        %1951 = vrot.lane.b32.xlu0 %v1944, 127
        %v1952 = vpop.permute.xlu0 %1951
        %1953 = vrot.lane.b32.xlu0 %v1946, 127
        %v1954 = vpop.permute.xlu0 %1953
        %1955 = vrot.lane.b32.xlu0 %v1948, 127
        %v1956 = vpop.permute.xlu0 %1955
        %1957 = vrot.lane.b32.xlu0 %v1950, 127
        %v1958 = vpop.permute.xlu0 %1957
        %1959 = vrot.lane.b32.xlu0 %v1949, 127
        %v1960 = vpop.permute.xlu0 %1959
        %v1966 = vadd.f32 %v1925, %v1952
        %v1967 = vadd.f32 %v1926, %v1954
        %v1968 = vadd.f32 %v1927, %v1956
        %v1969 = vadd.f32 %v1928, %v1958
        %v1970 = vadd.f32 %v1929, %v1960
        %s1971 = sld [smem:[#allocation6 + $0x17]]
        %v1972 = vstv %s1971
        %v1973 = vmul.f32 %v959, %v1972
        %v1974 = vmul.f32 %v964, %v1972
        %v1975 = vmul.f32 %v969, %v1972
        %v1976 = vmul.f32 %v974, %v1972
        %v1977 = vmul.f32 %v979, %v1972
        %v1983 = vrot.slane %v1973, 1
        %v1984 = vrot.slane %v1974, 1
        %v1985 = vsel %vm1305, %v1983, %v1984
        %v1986 = vrot.slane %v1975, 1
        %v1987 = vsel %vm1305, %v1984, %v1986
        %v1988 = vrot.slane %v1976, 1
        %v1989 = vsel %vm1305, %v1986, %v1988
        %v1990 = vrot.slane %v1977, 1
        %v1991 = vsel %vm1305, %v1988, %v1990
        %1992 = vrot.lane.b32.xlu0 %v1985, 126
        %v1993 = vpop.permute.xlu0 %1992
        %1994 = vrot.lane.b32.xlu0 %v1987, 126
        %v1995 = vpop.permute.xlu0 %1994
        %1996 = vrot.lane.b32.xlu0 %v1989, 126
        %v1997 = vpop.permute.xlu0 %1996
        %1998 = vrot.lane.b32.xlu0 %v1991, 126
        %v1999 = vpop.permute.xlu0 %1998
        %2000 = vrot.lane.b32.xlu0 %v1990, 126
        %v2001 = vpop.permute.xlu0 %2000
        %v2007 = vadd.f32 %v1966, %v1993
        %v2008 = vadd.f32 %v1967, %v1995
        %v2009 = vadd.f32 %v1968, %v1997
        %v2010 = vadd.f32 %v1969, %v1999
        %v2011 = vadd.f32 %v1970, %v2001
        %s2012 = sld [smem:[#allocation6 + $0x18]]
        %v2013 = vstv %s2012
        %v2014 = vmul.f32 %v959, %v2013
        %v2015 = vmul.f32 %v964, %v2013
        %v2016 = vmul.f32 %v969, %v2013
        %v2017 = vmul.f32 %v974, %v2013
        %v2018 = vmul.f32 %v979, %v2013
        %v2024 = vrot.slane %v2014, 2
        %v2025 = vrot.slane %v2015, 2
        %v2026 = vsel %vm1419, %v2024, %v2025
        %v2027 = vrot.slane %v2016, 2
        %v2028 = vsel %vm1419, %v2025, %v2027
        %v2029 = vrot.slane %v2017, 2
        %v2030 = vsel %vm1419, %v2027, %v2029
        %v2031 = vrot.slane %v2018, 2
        %v2032 = vsel %vm1419, %v2029, %v2031
        %v2038 = vadd.f32 %v2007, %v2026
        %v2039 = vadd.f32 %v2008, %v2028
        %v2040 = vadd.f32 %v2009, %v2030
        %v2041 = vadd.f32 %v2010, %v2032
        %v2042 = vadd.f32 %v2011, %v2031
        %s2043 = sld [smem:[#allocation6 + $0x19]]
        %v2044 = vstv %s2043
        %v2045 = vmul.f32 %v959, %v2044
        %v2046 = vmul.f32 %v964, %v2044
        %v2047 = vmul.f32 %v969, %v2044
        %v2048 = vmul.f32 %v974, %v2044
        %v2049 = vmul.f32 %v979, %v2044
        %v2055 = vrot.slane %v2045, 2
        %v2056 = vrot.slane %v2046, 2
        %v2057 = vsel %vm1419, %v2055, %v2056
        %v2058 = vrot.slane %v2047, 2
        %v2059 = vsel %vm1419, %v2056, %v2058
        %v2060 = vrot.slane %v2048, 2
        %v2061 = vsel %vm1419, %v2058, %v2060
        %v2062 = vrot.slane %v2049, 2
        %v2063 = vsel %vm1419, %v2060, %v2062
        %2064 = vrot.lane.b32.xlu0 %v2057, 127
        %v2065 = vpop.permute.xlu0 %2064
        %2066 = vrot.lane.b32.xlu0 %v2059, 127
        %v2067 = vpop.permute.xlu0 %2066
        %2068 = vrot.lane.b32.xlu0 %v2061, 127
        %v2069 = vpop.permute.xlu0 %2068
        %2070 = vrot.lane.b32.xlu0 %v2063, 127
        %v2071 = vpop.permute.xlu0 %2070
        %2072 = vrot.lane.b32.xlu0 %v2062, 127
        %v2073 = vpop.permute.xlu0 %2072
        %v2079 = vadd.f32 %v2038, %v2065
        %v2080 = vadd.f32 %v2039, %v2067
        %v2081 = vadd.f32 %v2040, %v2069
        %v2082 = vadd.f32 %v2041, %v2071
        %v2083 = vadd.f32 %v2042, %v2073
        %s2084 = sld [smem:[#allocation6 + $0x1a]]
        %v2085 = vstv %s2084
        %v2086 = vmul.f32 %v959, %v2085
        %v2087 = vmul.f32 %v964, %v2085
        %v2088 = vmul.f32 %v969, %v2085
        %v2089 = vmul.f32 %v974, %v2085
        %v2090 = vmul.f32 %v979, %v2085
        %v2096 = vrot.slane %v2086, 2
        %v2097 = vrot.slane %v2087, 2
        %v2098 = vsel %vm1419, %v2096, %v2097
        %v2099 = vrot.slane %v2088, 2
        %v2100 = vsel %vm1419, %v2097, %v2099
        %v2101 = vrot.slane %v2089, 2
        %v2102 = vsel %vm1419, %v2099, %v2101
        %v2103 = vrot.slane %v2090, 2
        %v2104 = vsel %vm1419, %v2101, %v2103
        %2105 = vrot.lane.b32.xlu0 %v2098, 126
        %v2106 = vpop.permute.xlu0 %2105
        %2107 = vrot.lane.b32.xlu0 %v2100, 126
        %v2108 = vpop.permute.xlu0 %2107
        %2109 = vrot.lane.b32.xlu0 %v2102, 126
        %v2110 = vpop.permute.xlu0 %2109
        %2111 = vrot.lane.b32.xlu0 %v2104, 126
        %v2112 = vpop.permute.xlu0 %2111
        %2113 = vrot.lane.b32.xlu0 %v2103, 126
        %v2114 = vpop.permute.xlu0 %2113
        %v2120 = vadd.f32 %v2079, %v2106
        %v2121 = vadd.f32 %v2080, %v2108
        %v2122 = vadd.f32 %v2081, %v2110
        %v2123 = vadd.f32 %v2082, %v2112
        %v2124 = vadd.f32 %v2083, %v2114
        %s2125 = sld [smem:[#allocation6 + $0x1b]]
        %v2126 = vstv %s2125
        %v2127 = vmul.f32 %v1157, %v2126
        %v2128 = vmul.f32 %v1162, %v2126
        %v2129 = vmul.f32 %v1167, %v2126
        %v2130 = vmul.f32 %v1172, %v2126
        %v2131 = vmul.f32 %v1177, %v2126
        %v2132 = vadd.f32 %v2120, %v2127
        %v2133 = vadd.f32 %v2121, %v2128
        %v2134 = vadd.f32 %v2122, %v2129
        %v2135 = vadd.f32 %v2123, %v2130
        %v2136 = vadd.f32 %v2124, %v2131
        %s2137 = sld [smem:[#allocation6 + $0x1c]]
        %v2138 = vstv %s2137
        %v2139 = vmul.f32 %v1157, %v2138
        %v2140 = vmul.f32 %v1162, %v2138
        %v2141 = vmul.f32 %v1167, %v2138
        %v2142 = vmul.f32 %v1172, %v2138
        %v2143 = vmul.f32 %v1177, %v2138
        %2149 = vrot.lane.b32.xlu0 %v2139, 127
        %v2150 = vpop.permute.xlu0 %2149
        %2151 = vrot.lane.b32.xlu0 %v2140, 127
        %v2152 = vpop.permute.xlu0 %2151
        %2153 = vrot.lane.b32.xlu0 %v2141, 127
        %v2154 = vpop.permute.xlu0 %2153
        %2155 = vrot.lane.b32.xlu0 %v2142, 127
        %v2156 = vpop.permute.xlu0 %2155
        %2157 = vrot.lane.b32.xlu0 %v2143, 127
        %v2158 = vpop.permute.xlu0 %2157
        %v2164 = vadd.f32 %v2132, %v2150
        %v2165 = vadd.f32 %v2133, %v2152
        %v2166 = vadd.f32 %v2134, %v2154
        %v2167 = vadd.f32 %v2135, %v2156
        %v2168 = vadd.f32 %v2136, %v2158
        %s2169 = sld [smem:[#allocation6 + $0x1d]]
        %v2170 = vstv %s2169
        %v2171 = vmul.f32 %v1157, %v2170
        %v2172 = vmul.f32 %v1162, %v2170
        %v2173 = vmul.f32 %v1167, %v2170
        %v2174 = vmul.f32 %v1172, %v2170
        %v2175 = vmul.f32 %v1177, %v2170
        %2181 = vrot.lane.b32.xlu0 %v2171, 126
        %v2182 = vpop.permute.xlu0 %2181
        %2183 = vrot.lane.b32.xlu0 %v2172, 126
        %v2184 = vpop.permute.xlu0 %2183
        %2185 = vrot.lane.b32.xlu0 %v2173, 126
        %v2186 = vpop.permute.xlu0 %2185
        %2187 = vrot.lane.b32.xlu0 %v2174, 126
        %v2188 = vpop.permute.xlu0 %2187
        %2189 = vrot.lane.b32.xlu0 %v2175, 126
        %v2190 = vpop.permute.xlu0 %2189
        %v2196 = vadd.f32 %v2164, %v2182
        %v2197 = vadd.f32 %v2165, %v2184
        %v2198 = vadd.f32 %v2166, %v2186
        %v2199 = vadd.f32 %v2167, %v2188
        %v2200 = vadd.f32 %v2168, %v2190
        %s2201 = sld [smem:[#allocation6 + $0x1e]]
        %v2202 = vstv %s2201
        %v2203 = vmul.f32 %v1157, %v2202
        %v2204 = vmul.f32 %v1162, %v2202
        %v2205 = vmul.f32 %v1167, %v2202
        %v2206 = vmul.f32 %v1172, %v2202
        %v2207 = vmul.f32 %v1177, %v2202
        %v2213 = vrot.slane %v2203, 1
        %v2214 = vrot.slane %v2204, 1
        %v2215 = vsel %vm1305, %v2213, %v2214
        %v2216 = vrot.slane %v2205, 1
        %v2217 = vsel %vm1305, %v2214, %v2216
        %v2218 = vrot.slane %v2206, 1
        %v2219 = vsel %vm1305, %v2216, %v2218
        %v2220 = vrot.slane %v2207, 1
        %v2221 = vsel %vm1305, %v2218, %v2220
        %v2227 = vadd.f32 %v2196, %v2215
        %v2228 = vadd.f32 %v2197, %v2217
        %v2229 = vadd.f32 %v2198, %v2219
        %v2230 = vadd.f32 %v2199, %v2221
        %v2231 = vadd.f32 %v2200, %v2220
        %s2232 = sld [smem:[#allocation6 + $0x1f]]
        %v2233 = vstv %s2232
        %v2234 = vmul.f32 %v1157, %v2233
        %v2235 = vmul.f32 %v1162, %v2233
        %v2236 = vmul.f32 %v1167, %v2233
        %v2237 = vmul.f32 %v1172, %v2233
        %v2238 = vmul.f32 %v1177, %v2233
        %v2244 = vrot.slane %v2234, 1
        %v2245 = vrot.slane %v2235, 1
        %v2246 = vsel %vm1305, %v2244, %v2245
        %v2247 = vrot.slane %v2236, 1
        %v2248 = vsel %vm1305, %v2245, %v2247
        %v2249 = vrot.slane %v2237, 1
        %v2250 = vsel %vm1305, %v2247, %v2249
        %v2251 = vrot.slane %v2238, 1
        %v2252 = vsel %vm1305, %v2249, %v2251
        %2253 = vrot.lane.b32.xlu0 %v2246, 127
        %v2254 = vpop.permute.xlu0 %2253
        %2255 = vrot.lane.b32.xlu0 %v2248, 127
        %v2256 = vpop.permute.xlu0 %2255
        %2257 = vrot.lane.b32.xlu0 %v2250, 127
        %v2258 = vpop.permute.xlu0 %2257
        %2259 = vrot.lane.b32.xlu0 %v2252, 127
        %v2260 = vpop.permute.xlu0 %2259
        %2261 = vrot.lane.b32.xlu0 %v2251, 127
        %v2262 = vpop.permute.xlu0 %2261
        %v2268 = vadd.f32 %v2227, %v2254
        %v2269 = vadd.f32 %v2228, %v2256
        %v2270 = vadd.f32 %v2229, %v2258
        %v2271 = vadd.f32 %v2230, %v2260
        %v2272 = vadd.f32 %v2231, %v2262
        %s2273 = sld [smem:[#allocation6 + $0x20]]
        %v2274 = vstv %s2273
        %v2275 = vmul.f32 %v1157, %v2274
        %v2276 = vmul.f32 %v1162, %v2274
        %v2277 = vmul.f32 %v1167, %v2274
        %v2278 = vmul.f32 %v1172, %v2274
        %v2279 = vmul.f32 %v1177, %v2274
        %v2285 = vrot.slane %v2275, 1
        %v2286 = vrot.slane %v2276, 1
        %v2287 = vsel %vm1305, %v2285, %v2286
        %v2288 = vrot.slane %v2277, 1
        %v2289 = vsel %vm1305, %v2286, %v2288
        %v2290 = vrot.slane %v2278, 1
        %v2291 = vsel %vm1305, %v2288, %v2290
        %v2292 = vrot.slane %v2279, 1
        %v2293 = vsel %vm1305, %v2290, %v2292
        %2294 = vrot.lane.b32.xlu0 %v2287, 126
        %v2295 = vpop.permute.xlu0 %2294
        %2296 = vrot.lane.b32.xlu0 %v2289, 126
        %v2297 = vpop.permute.xlu0 %2296
        %2298 = vrot.lane.b32.xlu0 %v2291, 126
        %v2299 = vpop.permute.xlu0 %2298
        %2300 = vrot.lane.b32.xlu0 %v2293, 126
        %v2301 = vpop.permute.xlu0 %2300
        %2302 = vrot.lane.b32.xlu0 %v2292, 126
        %v2303 = vpop.permute.xlu0 %2302
        %v2309 = vadd.f32 %v2268, %v2295
        %v2310 = vadd.f32 %v2269, %v2297
        %v2311 = vadd.f32 %v2270, %v2299
        %v2312 = vadd.f32 %v2271, %v2301
        %v2313 = vadd.f32 %v2272, %v2303
        %s2314 = sld [smem:[#allocation6 + $0x21]]
        %v2315 = vstv %s2314
        %v2316 = vmul.f32 %v1157, %v2315
        %v2317 = vmul.f32 %v1162, %v2315
        %v2318 = vmul.f32 %v1167, %v2315
        %v2319 = vmul.f32 %v1172, %v2315
        %v2320 = vmul.f32 %v1177, %v2315
        %v2326 = vrot.slane %v2316, 2
        %v2327 = vrot.slane %v2317, 2
        %v2328 = vsel %vm1419, %v2326, %v2327
        %v2329 = vrot.slane %v2318, 2
        %v2330 = vsel %vm1419, %v2327, %v2329
        %v2331 = vrot.slane %v2319, 2
        %v2332 = vsel %vm1419, %v2329, %v2331
        %v2333 = vrot.slane %v2320, 2
        %v2334 = vsel %vm1419, %v2331, %v2333
        %v2340 = vadd.f32 %v2309, %v2328
        %v2341 = vadd.f32 %v2310, %v2330
        %v2342 = vadd.f32 %v2311, %v2332
        %v2343 = vadd.f32 %v2312, %v2334
        %v2344 = vadd.f32 %v2313, %v2333
        %s2345 = sld [smem:[#allocation6 + $0x22]]
        %v2346 = vstv %s2345
        %v2347 = vmul.f32 %v1157, %v2346
        %v2348 = vmul.f32 %v1162, %v2346
        %v2349 = vmul.f32 %v1167, %v2346
        %v2350 = vmul.f32 %v1172, %v2346
        %v2351 = vmul.f32 %v1177, %v2346
        %v2357 = vrot.slane %v2347, 2
        %v2358 = vrot.slane %v2348, 2
        %v2359 = vsel %vm1419, %v2357, %v2358
        %v2360 = vrot.slane %v2349, 2
        %v2361 = vsel %vm1419, %v2358, %v2360
        %v2362 = vrot.slane %v2350, 2
        %v2363 = vsel %vm1419, %v2360, %v2362
        %v2364 = vrot.slane %v2351, 2
        %v2365 = vsel %vm1419, %v2362, %v2364
        %2366 = vrot.lane.b32.xlu0 %v2359, 127
        %v2367 = vpop.permute.xlu0 %2366
        %2368 = vrot.lane.b32.xlu0 %v2361, 127
        %v2369 = vpop.permute.xlu0 %2368
        %2370 = vrot.lane.b32.xlu0 %v2363, 127
        %v2371 = vpop.permute.xlu0 %2370
        %2372 = vrot.lane.b32.xlu0 %v2365, 127
        %v2373 = vpop.permute.xlu0 %2372
        %2374 = vrot.lane.b32.xlu0 %v2364, 127
        %v2375 = vpop.permute.xlu0 %2374
        %v2381 = vadd.f32 %v2340, %v2367
        %v2382 = vadd.f32 %v2341, %v2369
        %v2383 = vadd.f32 %v2342, %v2371
        %v2384 = vadd.f32 %v2343, %v2373
        %v2385 = vadd.f32 %v2344, %v2375
        %s2386 = sld [smem:[#allocation6 + $0x23]]
        %v2387 = vstv %s2386
        %v2388 = vmul.f32 %v1157, %v2387
        %v2389 = vmul.f32 %v1162, %v2387
        %v2390 = vmul.f32 %v1167, %v2387
        %v2391 = vmul.f32 %v1172, %v2387
        %v2392 = vmul.f32 %v1177, %v2387
        %v2398 = vrot.slane %v2388, 2
        %v2399 = vrot.slane %v2389, 2
        %v2400 = vsel %vm1419, %v2398, %v2399
        %v2401 = vrot.slane %v2390, 2
        %v2402 = vsel %vm1419, %v2399, %v2401
        %v2403 = vrot.slane %v2391, 2
        %v2404 = vsel %vm1419, %v2401, %v2403
        %v2405 = vrot.slane %v2392, 2
        %v2406 = vsel %vm1419, %v2403, %v2405
        %2407 = vrot.lane.b32.xlu0 %v2400, 126
        %v2408 = vpop.permute.xlu0 %2407
        %2409 = vrot.lane.b32.xlu0 %v2402, 126
        %v2410 = vpop.permute.xlu0 %2409
        %2411 = vrot.lane.b32.xlu0 %v2404, 126
        %v2412 = vpop.permute.xlu0 %2411
        %2413 = vrot.lane.b32.xlu0 %v2406, 126
        %v2414 = vpop.permute.xlu0 %2413
        %2415 = vrot.lane.b32.xlu0 %v2405, 126
        %v2416 = vpop.permute.xlu0 %2415
        %v2422 = vadd.f32 %v2381, %v2408
        %v2423 = vadd.f32 %v2382, %v2410
        %v2424 = vadd.f32 %v2383, %v2412
        %v2425 = vadd.f32 %v2384, %v2414
        %v2426 = vadd.f32 %v2385, %v2416
        %s2427 = sld [smem:[#allocation7]]
        %v2428 = vstv %s2427
        %v2429 = vadd.f32 %v2422, %v2428
        %v2430 = vadd.f32 %v2423, %v2428
        %v2431 = vadd.f32 %v2424, %v2428
        %v2432 = vadd.f32 %v2425, %v2428
        %v2433 = vadd.f32 %v2426, %v2428
        %v2434 = vmax.f32 %v2429, 0.0
        %v2435 = vmax.f32 %v2430, 0.0
        %v2436 = vmax.f32 %v2431, 0.0
        %v2437 = vmax.f32 %v2432, 0.0
        %v2438 = vmax.f32 %v2433, 0.0
        %v2439 = vsel %vm1217, %v2434, 0.0
        %v2440 = vsel %vm1218, %v2435, 0.0
        %v2441 = vsel %vm1219, %v2436, 0.0
        %v2442 = vsel %vm1220, %v2437, 0.0
        %v2443 = vsel %vm1221, %v2438, 0.0
        %s2444 = sld [smem:[#allocation6 + $0x24]]
        %v2445 = vstv %s2444
        %v2446 = vmul.f32 %v563, %v2445
        %v2447 = vmul.f32 %v568, %v2445
        %v2448 = vmul.f32 %v573, %v2445
        %v2449 = vmul.f32 %v578, %v2445
        %v2450 = vmul.f32 %v583, %v2445
        %s2451 = sld [smem:[#allocation6 + $0x25]]
        %v2452 = vstv %s2451
        %v2453 = vmul.f32 %v563, %v2452
        %v2454 = vmul.f32 %v568, %v2452
        %v2455 = vmul.f32 %v573, %v2452
        %v2456 = vmul.f32 %v578, %v2452
        %v2457 = vmul.f32 %v583, %v2452
        %2463 = vrot.lane.b32.xlu0 %v2453, 127
        %v2464 = vpop.permute.xlu0 %2463
        %2465 = vrot.lane.b32.xlu0 %v2454, 127
        %v2466 = vpop.permute.xlu0 %2465
        %2467 = vrot.lane.b32.xlu0 %v2455, 127
        %v2468 = vpop.permute.xlu0 %2467
        %2469 = vrot.lane.b32.xlu0 %v2456, 127
        %v2470 = vpop.permute.xlu0 %2469
        %2471 = vrot.lane.b32.xlu0 %v2457, 127
        %v2472 = vpop.permute.xlu0 %2471
        %v2478 = vadd.f32 %v2446, %v2464
        %v2479 = vadd.f32 %v2447, %v2466
        %v2480 = vadd.f32 %v2448, %v2468
        %v2481 = vadd.f32 %v2449, %v2470
        %v2482 = vadd.f32 %v2450, %v2472
        %s2483 = sld [smem:[#allocation6 + $0x26]]
        %v2484 = vstv %s2483
        %v2485 = vmul.f32 %v563, %v2484
        %v2486 = vmul.f32 %v568, %v2484
        %v2487 = vmul.f32 %v573, %v2484
        %v2488 = vmul.f32 %v578, %v2484
        %v2489 = vmul.f32 %v583, %v2484
        %2495 = vrot.lane.b32.xlu0 %v2485, 126
        %v2496 = vpop.permute.xlu0 %2495
        %2497 = vrot.lane.b32.xlu0 %v2486, 126
        %v2498 = vpop.permute.xlu0 %2497
        %2499 = vrot.lane.b32.xlu0 %v2487, 126
        %v2500 = vpop.permute.xlu0 %2499
        %2501 = vrot.lane.b32.xlu0 %v2488, 126
        %v2502 = vpop.permute.xlu0 %2501
        %2503 = vrot.lane.b32.xlu0 %v2489, 126
        %v2504 = vpop.permute.xlu0 %2503
        %v2510 = vadd.f32 %v2478, %v2496
        %v2511 = vadd.f32 %v2479, %v2498
        %v2512 = vadd.f32 %v2480, %v2500
        %v2513 = vadd.f32 %v2481, %v2502
        %v2514 = vadd.f32 %v2482, %v2504
        %s2515 = sld [smem:[#allocation6 + $0x27]]
        %v2516 = vstv %s2515
        %v2517 = vmul.f32 %v563, %v2516
        %v2518 = vmul.f32 %v568, %v2516
        %v2519 = vmul.f32 %v573, %v2516
        %v2520 = vmul.f32 %v578, %v2516
        %v2521 = vmul.f32 %v583, %v2516
        %v2527 = vrot.slane %v2517, 1
        %v2528 = vrot.slane %v2518, 1
        %v2529 = vsel %vm1305, %v2527, %v2528
        %v2530 = vrot.slane %v2519, 1
        %v2531 = vsel %vm1305, %v2528, %v2530
        %v2532 = vrot.slane %v2520, 1
        %v2533 = vsel %vm1305, %v2530, %v2532
        %v2534 = vrot.slane %v2521, 1
        %v2535 = vsel %vm1305, %v2532, %v2534
        %v2541 = vadd.f32 %v2510, %v2529
        %v2542 = vadd.f32 %v2511, %v2531
        %v2543 = vadd.f32 %v2512, %v2533
        %v2544 = vadd.f32 %v2513, %v2535
        %v2545 = vadd.f32 %v2514, %v2534
        %s2546 = sld [smem:[#allocation6 + $0x28]]
        %v2547 = vstv %s2546
        %v2548 = vmul.f32 %v563, %v2547
        %v2549 = vmul.f32 %v568, %v2547
        %v2550 = vmul.f32 %v573, %v2547
        %v2551 = vmul.f32 %v578, %v2547
        %v2552 = vmul.f32 %v583, %v2547
        %v2558 = vrot.slane %v2548, 1
        %v2559 = vrot.slane %v2549, 1
        %v2560 = vsel %vm1305, %v2558, %v2559
        %v2561 = vrot.slane %v2550, 1
        %v2562 = vsel %vm1305, %v2559, %v2561
        %v2563 = vrot.slane %v2551, 1
        %v2564 = vsel %vm1305, %v2561, %v2563
        %v2565 = vrot.slane %v2552, 1
        %v2566 = vsel %vm1305, %v2563, %v2565
        %2567 = vrot.lane.b32.xlu0 %v2560, 127
        %v2568 = vpop.permute.xlu0 %2567
        %2569 = vrot.lane.b32.xlu0 %v2562, 127
        %v2570 = vpop.permute.xlu0 %2569
        %2571 = vrot.lane.b32.xlu0 %v2564, 127
        %v2572 = vpop.permute.xlu0 %2571
        %2573 = vrot.lane.b32.xlu0 %v2566, 127
        %v2574 = vpop.permute.xlu0 %2573
        %2575 = vrot.lane.b32.xlu0 %v2565, 127
        %v2576 = vpop.permute.xlu0 %2575
        %v2582 = vadd.f32 %v2541, %v2568
        %v2583 = vadd.f32 %v2542, %v2570
        %v2584 = vadd.f32 %v2543, %v2572
        %v2585 = vadd.f32 %v2544, %v2574
        %v2586 = vadd.f32 %v2545, %v2576
        %s2587 = sld [smem:[#allocation6 + $0x29]]
        %v2588 = vstv %s2587
        %v2589 = vmul.f32 %v563, %v2588
        %v2590 = vmul.f32 %v568, %v2588
        %v2591 = vmul.f32 %v573, %v2588
        %v2592 = vmul.f32 %v578, %v2588
        %v2593 = vmul.f32 %v583, %v2588
        %v2599 = vrot.slane %v2589, 1
        %v2600 = vrot.slane %v2590, 1
        %v2601 = vsel %vm1305, %v2599, %v2600
        %v2602 = vrot.slane %v2591, 1
        %v2603 = vsel %vm1305, %v2600, %v2602
        %v2604 = vrot.slane %v2592, 1
        %v2605 = vsel %vm1305, %v2602, %v2604
        %v2606 = vrot.slane %v2593, 1
        %v2607 = vsel %vm1305, %v2604, %v2606
        %2608 = vrot.lane.b32.xlu0 %v2601, 126
        %v2609 = vpop.permute.xlu0 %2608
        %2610 = vrot.lane.b32.xlu0 %v2603, 126
        %v2611 = vpop.permute.xlu0 %2610
        %2612 = vrot.lane.b32.xlu0 %v2605, 126
        %v2613 = vpop.permute.xlu0 %2612
        %2614 = vrot.lane.b32.xlu0 %v2607, 126
        %v2615 = vpop.permute.xlu0 %2614
        %2616 = vrot.lane.b32.xlu0 %v2606, 126
        %v2617 = vpop.permute.xlu0 %2616
        %v2623 = vadd.f32 %v2582, %v2609
        %v2624 = vadd.f32 %v2583, %v2611
        %v2625 = vadd.f32 %v2584, %v2613
        %v2626 = vadd.f32 %v2585, %v2615
        %v2627 = vadd.f32 %v2586, %v2617
        %s2628 = sld [smem:[#allocation6 + $0x2a]]
        %v2629 = vstv %s2628
        %v2630 = vmul.f32 %v563, %v2629
        %v2631 = vmul.f32 %v568, %v2629
        %v2632 = vmul.f32 %v573, %v2629
        %v2633 = vmul.f32 %v578, %v2629
        %v2634 = vmul.f32 %v583, %v2629
        %v2640 = vrot.slane %v2630, 2
        %v2641 = vrot.slane %v2631, 2
        %v2642 = vsel %vm1419, %v2640, %v2641
        %v2643 = vrot.slane %v2632, 2
        %v2644 = vsel %vm1419, %v2641, %v2643
        %v2645 = vrot.slane %v2633, 2
        %v2646 = vsel %vm1419, %v2643, %v2645
        %v2647 = vrot.slane %v2634, 2
        %v2648 = vsel %vm1419, %v2645, %v2647
        %v2654 = vadd.f32 %v2623, %v2642
        %v2655 = vadd.f32 %v2624, %v2644
        %v2656 = vadd.f32 %v2625, %v2646
        %v2657 = vadd.f32 %v2626, %v2648
        %v2658 = vadd.f32 %v2627, %v2647
        %s2659 = sld [smem:[#allocation6 + $0x2b]]
        %v2660 = vstv %s2659
        %v2661 = vmul.f32 %v563, %v2660
        %v2662 = vmul.f32 %v568, %v2660
        %v2663 = vmul.f32 %v573, %v2660
        %v2664 = vmul.f32 %v578, %v2660
        %v2665 = vmul.f32 %v583, %v2660
        %v2671 = vrot.slane %v2661, 2
        %v2672 = vrot.slane %v2662, 2
        %v2673 = vsel %vm1419, %v2671, %v2672
        %v2674 = vrot.slane %v2663, 2
        %v2675 = vsel %vm1419, %v2672, %v2674
        %v2676 = vrot.slane %v2664, 2
        %v2677 = vsel %vm1419, %v2674, %v2676
        %v2678 = vrot.slane %v2665, 2
        %v2679 = vsel %vm1419, %v2676, %v2678
        %2680 = vrot.lane.b32.xlu0 %v2673, 127
        %v2681 = vpop.permute.xlu0 %2680
        %2682 = vrot.lane.b32.xlu0 %v2675, 127
        %v2683 = vpop.permute.xlu0 %2682
        %2684 = vrot.lane.b32.xlu0 %v2677, 127
        %v2685 = vpop.permute.xlu0 %2684
        %2686 = vrot.lane.b32.xlu0 %v2679, 127
        %v2687 = vpop.permute.xlu0 %2686
        %2688 = vrot.lane.b32.xlu0 %v2678, 127
        %v2689 = vpop.permute.xlu0 %2688
        %v2695 = vadd.f32 %v2654, %v2681
        %v2696 = vadd.f32 %v2655, %v2683
        %v2697 = vadd.f32 %v2656, %v2685
        %v2698 = vadd.f32 %v2657, %v2687
        %v2699 = vadd.f32 %v2658, %v2689
        %s2700 = sld [smem:[#allocation6 + $0x2c]]
        %v2701 = vstv %s2700
        %v2702 = vmul.f32 %v563, %v2701
        %v2703 = vmul.f32 %v568, %v2701
        %v2704 = vmul.f32 %v573, %v2701
        %v2705 = vmul.f32 %v578, %v2701
        %v2706 = vmul.f32 %v583, %v2701
        %v2712 = vrot.slane %v2702, 2
        %v2713 = vrot.slane %v2703, 2
        %v2714 = vsel %vm1419, %v2712, %v2713
        %v2715 = vrot.slane %v2704, 2
        %v2716 = vsel %vm1419, %v2713, %v2715
        %v2717 = vrot.slane %v2705, 2
        %v2718 = vsel %vm1419, %v2715, %v2717
        %v2719 = vrot.slane %v2706, 2
        %v2720 = vsel %vm1419, %v2717, %v2719
        %2721 = vrot.lane.b32.xlu0 %v2714, 126
        %v2722 = vpop.permute.xlu0 %2721
        %2723 = vrot.lane.b32.xlu0 %v2716, 126
        %v2724 = vpop.permute.xlu0 %2723
        %2725 = vrot.lane.b32.xlu0 %v2718, 126
        %v2726 = vpop.permute.xlu0 %2725
        %2727 = vrot.lane.b32.xlu0 %v2720, 126
        %v2728 = vpop.permute.xlu0 %2727
        %2729 = vrot.lane.b32.xlu0 %v2719, 126
        %v2730 = vpop.permute.xlu0 %2729
        %v2736 = vadd.f32 %v2695, %v2722
        %v2737 = vadd.f32 %v2696, %v2724
        %v2738 = vadd.f32 %v2697, %v2726
        %v2739 = vadd.f32 %v2698, %v2728
        %v2740 = vadd.f32 %v2699, %v2730
        %s2741 = sld [smem:[#allocation6 + $0x2d]]
        %v2742 = vstv %s2741
        %v2743 = vmul.f32 %v761, %v2742
        %v2744 = vmul.f32 %v766, %v2742
        %v2745 = vmul.f32 %v771, %v2742
        %v2746 = vmul.f32 %v776, %v2742
        %v2747 = vmul.f32 %v781, %v2742
        %v2748 = vadd.f32 %v2736, %v2743
        %v2749 = vadd.f32 %v2737, %v2744
        %v2750 = vadd.f32 %v2738, %v2745
        %v2751 = vadd.f32 %v2739, %v2746
        %v2752 = vadd.f32 %v2740, %v2747
        %s2753 = sld [smem:[#allocation6 + $0x2e]]
        %v2754 = vstv %s2753
        %v2755 = vmul.f32 %v761, %v2754
        %v2756 = vmul.f32 %v766, %v2754
        %v2757 = vmul.f32 %v771, %v2754
        %v2758 = vmul.f32 %v776, %v2754
        %v2759 = vmul.f32 %v781, %v2754
        %2765 = vrot.lane.b32.xlu0 %v2755, 127
        %v2766 = vpop.permute.xlu0 %2765
        %2767 = vrot.lane.b32.xlu0 %v2756, 127
        %v2768 = vpop.permute.xlu0 %2767
        %2769 = vrot.lane.b32.xlu0 %v2757, 127
        %v2770 = vpop.permute.xlu0 %2769
        %2771 = vrot.lane.b32.xlu0 %v2758, 127
        %v2772 = vpop.permute.xlu0 %2771
        %2773 = vrot.lane.b32.xlu0 %v2759, 127
        %v2774 = vpop.permute.xlu0 %2773
        %v2780 = vadd.f32 %v2748, %v2766
        %v2781 = vadd.f32 %v2749, %v2768
        %v2782 = vadd.f32 %v2750, %v2770
        %v2783 = vadd.f32 %v2751, %v2772
        %v2784 = vadd.f32 %v2752, %v2774
        %s2785 = sld [smem:[#allocation6 + $0x2f]]
        %v2786 = vstv %s2785
        %v2787 = vmul.f32 %v761, %v2786
        %v2788 = vmul.f32 %v766, %v2786
        %v2789 = vmul.f32 %v771, %v2786
        %v2790 = vmul.f32 %v776, %v2786
        %v2791 = vmul.f32 %v781, %v2786
        %2797 = vrot.lane.b32.xlu0 %v2787, 126
        %v2798 = vpop.permute.xlu0 %2797
        %2799 = vrot.lane.b32.xlu0 %v2788, 126
        %v2800 = vpop.permute.xlu0 %2799
        %2801 = vrot.lane.b32.xlu0 %v2789, 126
        %v2802 = vpop.permute.xlu0 %2801
        %2803 = vrot.lane.b32.xlu0 %v2790, 126
        %v2804 = vpop.permute.xlu0 %2803
        %2805 = vrot.lane.b32.xlu0 %v2791, 126
        %v2806 = vpop.permute.xlu0 %2805
        %v2812 = vadd.f32 %v2780, %v2798
        %v2813 = vadd.f32 %v2781, %v2800
        %v2814 = vadd.f32 %v2782, %v2802
        %v2815 = vadd.f32 %v2783, %v2804
        %v2816 = vadd.f32 %v2784, %v2806
        %s2817 = sld [smem:[#allocation6 + $0x30]]
        %v2818 = vstv %s2817
        %v2819 = vmul.f32 %v761, %v2818
        %v2820 = vmul.f32 %v766, %v2818
        %v2821 = vmul.f32 %v771, %v2818
        %v2822 = vmul.f32 %v776, %v2818
        %v2823 = vmul.f32 %v781, %v2818
        %v2829 = vrot.slane %v2819, 1
        %v2830 = vrot.slane %v2820, 1
        %v2831 = vsel %vm1305, %v2829, %v2830
        %v2832 = vrot.slane %v2821, 1
        %v2833 = vsel %vm1305, %v2830, %v2832
        %v2834 = vrot.slane %v2822, 1
        %v2835 = vsel %vm1305, %v2832, %v2834
        %v2836 = vrot.slane %v2823, 1
        %v2837 = vsel %vm1305, %v2834, %v2836
        %v2843 = vadd.f32 %v2812, %v2831
        %v2844 = vadd.f32 %v2813, %v2833
        %v2845 = vadd.f32 %v2814, %v2835
        %v2846 = vadd.f32 %v2815, %v2837
        %v2847 = vadd.f32 %v2816, %v2836
        %s2848 = sld [smem:[#allocation6 + $0x31]]
        %v2849 = vstv %s2848
        %v2850 = vmul.f32 %v761, %v2849
        %v2851 = vmul.f32 %v766, %v2849
        %v2852 = vmul.f32 %v771, %v2849
        %v2853 = vmul.f32 %v776, %v2849
        %v2854 = vmul.f32 %v781, %v2849
        %v2860 = vrot.slane %v2850, 1
        %v2861 = vrot.slane %v2851, 1
        %v2862 = vsel %vm1305, %v2860, %v2861
        %v2863 = vrot.slane %v2852, 1
        %v2864 = vsel %vm1305, %v2861, %v2863
        %v2865 = vrot.slane %v2853, 1
        %v2866 = vsel %vm1305, %v2863, %v2865
        %v2867 = vrot.slane %v2854, 1
        %v2868 = vsel %vm1305, %v2865, %v2867
        %2869 = vrot.lane.b32.xlu0 %v2862, 127
        %v2870 = vpop.permute.xlu0 %2869
        %2871 = vrot.lane.b32.xlu0 %v2864, 127
        %v2872 = vpop.permute.xlu0 %2871
        %2873 = vrot.lane.b32.xlu0 %v2866, 127
        %v2874 = vpop.permute.xlu0 %2873
        %2875 = vrot.lane.b32.xlu0 %v2868, 127
        %v2876 = vpop.permute.xlu0 %2875
        %2877 = vrot.lane.b32.xlu0 %v2867, 127
        %v2878 = vpop.permute.xlu0 %2877
        %v2884 = vadd.f32 %v2843, %v2870
        %v2885 = vadd.f32 %v2844, %v2872
        %v2886 = vadd.f32 %v2845, %v2874
        %v2887 = vadd.f32 %v2846, %v2876
        %v2888 = vadd.f32 %v2847, %v2878
        %s2889 = sld [smem:[#allocation6 + $0x32]]
        %v2890 = vstv %s2889
        %v2891 = vmul.f32 %v761, %v2890
        %v2892 = vmul.f32 %v766, %v2890
        %v2893 = vmul.f32 %v771, %v2890
        %v2894 = vmul.f32 %v776, %v2890
        %v2895 = vmul.f32 %v781, %v2890
        %v2901 = vrot.slane %v2891, 1
        %v2902 = vrot.slane %v2892, 1
        %v2903 = vsel %vm1305, %v2901, %v2902
        %v2904 = vrot.slane %v2893, 1
        %v2905 = vsel %vm1305, %v2902, %v2904
        %v2906 = vrot.slane %v2894, 1
        %v2907 = vsel %vm1305, %v2904, %v2906
        %v2908 = vrot.slane %v2895, 1
        %v2909 = vsel %vm1305, %v2906, %v2908
        %2910 = vrot.lane.b32.xlu0 %v2903, 126
        %v2911 = vpop.permute.xlu0 %2910
        %2912 = vrot.lane.b32.xlu0 %v2905, 126
        %v2913 = vpop.permute.xlu0 %2912
        %2914 = vrot.lane.b32.xlu0 %v2907, 126
        %v2915 = vpop.permute.xlu0 %2914
        %2916 = vrot.lane.b32.xlu0 %v2909, 126
        %v2917 = vpop.permute.xlu0 %2916
        %2918 = vrot.lane.b32.xlu0 %v2908, 126
        %v2919 = vpop.permute.xlu0 %2918
        %v2925 = vadd.f32 %v2884, %v2911
        %v2926 = vadd.f32 %v2885, %v2913
        %v2927 = vadd.f32 %v2886, %v2915
        %v2928 = vadd.f32 %v2887, %v2917
        %v2929 = vadd.f32 %v2888, %v2919
        %s2930 = sld [smem:[#allocation6 + $0x33]]
        %v2931 = vstv %s2930
        %v2932 = vmul.f32 %v761, %v2931
        %v2933 = vmul.f32 %v766, %v2931
        %v2934 = vmul.f32 %v771, %v2931
        %v2935 = vmul.f32 %v776, %v2931
        %v2936 = vmul.f32 %v781, %v2931
        %v2942 = vrot.slane %v2932, 2
        %v2943 = vrot.slane %v2933, 2
        %v2944 = vsel %vm1419, %v2942, %v2943
        %v2945 = vrot.slane %v2934, 2
        %v2946 = vsel %vm1419, %v2943, %v2945
        %v2947 = vrot.slane %v2935, 2
        %v2948 = vsel %vm1419, %v2945, %v2947
        %v2949 = vrot.slane %v2936, 2
        %v2950 = vsel %vm1419, %v2947, %v2949
        %v2956 = vadd.f32 %v2925, %v2944
        %v2957 = vadd.f32 %v2926, %v2946
        %v2958 = vadd.f32 %v2927, %v2948
        %v2959 = vadd.f32 %v2928, %v2950
        %v2960 = vadd.f32 %v2929, %v2949
        %s2961 = sld [smem:[#allocation6 + $0x34]]
        %v2962 = vstv %s2961
        %v2963 = vmul.f32 %v761, %v2962
        %v2964 = vmul.f32 %v766, %v2962
        %v2965 = vmul.f32 %v771, %v2962
        %v2966 = vmul.f32 %v776, %v2962
        %v2967 = vmul.f32 %v781, %v2962
        %v2973 = vrot.slane %v2963, 2
        %v2974 = vrot.slane %v2964, 2
        %v2975 = vsel %vm1419, %v2973, %v2974
        %v2976 = vrot.slane %v2965, 2
        %v2977 = vsel %vm1419, %v2974, %v2976
        %v2978 = vrot.slane %v2966, 2
        %v2979 = vsel %vm1419, %v2976, %v2978
        %v2980 = vrot.slane %v2967, 2
        %v2981 = vsel %vm1419, %v2978, %v2980
        %2982 = vrot.lane.b32.xlu0 %v2975, 127
        %v2983 = vpop.permute.xlu0 %2982
        %2984 = vrot.lane.b32.xlu0 %v2977, 127
        %v2985 = vpop.permute.xlu0 %2984
        %2986 = vrot.lane.b32.xlu0 %v2979, 127
        %v2987 = vpop.permute.xlu0 %2986
        %2988 = vrot.lane.b32.xlu0 %v2981, 127
        %v2989 = vpop.permute.xlu0 %2988
        %2990 = vrot.lane.b32.xlu0 %v2980, 127
        %v2991 = vpop.permute.xlu0 %2990
        %v2997 = vadd.f32 %v2956, %v2983
        %v2998 = vadd.f32 %v2957, %v2985
        %v2999 = vadd.f32 %v2958, %v2987
        %v3000 = vadd.f32 %v2959, %v2989
        %v3001 = vadd.f32 %v2960, %v2991
        %s3002 = sld [smem:[#allocation6 + $0x35]]
        %v3003 = vstv %s3002
        %v3004 = vmul.f32 %v761, %v3003
        %v3005 = vmul.f32 %v766, %v3003
        %v3006 = vmul.f32 %v771, %v3003
        %v3007 = vmul.f32 %v776, %v3003
        %v3008 = vmul.f32 %v781, %v3003
        %v3014 = vrot.slane %v3004, 2
        %v3015 = vrot.slane %v3005, 2
        %v3016 = vsel %vm1419, %v3014, %v3015
        %v3017 = vrot.slane %v3006, 2
        %v3018 = vsel %vm1419, %v3015, %v3017
        %v3019 = vrot.slane %v3007, 2
        %v3020 = vsel %vm1419, %v3017, %v3019
        %v3021 = vrot.slane %v3008, 2
        %v3022 = vsel %vm1419, %v3019, %v3021
        %3023 = vrot.lane.b32.xlu0 %v3016, 126
        %v3024 = vpop.permute.xlu0 %3023
        %3025 = vrot.lane.b32.xlu0 %v3018, 126
        %v3026 = vpop.permute.xlu0 %3025
        %3027 = vrot.lane.b32.xlu0 %v3020, 126
        %v3028 = vpop.permute.xlu0 %3027
        %3029 = vrot.lane.b32.xlu0 %v3022, 126
        %v3030 = vpop.permute.xlu0 %3029
        %3031 = vrot.lane.b32.xlu0 %v3021, 126
        %v3032 = vpop.permute.xlu0 %3031
        %v3038 = vadd.f32 %v2997, %v3024
        %v3039 = vadd.f32 %v2998, %v3026
        %v3040 = vadd.f32 %v2999, %v3028
        %v3041 = vadd.f32 %v3000, %v3030
        %v3042 = vadd.f32 %v3001, %v3032
        %s3043 = sld [smem:[#allocation6 + $0x36]]
        %v3044 = vstv %s3043
        %v3045 = vmul.f32 %v959, %v3044
        %v3046 = vmul.f32 %v964, %v3044
        %v3047 = vmul.f32 %v969, %v3044
        %v3048 = vmul.f32 %v974, %v3044
        %v3049 = vmul.f32 %v979, %v3044
        %v3050 = vadd.f32 %v3038, %v3045
        %v3051 = vadd.f32 %v3039, %v3046
        %v3052 = vadd.f32 %v3040, %v3047
        %v3053 = vadd.f32 %v3041, %v3048
        %v3054 = vadd.f32 %v3042, %v3049
        %s3055 = sld [smem:[#allocation6 + $0x37]]
        %v3056 = vstv %s3055
        %v3057 = vmul.f32 %v959, %v3056
        %v3058 = vmul.f32 %v964, %v3056
        %v3059 = vmul.f32 %v969, %v3056
        %v3060 = vmul.f32 %v974, %v3056
        %v3061 = vmul.f32 %v979, %v3056
        %3067 = vrot.lane.b32.xlu0 %v3057, 127
        %v3068 = vpop.permute.xlu0 %3067
        %3069 = vrot.lane.b32.xlu0 %v3058, 127
        %v3070 = vpop.permute.xlu0 %3069
        %3071 = vrot.lane.b32.xlu0 %v3059, 127
        %v3072 = vpop.permute.xlu0 %3071
        %3073 = vrot.lane.b32.xlu0 %v3060, 127
        %v3074 = vpop.permute.xlu0 %3073
        %3075 = vrot.lane.b32.xlu0 %v3061, 127
        %v3076 = vpop.permute.xlu0 %3075
        %v3082 = vadd.f32 %v3050, %v3068
        %v3083 = vadd.f32 %v3051, %v3070
        %v3084 = vadd.f32 %v3052, %v3072
        %v3085 = vadd.f32 %v3053, %v3074
        %v3086 = vadd.f32 %v3054, %v3076
        %s3087 = sld [smem:[#allocation6 + $0x38]]
        %v3088 = vstv %s3087
        %v3089 = vmul.f32 %v959, %v3088
        %v3090 = vmul.f32 %v964, %v3088
        %v3091 = vmul.f32 %v969, %v3088
        %v3092 = vmul.f32 %v974, %v3088
        %v3093 = vmul.f32 %v979, %v3088
        %3099 = vrot.lane.b32.xlu0 %v3089, 126
        %v3100 = vpop.permute.xlu0 %3099
        %3101 = vrot.lane.b32.xlu0 %v3090, 126
        %v3102 = vpop.permute.xlu0 %3101
        %3103 = vrot.lane.b32.xlu0 %v3091, 126
        %v3104 = vpop.permute.xlu0 %3103
        %3105 = vrot.lane.b32.xlu0 %v3092, 126
        %v3106 = vpop.permute.xlu0 %3105
        %3107 = vrot.lane.b32.xlu0 %v3093, 126
        %v3108 = vpop.permute.xlu0 %3107
        %v3114 = vadd.f32 %v3082, %v3100
        %v3115 = vadd.f32 %v3083, %v3102
        %v3116 = vadd.f32 %v3084, %v3104
        %v3117 = vadd.f32 %v3085, %v3106
        %v3118 = vadd.f32 %v3086, %v3108
        %s3119 = sld [smem:[#allocation6 + $0x39]]
        %v3120 = vstv %s3119
        %v3121 = vmul.f32 %v959, %v3120
        %v3122 = vmul.f32 %v964, %v3120
        %v3123 = vmul.f32 %v969, %v3120
        %v3124 = vmul.f32 %v974, %v3120
        %v3125 = vmul.f32 %v979, %v3120
        %v3131 = vrot.slane %v3121, 1
        %v3132 = vrot.slane %v3122, 1
        %v3133 = vsel %vm1305, %v3131, %v3132
        %v3134 = vrot.slane %v3123, 1
        %v3135 = vsel %vm1305, %v3132, %v3134
        %v3136 = vrot.slane %v3124, 1
        %v3137 = vsel %vm1305, %v3134, %v3136
        %v3138 = vrot.slane %v3125, 1
        %v3139 = vsel %vm1305, %v3136, %v3138
        %v3145 = vadd.f32 %v3114, %v3133
        %v3146 = vadd.f32 %v3115, %v3135
        %v3147 = vadd.f32 %v3116, %v3137
        %v3148 = vadd.f32 %v3117, %v3139
        %v3149 = vadd.f32 %v3118, %v3138
        %s3150 = sld [smem:[#allocation6 + $0x3a]]
        %v3151 = vstv %s3150
        %v3152 = vmul.f32 %v959, %v3151
        %v3153 = vmul.f32 %v964, %v3151
        %v3154 = vmul.f32 %v969, %v3151
        %v3155 = vmul.f32 %v974, %v3151
        %v3156 = vmul.f32 %v979, %v3151
        %v3162 = vrot.slane %v3152, 1
        %v3163 = vrot.slane %v3153, 1
        %v3164 = vsel %vm1305, %v3162, %v3163
        %v3165 = vrot.slane %v3154, 1
        %v3166 = vsel %vm1305, %v3163, %v3165
        %v3167 = vrot.slane %v3155, 1
        %v3168 = vsel %vm1305, %v3165, %v3167
        %v3169 = vrot.slane %v3156, 1
        %v3170 = vsel %vm1305, %v3167, %v3169
        %3171 = vrot.lane.b32.xlu0 %v3164, 127
        %v3172 = vpop.permute.xlu0 %3171
        %3173 = vrot.lane.b32.xlu0 %v3166, 127
        %v3174 = vpop.permute.xlu0 %3173
        %3175 = vrot.lane.b32.xlu0 %v3168, 127
        %v3176 = vpop.permute.xlu0 %3175
        %3177 = vrot.lane.b32.xlu0 %v3170, 127
        %v3178 = vpop.permute.xlu0 %3177
        %3179 = vrot.lane.b32.xlu0 %v3169, 127
        %v3180 = vpop.permute.xlu0 %3179
        %v3186 = vadd.f32 %v3145, %v3172
        %v3187 = vadd.f32 %v3146, %v3174
        %v3188 = vadd.f32 %v3147, %v3176
        %v3189 = vadd.f32 %v3148, %v3178
        %v3190 = vadd.f32 %v3149, %v3180
        %s3191 = sld [smem:[#allocation6 + $0x3b]]
        %v3192 = vstv %s3191
        %v3193 = vmul.f32 %v959, %v3192
        %v3194 = vmul.f32 %v964, %v3192
        %v3195 = vmul.f32 %v969, %v3192
        %v3196 = vmul.f32 %v974, %v3192
        %v3197 = vmul.f32 %v979, %v3192
        %v3203 = vrot.slane %v3193, 1
        %v3204 = vrot.slane %v3194, 1
        %v3205 = vsel %vm1305, %v3203, %v3204
        %v3206 = vrot.slane %v3195, 1
        %v3207 = vsel %vm1305, %v3204, %v3206
        %v3208 = vrot.slane %v3196, 1
        %v3209 = vsel %vm1305, %v3206, %v3208
        %v3210 = vrot.slane %v3197, 1
        %v3211 = vsel %vm1305, %v3208, %v3210
        %3212 = vrot.lane.b32.xlu0 %v3205, 126
        %v3213 = vpop.permute.xlu0 %3212
        %3214 = vrot.lane.b32.xlu0 %v3207, 126
        %v3215 = vpop.permute.xlu0 %3214
        %3216 = vrot.lane.b32.xlu0 %v3209, 126
        %v3217 = vpop.permute.xlu0 %3216
        %3218 = vrot.lane.b32.xlu0 %v3211, 126
        %v3219 = vpop.permute.xlu0 %3218
        %3220 = vrot.lane.b32.xlu0 %v3210, 126
        %v3221 = vpop.permute.xlu0 %3220
        %v3227 = vadd.f32 %v3186, %v3213
        %v3228 = vadd.f32 %v3187, %v3215
        %v3229 = vadd.f32 %v3188, %v3217
        %v3230 = vadd.f32 %v3189, %v3219
        %v3231 = vadd.f32 %v3190, %v3221
        %s3232 = sld [smem:[#allocation6 + $0x3c]]
        %v3233 = vstv %s3232
        %v3234 = vmul.f32 %v959, %v3233
        %v3235 = vmul.f32 %v964, %v3233
        %v3236 = vmul.f32 %v969, %v3233
        %v3237 = vmul.f32 %v974, %v3233
        %v3238 = vmul.f32 %v979, %v3233
        %v3244 = vrot.slane %v3234, 2
        %v3245 = vrot.slane %v3235, 2
        %v3246 = vsel %vm1419, %v3244, %v3245
        %v3247 = vrot.slane %v3236, 2
        %v3248 = vsel %vm1419, %v3245, %v3247
        %v3249 = vrot.slane %v3237, 2
        %v3250 = vsel %vm1419, %v3247, %v3249
        %v3251 = vrot.slane %v3238, 2
        %v3252 = vsel %vm1419, %v3249, %v3251
        %v3258 = vadd.f32 %v3227, %v3246
        %v3259 = vadd.f32 %v3228, %v3248
        %v3260 = vadd.f32 %v3229, %v3250
        %v3261 = vadd.f32 %v3230, %v3252
        %v3262 = vadd.f32 %v3231, %v3251
        %s3263 = sld [smem:[#allocation6 + $0x3d]]
        %v3264 = vstv %s3263
        %v3265 = vmul.f32 %v959, %v3264
        %v3266 = vmul.f32 %v964, %v3264
        %v3267 = vmul.f32 %v969, %v3264
        %v3268 = vmul.f32 %v974, %v3264
        %v3269 = vmul.f32 %v979, %v3264
        %v3275 = vrot.slane %v3265, 2
        %v3276 = vrot.slane %v3266, 2
        %v3277 = vsel %vm1419, %v3275, %v3276
        %v3278 = vrot.slane %v3267, 2
        %v3279 = vsel %vm1419, %v3276, %v3278
        %v3280 = vrot.slane %v3268, 2
        %v3281 = vsel %vm1419, %v3278, %v3280
        %v3282 = vrot.slane %v3269, 2
        %v3283 = vsel %vm1419, %v3280, %v3282
        %3284 = vrot.lane.b32.xlu0 %v3277, 127
        %v3285 = vpop.permute.xlu0 %3284
        %3286 = vrot.lane.b32.xlu0 %v3279, 127
        %v3287 = vpop.permute.xlu0 %3286
        %3288 = vrot.lane.b32.xlu0 %v3281, 127
        %v3289 = vpop.permute.xlu0 %3288
        %3290 = vrot.lane.b32.xlu0 %v3283, 127
        %v3291 = vpop.permute.xlu0 %3290
        %3292 = vrot.lane.b32.xlu0 %v3282, 127
        %v3293 = vpop.permute.xlu0 %3292
        %v3299 = vadd.f32 %v3258, %v3285
        %v3300 = vadd.f32 %v3259, %v3287
        %v3301 = vadd.f32 %v3260, %v3289
        %v3302 = vadd.f32 %v3261, %v3291
        %v3303 = vadd.f32 %v3262, %v3293
        %s3304 = sld [smem:[#allocation6 + $0x3e]]
        %v3305 = vstv %s3304
        %v3306 = vmul.f32 %v959, %v3305
        %v3307 = vmul.f32 %v964, %v3305
        %v3308 = vmul.f32 %v969, %v3305
        %v3309 = vmul.f32 %v974, %v3305
        %v3310 = vmul.f32 %v979, %v3305
        %v3316 = vrot.slane %v3306, 2
        %v3317 = vrot.slane %v3307, 2
        %v3318 = vsel %vm1419, %v3316, %v3317
        %v3319 = vrot.slane %v3308, 2
        %v3320 = vsel %vm1419, %v3317, %v3319
        %v3321 = vrot.slane %v3309, 2
        %v3322 = vsel %vm1419, %v3319, %v3321
        %v3323 = vrot.slane %v3310, 2
        %v3324 = vsel %vm1419, %v3321, %v3323
        %3325 = vrot.lane.b32.xlu0 %v3318, 126
        %v3326 = vpop.permute.xlu0 %3325
        %3327 = vrot.lane.b32.xlu0 %v3320, 126
        %v3328 = vpop.permute.xlu0 %3327
        %3329 = vrot.lane.b32.xlu0 %v3322, 126
        %v3330 = vpop.permute.xlu0 %3329
        %3331 = vrot.lane.b32.xlu0 %v3324, 126
        %v3332 = vpop.permute.xlu0 %3331
        %3333 = vrot.lane.b32.xlu0 %v3323, 126
        %v3334 = vpop.permute.xlu0 %3333
        %v3340 = vadd.f32 %v3299, %v3326
        %v3341 = vadd.f32 %v3300, %v3328
        %v3342 = vadd.f32 %v3301, %v3330
        %v3343 = vadd.f32 %v3302, %v3332
        %v3344 = vadd.f32 %v3303, %v3334
        %s3345 = sld [smem:[#allocation6 + $0x3f]]
        %v3346 = vstv %s3345
        %v3347 = vmul.f32 %v1157, %v3346
        %v3348 = vmul.f32 %v1162, %v3346
        %v3349 = vmul.f32 %v1167, %v3346
        %v3350 = vmul.f32 %v1172, %v3346
        %v3351 = vmul.f32 %v1177, %v3346
        %v3352 = vadd.f32 %v3340, %v3347
        %v3353 = vadd.f32 %v3341, %v3348
        %v3354 = vadd.f32 %v3342, %v3349
        %v3355 = vadd.f32 %v3343, %v3350
        %v3356 = vadd.f32 %v3344, %v3351
        %s3357 = sld [smem:[#allocation6 + $0x40]]
        %v3358 = vstv %s3357
        %v3359 = vmul.f32 %v1157, %v3358
        %v3360 = vmul.f32 %v1162, %v3358
        %v3361 = vmul.f32 %v1167, %v3358
        %v3362 = vmul.f32 %v1172, %v3358
        %v3363 = vmul.f32 %v1177, %v3358
        %3369 = vrot.lane.b32.xlu0 %v3359, 127
        %v3370 = vpop.permute.xlu0 %3369
        %3371 = vrot.lane.b32.xlu0 %v3360, 127
        %v3372 = vpop.permute.xlu0 %3371
        %3373 = vrot.lane.b32.xlu0 %v3361, 127
        %v3374 = vpop.permute.xlu0 %3373
        %3375 = vrot.lane.b32.xlu0 %v3362, 127
        %v3376 = vpop.permute.xlu0 %3375
        %3377 = vrot.lane.b32.xlu0 %v3363, 127
        %v3378 = vpop.permute.xlu0 %3377
        %v3384 = vadd.f32 %v3352, %v3370
        %v3385 = vadd.f32 %v3353, %v3372
        %v3386 = vadd.f32 %v3354, %v3374
        %v3387 = vadd.f32 %v3355, %v3376
        %v3388 = vadd.f32 %v3356, %v3378
        %s3389 = sld [smem:[#allocation6 + $0x41]]
        %v3390 = vstv %s3389
        %v3391 = vmul.f32 %v1157, %v3390
        %v3392 = vmul.f32 %v1162, %v3390
        %v3393 = vmul.f32 %v1167, %v3390
        %v3394 = vmul.f32 %v1172, %v3390
        %v3395 = vmul.f32 %v1177, %v3390
        %3401 = vrot.lane.b32.xlu0 %v3391, 126
        %v3402 = vpop.permute.xlu0 %3401
        %3403 = vrot.lane.b32.xlu0 %v3392, 126
        %v3404 = vpop.permute.xlu0 %3403
        %3405 = vrot.lane.b32.xlu0 %v3393, 126
        %v3406 = vpop.permute.xlu0 %3405
        %3407 = vrot.lane.b32.xlu0 %v3394, 126
        %v3408 = vpop.permute.xlu0 %3407
        %3409 = vrot.lane.b32.xlu0 %v3395, 126
        %v3410 = vpop.permute.xlu0 %3409
        %v3416 = vadd.f32 %v3384, %v3402
        %v3417 = vadd.f32 %v3385, %v3404
        %v3418 = vadd.f32 %v3386, %v3406
        %v3419 = vadd.f32 %v3387, %v3408
        %v3420 = vadd.f32 %v3388, %v3410
        %s3421 = sld [smem:[#allocation6 + $0x42]]
        %v3422 = vstv %s3421
        %v3423 = vmul.f32 %v1157, %v3422
        %v3424 = vmul.f32 %v1162, %v3422
        %v3425 = vmul.f32 %v1167, %v3422
        %v3426 = vmul.f32 %v1172, %v3422
        %v3427 = vmul.f32 %v1177, %v3422
        %v3433 = vrot.slane %v3423, 1
        %v3434 = vrot.slane %v3424, 1
        %v3435 = vsel %vm1305, %v3433, %v3434
        %v3436 = vrot.slane %v3425, 1
        %v3437 = vsel %vm1305, %v3434, %v3436
        %v3438 = vrot.slane %v3426, 1
        %v3439 = vsel %vm1305, %v3436, %v3438
        %v3440 = vrot.slane %v3427, 1
        %v3441 = vsel %vm1305, %v3438, %v3440
        %v3447 = vadd.f32 %v3416, %v3435
        %v3448 = vadd.f32 %v3417, %v3437
        %v3449 = vadd.f32 %v3418, %v3439
        %v3450 = vadd.f32 %v3419, %v3441
        %v3451 = vadd.f32 %v3420, %v3440
        %s3452 = sld [smem:[#allocation6 + $0x43]]
        %v3453 = vstv %s3452
        %v3454 = vmul.f32 %v1157, %v3453
        %v3455 = vmul.f32 %v1162, %v3453
        %v3456 = vmul.f32 %v1167, %v3453
        %v3457 = vmul.f32 %v1172, %v3453
        %v3458 = vmul.f32 %v1177, %v3453
        %v3464 = vrot.slane %v3454, 1
        %v3465 = vrot.slane %v3455, 1
        %v3466 = vsel %vm1305, %v3464, %v3465
        %v3467 = vrot.slane %v3456, 1
        %v3468 = vsel %vm1305, %v3465, %v3467
        %v3469 = vrot.slane %v3457, 1
        %v3470 = vsel %vm1305, %v3467, %v3469
        %v3471 = vrot.slane %v3458, 1
        %v3472 = vsel %vm1305, %v3469, %v3471
        %3473 = vrot.lane.b32.xlu0 %v3466, 127
        %v3474 = vpop.permute.xlu0 %3473
        %3475 = vrot.lane.b32.xlu0 %v3468, 127
        %v3476 = vpop.permute.xlu0 %3475
        %3477 = vrot.lane.b32.xlu0 %v3470, 127
        %v3478 = vpop.permute.xlu0 %3477
        %3479 = vrot.lane.b32.xlu0 %v3472, 127
        %v3480 = vpop.permute.xlu0 %3479
        %3481 = vrot.lane.b32.xlu0 %v3471, 127
        %v3482 = vpop.permute.xlu0 %3481
        %v3488 = vadd.f32 %v3447, %v3474
        %v3489 = vadd.f32 %v3448, %v3476
        %v3490 = vadd.f32 %v3449, %v3478
        %v3491 = vadd.f32 %v3450, %v3480
        %v3492 = vadd.f32 %v3451, %v3482
        %s3493 = sld [smem:[#allocation6 + $0x44]]
        %v3494 = vstv %s3493
        %v3495 = vmul.f32 %v1157, %v3494
        %v3496 = vmul.f32 %v1162, %v3494
        %v3497 = vmul.f32 %v1167, %v3494
        %v3498 = vmul.f32 %v1172, %v3494
        %v3499 = vmul.f32 %v1177, %v3494
        %v3505 = vrot.slane %v3495, 1
        %v3506 = vrot.slane %v3496, 1
        %v3507 = vsel %vm1305, %v3505, %v3506
        %v3508 = vrot.slane %v3497, 1
        %v3509 = vsel %vm1305, %v3506, %v3508
        %v3510 = vrot.slane %v3498, 1
        %v3511 = vsel %vm1305, %v3508, %v3510
        %v3512 = vrot.slane %v3499, 1
        %v3513 = vsel %vm1305, %v3510, %v3512
        %3514 = vrot.lane.b32.xlu0 %v3507, 126
        %v3515 = vpop.permute.xlu0 %3514
        %3516 = vrot.lane.b32.xlu0 %v3509, 126
        %v3517 = vpop.permute.xlu0 %3516
        %3518 = vrot.lane.b32.xlu0 %v3511, 126
        %v3519 = vpop.permute.xlu0 %3518
        %3520 = vrot.lane.b32.xlu0 %v3513, 126
        %v3521 = vpop.permute.xlu0 %3520
        %3522 = vrot.lane.b32.xlu0 %v3512, 126
        %v3523 = vpop.permute.xlu0 %3522
        %v3529 = vadd.f32 %v3488, %v3515
        %v3530 = vadd.f32 %v3489, %v3517
        %v3531 = vadd.f32 %v3490, %v3519
        %v3532 = vadd.f32 %v3491, %v3521
        %v3533 = vadd.f32 %v3492, %v3523
        %s3534 = sld [smem:[#allocation6 + $0x45]]
        %v3535 = vstv %s3534
        %v3536 = vmul.f32 %v1157, %v3535
        %v3537 = vmul.f32 %v1162, %v3535
        %v3538 = vmul.f32 %v1167, %v3535
        %v3539 = vmul.f32 %v1172, %v3535
        %v3540 = vmul.f32 %v1177, %v3535
        %v3546 = vrot.slane %v3536, 2
        %v3547 = vrot.slane %v3537, 2
        %v3548 = vsel %vm1419, %v3546, %v3547
        %v3549 = vrot.slane %v3538, 2
        %v3550 = vsel %vm1419, %v3547, %v3549
        %v3551 = vrot.slane %v3539, 2
        %v3552 = vsel %vm1419, %v3549, %v3551
        %v3553 = vrot.slane %v3540, 2
        %v3554 = vsel %vm1419, %v3551, %v3553
        %v3560 = vadd.f32 %v3529, %v3548
        %v3561 = vadd.f32 %v3530, %v3550
        %v3562 = vadd.f32 %v3531, %v3552
        %v3563 = vadd.f32 %v3532, %v3554
        %v3564 = vadd.f32 %v3533, %v3553
        %s3565 = sld [smem:[#allocation6 + $0x46]]
        %v3566 = vstv %s3565
        %v3567 = vmul.f32 %v1157, %v3566
        %v3568 = vmul.f32 %v1162, %v3566
        %v3569 = vmul.f32 %v1167, %v3566
        %v3570 = vmul.f32 %v1172, %v3566
        %v3571 = vmul.f32 %v1177, %v3566
        %v3577 = vrot.slane %v3567, 2
        %v3578 = vrot.slane %v3568, 2
        %v3579 = vsel %vm1419, %v3577, %v3578
        %v3580 = vrot.slane %v3569, 2
        %v3581 = vsel %vm1419, %v3578, %v3580
        %v3582 = vrot.slane %v3570, 2
        %v3583 = vsel %vm1419, %v3580, %v3582
        %v3584 = vrot.slane %v3571, 2
        %v3585 = vsel %vm1419, %v3582, %v3584
        %3586 = vrot.lane.b32.xlu0 %v3579, 127
        %v3587 = vpop.permute.xlu0 %3586
        %3588 = vrot.lane.b32.xlu0 %v3581, 127
        %v3589 = vpop.permute.xlu0 %3588
        %3590 = vrot.lane.b32.xlu0 %v3583, 127
        %v3591 = vpop.permute.xlu0 %3590
        %3592 = vrot.lane.b32.xlu0 %v3585, 127
        %v3593 = vpop.permute.xlu0 %3592
        %3594 = vrot.lane.b32.xlu0 %v3584, 127
        %v3595 = vpop.permute.xlu0 %3594
        %v3601 = vadd.f32 %v3560, %v3587
        %v3602 = vadd.f32 %v3561, %v3589
        %v3603 = vadd.f32 %v3562, %v3591
        %v3604 = vadd.f32 %v3563, %v3593
        %v3605 = vadd.f32 %v3564, %v3595
        %s3606 = sld [smem:[#allocation6 + $0x47]]
        %v3607 = vstv %s3606
        %v3608 = vmul.f32 %v1157, %v3607
        %v3609 = vmul.f32 %v1162, %v3607
        %v3610 = vmul.f32 %v1167, %v3607
        %v3611 = vmul.f32 %v1172, %v3607
        %v3612 = vmul.f32 %v1177, %v3607
        %v3618 = vrot.slane %v3608, 2
        %v3619 = vrot.slane %v3609, 2
        %v3620 = vsel %vm1419, %v3618, %v3619
        %v3621 = vrot.slane %v3610, 2
        %v3622 = vsel %vm1419, %v3619, %v3621
        %v3623 = vrot.slane %v3611, 2
        %v3624 = vsel %vm1419, %v3621, %v3623
        %v3625 = vrot.slane %v3612, 2
        %v3626 = vsel %vm1419, %v3623, %v3625
        %3627 = vrot.lane.b32.xlu0 %v3620, 126
        %v3628 = vpop.permute.xlu0 %3627
        %3629 = vrot.lane.b32.xlu0 %v3622, 126
        %v3630 = vpop.permute.xlu0 %3629
        %3631 = vrot.lane.b32.xlu0 %v3624, 126
        %v3632 = vpop.permute.xlu0 %3631
        %3633 = vrot.lane.b32.xlu0 %v3626, 126
        %v3634 = vpop.permute.xlu0 %3633
        %3635 = vrot.lane.b32.xlu0 %v3625, 126
        %v3636 = vpop.permute.xlu0 %3635
        %v3642 = vadd.f32 %v3601, %v3628
        %v3643 = vadd.f32 %v3602, %v3630
        %v3644 = vadd.f32 %v3603, %v3632
        %v3645 = vadd.f32 %v3604, %v3634
        %v3646 = vadd.f32 %v3605, %v3636
        %s3647 = sld [smem:[#allocation7 + $0x1]]
        %v3648 = vstv %s3647
        %v3649 = vadd.f32 %v3642, %v3648
        %v3650 = vadd.f32 %v3643, %v3648
        %v3651 = vadd.f32 %v3644, %v3648
        %v3652 = vadd.f32 %v3645, %v3648
        %v3653 = vadd.f32 %v3646, %v3648
        %v3654 = vmax.f32 %v3649, 0.0
        %v3655 = vmax.f32 %v3650, 0.0
        %v3656 = vmax.f32 %v3651, 0.0
        %v3657 = vmax.f32 %v3652, 0.0
        %v3658 = vmax.f32 %v3653, 0.0
        %v3659 = vsel %vm1217, %v3654, 0.0
        %v3660 = vsel %vm1218, %v3655, 0.0
        %v3661 = vsel %vm1219, %v3656, 0.0
        %v3662 = vsel %vm1220, %v3657, 0.0
        %v3663 = vsel %vm1221, %v3658, 0.0
        %s3664 = sld [smem:[#allocation6 + $0x48]]
        %v3665 = vstv %s3664
        %v3666 = vmul.f32 %v563, %v3665
        %v3667 = vmul.f32 %v568, %v3665
        %v3668 = vmul.f32 %v573, %v3665
        %v3669 = vmul.f32 %v578, %v3665
        %v3670 = vmul.f32 %v583, %v3665
        %s3671 = sld [smem:[#allocation6 + $0x49]]
        %v3672 = vstv %s3671
        %v3673 = vmul.f32 %v563, %v3672
        %v3674 = vmul.f32 %v568, %v3672
        %v3675 = vmul.f32 %v573, %v3672
        %v3676 = vmul.f32 %v578, %v3672
        %v3677 = vmul.f32 %v583, %v3672
        %3683 = vrot.lane.b32.xlu0 %v3673, 127
        %v3684 = vpop.permute.xlu0 %3683
        %3685 = vrot.lane.b32.xlu0 %v3674, 127
        %v3686 = vpop.permute.xlu0 %3685
        %3687 = vrot.lane.b32.xlu0 %v3675, 127
        %v3688 = vpop.permute.xlu0 %3687
        %3689 = vrot.lane.b32.xlu0 %v3676, 127
        %v3690 = vpop.permute.xlu0 %3689
        %3691 = vrot.lane.b32.xlu0 %v3677, 127
        %v3692 = vpop.permute.xlu0 %3691
        %v3698 = vadd.f32 %v3666, %v3684
        %v3699 = vadd.f32 %v3667, %v3686
        %v3700 = vadd.f32 %v3668, %v3688
        %v3701 = vadd.f32 %v3669, %v3690
        %v3702 = vadd.f32 %v3670, %v3692
        %s3703 = sld [smem:[#allocation6 + $0x4a]]
        %v3704 = vstv %s3703
        %v3705 = vmul.f32 %v563, %v3704
        %v3706 = vmul.f32 %v568, %v3704
        %v3707 = vmul.f32 %v573, %v3704
        %v3708 = vmul.f32 %v578, %v3704
        %v3709 = vmul.f32 %v583, %v3704
        %3715 = vrot.lane.b32.xlu0 %v3705, 126
        %v3716 = vpop.permute.xlu0 %3715
        %3717 = vrot.lane.b32.xlu0 %v3706, 126
        %v3718 = vpop.permute.xlu0 %3717
        %3719 = vrot.lane.b32.xlu0 %v3707, 126
        %v3720 = vpop.permute.xlu0 %3719
        %3721 = vrot.lane.b32.xlu0 %v3708, 126
        %v3722 = vpop.permute.xlu0 %3721
        %3723 = vrot.lane.b32.xlu0 %v3709, 126
        %v3724 = vpop.permute.xlu0 %3723
        %v3730 = vadd.f32 %v3698, %v3716
        %v3731 = vadd.f32 %v3699, %v3718
        %v3732 = vadd.f32 %v3700, %v3720
        %v3733 = vadd.f32 %v3701, %v3722
        %v3734 = vadd.f32 %v3702, %v3724
        %s3735 = sld [smem:[#allocation6 + $0x4b]]
        %v3736 = vstv %s3735
        %v3737 = vmul.f32 %v563, %v3736
        %v3738 = vmul.f32 %v568, %v3736
        %v3739 = vmul.f32 %v573, %v3736
        %v3740 = vmul.f32 %v578, %v3736
        %v3741 = vmul.f32 %v583, %v3736
        %v3747 = vrot.slane %v3737, 1
        %v3748 = vrot.slane %v3738, 1
        %v3749 = vsel %vm1305, %v3747, %v3748
        %v3750 = vrot.slane %v3739, 1
        %v3751 = vsel %vm1305, %v3748, %v3750
        %v3752 = vrot.slane %v3740, 1
        %v3753 = vsel %vm1305, %v3750, %v3752
        %v3754 = vrot.slane %v3741, 1
        %v3755 = vsel %vm1305, %v3752, %v3754
        %v3761 = vadd.f32 %v3730, %v3749
        %v3762 = vadd.f32 %v3731, %v3751
        %v3763 = vadd.f32 %v3732, %v3753
        %v3764 = vadd.f32 %v3733, %v3755
        %v3765 = vadd.f32 %v3734, %v3754
        %s3766 = sld [smem:[#allocation6 + $0x4c]]
        %v3767 = vstv %s3766
        %v3768 = vmul.f32 %v563, %v3767
        %v3769 = vmul.f32 %v568, %v3767
        %v3770 = vmul.f32 %v573, %v3767
        %v3771 = vmul.f32 %v578, %v3767
        %v3772 = vmul.f32 %v583, %v3767
        %v3778 = vrot.slane %v3768, 1
        %v3779 = vrot.slane %v3769, 1
        %v3780 = vsel %vm1305, %v3778, %v3779
        %v3781 = vrot.slane %v3770, 1
        %v3782 = vsel %vm1305, %v3779, %v3781
        %v3783 = vrot.slane %v3771, 1
        %v3784 = vsel %vm1305, %v3781, %v3783
        %v3785 = vrot.slane %v3772, 1
        %v3786 = vsel %vm1305, %v3783, %v3785
        %3787 = vrot.lane.b32.xlu0 %v3780, 127
        %v3788 = vpop.permute.xlu0 %3787
        %3789 = vrot.lane.b32.xlu0 %v3782, 127
        %v3790 = vpop.permute.xlu0 %3789
        %3791 = vrot.lane.b32.xlu0 %v3784, 127
        %v3792 = vpop.permute.xlu0 %3791
        %3793 = vrot.lane.b32.xlu0 %v3786, 127
        %v3794 = vpop.permute.xlu0 %3793
        %3795 = vrot.lane.b32.xlu0 %v3785, 127
        %v3796 = vpop.permute.xlu0 %3795
        %v3802 = vadd.f32 %v3761, %v3788
        %v3803 = vadd.f32 %v3762, %v3790
        %v3804 = vadd.f32 %v3763, %v3792
        %v3805 = vadd.f32 %v3764, %v3794
        %v3806 = vadd.f32 %v3765, %v3796
        %s3807 = sld [smem:[#allocation6 + $0x4d]]
        %v3808 = vstv %s3807
        %v3809 = vmul.f32 %v563, %v3808
        %v3810 = vmul.f32 %v568, %v3808
        %v3811 = vmul.f32 %v573, %v3808
        %v3812 = vmul.f32 %v578, %v3808
        %v3813 = vmul.f32 %v583, %v3808
        %v3819 = vrot.slane %v3809, 1
        %v3820 = vrot.slane %v3810, 1
        %v3821 = vsel %vm1305, %v3819, %v3820
        %v3822 = vrot.slane %v3811, 1
        %v3823 = vsel %vm1305, %v3820, %v3822
        %v3824 = vrot.slane %v3812, 1
        %v3825 = vsel %vm1305, %v3822, %v3824
        %v3826 = vrot.slane %v3813, 1
        %v3827 = vsel %vm1305, %v3824, %v3826
        %3828 = vrot.lane.b32.xlu0 %v3821, 126
        %v3829 = vpop.permute.xlu0 %3828
        %3830 = vrot.lane.b32.xlu0 %v3823, 126
        %v3831 = vpop.permute.xlu0 %3830
        %3832 = vrot.lane.b32.xlu0 %v3825, 126
        %v3833 = vpop.permute.xlu0 %3832
        %3834 = vrot.lane.b32.xlu0 %v3827, 126
        %v3835 = vpop.permute.xlu0 %3834
        %3836 = vrot.lane.b32.xlu0 %v3826, 126
        %v3837 = vpop.permute.xlu0 %3836
        %v3843 = vadd.f32 %v3802, %v3829
        %v3844 = vadd.f32 %v3803, %v3831
        %v3845 = vadd.f32 %v3804, %v3833
        %v3846 = vadd.f32 %v3805, %v3835
        %v3847 = vadd.f32 %v3806, %v3837
        %s3848 = sld [smem:[#allocation6 + $0x4e]]
        %v3849 = vstv %s3848
        %v3850 = vmul.f32 %v563, %v3849
        %v3851 = vmul.f32 %v568, %v3849
        %v3852 = vmul.f32 %v573, %v3849
        %v3853 = vmul.f32 %v578, %v3849
        %v3854 = vmul.f32 %v583, %v3849
        %v3860 = vrot.slane %v3850, 2
        %v3861 = vrot.slane %v3851, 2
        %v3862 = vsel %vm1419, %v3860, %v3861
        %v3863 = vrot.slane %v3852, 2
        %v3864 = vsel %vm1419, %v3861, %v3863
        %v3865 = vrot.slane %v3853, 2
        %v3866 = vsel %vm1419, %v3863, %v3865
        %v3867 = vrot.slane %v3854, 2
        %v3868 = vsel %vm1419, %v3865, %v3867
        %v3874 = vadd.f32 %v3843, %v3862
        %v3875 = vadd.f32 %v3844, %v3864
        %v3876 = vadd.f32 %v3845, %v3866
        %v3877 = vadd.f32 %v3846, %v3868
        %v3878 = vadd.f32 %v3847, %v3867
        %s3879 = sld [smem:[#allocation6 + $0x4f]]
        %v3880 = vstv %s3879
        %v3881 = vmul.f32 %v563, %v3880
        %v3882 = vmul.f32 %v568, %v3880
        %v3883 = vmul.f32 %v573, %v3880
        %v3884 = vmul.f32 %v578, %v3880
        %v3885 = vmul.f32 %v583, %v3880
        %v3891 = vrot.slane %v3881, 2
        %v3892 = vrot.slane %v3882, 2
        %v3893 = vsel %vm1419, %v3891, %v3892
        %v3894 = vrot.slane %v3883, 2
        %v3895 = vsel %vm1419, %v3892, %v3894
        %v3896 = vrot.slane %v3884, 2
        %v3897 = vsel %vm1419, %v3894, %v3896
        %v3898 = vrot.slane %v3885, 2
        %v3899 = vsel %vm1419, %v3896, %v3898
        %3900 = vrot.lane.b32.xlu0 %v3893, 127
        %v3901 = vpop.permute.xlu0 %3900
        %3902 = vrot.lane.b32.xlu0 %v3895, 127
        %v3903 = vpop.permute.xlu0 %3902
        %3904 = vrot.lane.b32.xlu0 %v3897, 127
        %v3905 = vpop.permute.xlu0 %3904
        %3906 = vrot.lane.b32.xlu0 %v3899, 127
        %v3907 = vpop.permute.xlu0 %3906
        %3908 = vrot.lane.b32.xlu0 %v3898, 127
        %v3909 = vpop.permute.xlu0 %3908
        %v3915 = vadd.f32 %v3874, %v3901
        %v3916 = vadd.f32 %v3875, %v3903
        %v3917 = vadd.f32 %v3876, %v3905
        %v3918 = vadd.f32 %v3877, %v3907
        %v3919 = vadd.f32 %v3878, %v3909
        %s3920 = sld [smem:[#allocation6 + $0x50]]
        %v3921 = vstv %s3920
        %v3922 = vmul.f32 %v563, %v3921
        %v3923 = vmul.f32 %v568, %v3921
        %v3924 = vmul.f32 %v573, %v3921
        %v3925 = vmul.f32 %v578, %v3921
        %v3926 = vmul.f32 %v583, %v3921
        %v3932 = vrot.slane %v3922, 2
        %v3933 = vrot.slane %v3923, 2
        %v3934 = vsel %vm1419, %v3932, %v3933
        %v3935 = vrot.slane %v3924, 2
        %v3936 = vsel %vm1419, %v3933, %v3935
        %v3937 = vrot.slane %v3925, 2
        %v3938 = vsel %vm1419, %v3935, %v3937
        %v3939 = vrot.slane %v3926, 2
        %v3940 = vsel %vm1419, %v3937, %v3939
        %3941 = vrot.lane.b32.xlu0 %v3934, 126
        %v3942 = vpop.permute.xlu0 %3941
        %3943 = vrot.lane.b32.xlu0 %v3936, 126
        %v3944 = vpop.permute.xlu0 %3943
        %3945 = vrot.lane.b32.xlu0 %v3938, 126
        %v3946 = vpop.permute.xlu0 %3945
        %3947 = vrot.lane.b32.xlu0 %v3940, 126
        %v3948 = vpop.permute.xlu0 %3947
        %3949 = vrot.lane.b32.xlu0 %v3939, 126
        %v3950 = vpop.permute.xlu0 %3949
        %v3956 = vadd.f32 %v3915, %v3942
        %v3957 = vadd.f32 %v3916, %v3944
        %v3958 = vadd.f32 %v3917, %v3946
        %v3959 = vadd.f32 %v3918, %v3948
        %v3960 = vadd.f32 %v3919, %v3950
        %s3961 = sld [smem:[#allocation6 + $0x51]]
        %v3962 = vstv %s3961
        %v3963 = vmul.f32 %v761, %v3962
        %v3964 = vmul.f32 %v766, %v3962
        %v3965 = vmul.f32 %v771, %v3962
        %v3966 = vmul.f32 %v776, %v3962
        %v3967 = vmul.f32 %v781, %v3962
        %v3968 = vadd.f32 %v3956, %v3963
        %v3969 = vadd.f32 %v3957, %v3964
        %v3970 = vadd.f32 %v3958, %v3965
        %v3971 = vadd.f32 %v3959, %v3966
        %v3972 = vadd.f32 %v3960, %v3967
        %s3973 = sld [smem:[#allocation6 + $0x52]]
        %v3974 = vstv %s3973
        %v3975 = vmul.f32 %v761, %v3974
        %v3976 = vmul.f32 %v766, %v3974
        %v3977 = vmul.f32 %v771, %v3974
        %v3978 = vmul.f32 %v776, %v3974
        %v3979 = vmul.f32 %v781, %v3974
        %3985 = vrot.lane.b32.xlu0 %v3975, 127
        %v3986 = vpop.permute.xlu0 %3985
        %3987 = vrot.lane.b32.xlu0 %v3976, 127
        %v3988 = vpop.permute.xlu0 %3987
        %3989 = vrot.lane.b32.xlu0 %v3977, 127
        %v3990 = vpop.permute.xlu0 %3989
        %3991 = vrot.lane.b32.xlu0 %v3978, 127
        %v3992 = vpop.permute.xlu0 %3991
        %3993 = vrot.lane.b32.xlu0 %v3979, 127
        %v3994 = vpop.permute.xlu0 %3993
        %v4000 = vadd.f32 %v3968, %v3986
        %v4001 = vadd.f32 %v3969, %v3988
        %v4002 = vadd.f32 %v3970, %v3990
        %v4003 = vadd.f32 %v3971, %v3992
        %v4004 = vadd.f32 %v3972, %v3994
        %s4005 = sld [smem:[#allocation6 + $0x53]]
        %v4006 = vstv %s4005
        %v4007 = vmul.f32 %v761, %v4006
        %v4008 = vmul.f32 %v766, %v4006
        %v4009 = vmul.f32 %v771, %v4006
        %v4010 = vmul.f32 %v776, %v4006
        %v4011 = vmul.f32 %v781, %v4006
        %4017 = vrot.lane.b32.xlu0 %v4007, 126
        %v4018 = vpop.permute.xlu0 %4017
        %4019 = vrot.lane.b32.xlu0 %v4008, 126
        %v4020 = vpop.permute.xlu0 %4019
        %4021 = vrot.lane.b32.xlu0 %v4009, 126
        %v4022 = vpop.permute.xlu0 %4021
        %4023 = vrot.lane.b32.xlu0 %v4010, 126
        %v4024 = vpop.permute.xlu0 %4023
        %4025 = vrot.lane.b32.xlu0 %v4011, 126
        %v4026 = vpop.permute.xlu0 %4025
        %v4032 = vadd.f32 %v4000, %v4018
        %v4033 = vadd.f32 %v4001, %v4020
        %v4034 = vadd.f32 %v4002, %v4022
        %v4035 = vadd.f32 %v4003, %v4024
        %v4036 = vadd.f32 %v4004, %v4026
        %s4037 = sld [smem:[#allocation6 + $0x54]]
        %v4038 = vstv %s4037
        %v4039 = vmul.f32 %v761, %v4038
        %v4040 = vmul.f32 %v766, %v4038
        %v4041 = vmul.f32 %v771, %v4038
        %v4042 = vmul.f32 %v776, %v4038
        %v4043 = vmul.f32 %v781, %v4038
        %v4049 = vrot.slane %v4039, 1
        %v4050 = vrot.slane %v4040, 1
        %v4051 = vsel %vm1305, %v4049, %v4050
        %v4052 = vrot.slane %v4041, 1
        %v4053 = vsel %vm1305, %v4050, %v4052
        %v4054 = vrot.slane %v4042, 1
        %v4055 = vsel %vm1305, %v4052, %v4054
        %v4056 = vrot.slane %v4043, 1
        %v4057 = vsel %vm1305, %v4054, %v4056
        %v4063 = vadd.f32 %v4032, %v4051
        %v4064 = vadd.f32 %v4033, %v4053
        %v4065 = vadd.f32 %v4034, %v4055
        %v4066 = vadd.f32 %v4035, %v4057
        %v4067 = vadd.f32 %v4036, %v4056
        %s4068 = sld [smem:[#allocation6 + $0x55]]
        %v4069 = vstv %s4068
        %v4070 = vmul.f32 %v761, %v4069
        %v4071 = vmul.f32 %v766, %v4069
        %v4072 = vmul.f32 %v771, %v4069
        %v4073 = vmul.f32 %v776, %v4069
        %v4074 = vmul.f32 %v781, %v4069
        %v4080 = vrot.slane %v4070, 1
        %v4081 = vrot.slane %v4071, 1
        %v4082 = vsel %vm1305, %v4080, %v4081
        %v4083 = vrot.slane %v4072, 1
        %v4084 = vsel %vm1305, %v4081, %v4083
        %v4085 = vrot.slane %v4073, 1
        %v4086 = vsel %vm1305, %v4083, %v4085
        %v4087 = vrot.slane %v4074, 1
        %v4088 = vsel %vm1305, %v4085, %v4087
        %4089 = vrot.lane.b32.xlu0 %v4082, 127
        %v4090 = vpop.permute.xlu0 %4089
        %4091 = vrot.lane.b32.xlu0 %v4084, 127
        %v4092 = vpop.permute.xlu0 %4091
        %4093 = vrot.lane.b32.xlu0 %v4086, 127
        %v4094 = vpop.permute.xlu0 %4093
        %4095 = vrot.lane.b32.xlu0 %v4088, 127
        %v4096 = vpop.permute.xlu0 %4095
        %4097 = vrot.lane.b32.xlu0 %v4087, 127
        %v4098 = vpop.permute.xlu0 %4097
        %v4104 = vadd.f32 %v4063, %v4090
        %v4105 = vadd.f32 %v4064, %v4092
        %v4106 = vadd.f32 %v4065, %v4094
        %v4107 = vadd.f32 %v4066, %v4096
        %v4108 = vadd.f32 %v4067, %v4098
        %s4109 = sld [smem:[#allocation6 + $0x56]]
        %v4110 = vstv %s4109
        %v4111 = vmul.f32 %v761, %v4110
        %v4112 = vmul.f32 %v766, %v4110
        %v4113 = vmul.f32 %v771, %v4110
        %v4114 = vmul.f32 %v776, %v4110
        %v4115 = vmul.f32 %v781, %v4110
        %v4121 = vrot.slane %v4111, 1
        %v4122 = vrot.slane %v4112, 1
        %v4123 = vsel %vm1305, %v4121, %v4122
        %v4124 = vrot.slane %v4113, 1
        %v4125 = vsel %vm1305, %v4122, %v4124
        %v4126 = vrot.slane %v4114, 1
        %v4127 = vsel %vm1305, %v4124, %v4126
        %v4128 = vrot.slane %v4115, 1
        %v4129 = vsel %vm1305, %v4126, %v4128
        %4130 = vrot.lane.b32.xlu0 %v4123, 126
        %v4131 = vpop.permute.xlu0 %4130
        %4132 = vrot.lane.b32.xlu0 %v4125, 126
        %v4133 = vpop.permute.xlu0 %4132
        %4134 = vrot.lane.b32.xlu0 %v4127, 126
        %v4135 = vpop.permute.xlu0 %4134
        %4136 = vrot.lane.b32.xlu0 %v4129, 126
        %v4137 = vpop.permute.xlu0 %4136
        %4138 = vrot.lane.b32.xlu0 %v4128, 126
        %v4139 = vpop.permute.xlu0 %4138
        %v4145 = vadd.f32 %v4104, %v4131
        %v4146 = vadd.f32 %v4105, %v4133
        %v4147 = vadd.f32 %v4106, %v4135
        %v4148 = vadd.f32 %v4107, %v4137
        %v4149 = vadd.f32 %v4108, %v4139
        %s4150 = sld [smem:[#allocation6 + $0x57]]
        %v4151 = vstv %s4150
        %v4152 = vmul.f32 %v761, %v4151
        %v4153 = vmul.f32 %v766, %v4151
        %v4154 = vmul.f32 %v771, %v4151
        %v4155 = vmul.f32 %v776, %v4151
        %v4156 = vmul.f32 %v781, %v4151
        %v4162 = vrot.slane %v4152, 2
        %v4163 = vrot.slane %v4153, 2
        %v4164 = vsel %vm1419, %v4162, %v4163
        %v4165 = vrot.slane %v4154, 2
        %v4166 = vsel %vm1419, %v4163, %v4165
        %v4167 = vrot.slane %v4155, 2
        %v4168 = vsel %vm1419, %v4165, %v4167
        %v4169 = vrot.slane %v4156, 2
        %v4170 = vsel %vm1419, %v4167, %v4169
        %v4176 = vadd.f32 %v4145, %v4164
        %v4177 = vadd.f32 %v4146, %v4166
        %v4178 = vadd.f32 %v4147, %v4168
        %v4179 = vadd.f32 %v4148, %v4170
        %v4180 = vadd.f32 %v4149, %v4169
        %s4181 = sld [smem:[#allocation6 + $0x58]]
        %v4182 = vstv %s4181
        %v4183 = vmul.f32 %v761, %v4182
        %v4184 = vmul.f32 %v766, %v4182
        %v4185 = vmul.f32 %v771, %v4182
        %v4186 = vmul.f32 %v776, %v4182
        %v4187 = vmul.f32 %v781, %v4182
        %v4193 = vrot.slane %v4183, 2
        %v4194 = vrot.slane %v4184, 2
        %v4195 = vsel %vm1419, %v4193, %v4194
        %v4196 = vrot.slane %v4185, 2
        %v4197 = vsel %vm1419, %v4194, %v4196
        %v4198 = vrot.slane %v4186, 2
        %v4199 = vsel %vm1419, %v4196, %v4198
        %v4200 = vrot.slane %v4187, 2
        %v4201 = vsel %vm1419, %v4198, %v4200
        %4202 = vrot.lane.b32.xlu0 %v4195, 127
        %v4203 = vpop.permute.xlu0 %4202
        %4204 = vrot.lane.b32.xlu0 %v4197, 127
        %v4205 = vpop.permute.xlu0 %4204
        %4206 = vrot.lane.b32.xlu0 %v4199, 127
        %v4207 = vpop.permute.xlu0 %4206
        %4208 = vrot.lane.b32.xlu0 %v4201, 127
        %v4209 = vpop.permute.xlu0 %4208
        %4210 = vrot.lane.b32.xlu0 %v4200, 127
        %v4211 = vpop.permute.xlu0 %4210
        %v4217 = vadd.f32 %v4176, %v4203
        %v4218 = vadd.f32 %v4177, %v4205
        %v4219 = vadd.f32 %v4178, %v4207
        %v4220 = vadd.f32 %v4179, %v4209
        %v4221 = vadd.f32 %v4180, %v4211
        %s4222 = sld [smem:[#allocation6 + $0x59]]
        %v4223 = vstv %s4222
        %v4224 = vmul.f32 %v761, %v4223
        %v4225 = vmul.f32 %v766, %v4223
        %v4226 = vmul.f32 %v771, %v4223
        %v4227 = vmul.f32 %v776, %v4223
        %v4228 = vmul.f32 %v781, %v4223
        %v4234 = vrot.slane %v4224, 2
        %v4235 = vrot.slane %v4225, 2
        %v4236 = vsel %vm1419, %v4234, %v4235
        %v4237 = vrot.slane %v4226, 2
        %v4238 = vsel %vm1419, %v4235, %v4237
        %v4239 = vrot.slane %v4227, 2
        %v4240 = vsel %vm1419, %v4237, %v4239
        %v4241 = vrot.slane %v4228, 2
        %v4242 = vsel %vm1419, %v4239, %v4241
        %4243 = vrot.lane.b32.xlu0 %v4236, 126
        %v4244 = vpop.permute.xlu0 %4243
        %4245 = vrot.lane.b32.xlu0 %v4238, 126
        %v4246 = vpop.permute.xlu0 %4245
        %4247 = vrot.lane.b32.xlu0 %v4240, 126
        %v4248 = vpop.permute.xlu0 %4247
        %4249 = vrot.lane.b32.xlu0 %v4242, 126
        %v4250 = vpop.permute.xlu0 %4249
        %4251 = vrot.lane.b32.xlu0 %v4241, 126
        %v4252 = vpop.permute.xlu0 %4251
        %v4258 = vadd.f32 %v4217, %v4244
        %v4259 = vadd.f32 %v4218, %v4246
        %v4260 = vadd.f32 %v4219, %v4248
        %v4261 = vadd.f32 %v4220, %v4250
        %v4262 = vadd.f32 %v4221, %v4252
        %s4263 = sld [smem:[#allocation6 + $0x5a]]
        %v4264 = vstv %s4263
        %v4265 = vmul.f32 %v959, %v4264
        %v4266 = vmul.f32 %v964, %v4264
        %v4267 = vmul.f32 %v969, %v4264
        %v4268 = vmul.f32 %v974, %v4264
        %v4269 = vmul.f32 %v979, %v4264
        %v4270 = vadd.f32 %v4258, %v4265
        %v4271 = vadd.f32 %v4259, %v4266
        %v4272 = vadd.f32 %v4260, %v4267
        %v4273 = vadd.f32 %v4261, %v4268
        %v4274 = vadd.f32 %v4262, %v4269
        %s4275 = sld [smem:[#allocation6 + $0x5b]]
        %v4276 = vstv %s4275
        %v4277 = vmul.f32 %v959, %v4276
        %v4278 = vmul.f32 %v964, %v4276
        %v4279 = vmul.f32 %v969, %v4276
        %v4280 = vmul.f32 %v974, %v4276
        %v4281 = vmul.f32 %v979, %v4276
        %4287 = vrot.lane.b32.xlu0 %v4277, 127
        %v4288 = vpop.permute.xlu0 %4287
        %4289 = vrot.lane.b32.xlu0 %v4278, 127
        %v4290 = vpop.permute.xlu0 %4289
        %4291 = vrot.lane.b32.xlu0 %v4279, 127
        %v4292 = vpop.permute.xlu0 %4291
        %4293 = vrot.lane.b32.xlu0 %v4280, 127
        %v4294 = vpop.permute.xlu0 %4293
        %4295 = vrot.lane.b32.xlu0 %v4281, 127
        %v4296 = vpop.permute.xlu0 %4295
        %v4302 = vadd.f32 %v4270, %v4288
        %v4303 = vadd.f32 %v4271, %v4290
        %v4304 = vadd.f32 %v4272, %v4292
        %v4305 = vadd.f32 %v4273, %v4294
        %v4306 = vadd.f32 %v4274, %v4296
        %s4307 = sld [smem:[#allocation6 + $0x5c]]
        %v4308 = vstv %s4307
        %v4309 = vmul.f32 %v959, %v4308
        %v4310 = vmul.f32 %v964, %v4308
        %v4311 = vmul.f32 %v969, %v4308
        %v4312 = vmul.f32 %v974, %v4308
        %v4313 = vmul.f32 %v979, %v4308
        %4319 = vrot.lane.b32.xlu0 %v4309, 126
        %v4320 = vpop.permute.xlu0 %4319
        %4321 = vrot.lane.b32.xlu0 %v4310, 126
        %v4322 = vpop.permute.xlu0 %4321
        %4323 = vrot.lane.b32.xlu0 %v4311, 126
        %v4324 = vpop.permute.xlu0 %4323
        %4325 = vrot.lane.b32.xlu0 %v4312, 126
        %v4326 = vpop.permute.xlu0 %4325
        %4327 = vrot.lane.b32.xlu0 %v4313, 126
        %v4328 = vpop.permute.xlu0 %4327
        %v4334 = vadd.f32 %v4302, %v4320
        %v4335 = vadd.f32 %v4303, %v4322
        %v4336 = vadd.f32 %v4304, %v4324
        %v4337 = vadd.f32 %v4305, %v4326
        %v4338 = vadd.f32 %v4306, %v4328
        %s4339 = sld [smem:[#allocation6 + $0x5d]]
        %v4340 = vstv %s4339
        %v4341 = vmul.f32 %v959, %v4340
        %v4342 = vmul.f32 %v964, %v4340
        %v4343 = vmul.f32 %v969, %v4340
        %v4344 = vmul.f32 %v974, %v4340
        %v4345 = vmul.f32 %v979, %v4340
        %v4351 = vrot.slane %v4341, 1
        %v4352 = vrot.slane %v4342, 1
        %v4353 = vsel %vm1305, %v4351, %v4352
        %v4354 = vrot.slane %v4343, 1
        %v4355 = vsel %vm1305, %v4352, %v4354
        %v4356 = vrot.slane %v4344, 1
        %v4357 = vsel %vm1305, %v4354, %v4356
        %v4358 = vrot.slane %v4345, 1
        %v4359 = vsel %vm1305, %v4356, %v4358
        %v4365 = vadd.f32 %v4334, %v4353
        %v4366 = vadd.f32 %v4335, %v4355
        %v4367 = vadd.f32 %v4336, %v4357
        %v4368 = vadd.f32 %v4337, %v4359
        %v4369 = vadd.f32 %v4338, %v4358
        %s4370 = sld [smem:[#allocation6 + $0x5e]]
        %v4371 = vstv %s4370
        %v4372 = vmul.f32 %v959, %v4371
        %v4373 = vmul.f32 %v964, %v4371
        %v4374 = vmul.f32 %v969, %v4371
        %v4375 = vmul.f32 %v974, %v4371
        %v4376 = vmul.f32 %v979, %v4371
        %v4382 = vrot.slane %v4372, 1
        %v4383 = vrot.slane %v4373, 1
        %v4384 = vsel %vm1305, %v4382, %v4383
        %v4385 = vrot.slane %v4374, 1
        %v4386 = vsel %vm1305, %v4383, %v4385
        %v4387 = vrot.slane %v4375, 1
        %v4388 = vsel %vm1305, %v4385, %v4387
        %v4389 = vrot.slane %v4376, 1
        %v4390 = vsel %vm1305, %v4387, %v4389
        %4391 = vrot.lane.b32.xlu0 %v4384, 127
        %v4392 = vpop.permute.xlu0 %4391
        %4393 = vrot.lane.b32.xlu0 %v4386, 127
        %v4394 = vpop.permute.xlu0 %4393
        %4395 = vrot.lane.b32.xlu0 %v4388, 127
        %v4396 = vpop.permute.xlu0 %4395
        %4397 = vrot.lane.b32.xlu0 %v4390, 127
        %v4398 = vpop.permute.xlu0 %4397
        %4399 = vrot.lane.b32.xlu0 %v4389, 127
        %v4400 = vpop.permute.xlu0 %4399
        %v4406 = vadd.f32 %v4365, %v4392
        %v4407 = vadd.f32 %v4366, %v4394
        %v4408 = vadd.f32 %v4367, %v4396
        %v4409 = vadd.f32 %v4368, %v4398
        %v4410 = vadd.f32 %v4369, %v4400
        %s4411 = sld [smem:[#allocation6 + $0x5f]]
        %v4412 = vstv %s4411
        %v4413 = vmul.f32 %v959, %v4412
        %v4414 = vmul.f32 %v964, %v4412
        %v4415 = vmul.f32 %v969, %v4412
        %v4416 = vmul.f32 %v974, %v4412
        %v4417 = vmul.f32 %v979, %v4412
        %v4423 = vrot.slane %v4413, 1
        %v4424 = vrot.slane %v4414, 1
        %v4425 = vsel %vm1305, %v4423, %v4424
        %v4426 = vrot.slane %v4415, 1
        %v4427 = vsel %vm1305, %v4424, %v4426
        %v4428 = vrot.slane %v4416, 1
        %v4429 = vsel %vm1305, %v4426, %v4428
        %v4430 = vrot.slane %v4417, 1
        %v4431 = vsel %vm1305, %v4428, %v4430
        %4432 = vrot.lane.b32.xlu0 %v4425, 126
        %v4433 = vpop.permute.xlu0 %4432
        %4434 = vrot.lane.b32.xlu0 %v4427, 126
        %v4435 = vpop.permute.xlu0 %4434
        %4436 = vrot.lane.b32.xlu0 %v4429, 126
        %v4437 = vpop.permute.xlu0 %4436
        %4438 = vrot.lane.b32.xlu0 %v4431, 126
        %v4439 = vpop.permute.xlu0 %4438
        %4440 = vrot.lane.b32.xlu0 %v4430, 126
        %v4441 = vpop.permute.xlu0 %4440
        %v4447 = vadd.f32 %v4406, %v4433
        %v4448 = vadd.f32 %v4407, %v4435
        %v4449 = vadd.f32 %v4408, %v4437
        %v4450 = vadd.f32 %v4409, %v4439
        %v4451 = vadd.f32 %v4410, %v4441
        %s4452 = sld [smem:[#allocation6 + $0x60]]
        %v4453 = vstv %s4452
        %v4454 = vmul.f32 %v959, %v4453
        %v4455 = vmul.f32 %v964, %v4453
        %v4456 = vmul.f32 %v969, %v4453
        %v4457 = vmul.f32 %v974, %v4453
        %v4458 = vmul.f32 %v979, %v4453
        %v4464 = vrot.slane %v4454, 2
        %v4465 = vrot.slane %v4455, 2
        %v4466 = vsel %vm1419, %v4464, %v4465
        %v4467 = vrot.slane %v4456, 2
        %v4468 = vsel %vm1419, %v4465, %v4467
        %v4469 = vrot.slane %v4457, 2
        %v4470 = vsel %vm1419, %v4467, %v4469
        %v4471 = vrot.slane %v4458, 2
        %v4472 = vsel %vm1419, %v4469, %v4471
        %v4478 = vadd.f32 %v4447, %v4466
        %v4479 = vadd.f32 %v4448, %v4468
        %v4480 = vadd.f32 %v4449, %v4470
        %v4481 = vadd.f32 %v4450, %v4472
        %v4482 = vadd.f32 %v4451, %v4471
        %s4483 = sld [smem:[#allocation6 + $0x61]]
        %v4484 = vstv %s4483
        %v4485 = vmul.f32 %v959, %v4484
        %v4486 = vmul.f32 %v964, %v4484
        %v4487 = vmul.f32 %v969, %v4484
        %v4488 = vmul.f32 %v974, %v4484
        %v4489 = vmul.f32 %v979, %v4484
        %v4495 = vrot.slane %v4485, 2
        %v4496 = vrot.slane %v4486, 2
        %v4497 = vsel %vm1419, %v4495, %v4496
        %v4498 = vrot.slane %v4487, 2
        %v4499 = vsel %vm1419, %v4496, %v4498
        %v4500 = vrot.slane %v4488, 2
        %v4501 = vsel %vm1419, %v4498, %v4500
        %v4502 = vrot.slane %v4489, 2
        %v4503 = vsel %vm1419, %v4500, %v4502
        %4504 = vrot.lane.b32.xlu0 %v4497, 127
        %v4505 = vpop.permute.xlu0 %4504
        %4506 = vrot.lane.b32.xlu0 %v4499, 127
        %v4507 = vpop.permute.xlu0 %4506
        %4508 = vrot.lane.b32.xlu0 %v4501, 127
        %v4509 = vpop.permute.xlu0 %4508
        %4510 = vrot.lane.b32.xlu0 %v4503, 127
        %v4511 = vpop.permute.xlu0 %4510
        %4512 = vrot.lane.b32.xlu0 %v4502, 127
        %v4513 = vpop.permute.xlu0 %4512
        %v4519 = vadd.f32 %v4478, %v4505
        %v4520 = vadd.f32 %v4479, %v4507
        %v4521 = vadd.f32 %v4480, %v4509
        %v4522 = vadd.f32 %v4481, %v4511
        %v4523 = vadd.f32 %v4482, %v4513
        %s4524 = sld [smem:[#allocation6 + $0x62]]
        %v4525 = vstv %s4524
        %v4526 = vmul.f32 %v959, %v4525
        %v4527 = vmul.f32 %v964, %v4525
        %v4528 = vmul.f32 %v969, %v4525
        %v4529 = vmul.f32 %v974, %v4525
        %v4530 = vmul.f32 %v979, %v4525
        %v4536 = vrot.slane %v4526, 2
        %v4537 = vrot.slane %v4527, 2
        %v4538 = vsel %vm1419, %v4536, %v4537
        %v4539 = vrot.slane %v4528, 2
        %v4540 = vsel %vm1419, %v4537, %v4539
        %v4541 = vrot.slane %v4529, 2
        %v4542 = vsel %vm1419, %v4539, %v4541
        %v4543 = vrot.slane %v4530, 2
        %v4544 = vsel %vm1419, %v4541, %v4543
        %4545 = vrot.lane.b32.xlu0 %v4538, 126
        %v4546 = vpop.permute.xlu0 %4545
        %4547 = vrot.lane.b32.xlu0 %v4540, 126
        %v4548 = vpop.permute.xlu0 %4547
        %4549 = vrot.lane.b32.xlu0 %v4542, 126
        %v4550 = vpop.permute.xlu0 %4549
        %4551 = vrot.lane.b32.xlu0 %v4544, 126
        %v4552 = vpop.permute.xlu0 %4551
        %4553 = vrot.lane.b32.xlu0 %v4543, 126
        %v4554 = vpop.permute.xlu0 %4553
        %v4560 = vadd.f32 %v4519, %v4546
        %v4561 = vadd.f32 %v4520, %v4548
        %v4562 = vadd.f32 %v4521, %v4550
        %v4563 = vadd.f32 %v4522, %v4552
        %v4564 = vadd.f32 %v4523, %v4554
        %s4565 = sld [smem:[#allocation6 + $0x63]]
        %v4566 = vstv %s4565
        %v4567 = vmul.f32 %v1157, %v4566
        %v4568 = vmul.f32 %v1162, %v4566
        %v4569 = vmul.f32 %v1167, %v4566
        %v4570 = vmul.f32 %v1172, %v4566
        %v4571 = vmul.f32 %v1177, %v4566
        %v4572 = vadd.f32 %v4560, %v4567
        %v4573 = vadd.f32 %v4561, %v4568
        %v4574 = vadd.f32 %v4562, %v4569
        %v4575 = vadd.f32 %v4563, %v4570
        %v4576 = vadd.f32 %v4564, %v4571
        %s4577 = sld [smem:[#allocation6 + $0x64]]
        %v4578 = vstv %s4577
        %v4579 = vmul.f32 %v1157, %v4578
        %v4580 = vmul.f32 %v1162, %v4578
        %v4581 = vmul.f32 %v1167, %v4578
        %v4582 = vmul.f32 %v1172, %v4578
        %v4583 = vmul.f32 %v1177, %v4578
        %4589 = vrot.lane.b32.xlu0 %v4579, 127
        %v4590 = vpop.permute.xlu0 %4589
        %4591 = vrot.lane.b32.xlu0 %v4580, 127
        %v4592 = vpop.permute.xlu0 %4591
        %4593 = vrot.lane.b32.xlu0 %v4581, 127
        %v4594 = vpop.permute.xlu0 %4593
        %4595 = vrot.lane.b32.xlu0 %v4582, 127
        %v4596 = vpop.permute.xlu0 %4595
        %4597 = vrot.lane.b32.xlu0 %v4583, 127
        %v4598 = vpop.permute.xlu0 %4597
        %v4604 = vadd.f32 %v4572, %v4590
        %v4605 = vadd.f32 %v4573, %v4592
        %v4606 = vadd.f32 %v4574, %v4594
        %v4607 = vadd.f32 %v4575, %v4596
        %v4608 = vadd.f32 %v4576, %v4598
        %s4609 = sld [smem:[#allocation6 + $0x65]]
        %v4610 = vstv %s4609
        %v4611 = vmul.f32 %v1157, %v4610
        %v4612 = vmul.f32 %v1162, %v4610
        %v4613 = vmul.f32 %v1167, %v4610
        %v4614 = vmul.f32 %v1172, %v4610
        %v4615 = vmul.f32 %v1177, %v4610
        %4621 = vrot.lane.b32.xlu0 %v4611, 126
        %v4622 = vpop.permute.xlu0 %4621
        %4623 = vrot.lane.b32.xlu0 %v4612, 126
        %v4624 = vpop.permute.xlu0 %4623
        %4625 = vrot.lane.b32.xlu0 %v4613, 126
        %v4626 = vpop.permute.xlu0 %4625
        %4627 = vrot.lane.b32.xlu0 %v4614, 126
        %v4628 = vpop.permute.xlu0 %4627
        %4629 = vrot.lane.b32.xlu0 %v4615, 126
        %v4630 = vpop.permute.xlu0 %4629
        %v4636 = vadd.f32 %v4604, %v4622
        %v4637 = vadd.f32 %v4605, %v4624
        %v4638 = vadd.f32 %v4606, %v4626
        %v4639 = vadd.f32 %v4607, %v4628
        %v4640 = vadd.f32 %v4608, %v4630
        %s4641 = sld [smem:[#allocation6 + $0x66]]
        %v4642 = vstv %s4641
        %v4643 = vmul.f32 %v1157, %v4642
        %v4644 = vmul.f32 %v1162, %v4642
        %v4645 = vmul.f32 %v1167, %v4642
        %v4646 = vmul.f32 %v1172, %v4642
        %v4647 = vmul.f32 %v1177, %v4642
        %v4653 = vrot.slane %v4643, 1
        %v4654 = vrot.slane %v4644, 1
        %v4655 = vsel %vm1305, %v4653, %v4654
        %v4656 = vrot.slane %v4645, 1
        %v4657 = vsel %vm1305, %v4654, %v4656
        %v4658 = vrot.slane %v4646, 1
        %v4659 = vsel %vm1305, %v4656, %v4658
        %v4660 = vrot.slane %v4647, 1
        %v4661 = vsel %vm1305, %v4658, %v4660
        %v4667 = vadd.f32 %v4636, %v4655
        %v4668 = vadd.f32 %v4637, %v4657
        %v4669 = vadd.f32 %v4638, %v4659
        %v4670 = vadd.f32 %v4639, %v4661
        %v4671 = vadd.f32 %v4640, %v4660
        %s4672 = sld [smem:[#allocation6 + $0x67]]
        %v4673 = vstv %s4672
        %v4674 = vmul.f32 %v1157, %v4673
        %v4675 = vmul.f32 %v1162, %v4673
        %v4676 = vmul.f32 %v1167, %v4673
        %v4677 = vmul.f32 %v1172, %v4673
        %v4678 = vmul.f32 %v1177, %v4673
        %v4684 = vrot.slane %v4674, 1
        %v4685 = vrot.slane %v4675, 1
        %v4686 = vsel %vm1305, %v4684, %v4685
        %v4687 = vrot.slane %v4676, 1
        %v4688 = vsel %vm1305, %v4685, %v4687
        %v4689 = vrot.slane %v4677, 1
        %v4690 = vsel %vm1305, %v4687, %v4689
        %v4691 = vrot.slane %v4678, 1
        %v4692 = vsel %vm1305, %v4689, %v4691
        %4693 = vrot.lane.b32.xlu0 %v4686, 127
        %v4694 = vpop.permute.xlu0 %4693
        %4695 = vrot.lane.b32.xlu0 %v4688, 127
        %v4696 = vpop.permute.xlu0 %4695
        %4697 = vrot.lane.b32.xlu0 %v4690, 127
        %v4698 = vpop.permute.xlu0 %4697
        %4699 = vrot.lane.b32.xlu0 %v4692, 127
        %v4700 = vpop.permute.xlu0 %4699
        %4701 = vrot.lane.b32.xlu0 %v4691, 127
        %v4702 = vpop.permute.xlu0 %4701
        %v4708 = vadd.f32 %v4667, %v4694
        %v4709 = vadd.f32 %v4668, %v4696
        %v4710 = vadd.f32 %v4669, %v4698
        %v4711 = vadd.f32 %v4670, %v4700
        %v4712 = vadd.f32 %v4671, %v4702
        %s4713 = sld [smem:[#allocation6 + $0x68]]
        %v4714 = vstv %s4713
        %v4715 = vmul.f32 %v1157, %v4714
        %v4716 = vmul.f32 %v1162, %v4714
        %v4717 = vmul.f32 %v1167, %v4714
        %v4718 = vmul.f32 %v1172, %v4714
        %v4719 = vmul.f32 %v1177, %v4714
        %v4725 = vrot.slane %v4715, 1
        %v4726 = vrot.slane %v4716, 1
        %v4727 = vsel %vm1305, %v4725, %v4726
        %v4728 = vrot.slane %v4717, 1
        %v4729 = vsel %vm1305, %v4726, %v4728
        %v4730 = vrot.slane %v4718, 1
        %v4731 = vsel %vm1305, %v4728, %v4730
        %v4732 = vrot.slane %v4719, 1
        %v4733 = vsel %vm1305, %v4730, %v4732
        %4734 = vrot.lane.b32.xlu0 %v4727, 126
        %v4735 = vpop.permute.xlu0 %4734
        %4736 = vrot.lane.b32.xlu0 %v4729, 126
        %v4737 = vpop.permute.xlu0 %4736
        %4738 = vrot.lane.b32.xlu0 %v4731, 126
        %v4739 = vpop.permute.xlu0 %4738
        %4740 = vrot.lane.b32.xlu0 %v4733, 126
        %v4741 = vpop.permute.xlu0 %4740
        %4742 = vrot.lane.b32.xlu0 %v4732, 126
        %v4743 = vpop.permute.xlu0 %4742
        %v4749 = vadd.f32 %v4708, %v4735
        %v4750 = vadd.f32 %v4709, %v4737
        %v4751 = vadd.f32 %v4710, %v4739
        %v4752 = vadd.f32 %v4711, %v4741
        %v4753 = vadd.f32 %v4712, %v4743
        %s4754 = sld [smem:[#allocation6 + $0x69]]
        %v4755 = vstv %s4754
        %v4756 = vmul.f32 %v1157, %v4755
        %v4757 = vmul.f32 %v1162, %v4755
        %v4758 = vmul.f32 %v1167, %v4755
        %v4759 = vmul.f32 %v1172, %v4755
        %v4760 = vmul.f32 %v1177, %v4755
        %v4766 = vrot.slane %v4756, 2
        %v4767 = vrot.slane %v4757, 2
        %v4768 = vsel %vm1419, %v4766, %v4767
        %v4769 = vrot.slane %v4758, 2
        %v4770 = vsel %vm1419, %v4767, %v4769
        %v4771 = vrot.slane %v4759, 2
        %v4772 = vsel %vm1419, %v4769, %v4771
        %v4773 = vrot.slane %v4760, 2
        %v4774 = vsel %vm1419, %v4771, %v4773
        %v4780 = vadd.f32 %v4749, %v4768
        %v4781 = vadd.f32 %v4750, %v4770
        %v4782 = vadd.f32 %v4751, %v4772
        %v4783 = vadd.f32 %v4752, %v4774
        %v4784 = vadd.f32 %v4753, %v4773
        %s4785 = sld [smem:[#allocation6 + $0x6a]]
        %v4786 = vstv %s4785
        %v4787 = vmul.f32 %v1157, %v4786
        %v4788 = vmul.f32 %v1162, %v4786
        %v4789 = vmul.f32 %v1167, %v4786
        %v4790 = vmul.f32 %v1172, %v4786
        %v4791 = vmul.f32 %v1177, %v4786
        %v4797 = vrot.slane %v4787, 2
        %v4798 = vrot.slane %v4788, 2
        %v4799 = vsel %vm1419, %v4797, %v4798
        %v4800 = vrot.slane %v4789, 2
        %v4801 = vsel %vm1419, %v4798, %v4800
        %v4802 = vrot.slane %v4790, 2
        %v4803 = vsel %vm1419, %v4800, %v4802
        %v4804 = vrot.slane %v4791, 2
        %v4805 = vsel %vm1419, %v4802, %v4804
        %4806 = vrot.lane.b32.xlu0 %v4799, 127
        %v4807 = vpop.permute.xlu0 %4806
        %4808 = vrot.lane.b32.xlu0 %v4801, 127
        %v4809 = vpop.permute.xlu0 %4808
        %4810 = vrot.lane.b32.xlu0 %v4803, 127
        %v4811 = vpop.permute.xlu0 %4810
        %4812 = vrot.lane.b32.xlu0 %v4805, 127
        %v4813 = vpop.permute.xlu0 %4812
        %4814 = vrot.lane.b32.xlu0 %v4804, 127
        %v4815 = vpop.permute.xlu0 %4814
        %v4821 = vadd.f32 %v4780, %v4807
        %v4822 = vadd.f32 %v4781, %v4809
        %v4823 = vadd.f32 %v4782, %v4811
        %v4824 = vadd.f32 %v4783, %v4813
        %v4825 = vadd.f32 %v4784, %v4815
        %s4826 = sld [smem:[#allocation6 + $0x6b]]
        %v4827 = vstv %s4826
        %v4828 = vmul.f32 %v1157, %v4827
        %v4829 = vmul.f32 %v1162, %v4827
        %v4830 = vmul.f32 %v1167, %v4827
        %v4831 = vmul.f32 %v1172, %v4827
        %v4832 = vmul.f32 %v1177, %v4827
        %v4838 = vrot.slane %v4828, 2
        %v4839 = vrot.slane %v4829, 2
        %v4840 = vsel %vm1419, %v4838, %v4839
        %v4841 = vrot.slane %v4830, 2
        %v4842 = vsel %vm1419, %v4839, %v4841
        %v4843 = vrot.slane %v4831, 2
        %v4844 = vsel %vm1419, %v4841, %v4843
        %v4845 = vrot.slane %v4832, 2
        %v4846 = vsel %vm1419, %v4843, %v4845
        %4847 = vrot.lane.b32.xlu0 %v4840, 126
        %v4848 = vpop.permute.xlu0 %4847
        %4849 = vrot.lane.b32.xlu0 %v4842, 126
        %v4850 = vpop.permute.xlu0 %4849
        %4851 = vrot.lane.b32.xlu0 %v4844, 126
        %v4852 = vpop.permute.xlu0 %4851
        %4853 = vrot.lane.b32.xlu0 %v4846, 126
        %v4854 = vpop.permute.xlu0 %4853
        %4855 = vrot.lane.b32.xlu0 %v4845, 126
        %v4856 = vpop.permute.xlu0 %4855
        %v4862 = vadd.f32 %v4821, %v4848
        %v4863 = vadd.f32 %v4822, %v4850
        %v4864 = vadd.f32 %v4823, %v4852
        %v4865 = vadd.f32 %v4824, %v4854
        %v4866 = vadd.f32 %v4825, %v4856
        %s4867 = sld [smem:[#allocation7 + $0x2]]
        %v4868 = vstv %s4867
        %v4869 = vadd.f32 %v4862, %v4868
        %v4870 = vadd.f32 %v4863, %v4868
        %v4871 = vadd.f32 %v4864, %v4868
        %v4872 = vadd.f32 %v4865, %v4868
        %v4873 = vadd.f32 %v4866, %v4868
        %v4874 = vmax.f32 %v4869, 0.0
        %v4875 = vmax.f32 %v4870, 0.0
        %v4876 = vmax.f32 %v4871, 0.0
        %v4877 = vmax.f32 %v4872, 0.0
        %v4878 = vmax.f32 %v4873, 0.0
        %v4879 = vsel %vm1217, %v4874, 0.0
        %v4880 = vsel %vm1218, %v4875, 0.0
        %v4881 = vsel %vm1219, %v4876, 0.0
        %v4882 = vsel %vm1220, %v4877, 0.0
        %v4883 = vsel %vm1221, %v4878, 0.0
        %s4884 = sld [smem:[#allocation6 + $0x6c]]
        %v4885 = vstv %s4884
        %v4886 = vmul.f32 %v563, %v4885
        %v4887 = vmul.f32 %v568, %v4885
        %v4888 = vmul.f32 %v573, %v4885
        %v4889 = vmul.f32 %v578, %v4885
        %v4890 = vmul.f32 %v583, %v4885
        %s4891 = sld [smem:[#allocation6 + $0x6d]]
        %v4892 = vstv %s4891
        %v4893 = vmul.f32 %v563, %v4892
        %v4894 = vmul.f32 %v568, %v4892
        %v4895 = vmul.f32 %v573, %v4892
        %v4896 = vmul.f32 %v578, %v4892
        %v4897 = vmul.f32 %v583, %v4892
        %4903 = vrot.lane.b32.xlu0 %v4893, 127
        %v4904 = vpop.permute.xlu0 %4903
        %4905 = vrot.lane.b32.xlu0 %v4894, 127
        %v4906 = vpop.permute.xlu0 %4905
        %4907 = vrot.lane.b32.xlu0 %v4895, 127
        %v4908 = vpop.permute.xlu0 %4907
        %4909 = vrot.lane.b32.xlu0 %v4896, 127
        %v4910 = vpop.permute.xlu0 %4909
        %4911 = vrot.lane.b32.xlu0 %v4897, 127
        %v4912 = vpop.permute.xlu0 %4911
        %v4918 = vadd.f32 %v4886, %v4904
        %v4919 = vadd.f32 %v4887, %v4906
        %v4920 = vadd.f32 %v4888, %v4908
        %v4921 = vadd.f32 %v4889, %v4910
        %v4922 = vadd.f32 %v4890, %v4912
        %s4923 = sld [smem:[#allocation6 + $0x6e]]
        %v4924 = vstv %s4923
        %v4925 = vmul.f32 %v563, %v4924
        %v4926 = vmul.f32 %v568, %v4924
        %v4927 = vmul.f32 %v573, %v4924
        %v4928 = vmul.f32 %v578, %v4924
        %v4929 = vmul.f32 %v583, %v4924
        %4935 = vrot.lane.b32.xlu0 %v4925, 126
        %v4936 = vpop.permute.xlu0 %4935
        %4937 = vrot.lane.b32.xlu0 %v4926, 126
        %v4938 = vpop.permute.xlu0 %4937
        %4939 = vrot.lane.b32.xlu0 %v4927, 126
        %v4940 = vpop.permute.xlu0 %4939
        %4941 = vrot.lane.b32.xlu0 %v4928, 126
        %v4942 = vpop.permute.xlu0 %4941
        %4943 = vrot.lane.b32.xlu0 %v4929, 126
        %v4944 = vpop.permute.xlu0 %4943
        %v4950 = vadd.f32 %v4918, %v4936
        %v4951 = vadd.f32 %v4919, %v4938
        %v4952 = vadd.f32 %v4920, %v4940
        %v4953 = vadd.f32 %v4921, %v4942
        %v4954 = vadd.f32 %v4922, %v4944
        %s4955 = sld [smem:[#allocation6 + $0x6f]]
        %v4956 = vstv %s4955
        %v4957 = vmul.f32 %v563, %v4956
        %v4958 = vmul.f32 %v568, %v4956
        %v4959 = vmul.f32 %v573, %v4956
        %v4960 = vmul.f32 %v578, %v4956
        %v4961 = vmul.f32 %v583, %v4956
        %v4967 = vrot.slane %v4957, 1
        %v4968 = vrot.slane %v4958, 1
        %v4969 = vsel %vm1305, %v4967, %v4968
        %v4970 = vrot.slane %v4959, 1
        %v4971 = vsel %vm1305, %v4968, %v4970
        %v4972 = vrot.slane %v4960, 1
        %v4973 = vsel %vm1305, %v4970, %v4972
        %v4974 = vrot.slane %v4961, 1
        %v4975 = vsel %vm1305, %v4972, %v4974
        %v4981 = vadd.f32 %v4950, %v4969
        %v4982 = vadd.f32 %v4951, %v4971
        %v4983 = vadd.f32 %v4952, %v4973
        %v4984 = vadd.f32 %v4953, %v4975
        %v4985 = vadd.f32 %v4954, %v4974
        %s4986 = sld [smem:[#allocation6 + $0x70]]
        %v4987 = vstv %s4986
        %v4988 = vmul.f32 %v563, %v4987
        %v4989 = vmul.f32 %v568, %v4987
        %v4990 = vmul.f32 %v573, %v4987
        %v4991 = vmul.f32 %v578, %v4987
        %v4992 = vmul.f32 %v583, %v4987
        %v4998 = vrot.slane %v4988, 1
        %v4999 = vrot.slane %v4989, 1
        %v5000 = vsel %vm1305, %v4998, %v4999
        %v5001 = vrot.slane %v4990, 1
        %v5002 = vsel %vm1305, %v4999, %v5001
        %v5003 = vrot.slane %v4991, 1
        %v5004 = vsel %vm1305, %v5001, %v5003
        %v5005 = vrot.slane %v4992, 1
        %v5006 = vsel %vm1305, %v5003, %v5005
        %5007 = vrot.lane.b32.xlu0 %v5000, 127
        %v5008 = vpop.permute.xlu0 %5007
        %5009 = vrot.lane.b32.xlu0 %v5002, 127
        %v5010 = vpop.permute.xlu0 %5009
        %5011 = vrot.lane.b32.xlu0 %v5004, 127
        %v5012 = vpop.permute.xlu0 %5011
        %5013 = vrot.lane.b32.xlu0 %v5006, 127
        %v5014 = vpop.permute.xlu0 %5013
        %5015 = vrot.lane.b32.xlu0 %v5005, 127
        %v5016 = vpop.permute.xlu0 %5015
        %v5022 = vadd.f32 %v4981, %v5008
        %v5023 = vadd.f32 %v4982, %v5010
        %v5024 = vadd.f32 %v4983, %v5012
        %v5025 = vadd.f32 %v4984, %v5014
        %v5026 = vadd.f32 %v4985, %v5016
        %s5027 = sld [smem:[#allocation6 + $0x71]]
        %v5028 = vstv %s5027
        %v5029 = vmul.f32 %v563, %v5028
        %v5030 = vmul.f32 %v568, %v5028
        %v5031 = vmul.f32 %v573, %v5028
        %v5032 = vmul.f32 %v578, %v5028
        %v5033 = vmul.f32 %v583, %v5028
        %v5039 = vrot.slane %v5029, 1
        %v5040 = vrot.slane %v5030, 1
        %v5041 = vsel %vm1305, %v5039, %v5040
        %v5042 = vrot.slane %v5031, 1
        %v5043 = vsel %vm1305, %v5040, %v5042
        %v5044 = vrot.slane %v5032, 1
        %v5045 = vsel %vm1305, %v5042, %v5044
        %v5046 = vrot.slane %v5033, 1
        %v5047 = vsel %vm1305, %v5044, %v5046
        %5048 = vrot.lane.b32.xlu0 %v5041, 126
        %v5049 = vpop.permute.xlu0 %5048
        %5050 = vrot.lane.b32.xlu0 %v5043, 126
        %v5051 = vpop.permute.xlu0 %5050
        %5052 = vrot.lane.b32.xlu0 %v5045, 126
        %v5053 = vpop.permute.xlu0 %5052
        %5054 = vrot.lane.b32.xlu0 %v5047, 126
        %v5055 = vpop.permute.xlu0 %5054
        %5056 = vrot.lane.b32.xlu0 %v5046, 126
        %v5057 = vpop.permute.xlu0 %5056
        %v5063 = vadd.f32 %v5022, %v5049
        %v5064 = vadd.f32 %v5023, %v5051
        %v5065 = vadd.f32 %v5024, %v5053
        %v5066 = vadd.f32 %v5025, %v5055
        %v5067 = vadd.f32 %v5026, %v5057
        %s5068 = sld [smem:[#allocation6 + $0x72]]
        %v5069 = vstv %s5068
        %v5070 = vmul.f32 %v563, %v5069
        %v5071 = vmul.f32 %v568, %v5069
        %v5072 = vmul.f32 %v573, %v5069
        %v5073 = vmul.f32 %v578, %v5069
        %v5074 = vmul.f32 %v583, %v5069
        %v5080 = vrot.slane %v5070, 2
        %v5081 = vrot.slane %v5071, 2
        %v5082 = vsel %vm1419, %v5080, %v5081
        %v5083 = vrot.slane %v5072, 2
        %v5084 = vsel %vm1419, %v5081, %v5083
        %v5085 = vrot.slane %v5073, 2
        %v5086 = vsel %vm1419, %v5083, %v5085
        %v5087 = vrot.slane %v5074, 2
        %v5088 = vsel %vm1419, %v5085, %v5087
        %v5094 = vadd.f32 %v5063, %v5082
        %v5095 = vadd.f32 %v5064, %v5084
        %v5096 = vadd.f32 %v5065, %v5086
        %v5097 = vadd.f32 %v5066, %v5088
        %v5098 = vadd.f32 %v5067, %v5087
        %s5099 = sld [smem:[#allocation6 + $0x73]]
        %v5100 = vstv %s5099
        %v5101 = vmul.f32 %v563, %v5100
        %v5102 = vmul.f32 %v568, %v5100
        %v5103 = vmul.f32 %v573, %v5100
        %v5104 = vmul.f32 %v578, %v5100
        %v5105 = vmul.f32 %v583, %v5100
        %v5111 = vrot.slane %v5101, 2
        %v5112 = vrot.slane %v5102, 2
        %v5113 = vsel %vm1419, %v5111, %v5112
        %v5114 = vrot.slane %v5103, 2
        %v5115 = vsel %vm1419, %v5112, %v5114
        %v5116 = vrot.slane %v5104, 2
        %v5117 = vsel %vm1419, %v5114, %v5116
        %v5118 = vrot.slane %v5105, 2
        %v5119 = vsel %vm1419, %v5116, %v5118
        %5120 = vrot.lane.b32.xlu0 %v5113, 127
        %v5121 = vpop.permute.xlu0 %5120
        %5122 = vrot.lane.b32.xlu0 %v5115, 127
        %v5123 = vpop.permute.xlu0 %5122
        %5124 = vrot.lane.b32.xlu0 %v5117, 127
        %v5125 = vpop.permute.xlu0 %5124
        %5126 = vrot.lane.b32.xlu0 %v5119, 127
        %v5127 = vpop.permute.xlu0 %5126
        %5128 = vrot.lane.b32.xlu0 %v5118, 127
        %v5129 = vpop.permute.xlu0 %5128
        %v5135 = vadd.f32 %v5094, %v5121
        %v5136 = vadd.f32 %v5095, %v5123
        %v5137 = vadd.f32 %v5096, %v5125
        %v5138 = vadd.f32 %v5097, %v5127
        %v5139 = vadd.f32 %v5098, %v5129
        %s5140 = sld [smem:[#allocation6 + $0x74]]
        %v5141 = vstv %s5140
        %v5142 = vmul.f32 %v563, %v5141
        %v5143 = vmul.f32 %v568, %v5141
        %v5144 = vmul.f32 %v573, %v5141
        %v5145 = vmul.f32 %v578, %v5141
        %v5146 = vmul.f32 %v583, %v5141
        %v5152 = vrot.slane %v5142, 2
        %v5153 = vrot.slane %v5143, 2
        %v5154 = vsel %vm1419, %v5152, %v5153
        %v5155 = vrot.slane %v5144, 2
        %v5156 = vsel %vm1419, %v5153, %v5155
        %v5157 = vrot.slane %v5145, 2
        %v5158 = vsel %vm1419, %v5155, %v5157
        %v5159 = vrot.slane %v5146, 2
        %v5160 = vsel %vm1419, %v5157, %v5159
        %5161 = vrot.lane.b32.xlu0 %v5154, 126
        %v5162 = vpop.permute.xlu0 %5161
        %5163 = vrot.lane.b32.xlu0 %v5156, 126
        %v5164 = vpop.permute.xlu0 %5163
        %5165 = vrot.lane.b32.xlu0 %v5158, 126
        %v5166 = vpop.permute.xlu0 %5165
        %5167 = vrot.lane.b32.xlu0 %v5160, 126
        %v5168 = vpop.permute.xlu0 %5167
        %5169 = vrot.lane.b32.xlu0 %v5159, 126
        %v5170 = vpop.permute.xlu0 %5169
        %v5176 = vadd.f32 %v5135, %v5162
        %v5177 = vadd.f32 %v5136, %v5164
        %v5178 = vadd.f32 %v5137, %v5166
        %v5179 = vadd.f32 %v5138, %v5168
        %v5180 = vadd.f32 %v5139, %v5170
        %s5181 = sld [smem:[#allocation6 + $0x75]]
        %v5182 = vstv %s5181
        %v5183 = vmul.f32 %v761, %v5182
        %v5184 = vmul.f32 %v766, %v5182
        %v5185 = vmul.f32 %v771, %v5182
        %v5186 = vmul.f32 %v776, %v5182
        %v5187 = vmul.f32 %v781, %v5182
        %v5188 = vadd.f32 %v5176, %v5183
        %v5189 = vadd.f32 %v5177, %v5184
        %v5190 = vadd.f32 %v5178, %v5185
        %v5191 = vadd.f32 %v5179, %v5186
        %v5192 = vadd.f32 %v5180, %v5187
        %s5193 = sld [smem:[#allocation6 + $0x76]]
        %v5194 = vstv %s5193
        %v5195 = vmul.f32 %v761, %v5194
        %v5196 = vmul.f32 %v766, %v5194
        %v5197 = vmul.f32 %v771, %v5194
        %v5198 = vmul.f32 %v776, %v5194
        %v5199 = vmul.f32 %v781, %v5194
        %5205 = vrot.lane.b32.xlu0 %v5195, 127
        %v5206 = vpop.permute.xlu0 %5205
        %5207 = vrot.lane.b32.xlu0 %v5196, 127
        %v5208 = vpop.permute.xlu0 %5207
        %5209 = vrot.lane.b32.xlu0 %v5197, 127
        %v5210 = vpop.permute.xlu0 %5209
        %5211 = vrot.lane.b32.xlu0 %v5198, 127
        %v5212 = vpop.permute.xlu0 %5211
        %5213 = vrot.lane.b32.xlu0 %v5199, 127
        %v5214 = vpop.permute.xlu0 %5213
        %v5220 = vadd.f32 %v5188, %v5206
        %v5221 = vadd.f32 %v5189, %v5208
        %v5222 = vadd.f32 %v5190, %v5210
        %v5223 = vadd.f32 %v5191, %v5212
        %v5224 = vadd.f32 %v5192, %v5214
        %s5225 = sld [smem:[#allocation6 + $0x77]]
        %v5226 = vstv %s5225
        %v5227 = vmul.f32 %v761, %v5226
        %v5228 = vmul.f32 %v766, %v5226
        %v5229 = vmul.f32 %v771, %v5226
        %v5230 = vmul.f32 %v776, %v5226
        %v5231 = vmul.f32 %v781, %v5226
        %5237 = vrot.lane.b32.xlu0 %v5227, 126
        %v5238 = vpop.permute.xlu0 %5237
        %5239 = vrot.lane.b32.xlu0 %v5228, 126
        %v5240 = vpop.permute.xlu0 %5239
        %5241 = vrot.lane.b32.xlu0 %v5229, 126
        %v5242 = vpop.permute.xlu0 %5241
        %5243 = vrot.lane.b32.xlu0 %v5230, 126
        %v5244 = vpop.permute.xlu0 %5243
        %5245 = vrot.lane.b32.xlu0 %v5231, 126
        %v5246 = vpop.permute.xlu0 %5245
        %v5252 = vadd.f32 %v5220, %v5238
        %v5253 = vadd.f32 %v5221, %v5240
        %v5254 = vadd.f32 %v5222, %v5242
        %v5255 = vadd.f32 %v5223, %v5244
        %v5256 = vadd.f32 %v5224, %v5246
        %s5257 = sld [smem:[#allocation6 + $0x78]]
        %v5258 = vstv %s5257
        %v5259 = vmul.f32 %v761, %v5258
        %v5260 = vmul.f32 %v766, %v5258
        %v5261 = vmul.f32 %v771, %v5258
        %v5262 = vmul.f32 %v776, %v5258
        %v5263 = vmul.f32 %v781, %v5258
        %v5269 = vrot.slane %v5259, 1
        %v5270 = vrot.slane %v5260, 1
        %v5271 = vsel %vm1305, %v5269, %v5270
        %v5272 = vrot.slane %v5261, 1
        %v5273 = vsel %vm1305, %v5270, %v5272
        %v5274 = vrot.slane %v5262, 1
        %v5275 = vsel %vm1305, %v5272, %v5274
        %v5276 = vrot.slane %v5263, 1
        %v5277 = vsel %vm1305, %v5274, %v5276
        %v5283 = vadd.f32 %v5252, %v5271
        %v5284 = vadd.f32 %v5253, %v5273
        %v5285 = vadd.f32 %v5254, %v5275
        %v5286 = vadd.f32 %v5255, %v5277
        %v5287 = vadd.f32 %v5256, %v5276
        %s5288 = sld [smem:[#allocation6 + $0x79]]
        %v5289 = vstv %s5288
        %v5290 = vmul.f32 %v761, %v5289
        %v5291 = vmul.f32 %v766, %v5289
        %v5292 = vmul.f32 %v771, %v5289
        %v5293 = vmul.f32 %v776, %v5289
        %v5294 = vmul.f32 %v781, %v5289
        %v5300 = vrot.slane %v5290, 1
        %v5301 = vrot.slane %v5291, 1
        %v5302 = vsel %vm1305, %v5300, %v5301
        %v5303 = vrot.slane %v5292, 1
        %v5304 = vsel %vm1305, %v5301, %v5303
        %v5305 = vrot.slane %v5293, 1
        %v5306 = vsel %vm1305, %v5303, %v5305
        %v5307 = vrot.slane %v5294, 1
        %v5308 = vsel %vm1305, %v5305, %v5307
        %5309 = vrot.lane.b32.xlu0 %v5302, 127
        %v5310 = vpop.permute.xlu0 %5309
        %5311 = vrot.lane.b32.xlu0 %v5304, 127
        %v5312 = vpop.permute.xlu0 %5311
        %5313 = vrot.lane.b32.xlu0 %v5306, 127
        %v5314 = vpop.permute.xlu0 %5313
        %5315 = vrot.lane.b32.xlu0 %v5308, 127
        %v5316 = vpop.permute.xlu0 %5315
        %5317 = vrot.lane.b32.xlu0 %v5307, 127
        %v5318 = vpop.permute.xlu0 %5317
        %v5324 = vadd.f32 %v5283, %v5310
        %v5325 = vadd.f32 %v5284, %v5312
        %v5326 = vadd.f32 %v5285, %v5314
        %v5327 = vadd.f32 %v5286, %v5316
        %v5328 = vadd.f32 %v5287, %v5318
        %s5329 = sld [smem:[#allocation6 + $0x7a]]
        %v5330 = vstv %s5329
        %v5331 = vmul.f32 %v761, %v5330
        %v5332 = vmul.f32 %v766, %v5330
        %v5333 = vmul.f32 %v771, %v5330
        %v5334 = vmul.f32 %v776, %v5330
        %v5335 = vmul.f32 %v781, %v5330
        %v5341 = vrot.slane %v5331, 1
        %v5342 = vrot.slane %v5332, 1
        %v5343 = vsel %vm1305, %v5341, %v5342
        %v5344 = vrot.slane %v5333, 1
        %v5345 = vsel %vm1305, %v5342, %v5344
        %v5346 = vrot.slane %v5334, 1
        %v5347 = vsel %vm1305, %v5344, %v5346
        %v5348 = vrot.slane %v5335, 1
        %v5349 = vsel %vm1305, %v5346, %v5348
        %5350 = vrot.lane.b32.xlu0 %v5343, 126
        %v5351 = vpop.permute.xlu0 %5350
        %5352 = vrot.lane.b32.xlu0 %v5345, 126
        %v5353 = vpop.permute.xlu0 %5352
        %5354 = vrot.lane.b32.xlu0 %v5347, 126
        %v5355 = vpop.permute.xlu0 %5354
        %5356 = vrot.lane.b32.xlu0 %v5349, 126
        %v5357 = vpop.permute.xlu0 %5356
        %5358 = vrot.lane.b32.xlu0 %v5348, 126
        %v5359 = vpop.permute.xlu0 %5358
        %v5365 = vadd.f32 %v5324, %v5351
        %v5366 = vadd.f32 %v5325, %v5353
        %v5367 = vadd.f32 %v5326, %v5355
        %v5368 = vadd.f32 %v5327, %v5357
        %v5369 = vadd.f32 %v5328, %v5359
        %s5370 = sld [smem:[#allocation6 + $0x7b]]
        %v5371 = vstv %s5370
        %v5372 = vmul.f32 %v761, %v5371
        %v5373 = vmul.f32 %v766, %v5371
        %v5374 = vmul.f32 %v771, %v5371
        %v5375 = vmul.f32 %v776, %v5371
        %v5376 = vmul.f32 %v781, %v5371
        %v5382 = vrot.slane %v5372, 2
        %v5383 = vrot.slane %v5373, 2
        %v5384 = vsel %vm1419, %v5382, %v5383
        %v5385 = vrot.slane %v5374, 2
        %v5386 = vsel %vm1419, %v5383, %v5385
        %v5387 = vrot.slane %v5375, 2
        %v5388 = vsel %vm1419, %v5385, %v5387
        %v5389 = vrot.slane %v5376, 2
        %v5390 = vsel %vm1419, %v5387, %v5389
        %v5396 = vadd.f32 %v5365, %v5384
        %v5397 = vadd.f32 %v5366, %v5386
        %v5398 = vadd.f32 %v5367, %v5388
        %v5399 = vadd.f32 %v5368, %v5390
        %v5400 = vadd.f32 %v5369, %v5389
        %s5401 = sld [smem:[#allocation6 + $0x7c]]
        %v5402 = vstv %s5401
        %v5403 = vmul.f32 %v761, %v5402
        %v5404 = vmul.f32 %v766, %v5402
        %v5405 = vmul.f32 %v771, %v5402
        %v5406 = vmul.f32 %v776, %v5402
        %v5407 = vmul.f32 %v781, %v5402
        %v5413 = vrot.slane %v5403, 2
        %v5414 = vrot.slane %v5404, 2
        %v5415 = vsel %vm1419, %v5413, %v5414
        %v5416 = vrot.slane %v5405, 2
        %v5417 = vsel %vm1419, %v5414, %v5416
        %v5418 = vrot.slane %v5406, 2
        %v5419 = vsel %vm1419, %v5416, %v5418
        %v5420 = vrot.slane %v5407, 2
        %v5421 = vsel %vm1419, %v5418, %v5420
        %5422 = vrot.lane.b32.xlu0 %v5415, 127
        %v5423 = vpop.permute.xlu0 %5422
        %5424 = vrot.lane.b32.xlu0 %v5417, 127
        %v5425 = vpop.permute.xlu0 %5424
        %5426 = vrot.lane.b32.xlu0 %v5419, 127
        %v5427 = vpop.permute.xlu0 %5426
        %5428 = vrot.lane.b32.xlu0 %v5421, 127
        %v5429 = vpop.permute.xlu0 %5428
        %5430 = vrot.lane.b32.xlu0 %v5420, 127
        %v5431 = vpop.permute.xlu0 %5430
        %v5437 = vadd.f32 %v5396, %v5423
        %v5438 = vadd.f32 %v5397, %v5425
        %v5439 = vadd.f32 %v5398, %v5427
        %v5440 = vadd.f32 %v5399, %v5429
        %v5441 = vadd.f32 %v5400, %v5431
        %s5442 = sld [smem:[#allocation6 + $0x7d]]
        %v5443 = vstv %s5442
        %v5444 = vmul.f32 %v761, %v5443
        %v5445 = vmul.f32 %v766, %v5443
        %v5446 = vmul.f32 %v771, %v5443
        %v5447 = vmul.f32 %v776, %v5443
        %v5448 = vmul.f32 %v781, %v5443
        %v5454 = vrot.slane %v5444, 2
        %v5455 = vrot.slane %v5445, 2
        %v5456 = vsel %vm1419, %v5454, %v5455
        %v5457 = vrot.slane %v5446, 2
        %v5458 = vsel %vm1419, %v5455, %v5457
        %v5459 = vrot.slane %v5447, 2
        %v5460 = vsel %vm1419, %v5457, %v5459
        %v5461 = vrot.slane %v5448, 2
        %v5462 = vsel %vm1419, %v5459, %v5461
        %5463 = vrot.lane.b32.xlu0 %v5456, 126
        %v5464 = vpop.permute.xlu0 %5463
        %5465 = vrot.lane.b32.xlu0 %v5458, 126
        %v5466 = vpop.permute.xlu0 %5465
        %5467 = vrot.lane.b32.xlu0 %v5460, 126
        %v5468 = vpop.permute.xlu0 %5467
        %5469 = vrot.lane.b32.xlu0 %v5462, 126
        %v5470 = vpop.permute.xlu0 %5469
        %5471 = vrot.lane.b32.xlu0 %v5461, 126
        %v5472 = vpop.permute.xlu0 %5471
        %v5478 = vadd.f32 %v5437, %v5464
        %v5479 = vadd.f32 %v5438, %v5466
        %v5480 = vadd.f32 %v5439, %v5468
        %v5481 = vadd.f32 %v5440, %v5470
        %v5482 = vadd.f32 %v5441, %v5472
        %s5483 = sld [smem:[#allocation6 + $0x7e]]
        %v5484 = vstv %s5483
        %v5485 = vmul.f32 %v959, %v5484
        %v5486 = vmul.f32 %v964, %v5484
        %v5487 = vmul.f32 %v969, %v5484
        %v5488 = vmul.f32 %v974, %v5484
        %v5489 = vmul.f32 %v979, %v5484
        %v5490 = vadd.f32 %v5478, %v5485
        %v5491 = vadd.f32 %v5479, %v5486
        %v5492 = vadd.f32 %v5480, %v5487
        %v5493 = vadd.f32 %v5481, %v5488
        %v5494 = vadd.f32 %v5482, %v5489
        %s5495 = sld [smem:[#allocation6 + $0x7f]]
        %v5496 = vstv %s5495
        %v5497 = vmul.f32 %v959, %v5496
        %v5498 = vmul.f32 %v964, %v5496
        %v5499 = vmul.f32 %v969, %v5496
        %v5500 = vmul.f32 %v974, %v5496
        %v5501 = vmul.f32 %v979, %v5496
        %5507 = vrot.lane.b32.xlu0 %v5497, 127
        %v5508 = vpop.permute.xlu0 %5507
        %5509 = vrot.lane.b32.xlu0 %v5498, 127
        %v5510 = vpop.permute.xlu0 %5509
        %5511 = vrot.lane.b32.xlu0 %v5499, 127
        %v5512 = vpop.permute.xlu0 %5511
        %5513 = vrot.lane.b32.xlu0 %v5500, 127
        %v5514 = vpop.permute.xlu0 %5513
        %5515 = vrot.lane.b32.xlu0 %v5501, 127
        %v5516 = vpop.permute.xlu0 %5515
        %v5522 = vadd.f32 %v5490, %v5508
        %v5523 = vadd.f32 %v5491, %v5510
        %v5524 = vadd.f32 %v5492, %v5512
        %v5525 = vadd.f32 %v5493, %v5514
        %v5526 = vadd.f32 %v5494, %v5516
        %s5527 = sld [smem:[#allocation6 + $0x80]]
        %v5528 = vstv %s5527
        %v5529 = vmul.f32 %v959, %v5528
        %v5530 = vmul.f32 %v964, %v5528
        %v5531 = vmul.f32 %v969, %v5528
        %v5532 = vmul.f32 %v974, %v5528
        %v5533 = vmul.f32 %v979, %v5528
        %5539 = vrot.lane.b32.xlu0 %v5529, 126
        %v5540 = vpop.permute.xlu0 %5539
        %5541 = vrot.lane.b32.xlu0 %v5530, 126
        %v5542 = vpop.permute.xlu0 %5541
        %5543 = vrot.lane.b32.xlu0 %v5531, 126
        %v5544 = vpop.permute.xlu0 %5543
        %5545 = vrot.lane.b32.xlu0 %v5532, 126
        %v5546 = vpop.permute.xlu0 %5545
        %5547 = vrot.lane.b32.xlu0 %v5533, 126
        %v5548 = vpop.permute.xlu0 %5547
        %v5554 = vadd.f32 %v5522, %v5540
        %v5555 = vadd.f32 %v5523, %v5542
        %v5556 = vadd.f32 %v5524, %v5544
        %v5557 = vadd.f32 %v5525, %v5546
        %v5558 = vadd.f32 %v5526, %v5548
        %s5559 = sld [smem:[#allocation6 + $0x81]]
        %v5560 = vstv %s5559
        %v5561 = vmul.f32 %v959, %v5560
        %v5562 = vmul.f32 %v964, %v5560
        %v5563 = vmul.f32 %v969, %v5560
        %v5564 = vmul.f32 %v974, %v5560
        %v5565 = vmul.f32 %v979, %v5560
        %v5571 = vrot.slane %v5561, 1
        %v5572 = vrot.slane %v5562, 1
        %v5573 = vsel %vm1305, %v5571, %v5572
        %v5574 = vrot.slane %v5563, 1
        %v5575 = vsel %vm1305, %v5572, %v5574
        %v5576 = vrot.slane %v5564, 1
        %v5577 = vsel %vm1305, %v5574, %v5576
        %v5578 = vrot.slane %v5565, 1
        %v5579 = vsel %vm1305, %v5576, %v5578
        %v5585 = vadd.f32 %v5554, %v5573
        %v5586 = vadd.f32 %v5555, %v5575
        %v5587 = vadd.f32 %v5556, %v5577
        %v5588 = vadd.f32 %v5557, %v5579
        %v5589 = vadd.f32 %v5558, %v5578
        %s5590 = sld [smem:[#allocation6 + $0x82]]
        %v5591 = vstv %s5590
        %v5592 = vmul.f32 %v959, %v5591
        %v5593 = vmul.f32 %v964, %v5591
        %v5594 = vmul.f32 %v969, %v5591
        %v5595 = vmul.f32 %v974, %v5591
        %v5596 = vmul.f32 %v979, %v5591
        %v5602 = vrot.slane %v5592, 1
        %v5603 = vrot.slane %v5593, 1
        %v5604 = vsel %vm1305, %v5602, %v5603
        %v5605 = vrot.slane %v5594, 1
        %v5606 = vsel %vm1305, %v5603, %v5605
        %v5607 = vrot.slane %v5595, 1
        %v5608 = vsel %vm1305, %v5605, %v5607
        %v5609 = vrot.slane %v5596, 1
        %v5610 = vsel %vm1305, %v5607, %v5609
        %5611 = vrot.lane.b32.xlu0 %v5604, 127
        %v5612 = vpop.permute.xlu0 %5611
        %5613 = vrot.lane.b32.xlu0 %v5606, 127
        %v5614 = vpop.permute.xlu0 %5613
        %5615 = vrot.lane.b32.xlu0 %v5608, 127
        %v5616 = vpop.permute.xlu0 %5615
        %5617 = vrot.lane.b32.xlu0 %v5610, 127
        %v5618 = vpop.permute.xlu0 %5617
        %5619 = vrot.lane.b32.xlu0 %v5609, 127
        %v5620 = vpop.permute.xlu0 %5619
        %v5626 = vadd.f32 %v5585, %v5612
        %v5627 = vadd.f32 %v5586, %v5614
        %v5628 = vadd.f32 %v5587, %v5616
        %v5629 = vadd.f32 %v5588, %v5618
        %v5630 = vadd.f32 %v5589, %v5620
        %s5631 = sld [smem:[#allocation6 + $0x83]]
        %v5632 = vstv %s5631
        %v5633 = vmul.f32 %v959, %v5632
        %v5634 = vmul.f32 %v964, %v5632
        %v5635 = vmul.f32 %v969, %v5632
        %v5636 = vmul.f32 %v974, %v5632
        %v5637 = vmul.f32 %v979, %v5632
        %v5643 = vrot.slane %v5633, 1
        %v5644 = vrot.slane %v5634, 1
        %v5645 = vsel %vm1305, %v5643, %v5644
        %v5646 = vrot.slane %v5635, 1
        %v5647 = vsel %vm1305, %v5644, %v5646
        %v5648 = vrot.slane %v5636, 1
        %v5649 = vsel %vm1305, %v5646, %v5648
        %v5650 = vrot.slane %v5637, 1
        %v5651 = vsel %vm1305, %v5648, %v5650
        %5652 = vrot.lane.b32.xlu0 %v5645, 126
        %v5653 = vpop.permute.xlu0 %5652
        %5654 = vrot.lane.b32.xlu0 %v5647, 126
        %v5655 = vpop.permute.xlu0 %5654
        %5656 = vrot.lane.b32.xlu0 %v5649, 126
        %v5657 = vpop.permute.xlu0 %5656
        %5658 = vrot.lane.b32.xlu0 %v5651, 126
        %v5659 = vpop.permute.xlu0 %5658
        %5660 = vrot.lane.b32.xlu0 %v5650, 126
        %v5661 = vpop.permute.xlu0 %5660
        %v5667 = vadd.f32 %v5626, %v5653
        %v5668 = vadd.f32 %v5627, %v5655
        %v5669 = vadd.f32 %v5628, %v5657
        %v5670 = vadd.f32 %v5629, %v5659
        %v5671 = vadd.f32 %v5630, %v5661
        %s5672 = sld [smem:[#allocation6 + $0x84]]
        %v5673 = vstv %s5672
        %v5674 = vmul.f32 %v959, %v5673
        %v5675 = vmul.f32 %v964, %v5673
        %v5676 = vmul.f32 %v969, %v5673
        %v5677 = vmul.f32 %v974, %v5673
        %v5678 = vmul.f32 %v979, %v5673
        %v5684 = vrot.slane %v5674, 2
        %v5685 = vrot.slane %v5675, 2
        %v5686 = vsel %vm1419, %v5684, %v5685
        %v5687 = vrot.slane %v5676, 2
        %v5688 = vsel %vm1419, %v5685, %v5687
        %v5689 = vrot.slane %v5677, 2
        %v5690 = vsel %vm1419, %v5687, %v5689
        %v5691 = vrot.slane %v5678, 2
        %v5692 = vsel %vm1419, %v5689, %v5691
        %v5698 = vadd.f32 %v5667, %v5686
        %v5699 = vadd.f32 %v5668, %v5688
        %v5700 = vadd.f32 %v5669, %v5690
        %v5701 = vadd.f32 %v5670, %v5692
        %v5702 = vadd.f32 %v5671, %v5691
        %s5703 = sld [smem:[#allocation6 + $0x85]]
        %v5704 = vstv %s5703
        %v5705 = vmul.f32 %v959, %v5704
        %v5706 = vmul.f32 %v964, %v5704
        %v5707 = vmul.f32 %v969, %v5704
        %v5708 = vmul.f32 %v974, %v5704
        %v5709 = vmul.f32 %v979, %v5704
        %v5715 = vrot.slane %v5705, 2
        %v5716 = vrot.slane %v5706, 2
        %v5717 = vsel %vm1419, %v5715, %v5716
        %v5718 = vrot.slane %v5707, 2
        %v5719 = vsel %vm1419, %v5716, %v5718
        %v5720 = vrot.slane %v5708, 2
        %v5721 = vsel %vm1419, %v5718, %v5720
        %v5722 = vrot.slane %v5709, 2
        %v5723 = vsel %vm1419, %v5720, %v5722
        %5724 = vrot.lane.b32.xlu0 %v5717, 127
        %v5725 = vpop.permute.xlu0 %5724
        %5726 = vrot.lane.b32.xlu0 %v5719, 127
        %v5727 = vpop.permute.xlu0 %5726
        %5728 = vrot.lane.b32.xlu0 %v5721, 127
        %v5729 = vpop.permute.xlu0 %5728
        %5730 = vrot.lane.b32.xlu0 %v5723, 127
        %v5731 = vpop.permute.xlu0 %5730
        %5732 = vrot.lane.b32.xlu0 %v5722, 127
        %v5733 = vpop.permute.xlu0 %5732
        %v5739 = vadd.f32 %v5698, %v5725
        %v5740 = vadd.f32 %v5699, %v5727
        %v5741 = vadd.f32 %v5700, %v5729
        %v5742 = vadd.f32 %v5701, %v5731
        %v5743 = vadd.f32 %v5702, %v5733
        %s5744 = sld [smem:[#allocation6 + $0x86]]
        %v5745 = vstv %s5744
        %v5746 = vmul.f32 %v959, %v5745
        %v5747 = vmul.f32 %v964, %v5745
        %v5748 = vmul.f32 %v969, %v5745
        %v5749 = vmul.f32 %v974, %v5745
        %v5750 = vmul.f32 %v979, %v5745
        %v5756 = vrot.slane %v5746, 2
        %v5757 = vrot.slane %v5747, 2
        %v5758 = vsel %vm1419, %v5756, %v5757
        %v5759 = vrot.slane %v5748, 2
        %v5760 = vsel %vm1419, %v5757, %v5759
        %v5761 = vrot.slane %v5749, 2
        %v5762 = vsel %vm1419, %v5759, %v5761
        %v5763 = vrot.slane %v5750, 2
        %v5764 = vsel %vm1419, %v5761, %v5763
        %5765 = vrot.lane.b32.xlu0 %v5758, 126
        %v5766 = vpop.permute.xlu0 %5765
        %5767 = vrot.lane.b32.xlu0 %v5760, 126
        %v5768 = vpop.permute.xlu0 %5767
        %5769 = vrot.lane.b32.xlu0 %v5762, 126
        %v5770 = vpop.permute.xlu0 %5769
        %5771 = vrot.lane.b32.xlu0 %v5764, 126
        %v5772 = vpop.permute.xlu0 %5771
        %5773 = vrot.lane.b32.xlu0 %v5763, 126
        %v5774 = vpop.permute.xlu0 %5773
        %v5780 = vadd.f32 %v5739, %v5766
        %v5781 = vadd.f32 %v5740, %v5768
        %v5782 = vadd.f32 %v5741, %v5770
        %v5783 = vadd.f32 %v5742, %v5772
        %v5784 = vadd.f32 %v5743, %v5774
        %s5785 = sld [smem:[#allocation6 + $0x87]]
        %v5786 = vstv %s5785
        %v5787 = vmul.f32 %v1157, %v5786
        %v5788 = vmul.f32 %v1162, %v5786
        %v5789 = vmul.f32 %v1167, %v5786
        %v5790 = vmul.f32 %v1172, %v5786
        %v5791 = vmul.f32 %v1177, %v5786
        %v5792 = vadd.f32 %v5780, %v5787
        %v5793 = vadd.f32 %v5781, %v5788
        %v5794 = vadd.f32 %v5782, %v5789
        %v5795 = vadd.f32 %v5783, %v5790
        %v5796 = vadd.f32 %v5784, %v5791
        %s5797 = sld [smem:[#allocation6 + $0x88]]
        %v5798 = vstv %s5797
        %v5799 = vmul.f32 %v1157, %v5798
        %v5800 = vmul.f32 %v1162, %v5798
        %v5801 = vmul.f32 %v1167, %v5798
        %v5802 = vmul.f32 %v1172, %v5798
        %v5803 = vmul.f32 %v1177, %v5798
        %5809 = vrot.lane.b32.xlu0 %v5799, 127
        %v5810 = vpop.permute.xlu0 %5809
        %5811 = vrot.lane.b32.xlu0 %v5800, 127
        %v5812 = vpop.permute.xlu0 %5811
        %5813 = vrot.lane.b32.xlu0 %v5801, 127
        %v5814 = vpop.permute.xlu0 %5813
        %5815 = vrot.lane.b32.xlu0 %v5802, 127
        %v5816 = vpop.permute.xlu0 %5815
        %5817 = vrot.lane.b32.xlu0 %v5803, 127
        %v5818 = vpop.permute.xlu0 %5817
        %v5824 = vadd.f32 %v5792, %v5810
        %v5825 = vadd.f32 %v5793, %v5812
        %v5826 = vadd.f32 %v5794, %v5814
        %v5827 = vadd.f32 %v5795, %v5816
        %v5828 = vadd.f32 %v5796, %v5818
        %s5829 = sld [smem:[#allocation6 + $0x89]]
        %v5830 = vstv %s5829
        %v5831 = vmul.f32 %v1157, %v5830
        %v5832 = vmul.f32 %v1162, %v5830
        %v5833 = vmul.f32 %v1167, %v5830
        %v5834 = vmul.f32 %v1172, %v5830
        %v5835 = vmul.f32 %v1177, %v5830
        %5841 = vrot.lane.b32.xlu0 %v5831, 126
        %v5842 = vpop.permute.xlu0 %5841
        %5843 = vrot.lane.b32.xlu0 %v5832, 126
        %v5844 = vpop.permute.xlu0 %5843
        %5845 = vrot.lane.b32.xlu0 %v5833, 126
        %v5846 = vpop.permute.xlu0 %5845
        %5847 = vrot.lane.b32.xlu0 %v5834, 126
        %v5848 = vpop.permute.xlu0 %5847
        %5849 = vrot.lane.b32.xlu0 %v5835, 126
        %v5850 = vpop.permute.xlu0 %5849
        %v5856 = vadd.f32 %v5824, %v5842
        %v5857 = vadd.f32 %v5825, %v5844
        %v5858 = vadd.f32 %v5826, %v5846
        %v5859 = vadd.f32 %v5827, %v5848
        %v5860 = vadd.f32 %v5828, %v5850
        %s5861 = sld [smem:[#allocation6 + $0x8a]]
        %v5862 = vstv %s5861
        %v5863 = vmul.f32 %v1157, %v5862
        %v5864 = vmul.f32 %v1162, %v5862
        %v5865 = vmul.f32 %v1167, %v5862
        %v5866 = vmul.f32 %v1172, %v5862
        %v5867 = vmul.f32 %v1177, %v5862
        %v5873 = vrot.slane %v5863, 1
        %v5874 = vrot.slane %v5864, 1
        %v5875 = vsel %vm1305, %v5873, %v5874
        %v5876 = vrot.slane %v5865, 1
        %v5877 = vsel %vm1305, %v5874, %v5876
        %v5878 = vrot.slane %v5866, 1
        %v5879 = vsel %vm1305, %v5876, %v5878
        %v5880 = vrot.slane %v5867, 1
        %v5881 = vsel %vm1305, %v5878, %v5880
        %v5887 = vadd.f32 %v5856, %v5875
        %v5888 = vadd.f32 %v5857, %v5877
        %v5889 = vadd.f32 %v5858, %v5879
        %v5890 = vadd.f32 %v5859, %v5881
        %v5891 = vadd.f32 %v5860, %v5880
        %s5892 = sld [smem:[#allocation6 + $0x8b]]
        %v5893 = vstv %s5892
        %v5894 = vmul.f32 %v1157, %v5893
        %v5895 = vmul.f32 %v1162, %v5893
        %v5896 = vmul.f32 %v1167, %v5893
        %v5897 = vmul.f32 %v1172, %v5893
        %v5898 = vmul.f32 %v1177, %v5893
        %v5904 = vrot.slane %v5894, 1
        %v5905 = vrot.slane %v5895, 1
        %v5906 = vsel %vm1305, %v5904, %v5905
        %v5907 = vrot.slane %v5896, 1
        %v5908 = vsel %vm1305, %v5905, %v5907
        %v5909 = vrot.slane %v5897, 1
        %v5910 = vsel %vm1305, %v5907, %v5909
        %v5911 = vrot.slane %v5898, 1
        %v5912 = vsel %vm1305, %v5909, %v5911
        %5913 = vrot.lane.b32.xlu0 %v5906, 127
        %v5914 = vpop.permute.xlu0 %5913
        %5915 = vrot.lane.b32.xlu0 %v5908, 127
        %v5916 = vpop.permute.xlu0 %5915
        %5917 = vrot.lane.b32.xlu0 %v5910, 127
        %v5918 = vpop.permute.xlu0 %5917
        %5919 = vrot.lane.b32.xlu0 %v5912, 127
        %v5920 = vpop.permute.xlu0 %5919
        %5921 = vrot.lane.b32.xlu0 %v5911, 127
        %v5922 = vpop.permute.xlu0 %5921
        %v5928 = vadd.f32 %v5887, %v5914
        %v5929 = vadd.f32 %v5888, %v5916
        %v5930 = vadd.f32 %v5889, %v5918
        %v5931 = vadd.f32 %v5890, %v5920
        %v5932 = vadd.f32 %v5891, %v5922
        %s5933 = sld [smem:[#allocation6 + $0x8c]]
        %v5934 = vstv %s5933
        %v5935 = vmul.f32 %v1157, %v5934
        %v5936 = vmul.f32 %v1162, %v5934
        %v5937 = vmul.f32 %v1167, %v5934
        %v5938 = vmul.f32 %v1172, %v5934
        %v5939 = vmul.f32 %v1177, %v5934
        %v5945 = vrot.slane %v5935, 1
        %v5946 = vrot.slane %v5936, 1
        %v5947 = vsel %vm1305, %v5945, %v5946
        %v5948 = vrot.slane %v5937, 1
        %v5949 = vsel %vm1305, %v5946, %v5948
        %v5950 = vrot.slane %v5938, 1
        %v5951 = vsel %vm1305, %v5948, %v5950
        %v5952 = vrot.slane %v5939, 1
        %v5953 = vsel %vm1305, %v5950, %v5952
        %5954 = vrot.lane.b32.xlu0 %v5947, 126
        %v5955 = vpop.permute.xlu0 %5954
        %5956 = vrot.lane.b32.xlu0 %v5949, 126
        %v5957 = vpop.permute.xlu0 %5956
        %5958 = vrot.lane.b32.xlu0 %v5951, 126
        %v5959 = vpop.permute.xlu0 %5958
        %5960 = vrot.lane.b32.xlu0 %v5953, 126
        %v5961 = vpop.permute.xlu0 %5960
        %5962 = vrot.lane.b32.xlu0 %v5952, 126
        %v5963 = vpop.permute.xlu0 %5962
        %v5969 = vadd.f32 %v5928, %v5955
        %v5970 = vadd.f32 %v5929, %v5957
        %v5971 = vadd.f32 %v5930, %v5959
        %v5972 = vadd.f32 %v5931, %v5961
        %v5973 = vadd.f32 %v5932, %v5963
        %s5974 = sld [smem:[#allocation6 + $0x8d]]
        %v5975 = vstv %s5974
        %v5976 = vmul.f32 %v1157, %v5975
        %v5977 = vmul.f32 %v1162, %v5975
        %v5978 = vmul.f32 %v1167, %v5975
        %v5979 = vmul.f32 %v1172, %v5975
        %v5980 = vmul.f32 %v1177, %v5975
        %v5986 = vrot.slane %v5976, 2
        %v5987 = vrot.slane %v5977, 2
        %v5988 = vsel %vm1419, %v5986, %v5987
        %v5989 = vrot.slane %v5978, 2
        %v5990 = vsel %vm1419, %v5987, %v5989
        %v5991 = vrot.slane %v5979, 2
        %v5992 = vsel %vm1419, %v5989, %v5991
        %v5993 = vrot.slane %v5980, 2
        %v5994 = vsel %vm1419, %v5991, %v5993
        %v6000 = vadd.f32 %v5969, %v5988
        %v6001 = vadd.f32 %v5970, %v5990
        %v6002 = vadd.f32 %v5971, %v5992
        %v6003 = vadd.f32 %v5972, %v5994
        %v6004 = vadd.f32 %v5973, %v5993
        %s6005 = sld [smem:[#allocation6 + $0x8e]]
        %v6006 = vstv %s6005
        %v6007 = vmul.f32 %v1157, %v6006
        %v6008 = vmul.f32 %v1162, %v6006
        %v6009 = vmul.f32 %v1167, %v6006
        %v6010 = vmul.f32 %v1172, %v6006
        %v6011 = vmul.f32 %v1177, %v6006
        %v6017 = vrot.slane %v6007, 2
        %v6018 = vrot.slane %v6008, 2
        %v6019 = vsel %vm1419, %v6017, %v6018
        %v6020 = vrot.slane %v6009, 2
        %v6021 = vsel %vm1419, %v6018, %v6020
        %v6022 = vrot.slane %v6010, 2
        %v6023 = vsel %vm1419, %v6020, %v6022
        %v6024 = vrot.slane %v6011, 2
        %v6025 = vsel %vm1419, %v6022, %v6024
        %6026 = vrot.lane.b32.xlu0 %v6019, 127
        %v6027 = vpop.permute.xlu0 %6026
        %6028 = vrot.lane.b32.xlu0 %v6021, 127
        %v6029 = vpop.permute.xlu0 %6028
        %6030 = vrot.lane.b32.xlu0 %v6023, 127
        %v6031 = vpop.permute.xlu0 %6030
        %6032 = vrot.lane.b32.xlu0 %v6025, 127
        %v6033 = vpop.permute.xlu0 %6032
        %6034 = vrot.lane.b32.xlu0 %v6024, 127
        %v6035 = vpop.permute.xlu0 %6034
        %v6041 = vadd.f32 %v6000, %v6027
        %v6042 = vadd.f32 %v6001, %v6029
        %v6043 = vadd.f32 %v6002, %v6031
        %v6044 = vadd.f32 %v6003, %v6033
        %v6045 = vadd.f32 %v6004, %v6035
        %s6046 = sld [smem:[#allocation6 + $0x8f]]
        %v6047 = vstv %s6046
        %v6048 = vmul.f32 %v1157, %v6047
        %v6049 = vmul.f32 %v1162, %v6047
        %v6050 = vmul.f32 %v1167, %v6047
        %v6051 = vmul.f32 %v1172, %v6047
        %v6052 = vmul.f32 %v1177, %v6047
        %v6058 = vrot.slane %v6048, 2
        %v6059 = vrot.slane %v6049, 2
        %v6060 = vsel %vm1419, %v6058, %v6059
        %v6061 = vrot.slane %v6050, 2
        %v6062 = vsel %vm1419, %v6059, %v6061
        %v6063 = vrot.slane %v6051, 2
        %v6064 = vsel %vm1419, %v6061, %v6063
        %v6065 = vrot.slane %v6052, 2
        %v6066 = vsel %vm1419, %v6063, %v6065
        %6067 = vrot.lane.b32.xlu0 %v6060, 126
        %v6068 = vpop.permute.xlu0 %6067
        %6069 = vrot.lane.b32.xlu0 %v6062, 126
        %v6070 = vpop.permute.xlu0 %6069
        %6071 = vrot.lane.b32.xlu0 %v6064, 126
        %v6072 = vpop.permute.xlu0 %6071
        %6073 = vrot.lane.b32.xlu0 %v6066, 126
        %v6074 = vpop.permute.xlu0 %6073
        %6075 = vrot.lane.b32.xlu0 %v6065, 126
        %v6076 = vpop.permute.xlu0 %6075
        %v6082 = vadd.f32 %v6041, %v6068
        %v6083 = vadd.f32 %v6042, %v6070
        %v6084 = vadd.f32 %v6043, %v6072
        %v6085 = vadd.f32 %v6044, %v6074
        %v6086 = vadd.f32 %v6045, %v6076
        %s6087 = sld [smem:[#allocation7 + $0x3]]
        %v6088 = vstv %s6087
        %v6089 = vadd.f32 %v6082, %v6088
        %v6090 = vadd.f32 %v6083, %v6088
        %v6091 = vadd.f32 %v6084, %v6088
        %v6092 = vadd.f32 %v6085, %v6088
        %v6093 = vadd.f32 %v6086, %v6088
        %v6094 = vmax.f32 %v6089, 0.0
        %v6095 = vmax.f32 %v6090, 0.0
        %v6096 = vmax.f32 %v6091, 0.0
        %v6097 = vmax.f32 %v6092, 0.0
        %v6098 = vmax.f32 %v6093, 0.0
        %v6099 = vsel %vm1217, %v6094, 0.0
        %v6100 = vsel %vm1218, %v6095, 0.0
        %v6101 = vsel %vm1219, %v6096, 0.0
        %v6102 = vsel %vm1220, %v6097, 0.0
        %v6103 = vsel %vm1221, %v6098, 0.0
        %s6104 = sld [smem:[#allocation9]]
        %v6105 = vstv %s6104
        %v6106 = vmul.f32 %v2439, %v6105
        %v6107 = vmul.f32 %v2440, %v6105
        %v6108 = vmul.f32 %v2441, %v6105
        %v6109 = vmul.f32 %v2442, %v6105
        %s6110 = sld [smem:[#allocation9 + $0x1]]
        %v6111 = vstv %s6110
        %v6112 = vmul.f32 %v2439, %v6111
        %v6113 = vmul.f32 %v2440, %v6111
        %v6114 = vmul.f32 %v2441, %v6111
        %v6115 = vmul.f32 %v2442, %v6111
        %6120 = vrot.lane.b32.xlu0 %v6112, 127
        %v6121 = vpop.permute.xlu0 %6120
        %6122 = vrot.lane.b32.xlu0 %v6113, 127
        %v6123 = vpop.permute.xlu0 %6122
        %6124 = vrot.lane.b32.xlu0 %v6114, 127
        %v6125 = vpop.permute.xlu0 %6124
        %6126 = vrot.lane.b32.xlu0 %v6115, 127
        %v6127 = vpop.permute.xlu0 %6126
        %v6132 = vadd.f32 %v6106, %v6121
        %v6133 = vadd.f32 %v6107, %v6123
        %v6134 = vadd.f32 %v6108, %v6125
        %v6135 = vadd.f32 %v6109, %v6127
        %s6136 = sld [smem:[#allocation9 + $0x2]]
        %v6137 = vstv %s6136
        %v6138 = vmul.f32 %v2439, %v6137
        %v6139 = vmul.f32 %v2440, %v6137
        %v6140 = vmul.f32 %v2441, %v6137
        %v6141 = vmul.f32 %v2442, %v6137
        %6146 = vrot.lane.b32.xlu0 %v6138, 126
        %v6147 = vpop.permute.xlu0 %6146
        %6148 = vrot.lane.b32.xlu0 %v6139, 126
        %v6149 = vpop.permute.xlu0 %6148
        %6150 = vrot.lane.b32.xlu0 %v6140, 126
        %v6151 = vpop.permute.xlu0 %6150
        %6152 = vrot.lane.b32.xlu0 %v6141, 126
        %v6153 = vpop.permute.xlu0 %6152
        %v6158 = vadd.f32 %v6132, %v6147
        %v6159 = vadd.f32 %v6133, %v6149
        %v6160 = vadd.f32 %v6134, %v6151
        %v6161 = vadd.f32 %v6135, %v6153
        %s6162 = sld [smem:[#allocation9 + $0x3]]
        %v6163 = vstv %s6162
        %v6164 = vmul.f32 %v2439, %v6163
        %v6165 = vmul.f32 %v2440, %v6163
        %v6166 = vmul.f32 %v2441, %v6163
        %v6167 = vmul.f32 %v2442, %v6163
        %v6168 = vmul.f32 %v2443, %v6163
        %v6174 = vrot.slane %v6164, 1
        %v6175 = vrot.slane %v6165, 1
        %v6176 = vsel %vm1305, %v6174, %v6175
        %v6177 = vrot.slane %v6166, 1
        %v6178 = vsel %vm1305, %v6175, %v6177
        %v6179 = vrot.slane %v6167, 1
        %v6180 = vsel %vm1305, %v6177, %v6179
        %v6181 = vrot.slane %v6168, 1
        %v6182 = vsel %vm1305, %v6179, %v6181
        %v6187 = vadd.f32 %v6158, %v6176
        %v6188 = vadd.f32 %v6159, %v6178
        %v6189 = vadd.f32 %v6160, %v6180
        %v6190 = vadd.f32 %v6161, %v6182
        %s6191 = sld [smem:[#allocation9 + $0x4]]
        %v6192 = vstv %s6191
        %v6193 = vmul.f32 %v2439, %v6192
        %v6194 = vmul.f32 %v2440, %v6192
        %v6195 = vmul.f32 %v2441, %v6192
        %v6196 = vmul.f32 %v2442, %v6192
        %v6197 = vmul.f32 %v2443, %v6192
        %v6203 = vrot.slane %v6193, 1
        %v6204 = vrot.slane %v6194, 1
        %v6205 = vsel %vm1305, %v6203, %v6204
        %v6206 = vrot.slane %v6195, 1
        %v6207 = vsel %vm1305, %v6204, %v6206
        %v6208 = vrot.slane %v6196, 1
        %v6209 = vsel %vm1305, %v6206, %v6208
        %v6210 = vrot.slane %v6197, 1
        %v6211 = vsel %vm1305, %v6208, %v6210
        %6212 = vrot.lane.b32.xlu0 %v6205, 127
        %v6213 = vpop.permute.xlu0 %6212
        %6214 = vrot.lane.b32.xlu0 %v6207, 127
        %v6215 = vpop.permute.xlu0 %6214
        %6216 = vrot.lane.b32.xlu0 %v6209, 127
        %v6217 = vpop.permute.xlu0 %6216
        %6218 = vrot.lane.b32.xlu0 %v6211, 127
        %v6219 = vpop.permute.xlu0 %6218
        %v6224 = vadd.f32 %v6187, %v6213
        %v6225 = vadd.f32 %v6188, %v6215
        %v6226 = vadd.f32 %v6189, %v6217
        %v6227 = vadd.f32 %v6190, %v6219
        %s6228 = sld [smem:[#allocation9 + $0x5]]
        %v6229 = vstv %s6228
        %v6230 = vmul.f32 %v2439, %v6229
        %v6231 = vmul.f32 %v2440, %v6229
        %v6232 = vmul.f32 %v2441, %v6229
        %v6233 = vmul.f32 %v2442, %v6229
        %v6234 = vmul.f32 %v2443, %v6229
        %v6240 = vrot.slane %v6230, 1
        %v6241 = vrot.slane %v6231, 1
        %v6242 = vsel %vm1305, %v6240, %v6241
        %v6243 = vrot.slane %v6232, 1
        %v6244 = vsel %vm1305, %v6241, %v6243
        %v6245 = vrot.slane %v6233, 1
        %v6246 = vsel %vm1305, %v6243, %v6245
        %v6247 = vrot.slane %v6234, 1
        %v6248 = vsel %vm1305, %v6245, %v6247
        %6249 = vrot.lane.b32.xlu0 %v6242, 126
        %v6250 = vpop.permute.xlu0 %6249
        %6251 = vrot.lane.b32.xlu0 %v6244, 126
        %v6252 = vpop.permute.xlu0 %6251
        %6253 = vrot.lane.b32.xlu0 %v6246, 126
        %v6254 = vpop.permute.xlu0 %6253
        %6255 = vrot.lane.b32.xlu0 %v6248, 126
        %v6256 = vpop.permute.xlu0 %6255
        %v6261 = vadd.f32 %v6224, %v6250
        %v6262 = vadd.f32 %v6225, %v6252
        %v6263 = vadd.f32 %v6226, %v6254
        %v6264 = vadd.f32 %v6227, %v6256
        %s6265 = sld [smem:[#allocation9 + $0x6]]
        %v6266 = vstv %s6265
        %v6267 = vmul.f32 %v2439, %v6266
        %v6268 = vmul.f32 %v2440, %v6266
        %v6269 = vmul.f32 %v2441, %v6266
        %v6270 = vmul.f32 %v2442, %v6266
        %v6271 = vmul.f32 %v2443, %v6266
        %v6277 = vrot.slane %v6267, 2
        %v6278 = vrot.slane %v6268, 2
        %v6279 = vsel %vm1419, %v6277, %v6278
        %v6280 = vrot.slane %v6269, 2
        %v6281 = vsel %vm1419, %v6278, %v6280
        %v6282 = vrot.slane %v6270, 2
        %v6283 = vsel %vm1419, %v6280, %v6282
        %v6284 = vrot.slane %v6271, 2
        %v6285 = vsel %vm1419, %v6282, %v6284
        %v6290 = vadd.f32 %v6261, %v6279
        %v6291 = vadd.f32 %v6262, %v6281
        %v6292 = vadd.f32 %v6263, %v6283
        %v6293 = vadd.f32 %v6264, %v6285
        %s6294 = sld [smem:[#allocation9 + $0x7]]
        %v6295 = vstv %s6294
        %v6296 = vmul.f32 %v2439, %v6295
        %v6297 = vmul.f32 %v2440, %v6295
        %v6298 = vmul.f32 %v2441, %v6295
        %v6299 = vmul.f32 %v2442, %v6295
        %v6300 = vmul.f32 %v2443, %v6295
        %v6306 = vrot.slane %v6296, 2
        %v6307 = vrot.slane %v6297, 2
        %v6308 = vsel %vm1419, %v6306, %v6307
        %v6309 = vrot.slane %v6298, 2
        %v6310 = vsel %vm1419, %v6307, %v6309
        %v6311 = vrot.slane %v6299, 2
        %v6312 = vsel %vm1419, %v6309, %v6311
        %v6313 = vrot.slane %v6300, 2
        %v6314 = vsel %vm1419, %v6311, %v6313
        %6315 = vrot.lane.b32.xlu0 %v6308, 127
        %v6316 = vpop.permute.xlu0 %6315
        %6317 = vrot.lane.b32.xlu0 %v6310, 127
        %v6318 = vpop.permute.xlu0 %6317
        %6319 = vrot.lane.b32.xlu0 %v6312, 127
        %v6320 = vpop.permute.xlu0 %6319
        %6321 = vrot.lane.b32.xlu0 %v6314, 127
        %v6322 = vpop.permute.xlu0 %6321
        %v6327 = vadd.f32 %v6290, %v6316
        %v6328 = vadd.f32 %v6291, %v6318
        %v6329 = vadd.f32 %v6292, %v6320
        %v6330 = vadd.f32 %v6293, %v6322
        %s6331 = sld [smem:[#allocation9 + $0x8]]
        %v6332 = vstv %s6331
        %v6333 = vmul.f32 %v2439, %v6332
        %v6334 = vmul.f32 %v2440, %v6332
        %v6335 = vmul.f32 %v2441, %v6332
        %v6336 = vmul.f32 %v2442, %v6332
        %v6337 = vmul.f32 %v2443, %v6332
        %v6343 = vrot.slane %v6333, 2
        %v6344 = vrot.slane %v6334, 2
        %v6345 = vsel %vm1419, %v6343, %v6344
        %v6346 = vrot.slane %v6335, 2
        %v6347 = vsel %vm1419, %v6344, %v6346
        %v6348 = vrot.slane %v6336, 2
        %v6349 = vsel %vm1419, %v6346, %v6348
        %v6350 = vrot.slane %v6337, 2
        %v6351 = vsel %vm1419, %v6348, %v6350
        %6352 = vrot.lane.b32.xlu0 %v6345, 126
        %v6353 = vpop.permute.xlu0 %6352
        %6354 = vrot.lane.b32.xlu0 %v6347, 126
        %v6355 = vpop.permute.xlu0 %6354
        %6356 = vrot.lane.b32.xlu0 %v6349, 126
        %v6357 = vpop.permute.xlu0 %6356
        %6358 = vrot.lane.b32.xlu0 %v6351, 126
        %v6359 = vpop.permute.xlu0 %6358
        %v6364 = vadd.f32 %v6327, %v6353
        %v6365 = vadd.f32 %v6328, %v6355
        %v6366 = vadd.f32 %v6329, %v6357
        %v6367 = vadd.f32 %v6330, %v6359
        %s6368 = sld [smem:[#allocation9 + $0x9]]
        %v6369 = vstv %s6368
        %v6370 = vmul.f32 %v3659, %v6369
        %v6371 = vmul.f32 %v3660, %v6369
        %v6372 = vmul.f32 %v3661, %v6369
        %v6373 = vmul.f32 %v3662, %v6369
        %v6374 = vadd.f32 %v6364, %v6370
        %v6375 = vadd.f32 %v6365, %v6371
        %v6376 = vadd.f32 %v6366, %v6372
        %v6377 = vadd.f32 %v6367, %v6373
        %s6378 = sld [smem:[#allocation9 + $0xa]]
        %v6379 = vstv %s6378
        %v6380 = vmul.f32 %v3659, %v6379
        %v6381 = vmul.f32 %v3660, %v6379
        %v6382 = vmul.f32 %v3661, %v6379
        %v6383 = vmul.f32 %v3662, %v6379
        %6388 = vrot.lane.b32.xlu0 %v6380, 127
        %v6389 = vpop.permute.xlu0 %6388
        %6390 = vrot.lane.b32.xlu0 %v6381, 127
        %v6391 = vpop.permute.xlu0 %6390
        %6392 = vrot.lane.b32.xlu0 %v6382, 127
        %v6393 = vpop.permute.xlu0 %6392
        %6394 = vrot.lane.b32.xlu0 %v6383, 127
        %v6395 = vpop.permute.xlu0 %6394
        %v6400 = vadd.f32 %v6374, %v6389
        %v6401 = vadd.f32 %v6375, %v6391
        %v6402 = vadd.f32 %v6376, %v6393
        %v6403 = vadd.f32 %v6377, %v6395
        %s6404 = sld [smem:[#allocation9 + $0xb]]
        %v6405 = vstv %s6404
        %v6406 = vmul.f32 %v3659, %v6405
        %v6407 = vmul.f32 %v3660, %v6405
        %v6408 = vmul.f32 %v3661, %v6405
        %v6409 = vmul.f32 %v3662, %v6405
        %6414 = vrot.lane.b32.xlu0 %v6406, 126
        %v6415 = vpop.permute.xlu0 %6414
        %6416 = vrot.lane.b32.xlu0 %v6407, 126
        %v6417 = vpop.permute.xlu0 %6416
        %6418 = vrot.lane.b32.xlu0 %v6408, 126
        %v6419 = vpop.permute.xlu0 %6418
        %6420 = vrot.lane.b32.xlu0 %v6409, 126
        %v6421 = vpop.permute.xlu0 %6420
        %v6426 = vadd.f32 %v6400, %v6415
        %v6427 = vadd.f32 %v6401, %v6417
        %v6428 = vadd.f32 %v6402, %v6419
        %v6429 = vadd.f32 %v6403, %v6421
        %s6430 = sld [smem:[#allocation9 + $0xc]]
        %v6431 = vstv %s6430
        %v6432 = vmul.f32 %v3659, %v6431
        %v6433 = vmul.f32 %v3660, %v6431
        %v6434 = vmul.f32 %v3661, %v6431
        %v6435 = vmul.f32 %v3662, %v6431
        %v6436 = vmul.f32 %v3663, %v6431
        %v6442 = vrot.slane %v6432, 1
        %v6443 = vrot.slane %v6433, 1
        %v6444 = vsel %vm1305, %v6442, %v6443
        %v6445 = vrot.slane %v6434, 1
        %v6446 = vsel %vm1305, %v6443, %v6445
        %v6447 = vrot.slane %v6435, 1
        %v6448 = vsel %vm1305, %v6445, %v6447
        %v6449 = vrot.slane %v6436, 1
        %v6450 = vsel %vm1305, %v6447, %v6449
        %v6455 = vadd.f32 %v6426, %v6444
        %v6456 = vadd.f32 %v6427, %v6446
        %v6457 = vadd.f32 %v6428, %v6448
        %v6458 = vadd.f32 %v6429, %v6450
        %s6459 = sld [smem:[#allocation9 + $0xd]]
        %v6460 = vstv %s6459
        %v6461 = vmul.f32 %v3659, %v6460
        %v6462 = vmul.f32 %v3660, %v6460
        %v6463 = vmul.f32 %v3661, %v6460
        %v6464 = vmul.f32 %v3662, %v6460
        %v6465 = vmul.f32 %v3663, %v6460
        %v6471 = vrot.slane %v6461, 1
        %v6472 = vrot.slane %v6462, 1
        %v6473 = vsel %vm1305, %v6471, %v6472
        %v6474 = vrot.slane %v6463, 1
        %v6475 = vsel %vm1305, %v6472, %v6474
        %v6476 = vrot.slane %v6464, 1
        %v6477 = vsel %vm1305, %v6474, %v6476
        %v6478 = vrot.slane %v6465, 1
        %v6479 = vsel %vm1305, %v6476, %v6478
        %6480 = vrot.lane.b32.xlu0 %v6473, 127
        %v6481 = vpop.permute.xlu0 %6480
        %6482 = vrot.lane.b32.xlu0 %v6475, 127
        %v6483 = vpop.permute.xlu0 %6482
        %6484 = vrot.lane.b32.xlu0 %v6477, 127
        %v6485 = vpop.permute.xlu0 %6484
        %6486 = vrot.lane.b32.xlu0 %v6479, 127
        %v6487 = vpop.permute.xlu0 %6486
        %v6492 = vadd.f32 %v6455, %v6481
        %v6493 = vadd.f32 %v6456, %v6483
        %v6494 = vadd.f32 %v6457, %v6485
        %v6495 = vadd.f32 %v6458, %v6487
        %s6496 = sld [smem:[#allocation9 + $0xe]]
        %v6497 = vstv %s6496
        %v6498 = vmul.f32 %v3659, %v6497
        %v6499 = vmul.f32 %v3660, %v6497
        %v6500 = vmul.f32 %v3661, %v6497
        %v6501 = vmul.f32 %v3662, %v6497
        %v6502 = vmul.f32 %v3663, %v6497
        %v6508 = vrot.slane %v6498, 1
        %v6509 = vrot.slane %v6499, 1
        %v6510 = vsel %vm1305, %v6508, %v6509
        %v6511 = vrot.slane %v6500, 1
        %v6512 = vsel %vm1305, %v6509, %v6511
        %v6513 = vrot.slane %v6501, 1
        %v6514 = vsel %vm1305, %v6511, %v6513
        %v6515 = vrot.slane %v6502, 1
        %v6516 = vsel %vm1305, %v6513, %v6515
        %6517 = vrot.lane.b32.xlu0 %v6510, 126
        %v6518 = vpop.permute.xlu0 %6517
        %6519 = vrot.lane.b32.xlu0 %v6512, 126
        %v6520 = vpop.permute.xlu0 %6519
        %6521 = vrot.lane.b32.xlu0 %v6514, 126
        %v6522 = vpop.permute.xlu0 %6521
        %6523 = vrot.lane.b32.xlu0 %v6516, 126
        %v6524 = vpop.permute.xlu0 %6523
        %v6529 = vadd.f32 %v6492, %v6518
        %v6530 = vadd.f32 %v6493, %v6520
        %v6531 = vadd.f32 %v6494, %v6522
        %v6532 = vadd.f32 %v6495, %v6524
        %s6533 = sld [smem:[#allocation9 + $0xf]]
        %v6534 = vstv %s6533
        %v6535 = vmul.f32 %v3659, %v6534
        %v6536 = vmul.f32 %v3660, %v6534
        %v6537 = vmul.f32 %v3661, %v6534
        %v6538 = vmul.f32 %v3662, %v6534
        %v6539 = vmul.f32 %v3663, %v6534
        %v6545 = vrot.slane %v6535, 2
        %v6546 = vrot.slane %v6536, 2
        %v6547 = vsel %vm1419, %v6545, %v6546
        %v6548 = vrot.slane %v6537, 2
        %v6549 = vsel %vm1419, %v6546, %v6548
        %v6550 = vrot.slane %v6538, 2
        %v6551 = vsel %vm1419, %v6548, %v6550
        %v6552 = vrot.slane %v6539, 2
        %v6553 = vsel %vm1419, %v6550, %v6552
        %v6558 = vadd.f32 %v6529, %v6547
        %v6559 = vadd.f32 %v6530, %v6549
        %v6560 = vadd.f32 %v6531, %v6551
        %v6561 = vadd.f32 %v6532, %v6553
        %s6562 = sld [smem:[#allocation9 + $0x10]]
        %v6563 = vstv %s6562
        %v6564 = vmul.f32 %v3659, %v6563
        %v6565 = vmul.f32 %v3660, %v6563
        %v6566 = vmul.f32 %v3661, %v6563
        %v6567 = vmul.f32 %v3662, %v6563
        %v6568 = vmul.f32 %v3663, %v6563
        %v6574 = vrot.slane %v6564, 2
        %v6575 = vrot.slane %v6565, 2
        %v6576 = vsel %vm1419, %v6574, %v6575
        %v6577 = vrot.slane %v6566, 2
        %v6578 = vsel %vm1419, %v6575, %v6577
        %v6579 = vrot.slane %v6567, 2
        %v6580 = vsel %vm1419, %v6577, %v6579
        %v6581 = vrot.slane %v6568, 2
        %v6582 = vsel %vm1419, %v6579, %v6581
        %6583 = vrot.lane.b32.xlu0 %v6576, 127
        %v6584 = vpop.permute.xlu0 %6583
        %6585 = vrot.lane.b32.xlu0 %v6578, 127
        %v6586 = vpop.permute.xlu0 %6585
        %6587 = vrot.lane.b32.xlu0 %v6580, 127
        %v6588 = vpop.permute.xlu0 %6587
        %6589 = vrot.lane.b32.xlu0 %v6582, 127
        %v6590 = vpop.permute.xlu0 %6589
        %v6595 = vadd.f32 %v6558, %v6584
        %v6596 = vadd.f32 %v6559, %v6586
        %v6597 = vadd.f32 %v6560, %v6588
        %v6598 = vadd.f32 %v6561, %v6590
        %s6599 = sld [smem:[#allocation9 + $0x11]]
        %v6600 = vstv %s6599
        %v6601 = vmul.f32 %v3659, %v6600
        %v6602 = vmul.f32 %v3660, %v6600
        %v6603 = vmul.f32 %v3661, %v6600
        %v6604 = vmul.f32 %v3662, %v6600
        %v6605 = vmul.f32 %v3663, %v6600
        %v6611 = vrot.slane %v6601, 2
        %v6612 = vrot.slane %v6602, 2
        %v6613 = vsel %vm1419, %v6611, %v6612
        %v6614 = vrot.slane %v6603, 2
        %v6615 = vsel %vm1419, %v6612, %v6614
        %v6616 = vrot.slane %v6604, 2
        %v6617 = vsel %vm1419, %v6614, %v6616
        %v6618 = vrot.slane %v6605, 2
        %v6619 = vsel %vm1419, %v6616, %v6618
        %6620 = vrot.lane.b32.xlu0 %v6613, 126
        %v6621 = vpop.permute.xlu0 %6620
        %6622 = vrot.lane.b32.xlu0 %v6615, 126
        %v6623 = vpop.permute.xlu0 %6622
        %6624 = vrot.lane.b32.xlu0 %v6617, 126
        %v6625 = vpop.permute.xlu0 %6624
        %6626 = vrot.lane.b32.xlu0 %v6619, 126
        %v6627 = vpop.permute.xlu0 %6626
        %v6632 = vadd.f32 %v6595, %v6621
        %v6633 = vadd.f32 %v6596, %v6623
        %v6634 = vadd.f32 %v6597, %v6625
        %v6635 = vadd.f32 %v6598, %v6627
        %s6636 = sld [smem:[#allocation9 + $0x12]]
        %v6637 = vstv %s6636
        %v6638 = vmul.f32 %v4879, %v6637
        %v6639 = vmul.f32 %v4880, %v6637
        %v6640 = vmul.f32 %v4881, %v6637
        %v6641 = vmul.f32 %v4882, %v6637
        %v6642 = vadd.f32 %v6632, %v6638
        %v6643 = vadd.f32 %v6633, %v6639
        %v6644 = vadd.f32 %v6634, %v6640
        %v6645 = vadd.f32 %v6635, %v6641
        %s6646 = sld [smem:[#allocation9 + $0x13]]
        %v6647 = vstv %s6646
        %v6648 = vmul.f32 %v4879, %v6647
        %v6649 = vmul.f32 %v4880, %v6647
        %v6650 = vmul.f32 %v4881, %v6647
        %v6651 = vmul.f32 %v4882, %v6647
        %6656 = vrot.lane.b32.xlu0 %v6648, 127
        %v6657 = vpop.permute.xlu0 %6656
        %6658 = vrot.lane.b32.xlu0 %v6649, 127
        %v6659 = vpop.permute.xlu0 %6658
        %6660 = vrot.lane.b32.xlu0 %v6650, 127
        %v6661 = vpop.permute.xlu0 %6660
        %6662 = vrot.lane.b32.xlu0 %v6651, 127
        %v6663 = vpop.permute.xlu0 %6662
        %v6668 = vadd.f32 %v6642, %v6657
        %v6669 = vadd.f32 %v6643, %v6659
        %v6670 = vadd.f32 %v6644, %v6661
        %v6671 = vadd.f32 %v6645, %v6663
        %s6672 = sld [smem:[#allocation9 + $0x14]]
        %v6673 = vstv %s6672
        %v6674 = vmul.f32 %v4879, %v6673
        %v6675 = vmul.f32 %v4880, %v6673
        %v6676 = vmul.f32 %v4881, %v6673
        %v6677 = vmul.f32 %v4882, %v6673
        %6682 = vrot.lane.b32.xlu0 %v6674, 126
        %v6683 = vpop.permute.xlu0 %6682
        %6684 = vrot.lane.b32.xlu0 %v6675, 126
        %v6685 = vpop.permute.xlu0 %6684
        %6686 = vrot.lane.b32.xlu0 %v6676, 126
        %v6687 = vpop.permute.xlu0 %6686
        %6688 = vrot.lane.b32.xlu0 %v6677, 126
        %v6689 = vpop.permute.xlu0 %6688
        %v6694 = vadd.f32 %v6668, %v6683
        %v6695 = vadd.f32 %v6669, %v6685
        %v6696 = vadd.f32 %v6670, %v6687
        %v6697 = vadd.f32 %v6671, %v6689
        %s6698 = sld [smem:[#allocation9 + $0x15]]
        %v6699 = vstv %s6698
        %v6700 = vmul.f32 %v4879, %v6699
        %v6701 = vmul.f32 %v4880, %v6699
        %v6702 = vmul.f32 %v4881, %v6699
        %v6703 = vmul.f32 %v4882, %v6699
        %v6704 = vmul.f32 %v4883, %v6699
        %v6710 = vrot.slane %v6700, 1
        %v6711 = vrot.slane %v6701, 1
        %v6712 = vsel %vm1305, %v6710, %v6711
        %v6713 = vrot.slane %v6702, 1
        %v6714 = vsel %vm1305, %v6711, %v6713
        %v6715 = vrot.slane %v6703, 1
        %v6716 = vsel %vm1305, %v6713, %v6715
        %v6717 = vrot.slane %v6704, 1
        %v6718 = vsel %vm1305, %v6715, %v6717
        %v6723 = vadd.f32 %v6694, %v6712
        %v6724 = vadd.f32 %v6695, %v6714
        %v6725 = vadd.f32 %v6696, %v6716
        %v6726 = vadd.f32 %v6697, %v6718
        %s6727 = sld [smem:[#allocation9 + $0x16]]
        %v6728 = vstv %s6727
        %v6729 = vmul.f32 %v4879, %v6728
        %v6730 = vmul.f32 %v4880, %v6728
        %v6731 = vmul.f32 %v4881, %v6728
        %v6732 = vmul.f32 %v4882, %v6728
        %v6733 = vmul.f32 %v4883, %v6728
        %v6739 = vrot.slane %v6729, 1
        %v6740 = vrot.slane %v6730, 1
        %v6741 = vsel %vm1305, %v6739, %v6740
        %v6742 = vrot.slane %v6731, 1
        %v6743 = vsel %vm1305, %v6740, %v6742
        %v6744 = vrot.slane %v6732, 1
        %v6745 = vsel %vm1305, %v6742, %v6744
        %v6746 = vrot.slane %v6733, 1
        %v6747 = vsel %vm1305, %v6744, %v6746
        %6748 = vrot.lane.b32.xlu0 %v6741, 127
        %v6749 = vpop.permute.xlu0 %6748
        %6750 = vrot.lane.b32.xlu0 %v6743, 127
        %v6751 = vpop.permute.xlu0 %6750
        %6752 = vrot.lane.b32.xlu0 %v6745, 127
        %v6753 = vpop.permute.xlu0 %6752
        %6754 = vrot.lane.b32.xlu0 %v6747, 127
        %v6755 = vpop.permute.xlu0 %6754
        %v6760 = vadd.f32 %v6723, %v6749
        %v6761 = vadd.f32 %v6724, %v6751
        %v6762 = vadd.f32 %v6725, %v6753
        %v6763 = vadd.f32 %v6726, %v6755
        %s6764 = sld [smem:[#allocation9 + $0x17]]
        %v6765 = vstv %s6764
        %v6766 = vmul.f32 %v4879, %v6765
        %v6767 = vmul.f32 %v4880, %v6765
        %v6768 = vmul.f32 %v4881, %v6765
        %v6769 = vmul.f32 %v4882, %v6765
        %v6770 = vmul.f32 %v4883, %v6765
        %v6776 = vrot.slane %v6766, 1
        %v6777 = vrot.slane %v6767, 1
        %v6778 = vsel %vm1305, %v6776, %v6777
        %v6779 = vrot.slane %v6768, 1
        %v6780 = vsel %vm1305, %v6777, %v6779
        %v6781 = vrot.slane %v6769, 1
        %v6782 = vsel %vm1305, %v6779, %v6781
        %v6783 = vrot.slane %v6770, 1
        %v6784 = vsel %vm1305, %v6781, %v6783
        %6785 = vrot.lane.b32.xlu0 %v6778, 126
        %v6786 = vpop.permute.xlu0 %6785
        %6787 = vrot.lane.b32.xlu0 %v6780, 126
        %v6788 = vpop.permute.xlu0 %6787
        %6789 = vrot.lane.b32.xlu0 %v6782, 126
        %v6790 = vpop.permute.xlu0 %6789
        %6791 = vrot.lane.b32.xlu0 %v6784, 126
        %v6792 = vpop.permute.xlu0 %6791
        %v6797 = vadd.f32 %v6760, %v6786
        %v6798 = vadd.f32 %v6761, %v6788
        %v6799 = vadd.f32 %v6762, %v6790
        %v6800 = vadd.f32 %v6763, %v6792
        %s6801 = sld [smem:[#allocation9 + $0x18]]
        %v6802 = vstv %s6801
        %v6803 = vmul.f32 %v4879, %v6802
        %v6804 = vmul.f32 %v4880, %v6802
        %v6805 = vmul.f32 %v4881, %v6802
        %v6806 = vmul.f32 %v4882, %v6802
        %v6807 = vmul.f32 %v4883, %v6802
        %v6813 = vrot.slane %v6803, 2
        %v6814 = vrot.slane %v6804, 2
        %v6815 = vsel %vm1419, %v6813, %v6814
        %v6816 = vrot.slane %v6805, 2
        %v6817 = vsel %vm1419, %v6814, %v6816
        %v6818 = vrot.slane %v6806, 2
        %v6819 = vsel %vm1419, %v6816, %v6818
        %v6820 = vrot.slane %v6807, 2
        %v6821 = vsel %vm1419, %v6818, %v6820
        %v6826 = vadd.f32 %v6797, %v6815
        %v6827 = vadd.f32 %v6798, %v6817
        %v6828 = vadd.f32 %v6799, %v6819
        %v6829 = vadd.f32 %v6800, %v6821
        %s6830 = sld [smem:[#allocation9 + $0x19]]
        %v6831 = vstv %s6830
        %v6832 = vmul.f32 %v4879, %v6831
        %v6833 = vmul.f32 %v4880, %v6831
        %v6834 = vmul.f32 %v4881, %v6831
        %v6835 = vmul.f32 %v4882, %v6831
        %v6836 = vmul.f32 %v4883, %v6831
        %v6842 = vrot.slane %v6832, 2
        %v6843 = vrot.slane %v6833, 2
        %v6844 = vsel %vm1419, %v6842, %v6843
        %v6845 = vrot.slane %v6834, 2
        %v6846 = vsel %vm1419, %v6843, %v6845
        %v6847 = vrot.slane %v6835, 2
        %v6848 = vsel %vm1419, %v6845, %v6847
        %v6849 = vrot.slane %v6836, 2
        %v6850 = vsel %vm1419, %v6847, %v6849
        %6851 = vrot.lane.b32.xlu0 %v6844, 127
        %v6852 = vpop.permute.xlu0 %6851
        %6853 = vrot.lane.b32.xlu0 %v6846, 127
        %v6854 = vpop.permute.xlu0 %6853
        %6855 = vrot.lane.b32.xlu0 %v6848, 127
        %v6856 = vpop.permute.xlu0 %6855
        %6857 = vrot.lane.b32.xlu0 %v6850, 127
        %v6858 = vpop.permute.xlu0 %6857
        %v6863 = vadd.f32 %v6826, %v6852
        %v6864 = vadd.f32 %v6827, %v6854
        %v6865 = vadd.f32 %v6828, %v6856
        %v6866 = vadd.f32 %v6829, %v6858
        %s6867 = sld [smem:[#allocation9 + $0x1a]]
        %v6868 = vstv %s6867
        %v6869 = vmul.f32 %v4879, %v6868
        %v6870 = vmul.f32 %v4880, %v6868
        %v6871 = vmul.f32 %v4881, %v6868
        %v6872 = vmul.f32 %v4882, %v6868
        %v6873 = vmul.f32 %v4883, %v6868
        %v6879 = vrot.slane %v6869, 2
        %v6880 = vrot.slane %v6870, 2
        %v6881 = vsel %vm1419, %v6879, %v6880
        %v6882 = vrot.slane %v6871, 2
        %v6883 = vsel %vm1419, %v6880, %v6882
        %v6884 = vrot.slane %v6872, 2
        %v6885 = vsel %vm1419, %v6882, %v6884
        %v6886 = vrot.slane %v6873, 2
        %v6887 = vsel %vm1419, %v6884, %v6886
        %6888 = vrot.lane.b32.xlu0 %v6881, 126
        %v6889 = vpop.permute.xlu0 %6888
        %6890 = vrot.lane.b32.xlu0 %v6883, 126
        %v6891 = vpop.permute.xlu0 %6890
        %6892 = vrot.lane.b32.xlu0 %v6885, 126
        %v6893 = vpop.permute.xlu0 %6892
        %6894 = vrot.lane.b32.xlu0 %v6887, 126
        %v6895 = vpop.permute.xlu0 %6894
        %v6900 = vadd.f32 %v6863, %v6889
        %v6901 = vadd.f32 %v6864, %v6891
        %v6902 = vadd.f32 %v6865, %v6893
        %v6903 = vadd.f32 %v6866, %v6895
        %s6904 = sld [smem:[#allocation9 + $0x1b]]
        %v6905 = vstv %s6904
        %v6906 = vmul.f32 %v6099, %v6905
        %v6907 = vmul.f32 %v6100, %v6905
        %v6908 = vmul.f32 %v6101, %v6905
        %v6909 = vmul.f32 %v6102, %v6905
        %v6910 = vadd.f32 %v6900, %v6906
        %v6911 = vadd.f32 %v6901, %v6907
        %v6912 = vadd.f32 %v6902, %v6908
        %v6913 = vadd.f32 %v6903, %v6909
        %s6914 = sld [smem:[#allocation9 + $0x1c]]
        %v6915 = vstv %s6914
        %v6916 = vmul.f32 %v6099, %v6915
        %v6917 = vmul.f32 %v6100, %v6915
        %v6918 = vmul.f32 %v6101, %v6915
        %v6919 = vmul.f32 %v6102, %v6915
        %6924 = vrot.lane.b32.xlu0 %v6916, 127
        %v6925 = vpop.permute.xlu0 %6924
        %6926 = vrot.lane.b32.xlu0 %v6917, 127
        %v6927 = vpop.permute.xlu0 %6926
        %6928 = vrot.lane.b32.xlu0 %v6918, 127
        %v6929 = vpop.permute.xlu0 %6928
        %6930 = vrot.lane.b32.xlu0 %v6919, 127
        %v6931 = vpop.permute.xlu0 %6930
        %v6936 = vadd.f32 %v6910, %v6925
        %v6937 = vadd.f32 %v6911, %v6927
        %v6938 = vadd.f32 %v6912, %v6929
        %v6939 = vadd.f32 %v6913, %v6931
        %s6940 = sld [smem:[#allocation9 + $0x1d]]
        %v6941 = vstv %s6940
        %v6942 = vmul.f32 %v6099, %v6941
        %v6943 = vmul.f32 %v6100, %v6941
        %v6944 = vmul.f32 %v6101, %v6941
        %v6945 = vmul.f32 %v6102, %v6941
        %6950 = vrot.lane.b32.xlu0 %v6942, 126
        %v6951 = vpop.permute.xlu0 %6950
        %6952 = vrot.lane.b32.xlu0 %v6943, 126
        %v6953 = vpop.permute.xlu0 %6952
        %6954 = vrot.lane.b32.xlu0 %v6944, 126
        %v6955 = vpop.permute.xlu0 %6954
        %6956 = vrot.lane.b32.xlu0 %v6945, 126
        %v6957 = vpop.permute.xlu0 %6956
        %v6962 = vadd.f32 %v6936, %v6951
        %v6963 = vadd.f32 %v6937, %v6953
        %v6964 = vadd.f32 %v6938, %v6955
        %v6965 = vadd.f32 %v6939, %v6957
        %s6966 = sld [smem:[#allocation9 + $0x1e]]
        %v6967 = vstv %s6966
        %v6968 = vmul.f32 %v6099, %v6967
        %v6969 = vmul.f32 %v6100, %v6967
        %v6970 = vmul.f32 %v6101, %v6967
        %v6971 = vmul.f32 %v6102, %v6967
        %v6972 = vmul.f32 %v6103, %v6967
        %v6978 = vrot.slane %v6968, 1
        %v6979 = vrot.slane %v6969, 1
        %v6980 = vsel %vm1305, %v6978, %v6979
        %v6981 = vrot.slane %v6970, 1
        %v6982 = vsel %vm1305, %v6979, %v6981
        %v6983 = vrot.slane %v6971, 1
        %v6984 = vsel %vm1305, %v6981, %v6983
        %v6985 = vrot.slane %v6972, 1
        %v6986 = vsel %vm1305, %v6983, %v6985
        %v6991 = vadd.f32 %v6962, %v6980
        %v6992 = vadd.f32 %v6963, %v6982
        %v6993 = vadd.f32 %v6964, %v6984
        %v6994 = vadd.f32 %v6965, %v6986
        %s6995 = sld [smem:[#allocation9 + $0x1f]]
        %v6996 = vstv %s6995
        %v6997 = vmul.f32 %v6099, %v6996
        %v6998 = vmul.f32 %v6100, %v6996
        %v6999 = vmul.f32 %v6101, %v6996
        %v7000 = vmul.f32 %v6102, %v6996
        %v7001 = vmul.f32 %v6103, %v6996
        %v7007 = vrot.slane %v6997, 1
        %v7008 = vrot.slane %v6998, 1
        %v7009 = vsel %vm1305, %v7007, %v7008
        %v7010 = vrot.slane %v6999, 1
        %v7011 = vsel %vm1305, %v7008, %v7010
        %v7012 = vrot.slane %v7000, 1
        %v7013 = vsel %vm1305, %v7010, %v7012
        %v7014 = vrot.slane %v7001, 1
        %v7015 = vsel %vm1305, %v7012, %v7014
        %7016 = vrot.lane.b32.xlu0 %v7009, 127
        %v7017 = vpop.permute.xlu0 %7016
        %7018 = vrot.lane.b32.xlu0 %v7011, 127
        %v7019 = vpop.permute.xlu0 %7018
        %7020 = vrot.lane.b32.xlu0 %v7013, 127
        %v7021 = vpop.permute.xlu0 %7020
        %7022 = vrot.lane.b32.xlu0 %v7015, 127
        %v7023 = vpop.permute.xlu0 %7022
        %v7028 = vadd.f32 %v6991, %v7017
        %v7029 = vadd.f32 %v6992, %v7019
        %v7030 = vadd.f32 %v6993, %v7021
        %v7031 = vadd.f32 %v6994, %v7023
        %s7032 = sld [smem:[#allocation9 + $0x20]]
        %v7033 = vstv %s7032
        %v7034 = vmul.f32 %v6099, %v7033
        %v7035 = vmul.f32 %v6100, %v7033
        %v7036 = vmul.f32 %v6101, %v7033
        %v7037 = vmul.f32 %v6102, %v7033
        %v7038 = vmul.f32 %v6103, %v7033
        %v7044 = vrot.slane %v7034, 1
        %v7045 = vrot.slane %v7035, 1
        %v7046 = vsel %vm1305, %v7044, %v7045
        %v7047 = vrot.slane %v7036, 1
        %v7048 = vsel %vm1305, %v7045, %v7047
        %v7049 = vrot.slane %v7037, 1
        %v7050 = vsel %vm1305, %v7047, %v7049
        %v7051 = vrot.slane %v7038, 1
        %v7052 = vsel %vm1305, %v7049, %v7051
        %7053 = vrot.lane.b32.xlu0 %v7046, 126
        %v7054 = vpop.permute.xlu0 %7053
        %7055 = vrot.lane.b32.xlu0 %v7048, 126
        %v7056 = vpop.permute.xlu0 %7055
        %7057 = vrot.lane.b32.xlu0 %v7050, 126
        %v7058 = vpop.permute.xlu0 %7057
        %7059 = vrot.lane.b32.xlu0 %v7052, 126
        %v7060 = vpop.permute.xlu0 %7059
        %v7065 = vadd.f32 %v7028, %v7054
        %v7066 = vadd.f32 %v7029, %v7056
        %v7067 = vadd.f32 %v7030, %v7058
        %v7068 = vadd.f32 %v7031, %v7060
        %s7069 = sld [smem:[#allocation9 + $0x21]]
        %v7070 = vstv %s7069
        %v7071 = vmul.f32 %v6099, %v7070
        %v7072 = vmul.f32 %v6100, %v7070
        %v7073 = vmul.f32 %v6101, %v7070
        %v7074 = vmul.f32 %v6102, %v7070
        %v7075 = vmul.f32 %v6103, %v7070
        %v7081 = vrot.slane %v7071, 2
        %v7082 = vrot.slane %v7072, 2
        %v7083 = vsel %vm1419, %v7081, %v7082
        %v7084 = vrot.slane %v7073, 2
        %v7085 = vsel %vm1419, %v7082, %v7084
        %v7086 = vrot.slane %v7074, 2
        %v7087 = vsel %vm1419, %v7084, %v7086
        %v7088 = vrot.slane %v7075, 2
        %v7089 = vsel %vm1419, %v7086, %v7088
        %v7094 = vadd.f32 %v7065, %v7083
        %v7095 = vadd.f32 %v7066, %v7085
        %v7096 = vadd.f32 %v7067, %v7087
        %v7097 = vadd.f32 %v7068, %v7089
        %s7098 = sld [smem:[#allocation9 + $0x22]]
        %v7099 = vstv %s7098
        %v7100 = vmul.f32 %v6099, %v7099
        %v7101 = vmul.f32 %v6100, %v7099
        %v7102 = vmul.f32 %v6101, %v7099
        %v7103 = vmul.f32 %v6102, %v7099
        %v7104 = vmul.f32 %v6103, %v7099
        %v7110 = vrot.slane %v7100, 2
        %v7111 = vrot.slane %v7101, 2
        %v7112 = vsel %vm1419, %v7110, %v7111
        %v7113 = vrot.slane %v7102, 2
        %v7114 = vsel %vm1419, %v7111, %v7113
        %v7115 = vrot.slane %v7103, 2
        %v7116 = vsel %vm1419, %v7113, %v7115
        %v7117 = vrot.slane %v7104, 2
        %v7118 = vsel %vm1419, %v7115, %v7117
        %7119 = vrot.lane.b32.xlu0 %v7112, 127
        %v7120 = vpop.permute.xlu0 %7119
        %7121 = vrot.lane.b32.xlu0 %v7114, 127
        %v7122 = vpop.permute.xlu0 %7121
        %7123 = vrot.lane.b32.xlu0 %v7116, 127
        %v7124 = vpop.permute.xlu0 %7123
        %7125 = vrot.lane.b32.xlu0 %v7118, 127
        %v7126 = vpop.permute.xlu0 %7125
        %v7131 = vadd.f32 %v7094, %v7120
        %v7132 = vadd.f32 %v7095, %v7122
        %v7133 = vadd.f32 %v7096, %v7124
        %v7134 = vadd.f32 %v7097, %v7126
        %s7135 = sld [smem:[#allocation9 + $0x23]]
        %v7136 = vstv %s7135
        %v7137 = vmul.f32 %v6099, %v7136
        %v7138 = vmul.f32 %v6100, %v7136
        %v7139 = vmul.f32 %v6101, %v7136
        %v7140 = vmul.f32 %v6102, %v7136
        %v7141 = vmul.f32 %v6103, %v7136
        %v7147 = vrot.slane %v7137, 2
        %v7148 = vrot.slane %v7138, 2
        %v7149 = vsel %vm1419, %v7147, %v7148
        %v7150 = vrot.slane %v7139, 2
        %v7151 = vsel %vm1419, %v7148, %v7150
        %v7152 = vrot.slane %v7140, 2
        %v7153 = vsel %vm1419, %v7150, %v7152
        %v7154 = vrot.slane %v7141, 2
        %v7155 = vsel %vm1419, %v7152, %v7154
        %7156 = vrot.lane.b32.xlu0 %v7149, 126
        %v7157 = vpop.permute.xlu0 %7156
        %7158 = vrot.lane.b32.xlu0 %v7151, 126
        %v7159 = vpop.permute.xlu0 %7158
        %7160 = vrot.lane.b32.xlu0 %v7153, 126
        %v7161 = vpop.permute.xlu0 %7160
        %7162 = vrot.lane.b32.xlu0 %v7155, 126
        %v7163 = vpop.permute.xlu0 %7162
        %v7168 = vadd.f32 %v7131, %v7157
        %v7169 = vadd.f32 %v7132, %v7159
        %v7170 = vadd.f32 %v7133, %v7161
        %v7171 = vadd.f32 %v7134, %v7163
        %s7172 = sld [smem:[#allocation10]]
        %v7173 = vstv %s7172
        %v7174 = vadd.f32 %v7168, %v7173
        %v7175 = vadd.f32 %v7169, %v7173
        %v7176 = vadd.f32 %v7170, %v7173
        %v7177 = vadd.f32 %v7171, %v7173
        %v7178 = vmax.f32 %v7174, 0.0
        %v7179 = vmax.f32 %v7175, 0.0
        %v7180 = vmax.f32 %v7176, 0.0
        %v7181 = vmax.f32 %v7177, 0.0
        %vm7182 = vcmask 261120
        %7183 = vst.msk [vmem:[%s362] sm:$0xff] %vm7182, %v7178
        %7184 = vst.msk [vmem:[%s362 + $0x8] sm:$0xff] %vm7182, %v7179
        %7185 = vst.msk [vmem:[%s362 + $0x10] sm:$0xff] %vm7182, %v7180
        %7186 = vst.msk [vmem:[%s362 + $0x18] sm:$0xff] %vm7182, %v7181
        %s7187 = sld [smem:[#allocation9 + $0x24]]
        %v7188 = vstv %s7187
        %v7189 = vmul.f32 %v2439, %v7188
        %v7190 = vmul.f32 %v2440, %v7188
        %v7191 = vmul.f32 %v2441, %v7188
        %v7192 = vmul.f32 %v2442, %v7188
        %s7193 = sld [smem:[#allocation9 + $0x25]]
        %v7194 = vstv %s7193
        %v7195 = vmul.f32 %v2439, %v7194
        %v7196 = vmul.f32 %v2440, %v7194
        %v7197 = vmul.f32 %v2441, %v7194
        %v7198 = vmul.f32 %v2442, %v7194
        %7203 = vrot.lane.b32.xlu0 %v7195, 127
        %v7204 = vpop.permute.xlu0 %7203
        %7205 = vrot.lane.b32.xlu0 %v7196, 127
        %v7206 = vpop.permute.xlu0 %7205
        %7207 = vrot.lane.b32.xlu0 %v7197, 127
        %v7208 = vpop.permute.xlu0 %7207
        %7209 = vrot.lane.b32.xlu0 %v7198, 127
        %v7210 = vpop.permute.xlu0 %7209
        %v7215 = vadd.f32 %v7189, %v7204
        %v7216 = vadd.f32 %v7190, %v7206
        %v7217 = vadd.f32 %v7191, %v7208
        %v7218 = vadd.f32 %v7192, %v7210
        %s7219 = sld [smem:[#allocation9 + $0x26]]
        %v7220 = vstv %s7219
        %v7221 = vmul.f32 %v2439, %v7220
        %v7222 = vmul.f32 %v2440, %v7220
        %v7223 = vmul.f32 %v2441, %v7220
        %v7224 = vmul.f32 %v2442, %v7220
        %7229 = vrot.lane.b32.xlu0 %v7221, 126
        %v7230 = vpop.permute.xlu0 %7229
        %7231 = vrot.lane.b32.xlu0 %v7222, 126
        %v7232 = vpop.permute.xlu0 %7231
        %7233 = vrot.lane.b32.xlu0 %v7223, 126
        %v7234 = vpop.permute.xlu0 %7233
        %7235 = vrot.lane.b32.xlu0 %v7224, 126
        %v7236 = vpop.permute.xlu0 %7235
        %v7241 = vadd.f32 %v7215, %v7230
        %v7242 = vadd.f32 %v7216, %v7232
        %v7243 = vadd.f32 %v7217, %v7234
        %v7244 = vadd.f32 %v7218, %v7236
        %s7245 = sld [smem:[#allocation9 + $0x27]]
        %v7246 = vstv %s7245
        %v7247 = vmul.f32 %v2439, %v7246
        %v7248 = vmul.f32 %v2440, %v7246
        %v7249 = vmul.f32 %v2441, %v7246
        %v7250 = vmul.f32 %v2442, %v7246
        %v7251 = vmul.f32 %v2443, %v7246
        %v7257 = vrot.slane %v7247, 1
        %v7258 = vrot.slane %v7248, 1
        %v7259 = vsel %vm1305, %v7257, %v7258
        %v7260 = vrot.slane %v7249, 1
        %v7261 = vsel %vm1305, %v7258, %v7260
        %v7262 = vrot.slane %v7250, 1
        %v7263 = vsel %vm1305, %v7260, %v7262
        %v7264 = vrot.slane %v7251, 1
        %v7265 = vsel %vm1305, %v7262, %v7264
        %v7270 = vadd.f32 %v7241, %v7259
        %v7271 = vadd.f32 %v7242, %v7261
        %v7272 = vadd.f32 %v7243, %v7263
        %v7273 = vadd.f32 %v7244, %v7265
        %s7274 = sld [smem:[#allocation9 + $0x28]]
        %v7275 = vstv %s7274
        %v7276 = vmul.f32 %v2439, %v7275
        %v7277 = vmul.f32 %v2440, %v7275
        %v7278 = vmul.f32 %v2441, %v7275
        %v7279 = vmul.f32 %v2442, %v7275
        %v7280 = vmul.f32 %v2443, %v7275
        %v7286 = vrot.slane %v7276, 1
        %v7287 = vrot.slane %v7277, 1
        %v7288 = vsel %vm1305, %v7286, %v7287
        %v7289 = vrot.slane %v7278, 1
        %v7290 = vsel %vm1305, %v7287, %v7289
        %v7291 = vrot.slane %v7279, 1
        %v7292 = vsel %vm1305, %v7289, %v7291
        %v7293 = vrot.slane %v7280, 1
        %v7294 = vsel %vm1305, %v7291, %v7293
        %7295 = vrot.lane.b32.xlu0 %v7288, 127
        %v7296 = vpop.permute.xlu0 %7295
        %7297 = vrot.lane.b32.xlu0 %v7290, 127
        %v7298 = vpop.permute.xlu0 %7297
        %7299 = vrot.lane.b32.xlu0 %v7292, 127
        %v7300 = vpop.permute.xlu0 %7299
        %7301 = vrot.lane.b32.xlu0 %v7294, 127
        %v7302 = vpop.permute.xlu0 %7301
        %v7307 = vadd.f32 %v7270, %v7296
        %v7308 = vadd.f32 %v7271, %v7298
        %v7309 = vadd.f32 %v7272, %v7300
        %v7310 = vadd.f32 %v7273, %v7302
        %s7311 = sld [smem:[#allocation9 + $0x29]]
        %v7312 = vstv %s7311
        %v7313 = vmul.f32 %v2439, %v7312
        %v7314 = vmul.f32 %v2440, %v7312
        %v7315 = vmul.f32 %v2441, %v7312
        %v7316 = vmul.f32 %v2442, %v7312
        %v7317 = vmul.f32 %v2443, %v7312
        %v7323 = vrot.slane %v7313, 1
        %v7324 = vrot.slane %v7314, 1
        %v7325 = vsel %vm1305, %v7323, %v7324
        %v7326 = vrot.slane %v7315, 1
        %v7327 = vsel %vm1305, %v7324, %v7326
        %v7328 = vrot.slane %v7316, 1
        %v7329 = vsel %vm1305, %v7326, %v7328
        %v7330 = vrot.slane %v7317, 1
        %v7331 = vsel %vm1305, %v7328, %v7330
        %7332 = vrot.lane.b32.xlu0 %v7325, 126
        %v7333 = vpop.permute.xlu0 %7332
        %7334 = vrot.lane.b32.xlu0 %v7327, 126
        %v7335 = vpop.permute.xlu0 %7334
        %7336 = vrot.lane.b32.xlu0 %v7329, 126
        %v7337 = vpop.permute.xlu0 %7336
        %7338 = vrot.lane.b32.xlu0 %v7331, 126
        %v7339 = vpop.permute.xlu0 %7338
        %v7344 = vadd.f32 %v7307, %v7333
        %v7345 = vadd.f32 %v7308, %v7335
        %v7346 = vadd.f32 %v7309, %v7337
        %v7347 = vadd.f32 %v7310, %v7339
        %s7348 = sld [smem:[#allocation9 + $0x2a]]
        %v7349 = vstv %s7348
        %v7350 = vmul.f32 %v2439, %v7349
        %v7351 = vmul.f32 %v2440, %v7349
        %v7352 = vmul.f32 %v2441, %v7349
        %v7353 = vmul.f32 %v2442, %v7349
        %v7354 = vmul.f32 %v2443, %v7349
        %v7360 = vrot.slane %v7350, 2
        %v7361 = vrot.slane %v7351, 2
        %v7362 = vsel %vm1419, %v7360, %v7361
        %v7363 = vrot.slane %v7352, 2
        %v7364 = vsel %vm1419, %v7361, %v7363
        %v7365 = vrot.slane %v7353, 2
        %v7366 = vsel %vm1419, %v7363, %v7365
        %v7367 = vrot.slane %v7354, 2
        %v7368 = vsel %vm1419, %v7365, %v7367
        %v7373 = vadd.f32 %v7344, %v7362
        %v7374 = vadd.f32 %v7345, %v7364
        %v7375 = vadd.f32 %v7346, %v7366
        %v7376 = vadd.f32 %v7347, %v7368
        %s7377 = sld [smem:[#allocation9 + $0x2b]]
        %v7378 = vstv %s7377
        %v7379 = vmul.f32 %v2439, %v7378
        %v7380 = vmul.f32 %v2440, %v7378
        %v7381 = vmul.f32 %v2441, %v7378
        %v7382 = vmul.f32 %v2442, %v7378
        %v7383 = vmul.f32 %v2443, %v7378
        %v7389 = vrot.slane %v7379, 2
        %v7390 = vrot.slane %v7380, 2
        %v7391 = vsel %vm1419, %v7389, %v7390
        %v7392 = vrot.slane %v7381, 2
        %v7393 = vsel %vm1419, %v7390, %v7392
        %v7394 = vrot.slane %v7382, 2
        %v7395 = vsel %vm1419, %v7392, %v7394
        %v7396 = vrot.slane %v7383, 2
        %v7397 = vsel %vm1419, %v7394, %v7396
        %7398 = vrot.lane.b32.xlu0 %v7391, 127
        %v7399 = vpop.permute.xlu0 %7398
        %7400 = vrot.lane.b32.xlu0 %v7393, 127
        %v7401 = vpop.permute.xlu0 %7400
        %7402 = vrot.lane.b32.xlu0 %v7395, 127
        %v7403 = vpop.permute.xlu0 %7402
        %7404 = vrot.lane.b32.xlu0 %v7397, 127
        %v7405 = vpop.permute.xlu0 %7404
        %v7410 = vadd.f32 %v7373, %v7399
        %v7411 = vadd.f32 %v7374, %v7401
        %v7412 = vadd.f32 %v7375, %v7403
        %v7413 = vadd.f32 %v7376, %v7405
        %s7414 = sld [smem:[#allocation9 + $0x2c]]
        %v7415 = vstv %s7414
        %v7416 = vmul.f32 %v2439, %v7415
        %v7417 = vmul.f32 %v2440, %v7415
        %v7418 = vmul.f32 %v2441, %v7415
        %v7419 = vmul.f32 %v2442, %v7415
        %v7420 = vmul.f32 %v2443, %v7415
        %v7426 = vrot.slane %v7416, 2
        %v7427 = vrot.slane %v7417, 2
        %v7428 = vsel %vm1419, %v7426, %v7427
        %v7429 = vrot.slane %v7418, 2
        %v7430 = vsel %vm1419, %v7427, %v7429
        %v7431 = vrot.slane %v7419, 2
        %v7432 = vsel %vm1419, %v7429, %v7431
        %v7433 = vrot.slane %v7420, 2
        %v7434 = vsel %vm1419, %v7431, %v7433
        %7435 = vrot.lane.b32.xlu0 %v7428, 126
        %v7436 = vpop.permute.xlu0 %7435
        %7437 = vrot.lane.b32.xlu0 %v7430, 126
        %v7438 = vpop.permute.xlu0 %7437
        %7439 = vrot.lane.b32.xlu0 %v7432, 126
        %v7440 = vpop.permute.xlu0 %7439
        %7441 = vrot.lane.b32.xlu0 %v7434, 126
        %v7442 = vpop.permute.xlu0 %7441
        %v7447 = vadd.f32 %v7410, %v7436
        %v7448 = vadd.f32 %v7411, %v7438
        %v7449 = vadd.f32 %v7412, %v7440
        %v7450 = vadd.f32 %v7413, %v7442
        %s7451 = sld [smem:[#allocation9 + $0x2d]]
        %v7452 = vstv %s7451
        %v7453 = vmul.f32 %v3659, %v7452
        %v7454 = vmul.f32 %v3660, %v7452
        %v7455 = vmul.f32 %v3661, %v7452
        %v7456 = vmul.f32 %v3662, %v7452
        %v7457 = vadd.f32 %v7447, %v7453
        %v7458 = vadd.f32 %v7448, %v7454
        %v7459 = vadd.f32 %v7449, %v7455
        %v7460 = vadd.f32 %v7450, %v7456
        %s7461 = sld [smem:[#allocation9 + $0x2e]]
        %v7462 = vstv %s7461
        %v7463 = vmul.f32 %v3659, %v7462
        %v7464 = vmul.f32 %v3660, %v7462
        %v7465 = vmul.f32 %v3661, %v7462
        %v7466 = vmul.f32 %v3662, %v7462
        %7471 = vrot.lane.b32.xlu0 %v7463, 127
        %v7472 = vpop.permute.xlu0 %7471
        %7473 = vrot.lane.b32.xlu0 %v7464, 127
        %v7474 = vpop.permute.xlu0 %7473
        %7475 = vrot.lane.b32.xlu0 %v7465, 127
        %v7476 = vpop.permute.xlu0 %7475
        %7477 = vrot.lane.b32.xlu0 %v7466, 127
        %v7478 = vpop.permute.xlu0 %7477
        %v7483 = vadd.f32 %v7457, %v7472
        %v7484 = vadd.f32 %v7458, %v7474
        %v7485 = vadd.f32 %v7459, %v7476
        %v7486 = vadd.f32 %v7460, %v7478
        %s7487 = sld [smem:[#allocation9 + $0x2f]]
        %v7488 = vstv %s7487
        %v7489 = vmul.f32 %v3659, %v7488
        %v7490 = vmul.f32 %v3660, %v7488
        %v7491 = vmul.f32 %v3661, %v7488
        %v7492 = vmul.f32 %v3662, %v7488
        %7497 = vrot.lane.b32.xlu0 %v7489, 126
        %v7498 = vpop.permute.xlu0 %7497
        %7499 = vrot.lane.b32.xlu0 %v7490, 126
        %v7500 = vpop.permute.xlu0 %7499
        %7501 = vrot.lane.b32.xlu0 %v7491, 126
        %v7502 = vpop.permute.xlu0 %7501
        %7503 = vrot.lane.b32.xlu0 %v7492, 126
        %v7504 = vpop.permute.xlu0 %7503
        %v7509 = vadd.f32 %v7483, %v7498
        %v7510 = vadd.f32 %v7484, %v7500
        %v7511 = vadd.f32 %v7485, %v7502
        %v7512 = vadd.f32 %v7486, %v7504
        %s7513 = sld [smem:[#allocation9 + $0x30]]
        %v7514 = vstv %s7513
        %v7515 = vmul.f32 %v3659, %v7514
        %v7516 = vmul.f32 %v3660, %v7514
        %v7517 = vmul.f32 %v3661, %v7514
        %v7518 = vmul.f32 %v3662, %v7514
        %v7519 = vmul.f32 %v3663, %v7514
        %v7525 = vrot.slane %v7515, 1
        %v7526 = vrot.slane %v7516, 1
        %v7527 = vsel %vm1305, %v7525, %v7526
        %v7528 = vrot.slane %v7517, 1
        %v7529 = vsel %vm1305, %v7526, %v7528
        %v7530 = vrot.slane %v7518, 1
        %v7531 = vsel %vm1305, %v7528, %v7530
        %v7532 = vrot.slane %v7519, 1
        %v7533 = vsel %vm1305, %v7530, %v7532
        %v7538 = vadd.f32 %v7509, %v7527
        %v7539 = vadd.f32 %v7510, %v7529
        %v7540 = vadd.f32 %v7511, %v7531
        %v7541 = vadd.f32 %v7512, %v7533
        %s7542 = sld [smem:[#allocation9 + $0x31]]
        %v7543 = vstv %s7542
        %v7544 = vmul.f32 %v3659, %v7543
        %v7545 = vmul.f32 %v3660, %v7543
        %v7546 = vmul.f32 %v3661, %v7543
        %v7547 = vmul.f32 %v3662, %v7543
        %v7548 = vmul.f32 %v3663, %v7543
        %v7554 = vrot.slane %v7544, 1
        %v7555 = vrot.slane %v7545, 1
        %v7556 = vsel %vm1305, %v7554, %v7555
        %v7557 = vrot.slane %v7546, 1
        %v7558 = vsel %vm1305, %v7555, %v7557
        %v7559 = vrot.slane %v7547, 1
        %v7560 = vsel %vm1305, %v7557, %v7559
        %v7561 = vrot.slane %v7548, 1
        %v7562 = vsel %vm1305, %v7559, %v7561
        %7563 = vrot.lane.b32.xlu0 %v7556, 127
        %v7564 = vpop.permute.xlu0 %7563
        %7565 = vrot.lane.b32.xlu0 %v7558, 127
        %v7566 = vpop.permute.xlu0 %7565
        %7567 = vrot.lane.b32.xlu0 %v7560, 127
        %v7568 = vpop.permute.xlu0 %7567
        %7569 = vrot.lane.b32.xlu0 %v7562, 127
        %v7570 = vpop.permute.xlu0 %7569
        %v7575 = vadd.f32 %v7538, %v7564
        %v7576 = vadd.f32 %v7539, %v7566
        %v7577 = vadd.f32 %v7540, %v7568
        %v7578 = vadd.f32 %v7541, %v7570
        %s7579 = sld [smem:[#allocation9 + $0x32]]
        %v7580 = vstv %s7579
        %v7581 = vmul.f32 %v3659, %v7580
        %v7582 = vmul.f32 %v3660, %v7580
        %v7583 = vmul.f32 %v3661, %v7580
        %v7584 = vmul.f32 %v3662, %v7580
        %v7585 = vmul.f32 %v3663, %v7580
        %v7591 = vrot.slane %v7581, 1
        %v7592 = vrot.slane %v7582, 1
        %v7593 = vsel %vm1305, %v7591, %v7592
        %v7594 = vrot.slane %v7583, 1
        %v7595 = vsel %vm1305, %v7592, %v7594
        %v7596 = vrot.slane %v7584, 1
        %v7597 = vsel %vm1305, %v7594, %v7596
        %v7598 = vrot.slane %v7585, 1
        %v7599 = vsel %vm1305, %v7596, %v7598
        %7600 = vrot.lane.b32.xlu0 %v7593, 126
        %v7601 = vpop.permute.xlu0 %7600
        %7602 = vrot.lane.b32.xlu0 %v7595, 126
        %v7603 = vpop.permute.xlu0 %7602
        %7604 = vrot.lane.b32.xlu0 %v7597, 126
        %v7605 = vpop.permute.xlu0 %7604
        %7606 = vrot.lane.b32.xlu0 %v7599, 126
        %v7607 = vpop.permute.xlu0 %7606
        %v7612 = vadd.f32 %v7575, %v7601
        %v7613 = vadd.f32 %v7576, %v7603
        %v7614 = vadd.f32 %v7577, %v7605
        %v7615 = vadd.f32 %v7578, %v7607
        %s7616 = sld [smem:[#allocation9 + $0x33]]
        %v7617 = vstv %s7616
        %v7618 = vmul.f32 %v3659, %v7617
        %v7619 = vmul.f32 %v3660, %v7617
        %v7620 = vmul.f32 %v3661, %v7617
        %v7621 = vmul.f32 %v3662, %v7617
        %v7622 = vmul.f32 %v3663, %v7617
        %v7628 = vrot.slane %v7618, 2
        %v7629 = vrot.slane %v7619, 2
        %v7630 = vsel %vm1419, %v7628, %v7629
        %v7631 = vrot.slane %v7620, 2
        %v7632 = vsel %vm1419, %v7629, %v7631
        %v7633 = vrot.slane %v7621, 2
        %v7634 = vsel %vm1419, %v7631, %v7633
        %v7635 = vrot.slane %v7622, 2
        %v7636 = vsel %vm1419, %v7633, %v7635
        %v7641 = vadd.f32 %v7612, %v7630
        %v7642 = vadd.f32 %v7613, %v7632
        %v7643 = vadd.f32 %v7614, %v7634
        %v7644 = vadd.f32 %v7615, %v7636
        %s7645 = sld [smem:[#allocation9 + $0x34]]
        %v7646 = vstv %s7645
        %v7647 = vmul.f32 %v3659, %v7646
        %v7648 = vmul.f32 %v3660, %v7646
        %v7649 = vmul.f32 %v3661, %v7646
        %v7650 = vmul.f32 %v3662, %v7646
        %v7651 = vmul.f32 %v3663, %v7646
        %v7657 = vrot.slane %v7647, 2
        %v7658 = vrot.slane %v7648, 2
        %v7659 = vsel %vm1419, %v7657, %v7658
        %v7660 = vrot.slane %v7649, 2
        %v7661 = vsel %vm1419, %v7658, %v7660
        %v7662 = vrot.slane %v7650, 2
        %v7663 = vsel %vm1419, %v7660, %v7662
        %v7664 = vrot.slane %v7651, 2
        %v7665 = vsel %vm1419, %v7662, %v7664
        %7666 = vrot.lane.b32.xlu0 %v7659, 127
        %v7667 = vpop.permute.xlu0 %7666
        %7668 = vrot.lane.b32.xlu0 %v7661, 127
        %v7669 = vpop.permute.xlu0 %7668
        %7670 = vrot.lane.b32.xlu0 %v7663, 127
        %v7671 = vpop.permute.xlu0 %7670
        %7672 = vrot.lane.b32.xlu0 %v7665, 127
        %v7673 = vpop.permute.xlu0 %7672
        %v7678 = vadd.f32 %v7641, %v7667
        %v7679 = vadd.f32 %v7642, %v7669
        %v7680 = vadd.f32 %v7643, %v7671
        %v7681 = vadd.f32 %v7644, %v7673
        %s7682 = sld [smem:[#allocation9 + $0x35]]
        %v7683 = vstv %s7682
        %v7684 = vmul.f32 %v3659, %v7683
        %v7685 = vmul.f32 %v3660, %v7683
        %v7686 = vmul.f32 %v3661, %v7683
        %v7687 = vmul.f32 %v3662, %v7683
        %v7688 = vmul.f32 %v3663, %v7683
        %v7694 = vrot.slane %v7684, 2
        %v7695 = vrot.slane %v7685, 2
        %v7696 = vsel %vm1419, %v7694, %v7695
        %v7697 = vrot.slane %v7686, 2
        %v7698 = vsel %vm1419, %v7695, %v7697
        %v7699 = vrot.slane %v7687, 2
        %v7700 = vsel %vm1419, %v7697, %v7699
        %v7701 = vrot.slane %v7688, 2
        %v7702 = vsel %vm1419, %v7699, %v7701
        %7703 = vrot.lane.b32.xlu0 %v7696, 126
        %v7704 = vpop.permute.xlu0 %7703
        %7705 = vrot.lane.b32.xlu0 %v7698, 126
        %v7706 = vpop.permute.xlu0 %7705
        %7707 = vrot.lane.b32.xlu0 %v7700, 126
        %v7708 = vpop.permute.xlu0 %7707
        %7709 = vrot.lane.b32.xlu0 %v7702, 126
        %v7710 = vpop.permute.xlu0 %7709
        %v7715 = vadd.f32 %v7678, %v7704
        %v7716 = vadd.f32 %v7679, %v7706
        %v7717 = vadd.f32 %v7680, %v7708
        %v7718 = vadd.f32 %v7681, %v7710
        %s7719 = sld [smem:[#allocation9 + $0x36]]
        %v7720 = vstv %s7719
        %v7721 = vmul.f32 %v4879, %v7720
        %v7722 = vmul.f32 %v4880, %v7720
        %v7723 = vmul.f32 %v4881, %v7720
        %v7724 = vmul.f32 %v4882, %v7720
        %v7725 = vadd.f32 %v7715, %v7721
        %v7726 = vadd.f32 %v7716, %v7722
        %v7727 = vadd.f32 %v7717, %v7723
        %v7728 = vadd.f32 %v7718, %v7724
        %s7729 = sld [smem:[#allocation9 + $0x37]]
        %v7730 = vstv %s7729
        %v7731 = vmul.f32 %v4879, %v7730
        %v7732 = vmul.f32 %v4880, %v7730
        %v7733 = vmul.f32 %v4881, %v7730
        %v7734 = vmul.f32 %v4882, %v7730
        %7739 = vrot.lane.b32.xlu0 %v7731, 127
        %v7740 = vpop.permute.xlu0 %7739
        %7741 = vrot.lane.b32.xlu0 %v7732, 127
        %v7742 = vpop.permute.xlu0 %7741
        %7743 = vrot.lane.b32.xlu0 %v7733, 127
        %v7744 = vpop.permute.xlu0 %7743
        %7745 = vrot.lane.b32.xlu0 %v7734, 127
        %v7746 = vpop.permute.xlu0 %7745
        %v7751 = vadd.f32 %v7725, %v7740
        %v7752 = vadd.f32 %v7726, %v7742
        %v7753 = vadd.f32 %v7727, %v7744
        %v7754 = vadd.f32 %v7728, %v7746
        %s7755 = sld [smem:[#allocation9 + $0x38]]
        %v7756 = vstv %s7755
        %v7757 = vmul.f32 %v4879, %v7756
        %v7758 = vmul.f32 %v4880, %v7756
        %v7759 = vmul.f32 %v4881, %v7756
        %v7760 = vmul.f32 %v4882, %v7756
        %7765 = vrot.lane.b32.xlu0 %v7757, 126
        %v7766 = vpop.permute.xlu0 %7765
        %7767 = vrot.lane.b32.xlu0 %v7758, 126
        %v7768 = vpop.permute.xlu0 %7767
        %7769 = vrot.lane.b32.xlu0 %v7759, 126
        %v7770 = vpop.permute.xlu0 %7769
        %7771 = vrot.lane.b32.xlu0 %v7760, 126
        %v7772 = vpop.permute.xlu0 %7771
        %v7777 = vadd.f32 %v7751, %v7766
        %v7778 = vadd.f32 %v7752, %v7768
        %v7779 = vadd.f32 %v7753, %v7770
        %v7780 = vadd.f32 %v7754, %v7772
        %s7781 = sld [smem:[#allocation9 + $0x39]]
        %v7782 = vstv %s7781
        %v7783 = vmul.f32 %v4879, %v7782
        %v7784 = vmul.f32 %v4880, %v7782
        %v7785 = vmul.f32 %v4881, %v7782
        %v7786 = vmul.f32 %v4882, %v7782
        %v7787 = vmul.f32 %v4883, %v7782
        %v7793 = vrot.slane %v7783, 1
        %v7794 = vrot.slane %v7784, 1
        %v7795 = vsel %vm1305, %v7793, %v7794
        %v7796 = vrot.slane %v7785, 1
        %v7797 = vsel %vm1305, %v7794, %v7796
        %v7798 = vrot.slane %v7786, 1
        %v7799 = vsel %vm1305, %v7796, %v7798
        %v7800 = vrot.slane %v7787, 1
        %v7801 = vsel %vm1305, %v7798, %v7800
        %v7806 = vadd.f32 %v7777, %v7795
        %v7807 = vadd.f32 %v7778, %v7797
        %v7808 = vadd.f32 %v7779, %v7799
        %v7809 = vadd.f32 %v7780, %v7801
        %s7810 = sld [smem:[#allocation9 + $0x3a]]
        %v7811 = vstv %s7810
        %v7812 = vmul.f32 %v4879, %v7811
        %v7813 = vmul.f32 %v4880, %v7811
        %v7814 = vmul.f32 %v4881, %v7811
        %v7815 = vmul.f32 %v4882, %v7811
        %v7816 = vmul.f32 %v4883, %v7811
        %v7822 = vrot.slane %v7812, 1
        %v7823 = vrot.slane %v7813, 1
        %v7824 = vsel %vm1305, %v7822, %v7823
        %v7825 = vrot.slane %v7814, 1
        %v7826 = vsel %vm1305, %v7823, %v7825
        %v7827 = vrot.slane %v7815, 1
        %v7828 = vsel %vm1305, %v7825, %v7827
        %v7829 = vrot.slane %v7816, 1
        %v7830 = vsel %vm1305, %v7827, %v7829
        %7831 = vrot.lane.b32.xlu0 %v7824, 127
        %v7832 = vpop.permute.xlu0 %7831
        %7833 = vrot.lane.b32.xlu0 %v7826, 127
        %v7834 = vpop.permute.xlu0 %7833
        %7835 = vrot.lane.b32.xlu0 %v7828, 127
        %v7836 = vpop.permute.xlu0 %7835
        %7837 = vrot.lane.b32.xlu0 %v7830, 127
        %v7838 = vpop.permute.xlu0 %7837
        %v7843 = vadd.f32 %v7806, %v7832
        %v7844 = vadd.f32 %v7807, %v7834
        %v7845 = vadd.f32 %v7808, %v7836
        %v7846 = vadd.f32 %v7809, %v7838
        %s7847 = sld [smem:[#allocation9 + $0x3b]]
        %v7848 = vstv %s7847
        %v7849 = vmul.f32 %v4879, %v7848
        %v7850 = vmul.f32 %v4880, %v7848
        %v7851 = vmul.f32 %v4881, %v7848
        %v7852 = vmul.f32 %v4882, %v7848
        %v7853 = vmul.f32 %v4883, %v7848
        %v7859 = vrot.slane %v7849, 1
        %v7860 = vrot.slane %v7850, 1
        %v7861 = vsel %vm1305, %v7859, %v7860
        %v7862 = vrot.slane %v7851, 1
        %v7863 = vsel %vm1305, %v7860, %v7862
        %v7864 = vrot.slane %v7852, 1
        %v7865 = vsel %vm1305, %v7862, %v7864
        %v7866 = vrot.slane %v7853, 1
        %v7867 = vsel %vm1305, %v7864, %v7866
        %7868 = vrot.lane.b32.xlu0 %v7861, 126
        %v7869 = vpop.permute.xlu0 %7868
        %7870 = vrot.lane.b32.xlu0 %v7863, 126
        %v7871 = vpop.permute.xlu0 %7870
        %7872 = vrot.lane.b32.xlu0 %v7865, 126
        %v7873 = vpop.permute.xlu0 %7872
        %7874 = vrot.lane.b32.xlu0 %v7867, 126
        %v7875 = vpop.permute.xlu0 %7874
        %v7880 = vadd.f32 %v7843, %v7869
        %v7881 = vadd.f32 %v7844, %v7871
        %v7882 = vadd.f32 %v7845, %v7873
        %v7883 = vadd.f32 %v7846, %v7875
        %s7884 = sld [smem:[#allocation9 + $0x3c]]
        %v7885 = vstv %s7884
        %v7886 = vmul.f32 %v4879, %v7885
        %v7887 = vmul.f32 %v4880, %v7885
        %v7888 = vmul.f32 %v4881, %v7885
        %v7889 = vmul.f32 %v4882, %v7885
        %v7890 = vmul.f32 %v4883, %v7885
        %v7896 = vrot.slane %v7886, 2
        %v7897 = vrot.slane %v7887, 2
        %v7898 = vsel %vm1419, %v7896, %v7897
        %v7899 = vrot.slane %v7888, 2
        %v7900 = vsel %vm1419, %v7897, %v7899
        %v7901 = vrot.slane %v7889, 2
        %v7902 = vsel %vm1419, %v7899, %v7901
        %v7903 = vrot.slane %v7890, 2
        %v7904 = vsel %vm1419, %v7901, %v7903
        %v7909 = vadd.f32 %v7880, %v7898
        %v7910 = vadd.f32 %v7881, %v7900
        %v7911 = vadd.f32 %v7882, %v7902
        %v7912 = vadd.f32 %v7883, %v7904
        %s7913 = sld [smem:[#allocation9 + $0x3d]]
        %v7914 = vstv %s7913
        %v7915 = vmul.f32 %v4879, %v7914
        %v7916 = vmul.f32 %v4880, %v7914
        %v7917 = vmul.f32 %v4881, %v7914
        %v7918 = vmul.f32 %v4882, %v7914
        %v7919 = vmul.f32 %v4883, %v7914
        %v7925 = vrot.slane %v7915, 2
        %v7926 = vrot.slane %v7916, 2
        %v7927 = vsel %vm1419, %v7925, %v7926
        %v7928 = vrot.slane %v7917, 2
        %v7929 = vsel %vm1419, %v7926, %v7928
        %v7930 = vrot.slane %v7918, 2
        %v7931 = vsel %vm1419, %v7928, %v7930
        %v7932 = vrot.slane %v7919, 2
        %v7933 = vsel %vm1419, %v7930, %v7932
        %7934 = vrot.lane.b32.xlu0 %v7927, 127
        %v7935 = vpop.permute.xlu0 %7934
        %7936 = vrot.lane.b32.xlu0 %v7929, 127
        %v7937 = vpop.permute.xlu0 %7936
        %7938 = vrot.lane.b32.xlu0 %v7931, 127
        %v7939 = vpop.permute.xlu0 %7938
        %7940 = vrot.lane.b32.xlu0 %v7933, 127
        %v7941 = vpop.permute.xlu0 %7940
        %v7946 = vadd.f32 %v7909, %v7935
        %v7947 = vadd.f32 %v7910, %v7937
        %v7948 = vadd.f32 %v7911, %v7939
        %v7949 = vadd.f32 %v7912, %v7941
        %s7950 = sld [smem:[#allocation9 + $0x3e]]
        %v7951 = vstv %s7950
        %v7952 = vmul.f32 %v4879, %v7951
        %v7953 = vmul.f32 %v4880, %v7951
        %v7954 = vmul.f32 %v4881, %v7951
        %v7955 = vmul.f32 %v4882, %v7951
        %v7956 = vmul.f32 %v4883, %v7951
        %v7962 = vrot.slane %v7952, 2
        %v7963 = vrot.slane %v7953, 2
        %v7964 = vsel %vm1419, %v7962, %v7963
        %v7965 = vrot.slane %v7954, 2
        %v7966 = vsel %vm1419, %v7963, %v7965
        %v7967 = vrot.slane %v7955, 2
        %v7968 = vsel %vm1419, %v7965, %v7967
        %v7969 = vrot.slane %v7956, 2
        %v7970 = vsel %vm1419, %v7967, %v7969
        %7971 = vrot.lane.b32.xlu0 %v7964, 126
        %v7972 = vpop.permute.xlu0 %7971
        %7973 = vrot.lane.b32.xlu0 %v7966, 126
        %v7974 = vpop.permute.xlu0 %7973
        %7975 = vrot.lane.b32.xlu0 %v7968, 126
        %v7976 = vpop.permute.xlu0 %7975
        %7977 = vrot.lane.b32.xlu0 %v7970, 126
        %v7978 = vpop.permute.xlu0 %7977
        %v7983 = vadd.f32 %v7946, %v7972
        %v7984 = vadd.f32 %v7947, %v7974
        %v7985 = vadd.f32 %v7948, %v7976
        %v7986 = vadd.f32 %v7949, %v7978
        %s7987 = sld [smem:[#allocation9 + $0x3f]]
        %v7988 = vstv %s7987
        %v7989 = vmul.f32 %v6099, %v7988
        %v7990 = vmul.f32 %v6100, %v7988
        %v7991 = vmul.f32 %v6101, %v7988
        %v7992 = vmul.f32 %v6102, %v7988
        %v7993 = vadd.f32 %v7983, %v7989
        %v7994 = vadd.f32 %v7984, %v7990
        %v7995 = vadd.f32 %v7985, %v7991
        %v7996 = vadd.f32 %v7986, %v7992
        %s7997 = sld [smem:[#allocation9 + $0x40]]
        %v7998 = vstv %s7997
        %v7999 = vmul.f32 %v6099, %v7998
        %v8000 = vmul.f32 %v6100, %v7998
        %v8001 = vmul.f32 %v6101, %v7998
        %v8002 = vmul.f32 %v6102, %v7998
        %8007 = vrot.lane.b32.xlu0 %v7999, 127
        %v8008 = vpop.permute.xlu0 %8007
        %8009 = vrot.lane.b32.xlu0 %v8000, 127
        %v8010 = vpop.permute.xlu0 %8009
        %8011 = vrot.lane.b32.xlu0 %v8001, 127
        %v8012 = vpop.permute.xlu0 %8011
        %8013 = vrot.lane.b32.xlu0 %v8002, 127
        %v8014 = vpop.permute.xlu0 %8013
        %v8019 = vadd.f32 %v7993, %v8008
        %v8020 = vadd.f32 %v7994, %v8010
        %v8021 = vadd.f32 %v7995, %v8012
        %v8022 = vadd.f32 %v7996, %v8014
        %s8023 = sld [smem:[#allocation9 + $0x41]]
        %v8024 = vstv %s8023
        %v8025 = vmul.f32 %v6099, %v8024
        %v8026 = vmul.f32 %v6100, %v8024
        %v8027 = vmul.f32 %v6101, %v8024
        %v8028 = vmul.f32 %v6102, %v8024
        %8033 = vrot.lane.b32.xlu0 %v8025, 126
        %v8034 = vpop.permute.xlu0 %8033
        %8035 = vrot.lane.b32.xlu0 %v8026, 126
        %v8036 = vpop.permute.xlu0 %8035
        %8037 = vrot.lane.b32.xlu0 %v8027, 126
        %v8038 = vpop.permute.xlu0 %8037
        %8039 = vrot.lane.b32.xlu0 %v8028, 126
        %v8040 = vpop.permute.xlu0 %8039
        %v8045 = vadd.f32 %v8019, %v8034
        %v8046 = vadd.f32 %v8020, %v8036
        %v8047 = vadd.f32 %v8021, %v8038
        %v8048 = vadd.f32 %v8022, %v8040
        %s8049 = sld [smem:[#allocation9 + $0x42]]
        %v8050 = vstv %s8049
        %v8051 = vmul.f32 %v6099, %v8050
        %v8052 = vmul.f32 %v6100, %v8050
        %v8053 = vmul.f32 %v6101, %v8050
        %v8054 = vmul.f32 %v6102, %v8050
        %v8055 = vmul.f32 %v6103, %v8050
        %v8061 = vrot.slane %v8051, 1
        %v8062 = vrot.slane %v8052, 1
        %v8063 = vsel %vm1305, %v8061, %v8062
        %v8064 = vrot.slane %v8053, 1
        %v8065 = vsel %vm1305, %v8062, %v8064
        %v8066 = vrot.slane %v8054, 1
        %v8067 = vsel %vm1305, %v8064, %v8066
        %v8068 = vrot.slane %v8055, 1
        %v8069 = vsel %vm1305, %v8066, %v8068
        %v8074 = vadd.f32 %v8045, %v8063
        %v8075 = vadd.f32 %v8046, %v8065
        %v8076 = vadd.f32 %v8047, %v8067
        %v8077 = vadd.f32 %v8048, %v8069
        %s8078 = sld [smem:[#allocation9 + $0x43]]
        %v8079 = vstv %s8078
        %v8080 = vmul.f32 %v6099, %v8079
        %v8081 = vmul.f32 %v6100, %v8079
        %v8082 = vmul.f32 %v6101, %v8079
        %v8083 = vmul.f32 %v6102, %v8079
        %v8084 = vmul.f32 %v6103, %v8079
        %v8090 = vrot.slane %v8080, 1
        %v8091 = vrot.slane %v8081, 1
        %v8092 = vsel %vm1305, %v8090, %v8091
        %v8093 = vrot.slane %v8082, 1
        %v8094 = vsel %vm1305, %v8091, %v8093
        %v8095 = vrot.slane %v8083, 1
        %v8096 = vsel %vm1305, %v8093, %v8095
        %v8097 = vrot.slane %v8084, 1
        %v8098 = vsel %vm1305, %v8095, %v8097
        %8099 = vrot.lane.b32.xlu0 %v8092, 127
        %v8100 = vpop.permute.xlu0 %8099
        %8101 = vrot.lane.b32.xlu0 %v8094, 127
        %v8102 = vpop.permute.xlu0 %8101
        %8103 = vrot.lane.b32.xlu0 %v8096, 127
        %v8104 = vpop.permute.xlu0 %8103
        %8105 = vrot.lane.b32.xlu0 %v8098, 127
        %v8106 = vpop.permute.xlu0 %8105
        %v8111 = vadd.f32 %v8074, %v8100
        %v8112 = vadd.f32 %v8075, %v8102
        %v8113 = vadd.f32 %v8076, %v8104
        %v8114 = vadd.f32 %v8077, %v8106
        %s8115 = sld [smem:[#allocation9 + $0x44]]
        %v8116 = vstv %s8115
        %v8117 = vmul.f32 %v6099, %v8116
        %v8118 = vmul.f32 %v6100, %v8116
        %v8119 = vmul.f32 %v6101, %v8116
        %v8120 = vmul.f32 %v6102, %v8116
        %v8121 = vmul.f32 %v6103, %v8116
        %v8127 = vrot.slane %v8117, 1
        %v8128 = vrot.slane %v8118, 1
        %v8129 = vsel %vm1305, %v8127, %v8128
        %v8130 = vrot.slane %v8119, 1
        %v8131 = vsel %vm1305, %v8128, %v8130
        %v8132 = vrot.slane %v8120, 1
        %v8133 = vsel %vm1305, %v8130, %v8132
        %v8134 = vrot.slane %v8121, 1
        %v8135 = vsel %vm1305, %v8132, %v8134
        %8136 = vrot.lane.b32.xlu0 %v8129, 126
        %v8137 = vpop.permute.xlu0 %8136
        %8138 = vrot.lane.b32.xlu0 %v8131, 126
        %v8139 = vpop.permute.xlu0 %8138
        %8140 = vrot.lane.b32.xlu0 %v8133, 126
        %v8141 = vpop.permute.xlu0 %8140
        %8142 = vrot.lane.b32.xlu0 %v8135, 126
        %v8143 = vpop.permute.xlu0 %8142
        %v8148 = vadd.f32 %v8111, %v8137
        %v8149 = vadd.f32 %v8112, %v8139
        %v8150 = vadd.f32 %v8113, %v8141
        %v8151 = vadd.f32 %v8114, %v8143
        %s8152 = sld [smem:[#allocation9 + $0x45]]
        %v8153 = vstv %s8152
        %v8154 = vmul.f32 %v6099, %v8153
        %v8155 = vmul.f32 %v6100, %v8153
        %v8156 = vmul.f32 %v6101, %v8153
        %v8157 = vmul.f32 %v6102, %v8153
        %v8158 = vmul.f32 %v6103, %v8153
        %v8164 = vrot.slane %v8154, 2
        %v8165 = vrot.slane %v8155, 2
        %v8166 = vsel %vm1419, %v8164, %v8165
        %v8167 = vrot.slane %v8156, 2
        %v8168 = vsel %vm1419, %v8165, %v8167
        %v8169 = vrot.slane %v8157, 2
        %v8170 = vsel %vm1419, %v8167, %v8169
        %v8171 = vrot.slane %v8158, 2
        %v8172 = vsel %vm1419, %v8169, %v8171
        %v8177 = vadd.f32 %v8148, %v8166
        %v8178 = vadd.f32 %v8149, %v8168
        %v8179 = vadd.f32 %v8150, %v8170
        %v8180 = vadd.f32 %v8151, %v8172
        %s8181 = sld [smem:[#allocation9 + $0x46]]
        %v8182 = vstv %s8181
        %v8183 = vmul.f32 %v6099, %v8182
        %v8184 = vmul.f32 %v6100, %v8182
        %v8185 = vmul.f32 %v6101, %v8182
        %v8186 = vmul.f32 %v6102, %v8182
        %v8187 = vmul.f32 %v6103, %v8182
        %v8193 = vrot.slane %v8183, 2
        %v8194 = vrot.slane %v8184, 2
        %v8195 = vsel %vm1419, %v8193, %v8194
        %v8196 = vrot.slane %v8185, 2
        %v8197 = vsel %vm1419, %v8194, %v8196
        %v8198 = vrot.slane %v8186, 2
        %v8199 = vsel %vm1419, %v8196, %v8198
        %v8200 = vrot.slane %v8187, 2
        %v8201 = vsel %vm1419, %v8198, %v8200
        %8202 = vrot.lane.b32.xlu0 %v8195, 127
        %v8203 = vpop.permute.xlu0 %8202
        %8204 = vrot.lane.b32.xlu0 %v8197, 127
        %v8205 = vpop.permute.xlu0 %8204
        %8206 = vrot.lane.b32.xlu0 %v8199, 127
        %v8207 = vpop.permute.xlu0 %8206
        %8208 = vrot.lane.b32.xlu0 %v8201, 127
        %v8209 = vpop.permute.xlu0 %8208
        %v8214 = vadd.f32 %v8177, %v8203
        %v8215 = vadd.f32 %v8178, %v8205
        %v8216 = vadd.f32 %v8179, %v8207
        %v8217 = vadd.f32 %v8180, %v8209
        %s8218 = sld [smem:[#allocation9 + $0x47]]
        %v8219 = vstv %s8218
        %v8220 = vmul.f32 %v6099, %v8219
        %v8221 = vmul.f32 %v6100, %v8219
        %v8222 = vmul.f32 %v6101, %v8219
        %v8223 = vmul.f32 %v6102, %v8219
        %v8224 = vmul.f32 %v6103, %v8219
        %v8230 = vrot.slane %v8220, 2
        %v8231 = vrot.slane %v8221, 2
        %v8232 = vsel %vm1419, %v8230, %v8231
        %v8233 = vrot.slane %v8222, 2
        %v8234 = vsel %vm1419, %v8231, %v8233
        %v8235 = vrot.slane %v8223, 2
        %v8236 = vsel %vm1419, %v8233, %v8235
        %v8237 = vrot.slane %v8224, 2
        %v8238 = vsel %vm1419, %v8235, %v8237
        %8239 = vrot.lane.b32.xlu0 %v8232, 126
        %v8240 = vpop.permute.xlu0 %8239
        %8241 = vrot.lane.b32.xlu0 %v8234, 126
        %v8242 = vpop.permute.xlu0 %8241
        %8243 = vrot.lane.b32.xlu0 %v8236, 126
        %v8244 = vpop.permute.xlu0 %8243
        %8245 = vrot.lane.b32.xlu0 %v8238, 126
        %v8246 = vpop.permute.xlu0 %8245
        %v8251 = vadd.f32 %v8214, %v8240
        %v8252 = vadd.f32 %v8215, %v8242
        %v8253 = vadd.f32 %v8216, %v8244
        %v8254 = vadd.f32 %v8217, %v8246
        %s8255 = sld [smem:[#allocation10 + $0x1]]
        %v8256 = vstv %s8255
        %v8257 = vadd.f32 %v8251, %v8256
        %v8258 = vadd.f32 %v8252, %v8256
        %v8259 = vadd.f32 %v8253, %v8256
        %v8260 = vadd.f32 %v8254, %v8256
        %v8261 = vmax.f32 %v8257, 0.0
        %v8262 = vmax.f32 %v8258, 0.0
        %v8263 = vmax.f32 %v8259, 0.0
        %v8264 = vmax.f32 %v8260, 0.0
        %s8265 = scalar_lea.vmem %s362, 32 [#allocation12]
        %8266 = vst.msk [vmem:[%s8265] sm:$0xff] %vm7182, %v8261
        %8267 = vst.msk [vmem:[%s8265 + $0x8] sm:$0xff] %vm7182, %v8262
        %8268 = vst.msk [vmem:[%s8265 + $0x10] sm:$0xff] %vm7182, %v8263
        %8269 = vst.msk [vmem:[%s8265 + $0x18] sm:$0xff] %vm7182, %v8264
        %s8270 = sld [smem:[#allocation9 + $0x48]]
        %v8271 = vstv %s8270
        %v8272 = vmul.f32 %v2439, %v8271
        %v8273 = vmul.f32 %v2440, %v8271
        %v8274 = vmul.f32 %v2441, %v8271
        %v8275 = vmul.f32 %v2442, %v8271
        %s8276 = sld [smem:[#allocation9 + $0x49]]
        %v8277 = vstv %s8276
        %v8278 = vmul.f32 %v2439, %v8277
        %v8279 = vmul.f32 %v2440, %v8277
        %v8280 = vmul.f32 %v2441, %v8277
        %v8281 = vmul.f32 %v2442, %v8277
        %8286 = vrot.lane.b32.xlu0 %v8278, 127
        %v8287 = vpop.permute.xlu0 %8286
        %8288 = vrot.lane.b32.xlu0 %v8279, 127
        %v8289 = vpop.permute.xlu0 %8288
        %8290 = vrot.lane.b32.xlu0 %v8280, 127
        %v8291 = vpop.permute.xlu0 %8290
        %8292 = vrot.lane.b32.xlu0 %v8281, 127
        %v8293 = vpop.permute.xlu0 %8292
        %v8298 = vadd.f32 %v8272, %v8287
        %v8299 = vadd.f32 %v8273, %v8289
        %v8300 = vadd.f32 %v8274, %v8291
        %v8301 = vadd.f32 %v8275, %v8293
        %s8302 = sld [smem:[#allocation9 + $0x4a]]
        %v8303 = vstv %s8302
        %v8304 = vmul.f32 %v2439, %v8303
        %v8305 = vmul.f32 %v2440, %v8303
        %v8306 = vmul.f32 %v2441, %v8303
        %v8307 = vmul.f32 %v2442, %v8303
        %8312 = vrot.lane.b32.xlu0 %v8304, 126
        %v8313 = vpop.permute.xlu0 %8312
        %8314 = vrot.lane.b32.xlu0 %v8305, 126
        %v8315 = vpop.permute.xlu0 %8314
        %8316 = vrot.lane.b32.xlu0 %v8306, 126
        %v8317 = vpop.permute.xlu0 %8316
        %8318 = vrot.lane.b32.xlu0 %v8307, 126
        %v8319 = vpop.permute.xlu0 %8318
        %v8324 = vadd.f32 %v8298, %v8313
        %v8325 = vadd.f32 %v8299, %v8315
        %v8326 = vadd.f32 %v8300, %v8317
        %v8327 = vadd.f32 %v8301, %v8319
        %s8328 = sld [smem:[#allocation9 + $0x4b]]
        %v8329 = vstv %s8328
        %v8330 = vmul.f32 %v2439, %v8329
        %v8331 = vmul.f32 %v2440, %v8329
        %v8332 = vmul.f32 %v2441, %v8329
        %v8333 = vmul.f32 %v2442, %v8329
        %v8334 = vmul.f32 %v2443, %v8329
        %v8340 = vrot.slane %v8330, 1
        %v8341 = vrot.slane %v8331, 1
        %v8342 = vsel %vm1305, %v8340, %v8341
        %v8343 = vrot.slane %v8332, 1
        %v8344 = vsel %vm1305, %v8341, %v8343
        %v8345 = vrot.slane %v8333, 1
        %v8346 = vsel %vm1305, %v8343, %v8345
        %v8347 = vrot.slane %v8334, 1
        %v8348 = vsel %vm1305, %v8345, %v8347
        %v8353 = vadd.f32 %v8324, %v8342
        %v8354 = vadd.f32 %v8325, %v8344
        %v8355 = vadd.f32 %v8326, %v8346
        %v8356 = vadd.f32 %v8327, %v8348
        %s8357 = sld [smem:[#allocation9 + $0x4c]]
        %v8358 = vstv %s8357
        %v8359 = vmul.f32 %v2439, %v8358
        %v8360 = vmul.f32 %v2440, %v8358
        %v8361 = vmul.f32 %v2441, %v8358
        %v8362 = vmul.f32 %v2442, %v8358
        %v8363 = vmul.f32 %v2443, %v8358
        %v8369 = vrot.slane %v8359, 1
        %v8370 = vrot.slane %v8360, 1
        %v8371 = vsel %vm1305, %v8369, %v8370
        %v8372 = vrot.slane %v8361, 1
        %v8373 = vsel %vm1305, %v8370, %v8372
        %v8374 = vrot.slane %v8362, 1
        %v8375 = vsel %vm1305, %v8372, %v8374
        %v8376 = vrot.slane %v8363, 1
        %v8377 = vsel %vm1305, %v8374, %v8376
        %8378 = vrot.lane.b32.xlu0 %v8371, 127
        %v8379 = vpop.permute.xlu0 %8378
        %8380 = vrot.lane.b32.xlu0 %v8373, 127
        %v8381 = vpop.permute.xlu0 %8380
        %8382 = vrot.lane.b32.xlu0 %v8375, 127
        %v8383 = vpop.permute.xlu0 %8382
        %8384 = vrot.lane.b32.xlu0 %v8377, 127
        %v8385 = vpop.permute.xlu0 %8384
        %v8390 = vadd.f32 %v8353, %v8379
        %v8391 = vadd.f32 %v8354, %v8381
        %v8392 = vadd.f32 %v8355, %v8383
        %v8393 = vadd.f32 %v8356, %v8385
        %s8394 = sld [smem:[#allocation9 + $0x4d]]
        %v8395 = vstv %s8394
        %v8396 = vmul.f32 %v2439, %v8395
        %v8397 = vmul.f32 %v2440, %v8395
        %v8398 = vmul.f32 %v2441, %v8395
        %v8399 = vmul.f32 %v2442, %v8395
        %v8400 = vmul.f32 %v2443, %v8395
        %v8406 = vrot.slane %v8396, 1
        %v8407 = vrot.slane %v8397, 1
        %v8408 = vsel %vm1305, %v8406, %v8407
        %v8409 = vrot.slane %v8398, 1
        %v8410 = vsel %vm1305, %v8407, %v8409
        %v8411 = vrot.slane %v8399, 1
        %v8412 = vsel %vm1305, %v8409, %v8411
        %v8413 = vrot.slane %v8400, 1
        %v8414 = vsel %vm1305, %v8411, %v8413
        %8415 = vrot.lane.b32.xlu0 %v8408, 126
        %v8416 = vpop.permute.xlu0 %8415
        %8417 = vrot.lane.b32.xlu0 %v8410, 126
        %v8418 = vpop.permute.xlu0 %8417
        %8419 = vrot.lane.b32.xlu0 %v8412, 126
        %v8420 = vpop.permute.xlu0 %8419
        %8421 = vrot.lane.b32.xlu0 %v8414, 126
        %v8422 = vpop.permute.xlu0 %8421
        %v8427 = vadd.f32 %v8390, %v8416
        %v8428 = vadd.f32 %v8391, %v8418
        %v8429 = vadd.f32 %v8392, %v8420
        %v8430 = vadd.f32 %v8393, %v8422
        %s8431 = sld [smem:[#allocation9 + $0x4e]]
        %v8432 = vstv %s8431
        %v8433 = vmul.f32 %v2439, %v8432
        %v8434 = vmul.f32 %v2440, %v8432
        %v8435 = vmul.f32 %v2441, %v8432
        %v8436 = vmul.f32 %v2442, %v8432
        %v8437 = vmul.f32 %v2443, %v8432
        %v8443 = vrot.slane %v8433, 2
        %v8444 = vrot.slane %v8434, 2
        %v8445 = vsel %vm1419, %v8443, %v8444
        %v8446 = vrot.slane %v8435, 2
        %v8447 = vsel %vm1419, %v8444, %v8446
        %v8448 = vrot.slane %v8436, 2
        %v8449 = vsel %vm1419, %v8446, %v8448
        %v8450 = vrot.slane %v8437, 2
        %v8451 = vsel %vm1419, %v8448, %v8450
        %v8456 = vadd.f32 %v8427, %v8445
        %v8457 = vadd.f32 %v8428, %v8447
        %v8458 = vadd.f32 %v8429, %v8449
        %v8459 = vadd.f32 %v8430, %v8451
        %s8460 = sld [smem:[#allocation9 + $0x4f]]
        %v8461 = vstv %s8460
        %v8462 = vmul.f32 %v2439, %v8461
        %v8463 = vmul.f32 %v2440, %v8461
        %v8464 = vmul.f32 %v2441, %v8461
        %v8465 = vmul.f32 %v2442, %v8461
        %v8466 = vmul.f32 %v2443, %v8461
        %v8472 = vrot.slane %v8462, 2
        %v8473 = vrot.slane %v8463, 2
        %v8474 = vsel %vm1419, %v8472, %v8473
        %v8475 = vrot.slane %v8464, 2
        %v8476 = vsel %vm1419, %v8473, %v8475
        %v8477 = vrot.slane %v8465, 2
        %v8478 = vsel %vm1419, %v8475, %v8477
        %v8479 = vrot.slane %v8466, 2
        %v8480 = vsel %vm1419, %v8477, %v8479
        %8481 = vrot.lane.b32.xlu0 %v8474, 127
        %v8482 = vpop.permute.xlu0 %8481
        %8483 = vrot.lane.b32.xlu0 %v8476, 127
        %v8484 = vpop.permute.xlu0 %8483
        %8485 = vrot.lane.b32.xlu0 %v8478, 127
        %v8486 = vpop.permute.xlu0 %8485
        %8487 = vrot.lane.b32.xlu0 %v8480, 127
        %v8488 = vpop.permute.xlu0 %8487
        %v8493 = vadd.f32 %v8456, %v8482
        %v8494 = vadd.f32 %v8457, %v8484
        %v8495 = vadd.f32 %v8458, %v8486
        %v8496 = vadd.f32 %v8459, %v8488
        %s8497 = sld [smem:[#allocation9 + $0x50]]
        %v8498 = vstv %s8497
        %v8499 = vmul.f32 %v2439, %v8498
        %v8500 = vmul.f32 %v2440, %v8498
        %v8501 = vmul.f32 %v2441, %v8498
        %v8502 = vmul.f32 %v2442, %v8498
        %v8503 = vmul.f32 %v2443, %v8498
        %v8509 = vrot.slane %v8499, 2
        %v8510 = vrot.slane %v8500, 2
        %v8511 = vsel %vm1419, %v8509, %v8510
        %v8512 = vrot.slane %v8501, 2
        %v8513 = vsel %vm1419, %v8510, %v8512
        %v8514 = vrot.slane %v8502, 2
        %v8515 = vsel %vm1419, %v8512, %v8514
        %v8516 = vrot.slane %v8503, 2
        %v8517 = vsel %vm1419, %v8514, %v8516
        %8518 = vrot.lane.b32.xlu0 %v8511, 126
        %v8519 = vpop.permute.xlu0 %8518
        %8520 = vrot.lane.b32.xlu0 %v8513, 126
        %v8521 = vpop.permute.xlu0 %8520
        %8522 = vrot.lane.b32.xlu0 %v8515, 126
        %v8523 = vpop.permute.xlu0 %8522
        %8524 = vrot.lane.b32.xlu0 %v8517, 126
        %v8525 = vpop.permute.xlu0 %8524
        %v8530 = vadd.f32 %v8493, %v8519
        %v8531 = vadd.f32 %v8494, %v8521
        %v8532 = vadd.f32 %v8495, %v8523
        %v8533 = vadd.f32 %v8496, %v8525
        %s8534 = sld [smem:[#allocation9 + $0x51]]
        %v8535 = vstv %s8534
        %v8536 = vmul.f32 %v3659, %v8535
        %v8537 = vmul.f32 %v3660, %v8535
        %v8538 = vmul.f32 %v3661, %v8535
        %v8539 = vmul.f32 %v3662, %v8535
        %v8540 = vadd.f32 %v8530, %v8536
        %v8541 = vadd.f32 %v8531, %v8537
        %v8542 = vadd.f32 %v8532, %v8538
        %v8543 = vadd.f32 %v8533, %v8539
        %s8544 = sld [smem:[#allocation9 + $0x52]]
        %v8545 = vstv %s8544
        %v8546 = vmul.f32 %v3659, %v8545
        %v8547 = vmul.f32 %v3660, %v8545
        %v8548 = vmul.f32 %v3661, %v8545
        %v8549 = vmul.f32 %v3662, %v8545
        %8554 = vrot.lane.b32.xlu0 %v8546, 127
        %v8555 = vpop.permute.xlu0 %8554
        %8556 = vrot.lane.b32.xlu0 %v8547, 127
        %v8557 = vpop.permute.xlu0 %8556
        %8558 = vrot.lane.b32.xlu0 %v8548, 127
        %v8559 = vpop.permute.xlu0 %8558
        %8560 = vrot.lane.b32.xlu0 %v8549, 127
        %v8561 = vpop.permute.xlu0 %8560
        %v8566 = vadd.f32 %v8540, %v8555
        %v8567 = vadd.f32 %v8541, %v8557
        %v8568 = vadd.f32 %v8542, %v8559
        %v8569 = vadd.f32 %v8543, %v8561
        %s8570 = sld [smem:[#allocation9 + $0x53]]
        %v8571 = vstv %s8570
        %v8572 = vmul.f32 %v3659, %v8571
        %v8573 = vmul.f32 %v3660, %v8571
        %v8574 = vmul.f32 %v3661, %v8571
        %v8575 = vmul.f32 %v3662, %v8571
        %8580 = vrot.lane.b32.xlu0 %v8572, 126
        %v8581 = vpop.permute.xlu0 %8580
        %8582 = vrot.lane.b32.xlu0 %v8573, 126
        %v8583 = vpop.permute.xlu0 %8582
        %8584 = vrot.lane.b32.xlu0 %v8574, 126
        %v8585 = vpop.permute.xlu0 %8584
        %8586 = vrot.lane.b32.xlu0 %v8575, 126
        %v8587 = vpop.permute.xlu0 %8586
        %v8592 = vadd.f32 %v8566, %v8581
        %v8593 = vadd.f32 %v8567, %v8583
        %v8594 = vadd.f32 %v8568, %v8585
        %v8595 = vadd.f32 %v8569, %v8587
        %s8596 = sld [smem:[#allocation9 + $0x54]]
        %v8597 = vstv %s8596
        %v8598 = vmul.f32 %v3659, %v8597
        %v8599 = vmul.f32 %v3660, %v8597
        %v8600 = vmul.f32 %v3661, %v8597
        %v8601 = vmul.f32 %v3662, %v8597
        %v8602 = vmul.f32 %v3663, %v8597
        %v8608 = vrot.slane %v8598, 1
        %v8609 = vrot.slane %v8599, 1
        %v8610 = vsel %vm1305, %v8608, %v8609
        %v8611 = vrot.slane %v8600, 1
        %v8612 = vsel %vm1305, %v8609, %v8611
        %v8613 = vrot.slane %v8601, 1
        %v8614 = vsel %vm1305, %v8611, %v8613
        %v8615 = vrot.slane %v8602, 1
        %v8616 = vsel %vm1305, %v8613, %v8615
        %v8621 = vadd.f32 %v8592, %v8610
        %v8622 = vadd.f32 %v8593, %v8612
        %v8623 = vadd.f32 %v8594, %v8614
        %v8624 = vadd.f32 %v8595, %v8616
        %s8625 = sld [smem:[#allocation9 + $0x55]]
        %v8626 = vstv %s8625
        %v8627 = vmul.f32 %v3659, %v8626
        %v8628 = vmul.f32 %v3660, %v8626
        %v8629 = vmul.f32 %v3661, %v8626
        %v8630 = vmul.f32 %v3662, %v8626
        %v8631 = vmul.f32 %v3663, %v8626
        %v8637 = vrot.slane %v8627, 1
        %v8638 = vrot.slane %v8628, 1
        %v8639 = vsel %vm1305, %v8637, %v8638
        %v8640 = vrot.slane %v8629, 1
        %v8641 = vsel %vm1305, %v8638, %v8640
        %v8642 = vrot.slane %v8630, 1
        %v8643 = vsel %vm1305, %v8640, %v8642
        %v8644 = vrot.slane %v8631, 1
        %v8645 = vsel %vm1305, %v8642, %v8644
        %8646 = vrot.lane.b32.xlu0 %v8639, 127
        %v8647 = vpop.permute.xlu0 %8646
        %8648 = vrot.lane.b32.xlu0 %v8641, 127
        %v8649 = vpop.permute.xlu0 %8648
        %8650 = vrot.lane.b32.xlu0 %v8643, 127
        %v8651 = vpop.permute.xlu0 %8650
        %8652 = vrot.lane.b32.xlu0 %v8645, 127
        %v8653 = vpop.permute.xlu0 %8652
        %v8658 = vadd.f32 %v8621, %v8647
        %v8659 = vadd.f32 %v8622, %v8649
        %v8660 = vadd.f32 %v8623, %v8651
        %v8661 = vadd.f32 %v8624, %v8653
        %s8662 = sld [smem:[#allocation9 + $0x56]]
        %v8663 = vstv %s8662
        %v8664 = vmul.f32 %v3659, %v8663
        %v8665 = vmul.f32 %v3660, %v8663
        %v8666 = vmul.f32 %v3661, %v8663
        %v8667 = vmul.f32 %v3662, %v8663
        %v8668 = vmul.f32 %v3663, %v8663
        %v8674 = vrot.slane %v8664, 1
        %v8675 = vrot.slane %v8665, 1
        %v8676 = vsel %vm1305, %v8674, %v8675
        %v8677 = vrot.slane %v8666, 1
        %v8678 = vsel %vm1305, %v8675, %v8677
        %v8679 = vrot.slane %v8667, 1
        %v8680 = vsel %vm1305, %v8677, %v8679
        %v8681 = vrot.slane %v8668, 1
        %v8682 = vsel %vm1305, %v8679, %v8681
        %8683 = vrot.lane.b32.xlu0 %v8676, 126
        %v8684 = vpop.permute.xlu0 %8683
        %8685 = vrot.lane.b32.xlu0 %v8678, 126
        %v8686 = vpop.permute.xlu0 %8685
        %8687 = vrot.lane.b32.xlu0 %v8680, 126
        %v8688 = vpop.permute.xlu0 %8687
        %8689 = vrot.lane.b32.xlu0 %v8682, 126
        %v8690 = vpop.permute.xlu0 %8689
        %v8695 = vadd.f32 %v8658, %v8684
        %v8696 = vadd.f32 %v8659, %v8686
        %v8697 = vadd.f32 %v8660, %v8688
        %v8698 = vadd.f32 %v8661, %v8690
        %s8699 = sld [smem:[#allocation9 + $0x57]]
        %v8700 = vstv %s8699
        %v8701 = vmul.f32 %v3659, %v8700
        %v8702 = vmul.f32 %v3660, %v8700
        %v8703 = vmul.f32 %v3661, %v8700
        %v8704 = vmul.f32 %v3662, %v8700
        %v8705 = vmul.f32 %v3663, %v8700
        %v8711 = vrot.slane %v8701, 2
        %v8712 = vrot.slane %v8702, 2
        %v8713 = vsel %vm1419, %v8711, %v8712
        %v8714 = vrot.slane %v8703, 2
        %v8715 = vsel %vm1419, %v8712, %v8714
        %v8716 = vrot.slane %v8704, 2
        %v8717 = vsel %vm1419, %v8714, %v8716
        %v8718 = vrot.slane %v8705, 2
        %v8719 = vsel %vm1419, %v8716, %v8718
        %v8724 = vadd.f32 %v8695, %v8713
        %v8725 = vadd.f32 %v8696, %v8715
        %v8726 = vadd.f32 %v8697, %v8717
        %v8727 = vadd.f32 %v8698, %v8719
        %s8728 = sld [smem:[#allocation9 + $0x58]]
        %v8729 = vstv %s8728
        %v8730 = vmul.f32 %v3659, %v8729
        %v8731 = vmul.f32 %v3660, %v8729
        %v8732 = vmul.f32 %v3661, %v8729
        %v8733 = vmul.f32 %v3662, %v8729
        %v8734 = vmul.f32 %v3663, %v8729
        %v8740 = vrot.slane %v8730, 2
        %v8741 = vrot.slane %v8731, 2
        %v8742 = vsel %vm1419, %v8740, %v8741
        %v8743 = vrot.slane %v8732, 2
        %v8744 = vsel %vm1419, %v8741, %v8743
        %v8745 = vrot.slane %v8733, 2
        %v8746 = vsel %vm1419, %v8743, %v8745
        %v8747 = vrot.slane %v8734, 2
        %v8748 = vsel %vm1419, %v8745, %v8747
        %8749 = vrot.lane.b32.xlu0 %v8742, 127
        %v8750 = vpop.permute.xlu0 %8749
        %8751 = vrot.lane.b32.xlu0 %v8744, 127
        %v8752 = vpop.permute.xlu0 %8751
        %8753 = vrot.lane.b32.xlu0 %v8746, 127
        %v8754 = vpop.permute.xlu0 %8753
        %8755 = vrot.lane.b32.xlu0 %v8748, 127
        %v8756 = vpop.permute.xlu0 %8755
        %v8761 = vadd.f32 %v8724, %v8750
        %v8762 = vadd.f32 %v8725, %v8752
        %v8763 = vadd.f32 %v8726, %v8754
        %v8764 = vadd.f32 %v8727, %v8756
        %s8765 = sld [smem:[#allocation9 + $0x59]]
        %v8766 = vstv %s8765
        %v8767 = vmul.f32 %v3659, %v8766
        %v8768 = vmul.f32 %v3660, %v8766
        %v8769 = vmul.f32 %v3661, %v8766
        %v8770 = vmul.f32 %v3662, %v8766
        %v8771 = vmul.f32 %v3663, %v8766
        %v8777 = vrot.slane %v8767, 2
        %v8778 = vrot.slane %v8768, 2
        %v8779 = vsel %vm1419, %v8777, %v8778
        %v8780 = vrot.slane %v8769, 2
        %v8781 = vsel %vm1419, %v8778, %v8780
        %v8782 = vrot.slane %v8770, 2
        %v8783 = vsel %vm1419, %v8780, %v8782
        %v8784 = vrot.slane %v8771, 2
        %v8785 = vsel %vm1419, %v8782, %v8784
        %8786 = vrot.lane.b32.xlu0 %v8779, 126
        %v8787 = vpop.permute.xlu0 %8786
        %8788 = vrot.lane.b32.xlu0 %v8781, 126
        %v8789 = vpop.permute.xlu0 %8788
        %8790 = vrot.lane.b32.xlu0 %v8783, 126
        %v8791 = vpop.permute.xlu0 %8790
        %8792 = vrot.lane.b32.xlu0 %v8785, 126
        %v8793 = vpop.permute.xlu0 %8792
        %v8798 = vadd.f32 %v8761, %v8787
        %v8799 = vadd.f32 %v8762, %v8789
        %v8800 = vadd.f32 %v8763, %v8791
        %v8801 = vadd.f32 %v8764, %v8793
        %s8802 = sld [smem:[#allocation9 + $0x5a]]
        %v8803 = vstv %s8802
        %v8804 = vmul.f32 %v4879, %v8803
        %v8805 = vmul.f32 %v4880, %v8803
        %v8806 = vmul.f32 %v4881, %v8803
        %v8807 = vmul.f32 %v4882, %v8803
        %v8808 = vadd.f32 %v8798, %v8804
        %v8809 = vadd.f32 %v8799, %v8805
        %v8810 = vadd.f32 %v8800, %v8806
        %v8811 = vadd.f32 %v8801, %v8807
        %s8812 = sld [smem:[#allocation9 + $0x5b]]
        %v8813 = vstv %s8812
        %v8814 = vmul.f32 %v4879, %v8813
        %v8815 = vmul.f32 %v4880, %v8813
        %v8816 = vmul.f32 %v4881, %v8813
        %v8817 = vmul.f32 %v4882, %v8813
        %8822 = vrot.lane.b32.xlu0 %v8814, 127
        %v8823 = vpop.permute.xlu0 %8822
        %8824 = vrot.lane.b32.xlu0 %v8815, 127
        %v8825 = vpop.permute.xlu0 %8824
        %8826 = vrot.lane.b32.xlu0 %v8816, 127
        %v8827 = vpop.permute.xlu0 %8826
        %8828 = vrot.lane.b32.xlu0 %v8817, 127
        %v8829 = vpop.permute.xlu0 %8828
        %v8834 = vadd.f32 %v8808, %v8823
        %v8835 = vadd.f32 %v8809, %v8825
        %v8836 = vadd.f32 %v8810, %v8827
        %v8837 = vadd.f32 %v8811, %v8829
        %s8838 = sld [smem:[#allocation9 + $0x5c]]
        %v8839 = vstv %s8838
        %v8840 = vmul.f32 %v4879, %v8839
        %v8841 = vmul.f32 %v4880, %v8839
        %v8842 = vmul.f32 %v4881, %v8839
        %v8843 = vmul.f32 %v4882, %v8839
        %8848 = vrot.lane.b32.xlu0 %v8840, 126
        %v8849 = vpop.permute.xlu0 %8848
        %8850 = vrot.lane.b32.xlu0 %v8841, 126
        %v8851 = vpop.permute.xlu0 %8850
        %8852 = vrot.lane.b32.xlu0 %v8842, 126
        %v8853 = vpop.permute.xlu0 %8852
        %8854 = vrot.lane.b32.xlu0 %v8843, 126
        %v8855 = vpop.permute.xlu0 %8854
        %v8860 = vadd.f32 %v8834, %v8849
        %v8861 = vadd.f32 %v8835, %v8851
        %v8862 = vadd.f32 %v8836, %v8853
        %v8863 = vadd.f32 %v8837, %v8855
        %s8864 = sld [smem:[#allocation9 + $0x5d]]
        %v8865 = vstv %s8864
        %v8866 = vmul.f32 %v4879, %v8865
        %v8867 = vmul.f32 %v4880, %v8865
        %v8868 = vmul.f32 %v4881, %v8865
        %v8869 = vmul.f32 %v4882, %v8865
        %v8870 = vmul.f32 %v4883, %v8865
        %v8876 = vrot.slane %v8866, 1
        %v8877 = vrot.slane %v8867, 1
        %v8878 = vsel %vm1305, %v8876, %v8877
        %v8879 = vrot.slane %v8868, 1
        %v8880 = vsel %vm1305, %v8877, %v8879
        %v8881 = vrot.slane %v8869, 1
        %v8882 = vsel %vm1305, %v8879, %v8881
        %v8883 = vrot.slane %v8870, 1
        %v8884 = vsel %vm1305, %v8881, %v8883
        %v8889 = vadd.f32 %v8860, %v8878
        %v8890 = vadd.f32 %v8861, %v8880
        %v8891 = vadd.f32 %v8862, %v8882
        %v8892 = vadd.f32 %v8863, %v8884
        %s8893 = sld [smem:[#allocation9 + $0x5e]]
        %v8894 = vstv %s8893
        %v8895 = vmul.f32 %v4879, %v8894
        %v8896 = vmul.f32 %v4880, %v8894
        %v8897 = vmul.f32 %v4881, %v8894
        %v8898 = vmul.f32 %v4882, %v8894
        %v8899 = vmul.f32 %v4883, %v8894
        %v8905 = vrot.slane %v8895, 1
        %v8906 = vrot.slane %v8896, 1
        %v8907 = vsel %vm1305, %v8905, %v8906
        %v8908 = vrot.slane %v8897, 1
        %v8909 = vsel %vm1305, %v8906, %v8908
        %v8910 = vrot.slane %v8898, 1
        %v8911 = vsel %vm1305, %v8908, %v8910
        %v8912 = vrot.slane %v8899, 1
        %v8913 = vsel %vm1305, %v8910, %v8912
        %8914 = vrot.lane.b32.xlu0 %v8907, 127
        %v8915 = vpop.permute.xlu0 %8914
        %8916 = vrot.lane.b32.xlu0 %v8909, 127
        %v8917 = vpop.permute.xlu0 %8916
        %8918 = vrot.lane.b32.xlu0 %v8911, 127
        %v8919 = vpop.permute.xlu0 %8918
        %8920 = vrot.lane.b32.xlu0 %v8913, 127
        %v8921 = vpop.permute.xlu0 %8920
        %v8926 = vadd.f32 %v8889, %v8915
        %v8927 = vadd.f32 %v8890, %v8917
        %v8928 = vadd.f32 %v8891, %v8919
        %v8929 = vadd.f32 %v8892, %v8921
        %s8930 = sld [smem:[#allocation9 + $0x5f]]
        %v8931 = vstv %s8930
        %v8932 = vmul.f32 %v4879, %v8931
        %v8933 = vmul.f32 %v4880, %v8931
        %v8934 = vmul.f32 %v4881, %v8931
        %v8935 = vmul.f32 %v4882, %v8931
        %v8936 = vmul.f32 %v4883, %v8931
        %v8942 = vrot.slane %v8932, 1
        %v8943 = vrot.slane %v8933, 1
        %v8944 = vsel %vm1305, %v8942, %v8943
        %v8945 = vrot.slane %v8934, 1
        %v8946 = vsel %vm1305, %v8943, %v8945
        %v8947 = vrot.slane %v8935, 1
        %v8948 = vsel %vm1305, %v8945, %v8947
        %v8949 = vrot.slane %v8936, 1
        %v8950 = vsel %vm1305, %v8947, %v8949
        %8951 = vrot.lane.b32.xlu0 %v8944, 126
        %v8952 = vpop.permute.xlu0 %8951
        %8953 = vrot.lane.b32.xlu0 %v8946, 126
        %v8954 = vpop.permute.xlu0 %8953
        %8955 = vrot.lane.b32.xlu0 %v8948, 126
        %v8956 = vpop.permute.xlu0 %8955
        %8957 = vrot.lane.b32.xlu0 %v8950, 126
        %v8958 = vpop.permute.xlu0 %8957
        %v8963 = vadd.f32 %v8926, %v8952
        %v8964 = vadd.f32 %v8927, %v8954
        %v8965 = vadd.f32 %v8928, %v8956
        %v8966 = vadd.f32 %v8929, %v8958
        %s8967 = sld [smem:[#allocation9 + $0x60]]
        %v8968 = vstv %s8967
        %v8969 = vmul.f32 %v4879, %v8968
        %v8970 = vmul.f32 %v4880, %v8968
        %v8971 = vmul.f32 %v4881, %v8968
        %v8972 = vmul.f32 %v4882, %v8968
        %v8973 = vmul.f32 %v4883, %v8968
        %v8979 = vrot.slane %v8969, 2
        %v8980 = vrot.slane %v8970, 2
        %v8981 = vsel %vm1419, %v8979, %v8980
        %v8982 = vrot.slane %v8971, 2
        %v8983 = vsel %vm1419, %v8980, %v8982
        %v8984 = vrot.slane %v8972, 2
        %v8985 = vsel %vm1419, %v8982, %v8984
        %v8986 = vrot.slane %v8973, 2
        %v8987 = vsel %vm1419, %v8984, %v8986
        %v8992 = vadd.f32 %v8963, %v8981
        %v8993 = vadd.f32 %v8964, %v8983
        %v8994 = vadd.f32 %v8965, %v8985
        %v8995 = vadd.f32 %v8966, %v8987
        %s8996 = sld [smem:[#allocation9 + $0x61]]
        %v8997 = vstv %s8996
        %v8998 = vmul.f32 %v4879, %v8997
        %v8999 = vmul.f32 %v4880, %v8997
        %v9000 = vmul.f32 %v4881, %v8997
        %v9001 = vmul.f32 %v4882, %v8997
        %v9002 = vmul.f32 %v4883, %v8997
        %v9008 = vrot.slane %v8998, 2
        %v9009 = vrot.slane %v8999, 2
        %v9010 = vsel %vm1419, %v9008, %v9009
        %v9011 = vrot.slane %v9000, 2
        %v9012 = vsel %vm1419, %v9009, %v9011
        %v9013 = vrot.slane %v9001, 2
        %v9014 = vsel %vm1419, %v9011, %v9013
        %v9015 = vrot.slane %v9002, 2
        %v9016 = vsel %vm1419, %v9013, %v9015
        %9017 = vrot.lane.b32.xlu0 %v9010, 127
        %v9018 = vpop.permute.xlu0 %9017
        %9019 = vrot.lane.b32.xlu0 %v9012, 127
        %v9020 = vpop.permute.xlu0 %9019
        %9021 = vrot.lane.b32.xlu0 %v9014, 127
        %v9022 = vpop.permute.xlu0 %9021
        %9023 = vrot.lane.b32.xlu0 %v9016, 127
        %v9024 = vpop.permute.xlu0 %9023
        %v9029 = vadd.f32 %v8992, %v9018
        %v9030 = vadd.f32 %v8993, %v9020
        %v9031 = vadd.f32 %v8994, %v9022
        %v9032 = vadd.f32 %v8995, %v9024
        %s9033 = sld [smem:[#allocation9 + $0x62]]
        %v9034 = vstv %s9033
        %v9035 = vmul.f32 %v4879, %v9034
        %v9036 = vmul.f32 %v4880, %v9034
        %v9037 = vmul.f32 %v4881, %v9034
        %v9038 = vmul.f32 %v4882, %v9034
        %v9039 = vmul.f32 %v4883, %v9034
        %v9045 = vrot.slane %v9035, 2
        %v9046 = vrot.slane %v9036, 2
        %v9047 = vsel %vm1419, %v9045, %v9046
        %v9048 = vrot.slane %v9037, 2
        %v9049 = vsel %vm1419, %v9046, %v9048
        %v9050 = vrot.slane %v9038, 2
        %v9051 = vsel %vm1419, %v9048, %v9050
        %v9052 = vrot.slane %v9039, 2
        %v9053 = vsel %vm1419, %v9050, %v9052
        %9054 = vrot.lane.b32.xlu0 %v9047, 126
        %v9055 = vpop.permute.xlu0 %9054
        %9056 = vrot.lane.b32.xlu0 %v9049, 126
        %v9057 = vpop.permute.xlu0 %9056
        %9058 = vrot.lane.b32.xlu0 %v9051, 126
        %v9059 = vpop.permute.xlu0 %9058
        %9060 = vrot.lane.b32.xlu0 %v9053, 126
        %v9061 = vpop.permute.xlu0 %9060
        %v9066 = vadd.f32 %v9029, %v9055
        %v9067 = vadd.f32 %v9030, %v9057
        %v9068 = vadd.f32 %v9031, %v9059
        %v9069 = vadd.f32 %v9032, %v9061
        %s9070 = sld [smem:[#allocation9 + $0x63]]
        %v9071 = vstv %s9070
        %v9072 = vmul.f32 %v6099, %v9071
        %v9073 = vmul.f32 %v6100, %v9071
        %v9074 = vmul.f32 %v6101, %v9071
        %v9075 = vmul.f32 %v6102, %v9071
        %v9076 = vadd.f32 %v9066, %v9072
        %v9077 = vadd.f32 %v9067, %v9073
        %v9078 = vadd.f32 %v9068, %v9074
        %v9079 = vadd.f32 %v9069, %v9075
        %s9080 = sld [smem:[#allocation9 + $0x64]]
        %v9081 = vstv %s9080
        %v9082 = vmul.f32 %v6099, %v9081
        %v9083 = vmul.f32 %v6100, %v9081
        %v9084 = vmul.f32 %v6101, %v9081
        %v9085 = vmul.f32 %v6102, %v9081
        %9090 = vrot.lane.b32.xlu0 %v9082, 127
        %v9091 = vpop.permute.xlu0 %9090
        %9092 = vrot.lane.b32.xlu0 %v9083, 127
        %v9093 = vpop.permute.xlu0 %9092
        %9094 = vrot.lane.b32.xlu0 %v9084, 127
        %v9095 = vpop.permute.xlu0 %9094
        %9096 = vrot.lane.b32.xlu0 %v9085, 127
        %v9097 = vpop.permute.xlu0 %9096
        %v9102 = vadd.f32 %v9076, %v9091
        %v9103 = vadd.f32 %v9077, %v9093
        %v9104 = vadd.f32 %v9078, %v9095
        %v9105 = vadd.f32 %v9079, %v9097
        %s9106 = sld [smem:[#allocation9 + $0x65]]
        %v9107 = vstv %s9106
        %v9108 = vmul.f32 %v6099, %v9107
        %v9109 = vmul.f32 %v6100, %v9107
        %v9110 = vmul.f32 %v6101, %v9107
        %v9111 = vmul.f32 %v6102, %v9107
        %9116 = vrot.lane.b32.xlu0 %v9108, 126
        %v9117 = vpop.permute.xlu0 %9116
        %9118 = vrot.lane.b32.xlu0 %v9109, 126
        %v9119 = vpop.permute.xlu0 %9118
        %9120 = vrot.lane.b32.xlu0 %v9110, 126
        %v9121 = vpop.permute.xlu0 %9120
        %9122 = vrot.lane.b32.xlu0 %v9111, 126
        %v9123 = vpop.permute.xlu0 %9122
        %v9128 = vadd.f32 %v9102, %v9117
        %v9129 = vadd.f32 %v9103, %v9119
        %v9130 = vadd.f32 %v9104, %v9121
        %v9131 = vadd.f32 %v9105, %v9123
        %s9132 = sld [smem:[#allocation9 + $0x66]]
        %v9133 = vstv %s9132
        %v9134 = vmul.f32 %v6099, %v9133
        %v9135 = vmul.f32 %v6100, %v9133
        %v9136 = vmul.f32 %v6101, %v9133
        %v9137 = vmul.f32 %v6102, %v9133
        %v9138 = vmul.f32 %v6103, %v9133
        %v9144 = vrot.slane %v9134, 1
        %v9145 = vrot.slane %v9135, 1
        %v9146 = vsel %vm1305, %v9144, %v9145
        %v9147 = vrot.slane %v9136, 1
        %v9148 = vsel %vm1305, %v9145, %v9147
        %v9149 = vrot.slane %v9137, 1
        %v9150 = vsel %vm1305, %v9147, %v9149
        %v9151 = vrot.slane %v9138, 1
        %v9152 = vsel %vm1305, %v9149, %v9151
        %v9157 = vadd.f32 %v9128, %v9146
        %v9158 = vadd.f32 %v9129, %v9148
        %v9159 = vadd.f32 %v9130, %v9150
        %v9160 = vadd.f32 %v9131, %v9152
        %s9161 = sld [smem:[#allocation9 + $0x67]]
        %v9162 = vstv %s9161
        %v9163 = vmul.f32 %v6099, %v9162
        %v9164 = vmul.f32 %v6100, %v9162
        %v9165 = vmul.f32 %v6101, %v9162
        %v9166 = vmul.f32 %v6102, %v9162
        %v9167 = vmul.f32 %v6103, %v9162
        %v9173 = vrot.slane %v9163, 1
        %v9174 = vrot.slane %v9164, 1
        %v9175 = vsel %vm1305, %v9173, %v9174
        %v9176 = vrot.slane %v9165, 1
        %v9177 = vsel %vm1305, %v9174, %v9176
        %v9178 = vrot.slane %v9166, 1
        %v9179 = vsel %vm1305, %v9176, %v9178
        %v9180 = vrot.slane %v9167, 1
        %v9181 = vsel %vm1305, %v9178, %v9180
        %9182 = vrot.lane.b32.xlu0 %v9175, 127
        %v9183 = vpop.permute.xlu0 %9182
        %9184 = vrot.lane.b32.xlu0 %v9177, 127
        %v9185 = vpop.permute.xlu0 %9184
        %9186 = vrot.lane.b32.xlu0 %v9179, 127
        %v9187 = vpop.permute.xlu0 %9186
        %9188 = vrot.lane.b32.xlu0 %v9181, 127
        %v9189 = vpop.permute.xlu0 %9188
        %v9194 = vadd.f32 %v9157, %v9183
        %v9195 = vadd.f32 %v9158, %v9185
        %v9196 = vadd.f32 %v9159, %v9187
        %v9197 = vadd.f32 %v9160, %v9189
        %s9198 = sld [smem:[#allocation9 + $0x68]]
        %v9199 = vstv %s9198
        %v9200 = vmul.f32 %v6099, %v9199
        %v9201 = vmul.f32 %v6100, %v9199
        %v9202 = vmul.f32 %v6101, %v9199
        %v9203 = vmul.f32 %v6102, %v9199
        %v9204 = vmul.f32 %v6103, %v9199
        %v9210 = vrot.slane %v9200, 1
        %v9211 = vrot.slane %v9201, 1
        %v9212 = vsel %vm1305, %v9210, %v9211
        %v9213 = vrot.slane %v9202, 1
        %v9214 = vsel %vm1305, %v9211, %v9213
        %v9215 = vrot.slane %v9203, 1
        %v9216 = vsel %vm1305, %v9213, %v9215
        %v9217 = vrot.slane %v9204, 1
        %v9218 = vsel %vm1305, %v9215, %v9217
        %9219 = vrot.lane.b32.xlu0 %v9212, 126
        %v9220 = vpop.permute.xlu0 %9219
        %9221 = vrot.lane.b32.xlu0 %v9214, 126
        %v9222 = vpop.permute.xlu0 %9221
        %9223 = vrot.lane.b32.xlu0 %v9216, 126
        %v9224 = vpop.permute.xlu0 %9223
        %9225 = vrot.lane.b32.xlu0 %v9218, 126
        %v9226 = vpop.permute.xlu0 %9225
        %v9231 = vadd.f32 %v9194, %v9220
        %v9232 = vadd.f32 %v9195, %v9222
        %v9233 = vadd.f32 %v9196, %v9224
        %v9234 = vadd.f32 %v9197, %v9226
        %s9235 = sld [smem:[#allocation9 + $0x69]]
        %v9236 = vstv %s9235
        %v9237 = vmul.f32 %v6099, %v9236
        %v9238 = vmul.f32 %v6100, %v9236
        %v9239 = vmul.f32 %v6101, %v9236
        %v9240 = vmul.f32 %v6102, %v9236
        %v9241 = vmul.f32 %v6103, %v9236
        %v9247 = vrot.slane %v9237, 2
        %v9248 = vrot.slane %v9238, 2
        %v9249 = vsel %vm1419, %v9247, %v9248
        %v9250 = vrot.slane %v9239, 2
        %v9251 = vsel %vm1419, %v9248, %v9250
        %v9252 = vrot.slane %v9240, 2
        %v9253 = vsel %vm1419, %v9250, %v9252
        %v9254 = vrot.slane %v9241, 2
        %v9255 = vsel %vm1419, %v9252, %v9254
        %v9260 = vadd.f32 %v9231, %v9249
        %v9261 = vadd.f32 %v9232, %v9251
        %v9262 = vadd.f32 %v9233, %v9253
        %v9263 = vadd.f32 %v9234, %v9255
        %s9264 = sld [smem:[#allocation9 + $0x6a]]
        %v9265 = vstv %s9264
        %v9266 = vmul.f32 %v6099, %v9265
        %v9267 = vmul.f32 %v6100, %v9265
        %v9268 = vmul.f32 %v6101, %v9265
        %v9269 = vmul.f32 %v6102, %v9265
        %v9270 = vmul.f32 %v6103, %v9265
        %v9276 = vrot.slane %v9266, 2
        %v9277 = vrot.slane %v9267, 2
        %v9278 = vsel %vm1419, %v9276, %v9277
        %v9279 = vrot.slane %v9268, 2
        %v9280 = vsel %vm1419, %v9277, %v9279
        %v9281 = vrot.slane %v9269, 2
        %v9282 = vsel %vm1419, %v9279, %v9281
        %v9283 = vrot.slane %v9270, 2
        %v9284 = vsel %vm1419, %v9281, %v9283
        %9285 = vrot.lane.b32.xlu0 %v9278, 127
        %v9286 = vpop.permute.xlu0 %9285
        %9287 = vrot.lane.b32.xlu0 %v9280, 127
        %v9288 = vpop.permute.xlu0 %9287
        %9289 = vrot.lane.b32.xlu0 %v9282, 127
        %v9290 = vpop.permute.xlu0 %9289
        %9291 = vrot.lane.b32.xlu0 %v9284, 127
        %v9292 = vpop.permute.xlu0 %9291
        %v9297 = vadd.f32 %v9260, %v9286
        %v9298 = vadd.f32 %v9261, %v9288
        %v9299 = vadd.f32 %v9262, %v9290
        %v9300 = vadd.f32 %v9263, %v9292
        %s9301 = sld [smem:[#allocation9 + $0x6b]]
        %v9302 = vstv %s9301
        %v9303 = vmul.f32 %v6099, %v9302
        %v9304 = vmul.f32 %v6100, %v9302
        %v9305 = vmul.f32 %v6101, %v9302
        %v9306 = vmul.f32 %v6102, %v9302
        %v9307 = vmul.f32 %v6103, %v9302
        %v9313 = vrot.slane %v9303, 2
        %v9314 = vrot.slane %v9304, 2
        %v9315 = vsel %vm1419, %v9313, %v9314
        %v9316 = vrot.slane %v9305, 2
        %v9317 = vsel %vm1419, %v9314, %v9316
        %v9318 = vrot.slane %v9306, 2
        %v9319 = vsel %vm1419, %v9316, %v9318
        %v9320 = vrot.slane %v9307, 2
        %v9321 = vsel %vm1419, %v9318, %v9320
        %9322 = vrot.lane.b32.xlu0 %v9315, 126
        %v9323 = vpop.permute.xlu0 %9322
        %9324 = vrot.lane.b32.xlu0 %v9317, 126
        %v9325 = vpop.permute.xlu0 %9324
        %9326 = vrot.lane.b32.xlu0 %v9319, 126
        %v9327 = vpop.permute.xlu0 %9326
        %9328 = vrot.lane.b32.xlu0 %v9321, 126
        %v9329 = vpop.permute.xlu0 %9328
        %v9334 = vadd.f32 %v9297, %v9323
        %v9335 = vadd.f32 %v9298, %v9325
        %v9336 = vadd.f32 %v9299, %v9327
        %v9337 = vadd.f32 %v9300, %v9329
        %s9338 = sld [smem:[#allocation10 + $0x2]]
        %v9339 = vstv %s9338
        %v9340 = vadd.f32 %v9334, %v9339
        %v9341 = vadd.f32 %v9335, %v9339
        %v9342 = vadd.f32 %v9336, %v9339
        %v9343 = vadd.f32 %v9337, %v9339
        %v9344 = vmax.f32 %v9340, 0.0
        %v9345 = vmax.f32 %v9341, 0.0
        %v9346 = vmax.f32 %v9342, 0.0
        %v9347 = vmax.f32 %v9343, 0.0
        %s9348 = scalar_lea.vmem %s362, 64 [#allocation12]
        %9349 = vst.msk [vmem:[%s9348] sm:$0xff] %vm7182, %v9344
        %9350 = vst.msk [vmem:[%s9348 + $0x8] sm:$0xff] %vm7182, %v9345
        %9351 = vst.msk [vmem:[%s9348 + $0x10] sm:$0xff] %vm7182, %v9346
        %9352 = vst.msk [vmem:[%s9348 + $0x18] sm:$0xff] %vm7182, %v9347
        %s9353 = sld [smem:[#allocation9 + $0x6c]]
        %v9354 = vstv %s9353
        %v9355 = vmul.f32 %v2439, %v9354
        %v9356 = vmul.f32 %v2440, %v9354
        %v9357 = vmul.f32 %v2441, %v9354
        %v9358 = vmul.f32 %v2442, %v9354
        %s9359 = sld [smem:[#allocation9 + $0x6d]]
        %v9360 = vstv %s9359
        %v9361 = vmul.f32 %v2439, %v9360
        %v9362 = vmul.f32 %v2440, %v9360
        %v9363 = vmul.f32 %v2441, %v9360
        %v9364 = vmul.f32 %v2442, %v9360
        %9369 = vrot.lane.b32.xlu0 %v9361, 127
        %v9370 = vpop.permute.xlu0 %9369
        %9371 = vrot.lane.b32.xlu0 %v9362, 127
        %v9372 = vpop.permute.xlu0 %9371
        %9373 = vrot.lane.b32.xlu0 %v9363, 127
        %v9374 = vpop.permute.xlu0 %9373
        %9375 = vrot.lane.b32.xlu0 %v9364, 127
        %v9376 = vpop.permute.xlu0 %9375
        %v9381 = vadd.f32 %v9355, %v9370
        %v9382 = vadd.f32 %v9356, %v9372
        %v9383 = vadd.f32 %v9357, %v9374
        %v9384 = vadd.f32 %v9358, %v9376
        %s9385 = sld [smem:[#allocation9 + $0x6e]]
        %v9386 = vstv %s9385
        %v9387 = vmul.f32 %v2439, %v9386
        %v9388 = vmul.f32 %v2440, %v9386
        %v9389 = vmul.f32 %v2441, %v9386
        %v9390 = vmul.f32 %v2442, %v9386
        %9395 = vrot.lane.b32.xlu0 %v9387, 126
        %v9396 = vpop.permute.xlu0 %9395
        %9397 = vrot.lane.b32.xlu0 %v9388, 126
        %v9398 = vpop.permute.xlu0 %9397
        %9399 = vrot.lane.b32.xlu0 %v9389, 126
        %v9400 = vpop.permute.xlu0 %9399
        %9401 = vrot.lane.b32.xlu0 %v9390, 126
        %v9402 = vpop.permute.xlu0 %9401
        %v9407 = vadd.f32 %v9381, %v9396
        %v9408 = vadd.f32 %v9382, %v9398
        %v9409 = vadd.f32 %v9383, %v9400
        %v9410 = vadd.f32 %v9384, %v9402
        %s9411 = sld [smem:[#allocation9 + $0x6f]]
        %v9412 = vstv %s9411
        %v9413 = vmul.f32 %v2439, %v9412
        %v9414 = vmul.f32 %v2440, %v9412
        %v9415 = vmul.f32 %v2441, %v9412
        %v9416 = vmul.f32 %v2442, %v9412
        %v9417 = vmul.f32 %v2443, %v9412
        %v9423 = vrot.slane %v9413, 1
        %v9424 = vrot.slane %v9414, 1
        %v9425 = vsel %vm1305, %v9423, %v9424
        %v9426 = vrot.slane %v9415, 1
        %v9427 = vsel %vm1305, %v9424, %v9426
        %v9428 = vrot.slane %v9416, 1
        %v9429 = vsel %vm1305, %v9426, %v9428
        %v9430 = vrot.slane %v9417, 1
        %v9431 = vsel %vm1305, %v9428, %v9430
        %v9436 = vadd.f32 %v9407, %v9425
        %v9437 = vadd.f32 %v9408, %v9427
        %v9438 = vadd.f32 %v9409, %v9429
        %v9439 = vadd.f32 %v9410, %v9431
        %s9440 = sld [smem:[#allocation9 + $0x70]]
        %v9441 = vstv %s9440
        %v9442 = vmul.f32 %v2439, %v9441
        %v9443 = vmul.f32 %v2440, %v9441
        %v9444 = vmul.f32 %v2441, %v9441
        %v9445 = vmul.f32 %v2442, %v9441
        %v9446 = vmul.f32 %v2443, %v9441
        %v9452 = vrot.slane %v9442, 1
        %v9453 = vrot.slane %v9443, 1
        %v9454 = vsel %vm1305, %v9452, %v9453
        %v9455 = vrot.slane %v9444, 1
        %v9456 = vsel %vm1305, %v9453, %v9455
        %v9457 = vrot.slane %v9445, 1
        %v9458 = vsel %vm1305, %v9455, %v9457
        %v9459 = vrot.slane %v9446, 1
        %v9460 = vsel %vm1305, %v9457, %v9459
        %9461 = vrot.lane.b32.xlu0 %v9454, 127
        %v9462 = vpop.permute.xlu0 %9461
        %9463 = vrot.lane.b32.xlu0 %v9456, 127
        %v9464 = vpop.permute.xlu0 %9463
        %9465 = vrot.lane.b32.xlu0 %v9458, 127
        %v9466 = vpop.permute.xlu0 %9465
        %9467 = vrot.lane.b32.xlu0 %v9460, 127
        %v9468 = vpop.permute.xlu0 %9467
        %v9473 = vadd.f32 %v9436, %v9462
        %v9474 = vadd.f32 %v9437, %v9464
        %v9475 = vadd.f32 %v9438, %v9466
        %v9476 = vadd.f32 %v9439, %v9468
        %s9477 = sld [smem:[#allocation9 + $0x71]]
        %v9478 = vstv %s9477
        %v9479 = vmul.f32 %v2439, %v9478
        %v9480 = vmul.f32 %v2440, %v9478
        %v9481 = vmul.f32 %v2441, %v9478
        %v9482 = vmul.f32 %v2442, %v9478
        %v9483 = vmul.f32 %v2443, %v9478
        %v9489 = vrot.slane %v9479, 1
        %v9490 = vrot.slane %v9480, 1
        %v9491 = vsel %vm1305, %v9489, %v9490
        %v9492 = vrot.slane %v9481, 1
        %v9493 = vsel %vm1305, %v9490, %v9492
        %v9494 = vrot.slane %v9482, 1
        %v9495 = vsel %vm1305, %v9492, %v9494
        %v9496 = vrot.slane %v9483, 1
        %v9497 = vsel %vm1305, %v9494, %v9496
        %9498 = vrot.lane.b32.xlu0 %v9491, 126
        %v9499 = vpop.permute.xlu0 %9498
        %9500 = vrot.lane.b32.xlu0 %v9493, 126
        %v9501 = vpop.permute.xlu0 %9500
        %9502 = vrot.lane.b32.xlu0 %v9495, 126
        %v9503 = vpop.permute.xlu0 %9502
        %9504 = vrot.lane.b32.xlu0 %v9497, 126
        %v9505 = vpop.permute.xlu0 %9504
        %v9510 = vadd.f32 %v9473, %v9499
        %v9511 = vadd.f32 %v9474, %v9501
        %v9512 = vadd.f32 %v9475, %v9503
        %v9513 = vadd.f32 %v9476, %v9505
        %s9514 = sld [smem:[#allocation9 + $0x72]]
        %v9515 = vstv %s9514
        %v9516 = vmul.f32 %v2439, %v9515
        %v9517 = vmul.f32 %v2440, %v9515
        %v9518 = vmul.f32 %v2441, %v9515
        %v9519 = vmul.f32 %v2442, %v9515
        %v9520 = vmul.f32 %v2443, %v9515
        %v9526 = vrot.slane %v9516, 2
        %v9527 = vrot.slane %v9517, 2
        %v9528 = vsel %vm1419, %v9526, %v9527
        %v9529 = vrot.slane %v9518, 2
        %v9530 = vsel %vm1419, %v9527, %v9529
        %v9531 = vrot.slane %v9519, 2
        %v9532 = vsel %vm1419, %v9529, %v9531
        %v9533 = vrot.slane %v9520, 2
        %v9534 = vsel %vm1419, %v9531, %v9533
        %v9539 = vadd.f32 %v9510, %v9528
        %v9540 = vadd.f32 %v9511, %v9530
        %v9541 = vadd.f32 %v9512, %v9532
        %v9542 = vadd.f32 %v9513, %v9534
        %s9543 = sld [smem:[#allocation9 + $0x73]]
        %v9544 = vstv %s9543
        %v9545 = vmul.f32 %v2439, %v9544
        %v9546 = vmul.f32 %v2440, %v9544
        %v9547 = vmul.f32 %v2441, %v9544
        %v9548 = vmul.f32 %v2442, %v9544
        %v9549 = vmul.f32 %v2443, %v9544
        %v9555 = vrot.slane %v9545, 2
        %v9556 = vrot.slane %v9546, 2
        %v9557 = vsel %vm1419, %v9555, %v9556
        %v9558 = vrot.slane %v9547, 2
        %v9559 = vsel %vm1419, %v9556, %v9558
        %v9560 = vrot.slane %v9548, 2
        %v9561 = vsel %vm1419, %v9558, %v9560
        %v9562 = vrot.slane %v9549, 2
        %v9563 = vsel %vm1419, %v9560, %v9562
        %9564 = vrot.lane.b32.xlu0 %v9557, 127
        %v9565 = vpop.permute.xlu0 %9564
        %9566 = vrot.lane.b32.xlu0 %v9559, 127
        %v9567 = vpop.permute.xlu0 %9566
        %9568 = vrot.lane.b32.xlu0 %v9561, 127
        %v9569 = vpop.permute.xlu0 %9568
        %9570 = vrot.lane.b32.xlu0 %v9563, 127
        %v9571 = vpop.permute.xlu0 %9570
        %v9576 = vadd.f32 %v9539, %v9565
        %v9577 = vadd.f32 %v9540, %v9567
        %v9578 = vadd.f32 %v9541, %v9569
        %v9579 = vadd.f32 %v9542, %v9571
        %s9580 = sld [smem:[#allocation9 + $0x74]]
        %v9581 = vstv %s9580
        %v9582 = vmul.f32 %v2439, %v9581
        %v9583 = vmul.f32 %v2440, %v9581
        %v9584 = vmul.f32 %v2441, %v9581
        %v9585 = vmul.f32 %v2442, %v9581
        %v9586 = vmul.f32 %v2443, %v9581
        %v9592 = vrot.slane %v9582, 2
        %v9593 = vrot.slane %v9583, 2
        %v9594 = vsel %vm1419, %v9592, %v9593
        %v9595 = vrot.slane %v9584, 2
        %v9596 = vsel %vm1419, %v9593, %v9595
        %v9597 = vrot.slane %v9585, 2
        %v9598 = vsel %vm1419, %v9595, %v9597
        %v9599 = vrot.slane %v9586, 2
        %v9600 = vsel %vm1419, %v9597, %v9599
        %9601 = vrot.lane.b32.xlu0 %v9594, 126
        %v9602 = vpop.permute.xlu0 %9601
        %9603 = vrot.lane.b32.xlu0 %v9596, 126
        %v9604 = vpop.permute.xlu0 %9603
        %9605 = vrot.lane.b32.xlu0 %v9598, 126
        %v9606 = vpop.permute.xlu0 %9605
        %9607 = vrot.lane.b32.xlu0 %v9600, 126
        %v9608 = vpop.permute.xlu0 %9607
        %v9613 = vadd.f32 %v9576, %v9602
        %v9614 = vadd.f32 %v9577, %v9604
        %v9615 = vadd.f32 %v9578, %v9606
        %v9616 = vadd.f32 %v9579, %v9608
        %s9617 = sld [smem:[#allocation9 + $0x75]]
        %v9618 = vstv %s9617
        %v9619 = vmul.f32 %v3659, %v9618
        %v9620 = vmul.f32 %v3660, %v9618
        %v9621 = vmul.f32 %v3661, %v9618
        %v9622 = vmul.f32 %v3662, %v9618
        %v9623 = vadd.f32 %v9613, %v9619
        %v9624 = vadd.f32 %v9614, %v9620
        %v9625 = vadd.f32 %v9615, %v9621
        %v9626 = vadd.f32 %v9616, %v9622
        %s9627 = sld [smem:[#allocation9 + $0x76]]
        %v9628 = vstv %s9627
        %v9629 = vmul.f32 %v3659, %v9628
        %v9630 = vmul.f32 %v3660, %v9628
        %v9631 = vmul.f32 %v3661, %v9628
        %v9632 = vmul.f32 %v3662, %v9628
        %9637 = vrot.lane.b32.xlu0 %v9629, 127
        %v9638 = vpop.permute.xlu0 %9637
        %9639 = vrot.lane.b32.xlu0 %v9630, 127
        %v9640 = vpop.permute.xlu0 %9639
        %9641 = vrot.lane.b32.xlu0 %v9631, 127
        %v9642 = vpop.permute.xlu0 %9641
        %9643 = vrot.lane.b32.xlu0 %v9632, 127
        %v9644 = vpop.permute.xlu0 %9643
        %v9649 = vadd.f32 %v9623, %v9638
        %v9650 = vadd.f32 %v9624, %v9640
        %v9651 = vadd.f32 %v9625, %v9642
        %v9652 = vadd.f32 %v9626, %v9644
        %s9653 = sld [smem:[#allocation9 + $0x77]]
        %v9654 = vstv %s9653
        %v9655 = vmul.f32 %v3659, %v9654
        %v9656 = vmul.f32 %v3660, %v9654
        %v9657 = vmul.f32 %v3661, %v9654
        %v9658 = vmul.f32 %v3662, %v9654
        %9663 = vrot.lane.b32.xlu0 %v9655, 126
        %v9664 = vpop.permute.xlu0 %9663
        %9665 = vrot.lane.b32.xlu0 %v9656, 126
        %v9666 = vpop.permute.xlu0 %9665
        %9667 = vrot.lane.b32.xlu0 %v9657, 126
        %v9668 = vpop.permute.xlu0 %9667
        %9669 = vrot.lane.b32.xlu0 %v9658, 126
        %v9670 = vpop.permute.xlu0 %9669
        %v9675 = vadd.f32 %v9649, %v9664
        %v9676 = vadd.f32 %v9650, %v9666
        %v9677 = vadd.f32 %v9651, %v9668
        %v9678 = vadd.f32 %v9652, %v9670
        %s9679 = sld [smem:[#allocation9 + $0x78]]
        %v9680 = vstv %s9679
        %v9681 = vmul.f32 %v3659, %v9680
        %v9682 = vmul.f32 %v3660, %v9680
        %v9683 = vmul.f32 %v3661, %v9680
        %v9684 = vmul.f32 %v3662, %v9680
        %v9685 = vmul.f32 %v3663, %v9680
        %v9691 = vrot.slane %v9681, 1
        %v9692 = vrot.slane %v9682, 1
        %v9693 = vsel %vm1305, %v9691, %v9692
        %v9694 = vrot.slane %v9683, 1
        %v9695 = vsel %vm1305, %v9692, %v9694
        %v9696 = vrot.slane %v9684, 1
        %v9697 = vsel %vm1305, %v9694, %v9696
        %v9698 = vrot.slane %v9685, 1
        %v9699 = vsel %vm1305, %v9696, %v9698
        %v9704 = vadd.f32 %v9675, %v9693
        %v9705 = vadd.f32 %v9676, %v9695
        %v9706 = vadd.f32 %v9677, %v9697
        %v9707 = vadd.f32 %v9678, %v9699
        %s9708 = sld [smem:[#allocation9 + $0x79]]
        %v9709 = vstv %s9708
        %v9710 = vmul.f32 %v3659, %v9709
        %v9711 = vmul.f32 %v3660, %v9709
        %v9712 = vmul.f32 %v3661, %v9709
        %v9713 = vmul.f32 %v3662, %v9709
        %v9714 = vmul.f32 %v3663, %v9709
        %v9720 = vrot.slane %v9710, 1
        %v9721 = vrot.slane %v9711, 1
        %v9722 = vsel %vm1305, %v9720, %v9721
        %v9723 = vrot.slane %v9712, 1
        %v9724 = vsel %vm1305, %v9721, %v9723
        %v9725 = vrot.slane %v9713, 1
        %v9726 = vsel %vm1305, %v9723, %v9725
        %v9727 = vrot.slane %v9714, 1
        %v9728 = vsel %vm1305, %v9725, %v9727
        %9729 = vrot.lane.b32.xlu0 %v9722, 127
        %v9730 = vpop.permute.xlu0 %9729
        %9731 = vrot.lane.b32.xlu0 %v9724, 127
        %v9732 = vpop.permute.xlu0 %9731
        %9733 = vrot.lane.b32.xlu0 %v9726, 127
        %v9734 = vpop.permute.xlu0 %9733
        %9735 = vrot.lane.b32.xlu0 %v9728, 127
        %v9736 = vpop.permute.xlu0 %9735
        %v9741 = vadd.f32 %v9704, %v9730
        %v9742 = vadd.f32 %v9705, %v9732
        %v9743 = vadd.f32 %v9706, %v9734
        %v9744 = vadd.f32 %v9707, %v9736
        %s9745 = sld [smem:[#allocation9 + $0x7a]]
        %v9746 = vstv %s9745
        %v9747 = vmul.f32 %v3659, %v9746
        %v9748 = vmul.f32 %v3660, %v9746
        %v9749 = vmul.f32 %v3661, %v9746
        %v9750 = vmul.f32 %v3662, %v9746
        %v9751 = vmul.f32 %v3663, %v9746
        %v9757 = vrot.slane %v9747, 1
        %v9758 = vrot.slane %v9748, 1
        %v9759 = vsel %vm1305, %v9757, %v9758
        %v9760 = vrot.slane %v9749, 1
        %v9761 = vsel %vm1305, %v9758, %v9760
        %v9762 = vrot.slane %v9750, 1
        %v9763 = vsel %vm1305, %v9760, %v9762
        %v9764 = vrot.slane %v9751, 1
        %v9765 = vsel %vm1305, %v9762, %v9764
        %9766 = vrot.lane.b32.xlu0 %v9759, 126
        %v9767 = vpop.permute.xlu0 %9766
        %9768 = vrot.lane.b32.xlu0 %v9761, 126
        %v9769 = vpop.permute.xlu0 %9768
        %9770 = vrot.lane.b32.xlu0 %v9763, 126
        %v9771 = vpop.permute.xlu0 %9770
        %9772 = vrot.lane.b32.xlu0 %v9765, 126
        %v9773 = vpop.permute.xlu0 %9772
        %v9778 = vadd.f32 %v9741, %v9767
        %v9779 = vadd.f32 %v9742, %v9769
        %v9780 = vadd.f32 %v9743, %v9771
        %v9781 = vadd.f32 %v9744, %v9773
        %s9782 = sld [smem:[#allocation9 + $0x7b]]
        %v9783 = vstv %s9782
        %v9784 = vmul.f32 %v3659, %v9783
        %v9785 = vmul.f32 %v3660, %v9783
        %v9786 = vmul.f32 %v3661, %v9783
        %v9787 = vmul.f32 %v3662, %v9783
        %v9788 = vmul.f32 %v3663, %v9783
        %v9794 = vrot.slane %v9784, 2
        %v9795 = vrot.slane %v9785, 2
        %v9796 = vsel %vm1419, %v9794, %v9795
        %v9797 = vrot.slane %v9786, 2
        %v9798 = vsel %vm1419, %v9795, %v9797
        %v9799 = vrot.slane %v9787, 2
        %v9800 = vsel %vm1419, %v9797, %v9799
        %v9801 = vrot.slane %v9788, 2
        %v9802 = vsel %vm1419, %v9799, %v9801
        %v9807 = vadd.f32 %v9778, %v9796
        %v9808 = vadd.f32 %v9779, %v9798
        %v9809 = vadd.f32 %v9780, %v9800
        %v9810 = vadd.f32 %v9781, %v9802
        %s9811 = sld [smem:[#allocation9 + $0x7c]]
        %v9812 = vstv %s9811
        %v9813 = vmul.f32 %v3659, %v9812
        %v9814 = vmul.f32 %v3660, %v9812
        %v9815 = vmul.f32 %v3661, %v9812
        %v9816 = vmul.f32 %v3662, %v9812
        %v9817 = vmul.f32 %v3663, %v9812
        %v9823 = vrot.slane %v9813, 2
        %v9824 = vrot.slane %v9814, 2
        %v9825 = vsel %vm1419, %v9823, %v9824
        %v9826 = vrot.slane %v9815, 2
        %v9827 = vsel %vm1419, %v9824, %v9826
        %v9828 = vrot.slane %v9816, 2
        %v9829 = vsel %vm1419, %v9826, %v9828
        %v9830 = vrot.slane %v9817, 2
        %v9831 = vsel %vm1419, %v9828, %v9830
        %9832 = vrot.lane.b32.xlu0 %v9825, 127
        %v9833 = vpop.permute.xlu0 %9832
        %9834 = vrot.lane.b32.xlu0 %v9827, 127
        %v9835 = vpop.permute.xlu0 %9834
        %9836 = vrot.lane.b32.xlu0 %v9829, 127
        %v9837 = vpop.permute.xlu0 %9836
        %9838 = vrot.lane.b32.xlu0 %v9831, 127
        %v9839 = vpop.permute.xlu0 %9838
        %v9844 = vadd.f32 %v9807, %v9833
        %v9845 = vadd.f32 %v9808, %v9835
        %v9846 = vadd.f32 %v9809, %v9837
        %v9847 = vadd.f32 %v9810, %v9839
        %s9848 = sld [smem:[#allocation9 + $0x7d]]
        %v9849 = vstv %s9848
        %v9850 = vmul.f32 %v3659, %v9849
        %v9851 = vmul.f32 %v3660, %v9849
        %v9852 = vmul.f32 %v3661, %v9849
        %v9853 = vmul.f32 %v3662, %v9849
        %v9854 = vmul.f32 %v3663, %v9849
        %v9860 = vrot.slane %v9850, 2
        %v9861 = vrot.slane %v9851, 2
        %v9862 = vsel %vm1419, %v9860, %v9861
        %v9863 = vrot.slane %v9852, 2
        %v9864 = vsel %vm1419, %v9861, %v9863
        %v9865 = vrot.slane %v9853, 2
        %v9866 = vsel %vm1419, %v9863, %v9865
        %v9867 = vrot.slane %v9854, 2
        %v9868 = vsel %vm1419, %v9865, %v9867
        %9869 = vrot.lane.b32.xlu0 %v9862, 126
        %v9870 = vpop.permute.xlu0 %9869
        %9871 = vrot.lane.b32.xlu0 %v9864, 126
        %v9872 = vpop.permute.xlu0 %9871
        %9873 = vrot.lane.b32.xlu0 %v9866, 126
        %v9874 = vpop.permute.xlu0 %9873
        %9875 = vrot.lane.b32.xlu0 %v9868, 126
        %v9876 = vpop.permute.xlu0 %9875
        %v9881 = vadd.f32 %v9844, %v9870
        %v9882 = vadd.f32 %v9845, %v9872
        %v9883 = vadd.f32 %v9846, %v9874
        %v9884 = vadd.f32 %v9847, %v9876
        %s9885 = sld [smem:[#allocation9 + $0x7e]]
        %v9886 = vstv %s9885
        %v9887 = vmul.f32 %v4879, %v9886
        %v9888 = vmul.f32 %v4880, %v9886
        %v9889 = vmul.f32 %v4881, %v9886
        %v9890 = vmul.f32 %v4882, %v9886
        %v9891 = vadd.f32 %v9881, %v9887
        %v9892 = vadd.f32 %v9882, %v9888
        %v9893 = vadd.f32 %v9883, %v9889
        %v9894 = vadd.f32 %v9884, %v9890
        %s9895 = sld [smem:[#allocation9 + $0x7f]]
        %v9896 = vstv %s9895
        %v9897 = vmul.f32 %v4879, %v9896
        %v9898 = vmul.f32 %v4880, %v9896
        %v9899 = vmul.f32 %v4881, %v9896
        %v9900 = vmul.f32 %v4882, %v9896
        %9905 = vrot.lane.b32.xlu0 %v9897, 127
        %v9906 = vpop.permute.xlu0 %9905
        %9907 = vrot.lane.b32.xlu0 %v9898, 127
        %v9908 = vpop.permute.xlu0 %9907
        %9909 = vrot.lane.b32.xlu0 %v9899, 127
        %v9910 = vpop.permute.xlu0 %9909
        %9911 = vrot.lane.b32.xlu0 %v9900, 127
        %v9912 = vpop.permute.xlu0 %9911
        %v9917 = vadd.f32 %v9891, %v9906
        %v9918 = vadd.f32 %v9892, %v9908
        %v9919 = vadd.f32 %v9893, %v9910
        %v9920 = vadd.f32 %v9894, %v9912
        %s9921 = sld [smem:[#allocation9 + $0x80]]
        %v9922 = vstv %s9921
        %v9923 = vmul.f32 %v4879, %v9922
        %v9924 = vmul.f32 %v4880, %v9922
        %v9925 = vmul.f32 %v4881, %v9922
        %v9926 = vmul.f32 %v4882, %v9922
        %9931 = vrot.lane.b32.xlu0 %v9923, 126
        %v9932 = vpop.permute.xlu0 %9931
        %9933 = vrot.lane.b32.xlu0 %v9924, 126
        %v9934 = vpop.permute.xlu0 %9933
        %9935 = vrot.lane.b32.xlu0 %v9925, 126
        %v9936 = vpop.permute.xlu0 %9935
        %9937 = vrot.lane.b32.xlu0 %v9926, 126
        %v9938 = vpop.permute.xlu0 %9937
        %v9943 = vadd.f32 %v9917, %v9932
        %v9944 = vadd.f32 %v9918, %v9934
        %v9945 = vadd.f32 %v9919, %v9936
        %v9946 = vadd.f32 %v9920, %v9938
        %s9947 = sld [smem:[#allocation9 + $0x81]]
        %v9948 = vstv %s9947
        %v9949 = vmul.f32 %v4879, %v9948
        %v9950 = vmul.f32 %v4880, %v9948
        %v9951 = vmul.f32 %v4881, %v9948
        %v9952 = vmul.f32 %v4882, %v9948
        %v9953 = vmul.f32 %v4883, %v9948
        %v9959 = vrot.slane %v9949, 1
        %v9960 = vrot.slane %v9950, 1
        %v9961 = vsel %vm1305, %v9959, %v9960
        %v9962 = vrot.slane %v9951, 1
        %v9963 = vsel %vm1305, %v9960, %v9962
        %v9964 = vrot.slane %v9952, 1
        %v9965 = vsel %vm1305, %v9962, %v9964
        %v9966 = vrot.slane %v9953, 1
        %v9967 = vsel %vm1305, %v9964, %v9966
        %v9972 = vadd.f32 %v9943, %v9961
        %v9973 = vadd.f32 %v9944, %v9963
        %v9974 = vadd.f32 %v9945, %v9965
        %v9975 = vadd.f32 %v9946, %v9967
        %s9976 = sld [smem:[#allocation9 + $0x82]]
        %v9977 = vstv %s9976
        %v9978 = vmul.f32 %v4879, %v9977
        %v9979 = vmul.f32 %v4880, %v9977
        %v9980 = vmul.f32 %v4881, %v9977
        %v9981 = vmul.f32 %v4882, %v9977
        %v9982 = vmul.f32 %v4883, %v9977
        %v9988 = vrot.slane %v9978, 1
        %v9989 = vrot.slane %v9979, 1
        %v9990 = vsel %vm1305, %v9988, %v9989
        %v9991 = vrot.slane %v9980, 1
        %v9992 = vsel %vm1305, %v9989, %v9991
        %v9993 = vrot.slane %v9981, 1
        %v9994 = vsel %vm1305, %v9991, %v9993
        %v9995 = vrot.slane %v9982, 1
        %v9996 = vsel %vm1305, %v9993, %v9995
        %9997 = vrot.lane.b32.xlu0 %v9990, 127
        %v9998 = vpop.permute.xlu0 %9997
        %9999 = vrot.lane.b32.xlu0 %v9992, 127
        %v10000 = vpop.permute.xlu0 %9999
        %10001 = vrot.lane.b32.xlu0 %v9994, 127
        %v10002 = vpop.permute.xlu0 %10001
        %10003 = vrot.lane.b32.xlu0 %v9996, 127
        %v10004 = vpop.permute.xlu0 %10003
        %v10009 = vadd.f32 %v9972, %v9998
        %v10010 = vadd.f32 %v9973, %v10000
        %v10011 = vadd.f32 %v9974, %v10002
        %v10012 = vadd.f32 %v9975, %v10004
        %s10013 = sld [smem:[#allocation9 + $0x83]]
        %v10014 = vstv %s10013
        %v10015 = vmul.f32 %v4879, %v10014
        %v10016 = vmul.f32 %v4880, %v10014
        %v10017 = vmul.f32 %v4881, %v10014
        %v10018 = vmul.f32 %v4882, %v10014
        %v10019 = vmul.f32 %v4883, %v10014
        %v10025 = vrot.slane %v10015, 1
        %v10026 = vrot.slane %v10016, 1
        %v10027 = vsel %vm1305, %v10025, %v10026
        %v10028 = vrot.slane %v10017, 1
        %v10029 = vsel %vm1305, %v10026, %v10028
        %v10030 = vrot.slane %v10018, 1
        %v10031 = vsel %vm1305, %v10028, %v10030
        %v10032 = vrot.slane %v10019, 1
        %v10033 = vsel %vm1305, %v10030, %v10032
        %10034 = vrot.lane.b32.xlu0 %v10027, 126
        %v10035 = vpop.permute.xlu0 %10034
        %10036 = vrot.lane.b32.xlu0 %v10029, 126
        %v10037 = vpop.permute.xlu0 %10036
        %10038 = vrot.lane.b32.xlu0 %v10031, 126
        %v10039 = vpop.permute.xlu0 %10038
        %10040 = vrot.lane.b32.xlu0 %v10033, 126
        %v10041 = vpop.permute.xlu0 %10040
        %v10046 = vadd.f32 %v10009, %v10035
        %v10047 = vadd.f32 %v10010, %v10037
        %v10048 = vadd.f32 %v10011, %v10039
        %v10049 = vadd.f32 %v10012, %v10041
        %s10050 = sld [smem:[#allocation9 + $0x84]]
        %v10051 = vstv %s10050
        %v10052 = vmul.f32 %v4879, %v10051
        %v10053 = vmul.f32 %v4880, %v10051
        %v10054 = vmul.f32 %v4881, %v10051
        %v10055 = vmul.f32 %v4882, %v10051
        %v10056 = vmul.f32 %v4883, %v10051
        %v10062 = vrot.slane %v10052, 2
        %v10063 = vrot.slane %v10053, 2
        %v10064 = vsel %vm1419, %v10062, %v10063
        %v10065 = vrot.slane %v10054, 2
        %v10066 = vsel %vm1419, %v10063, %v10065
        %v10067 = vrot.slane %v10055, 2
        %v10068 = vsel %vm1419, %v10065, %v10067
        %v10069 = vrot.slane %v10056, 2
        %v10070 = vsel %vm1419, %v10067, %v10069
        %v10075 = vadd.f32 %v10046, %v10064
        %v10076 = vadd.f32 %v10047, %v10066
        %v10077 = vadd.f32 %v10048, %v10068
        %v10078 = vadd.f32 %v10049, %v10070
        %s10079 = sld [smem:[#allocation9 + $0x85]]
        %v10080 = vstv %s10079
        %v10081 = vmul.f32 %v4879, %v10080
        %v10082 = vmul.f32 %v4880, %v10080
        %v10083 = vmul.f32 %v4881, %v10080
        %v10084 = vmul.f32 %v4882, %v10080
        %v10085 = vmul.f32 %v4883, %v10080
        %v10091 = vrot.slane %v10081, 2
        %v10092 = vrot.slane %v10082, 2
        %v10093 = vsel %vm1419, %v10091, %v10092
        %v10094 = vrot.slane %v10083, 2
        %v10095 = vsel %vm1419, %v10092, %v10094
        %v10096 = vrot.slane %v10084, 2
        %v10097 = vsel %vm1419, %v10094, %v10096
        %v10098 = vrot.slane %v10085, 2
        %v10099 = vsel %vm1419, %v10096, %v10098
        %10100 = vrot.lane.b32.xlu0 %v10093, 127
        %v10101 = vpop.permute.xlu0 %10100
        %10102 = vrot.lane.b32.xlu0 %v10095, 127
        %v10103 = vpop.permute.xlu0 %10102
        %10104 = vrot.lane.b32.xlu0 %v10097, 127
        %v10105 = vpop.permute.xlu0 %10104
        %10106 = vrot.lane.b32.xlu0 %v10099, 127
        %v10107 = vpop.permute.xlu0 %10106
        %v10112 = vadd.f32 %v10075, %v10101
        %v10113 = vadd.f32 %v10076, %v10103
        %v10114 = vadd.f32 %v10077, %v10105
        %v10115 = vadd.f32 %v10078, %v10107
        %s10116 = sld [smem:[#allocation9 + $0x86]]
        %v10117 = vstv %s10116
        %v10118 = vmul.f32 %v4879, %v10117
        %v10119 = vmul.f32 %v4880, %v10117
        %v10120 = vmul.f32 %v4881, %v10117
        %v10121 = vmul.f32 %v4882, %v10117
        %v10122 = vmul.f32 %v4883, %v10117
        %v10128 = vrot.slane %v10118, 2
        %v10129 = vrot.slane %v10119, 2
        %v10130 = vsel %vm1419, %v10128, %v10129
        %v10131 = vrot.slane %v10120, 2
        %v10132 = vsel %vm1419, %v10129, %v10131
        %v10133 = vrot.slane %v10121, 2
        %v10134 = vsel %vm1419, %v10131, %v10133
        %v10135 = vrot.slane %v10122, 2
        %v10136 = vsel %vm1419, %v10133, %v10135
        %10137 = vrot.lane.b32.xlu0 %v10130, 126
        %v10138 = vpop.permute.xlu0 %10137
        %10139 = vrot.lane.b32.xlu0 %v10132, 126
        %v10140 = vpop.permute.xlu0 %10139
        %10141 = vrot.lane.b32.xlu0 %v10134, 126
        %v10142 = vpop.permute.xlu0 %10141
        %10143 = vrot.lane.b32.xlu0 %v10136, 126
        %v10144 = vpop.permute.xlu0 %10143
        %v10149 = vadd.f32 %v10112, %v10138
        %v10150 = vadd.f32 %v10113, %v10140
        %v10151 = vadd.f32 %v10114, %v10142
        %v10152 = vadd.f32 %v10115, %v10144
        %s10153 = sld [smem:[#allocation9 + $0x87]]
        %v10154 = vstv %s10153
        %v10155 = vmul.f32 %v6099, %v10154
        %v10156 = vmul.f32 %v6100, %v10154
        %v10157 = vmul.f32 %v6101, %v10154
        %v10158 = vmul.f32 %v6102, %v10154
        %v10159 = vadd.f32 %v10149, %v10155
        %v10160 = vadd.f32 %v10150, %v10156
        %v10161 = vadd.f32 %v10151, %v10157
        %v10162 = vadd.f32 %v10152, %v10158
        %s10163 = sld [smem:[#allocation9 + $0x88]]
        %v10164 = vstv %s10163
        %v10165 = vmul.f32 %v6099, %v10164
        %v10166 = vmul.f32 %v6100, %v10164
        %v10167 = vmul.f32 %v6101, %v10164
        %v10168 = vmul.f32 %v6102, %v10164
        %10173 = vrot.lane.b32.xlu0 %v10165, 127
        %v10174 = vpop.permute.xlu0 %10173
        %10175 = vrot.lane.b32.xlu0 %v10166, 127
        %v10176 = vpop.permute.xlu0 %10175
        %10177 = vrot.lane.b32.xlu0 %v10167, 127
        %v10178 = vpop.permute.xlu0 %10177
        %10179 = vrot.lane.b32.xlu0 %v10168, 127
        %v10180 = vpop.permute.xlu0 %10179
        %v10185 = vadd.f32 %v10159, %v10174
        %v10186 = vadd.f32 %v10160, %v10176
        %v10187 = vadd.f32 %v10161, %v10178
        %v10188 = vadd.f32 %v10162, %v10180
        %s10189 = sld [smem:[#allocation9 + $0x89]]
        %v10190 = vstv %s10189
        %v10191 = vmul.f32 %v6099, %v10190
        %v10192 = vmul.f32 %v6100, %v10190
        %v10193 = vmul.f32 %v6101, %v10190
        %v10194 = vmul.f32 %v6102, %v10190
        %10199 = vrot.lane.b32.xlu0 %v10191, 126
        %v10200 = vpop.permute.xlu0 %10199
        %10201 = vrot.lane.b32.xlu0 %v10192, 126
        %v10202 = vpop.permute.xlu0 %10201
        %10203 = vrot.lane.b32.xlu0 %v10193, 126
        %v10204 = vpop.permute.xlu0 %10203
        %10205 = vrot.lane.b32.xlu0 %v10194, 126
        %v10206 = vpop.permute.xlu0 %10205
        %v10211 = vadd.f32 %v10185, %v10200
        %v10212 = vadd.f32 %v10186, %v10202
        %v10213 = vadd.f32 %v10187, %v10204
        %v10214 = vadd.f32 %v10188, %v10206
        %s10215 = sld [smem:[#allocation9 + $0x8a]]
        %v10216 = vstv %s10215
        %v10217 = vmul.f32 %v6099, %v10216
        %v10218 = vmul.f32 %v6100, %v10216
        %v10219 = vmul.f32 %v6101, %v10216
        %v10220 = vmul.f32 %v6102, %v10216
        %v10221 = vmul.f32 %v6103, %v10216
        %v10227 = vrot.slane %v10217, 1
        %v10228 = vrot.slane %v10218, 1
        %v10229 = vsel %vm1305, %v10227, %v10228
        %v10230 = vrot.slane %v10219, 1
        %v10231 = vsel %vm1305, %v10228, %v10230
        %v10232 = vrot.slane %v10220, 1
        %v10233 = vsel %vm1305, %v10230, %v10232
        %v10234 = vrot.slane %v10221, 1
        %v10235 = vsel %vm1305, %v10232, %v10234
        %v10240 = vadd.f32 %v10211, %v10229
        %v10241 = vadd.f32 %v10212, %v10231
        %v10242 = vadd.f32 %v10213, %v10233
        %v10243 = vadd.f32 %v10214, %v10235
        %s10244 = sld [smem:[#allocation9 + $0x8b]]
        %v10245 = vstv %s10244
        %v10246 = vmul.f32 %v6099, %v10245
        %v10247 = vmul.f32 %v6100, %v10245
        %v10248 = vmul.f32 %v6101, %v10245
        %v10249 = vmul.f32 %v6102, %v10245
        %v10250 = vmul.f32 %v6103, %v10245
        %v10256 = vrot.slane %v10246, 1
        %v10257 = vrot.slane %v10247, 1
        %v10258 = vsel %vm1305, %v10256, %v10257
        %v10259 = vrot.slane %v10248, 1
        %v10260 = vsel %vm1305, %v10257, %v10259
        %v10261 = vrot.slane %v10249, 1
        %v10262 = vsel %vm1305, %v10259, %v10261
        %v10263 = vrot.slane %v10250, 1
        %v10264 = vsel %vm1305, %v10261, %v10263
        %10265 = vrot.lane.b32.xlu0 %v10258, 127
        %v10266 = vpop.permute.xlu0 %10265
        %10267 = vrot.lane.b32.xlu0 %v10260, 127
        %v10268 = vpop.permute.xlu0 %10267
        %10269 = vrot.lane.b32.xlu0 %v10262, 127
        %v10270 = vpop.permute.xlu0 %10269
        %10271 = vrot.lane.b32.xlu0 %v10264, 127
        %v10272 = vpop.permute.xlu0 %10271
        %v10277 = vadd.f32 %v10240, %v10266
        %v10278 = vadd.f32 %v10241, %v10268
        %v10279 = vadd.f32 %v10242, %v10270
        %v10280 = vadd.f32 %v10243, %v10272
        %s10281 = sld [smem:[#allocation9 + $0x8c]]
        %v10282 = vstv %s10281
        %v10283 = vmul.f32 %v6099, %v10282
        %v10284 = vmul.f32 %v6100, %v10282
        %v10285 = vmul.f32 %v6101, %v10282
        %v10286 = vmul.f32 %v6102, %v10282
        %v10287 = vmul.f32 %v6103, %v10282
        %v10293 = vrot.slane %v10283, 1
        %v10294 = vrot.slane %v10284, 1
        %v10295 = vsel %vm1305, %v10293, %v10294
        %v10296 = vrot.slane %v10285, 1
        %v10297 = vsel %vm1305, %v10294, %v10296
        %v10298 = vrot.slane %v10286, 1
        %v10299 = vsel %vm1305, %v10296, %v10298
        %v10300 = vrot.slane %v10287, 1
        %v10301 = vsel %vm1305, %v10298, %v10300
        %10302 = vrot.lane.b32.xlu0 %v10295, 126
        %v10303 = vpop.permute.xlu0 %10302
        %10304 = vrot.lane.b32.xlu0 %v10297, 126
        %v10305 = vpop.permute.xlu0 %10304
        %10306 = vrot.lane.b32.xlu0 %v10299, 126
        %v10307 = vpop.permute.xlu0 %10306
        %10308 = vrot.lane.b32.xlu0 %v10301, 126
        %v10309 = vpop.permute.xlu0 %10308
        %v10314 = vadd.f32 %v10277, %v10303
        %v10315 = vadd.f32 %v10278, %v10305
        %v10316 = vadd.f32 %v10279, %v10307
        %v10317 = vadd.f32 %v10280, %v10309
        %s10318 = sld [smem:[#allocation9 + $0x8d]]
        %v10319 = vstv %s10318
        %v10320 = vmul.f32 %v6099, %v10319
        %v10321 = vmul.f32 %v6100, %v10319
        %v10322 = vmul.f32 %v6101, %v10319
        %v10323 = vmul.f32 %v6102, %v10319
        %v10324 = vmul.f32 %v6103, %v10319
        %v10330 = vrot.slane %v10320, 2
        %v10331 = vrot.slane %v10321, 2
        %v10332 = vsel %vm1419, %v10330, %v10331
        %v10333 = vrot.slane %v10322, 2
        %v10334 = vsel %vm1419, %v10331, %v10333
        %v10335 = vrot.slane %v10323, 2
        %v10336 = vsel %vm1419, %v10333, %v10335
        %v10337 = vrot.slane %v10324, 2
        %v10338 = vsel %vm1419, %v10335, %v10337
        %v10343 = vadd.f32 %v10314, %v10332
        %v10344 = vadd.f32 %v10315, %v10334
        %v10345 = vadd.f32 %v10316, %v10336
        %v10346 = vadd.f32 %v10317, %v10338
        %s10347 = sld [smem:[#allocation9 + $0x8e]]
        %v10348 = vstv %s10347
        %v10349 = vmul.f32 %v6099, %v10348
        %v10350 = vmul.f32 %v6100, %v10348
        %v10351 = vmul.f32 %v6101, %v10348
        %v10352 = vmul.f32 %v6102, %v10348
        %v10353 = vmul.f32 %v6103, %v10348
        %v10359 = vrot.slane %v10349, 2
        %v10360 = vrot.slane %v10350, 2
        %v10361 = vsel %vm1419, %v10359, %v10360
        %v10362 = vrot.slane %v10351, 2
        %v10363 = vsel %vm1419, %v10360, %v10362
        %v10364 = vrot.slane %v10352, 2
        %v10365 = vsel %vm1419, %v10362, %v10364
        %v10366 = vrot.slane %v10353, 2
        %v10367 = vsel %vm1419, %v10364, %v10366
        %10368 = vrot.lane.b32.xlu0 %v10361, 127
        %v10369 = vpop.permute.xlu0 %10368
        %10370 = vrot.lane.b32.xlu0 %v10363, 127
        %v10371 = vpop.permute.xlu0 %10370
        %10372 = vrot.lane.b32.xlu0 %v10365, 127
        %v10373 = vpop.permute.xlu0 %10372
        %10374 = vrot.lane.b32.xlu0 %v10367, 127
        %v10375 = vpop.permute.xlu0 %10374
        %v10380 = vadd.f32 %v10343, %v10369
        %v10381 = vadd.f32 %v10344, %v10371
        %v10382 = vadd.f32 %v10345, %v10373
        %v10383 = vadd.f32 %v10346, %v10375
        %s10384 = sld [smem:[#allocation9 + $0x8f]]
        %v10385 = vstv %s10384
        %v10386 = vmul.f32 %v6099, %v10385
        %v10387 = vmul.f32 %v6100, %v10385
        %v10388 = vmul.f32 %v6101, %v10385
        %v10389 = vmul.f32 %v6102, %v10385
        %v10390 = vmul.f32 %v6103, %v10385
        %v10396 = vrot.slane %v10386, 2
        %v10397 = vrot.slane %v10387, 2
        %v10398 = vsel %vm1419, %v10396, %v10397
        %v10399 = vrot.slane %v10388, 2
        %v10400 = vsel %vm1419, %v10397, %v10399
        %v10401 = vrot.slane %v10389, 2
        %v10402 = vsel %vm1419, %v10399, %v10401
        %v10403 = vrot.slane %v10390, 2
        %v10404 = vsel %vm1419, %v10401, %v10403
        %10405 = vrot.lane.b32.xlu0 %v10398, 126
        %v10406 = vpop.permute.xlu0 %10405
        %10407 = vrot.lane.b32.xlu0 %v10400, 126
        %v10408 = vpop.permute.xlu0 %10407
        %10409 = vrot.lane.b32.xlu0 %v10402, 126
        %v10410 = vpop.permute.xlu0 %10409
        %10411 = vrot.lane.b32.xlu0 %v10404, 126
        %v10412 = vpop.permute.xlu0 %10411
        %v10417 = vadd.f32 %v10380, %v10406
        %v10418 = vadd.f32 %v10381, %v10408
        %v10419 = vadd.f32 %v10382, %v10410
        %v10420 = vadd.f32 %v10383, %v10412
        %s10421 = sld [smem:[#allocation10 + $0x3]]
        %v10422 = vstv %s10421
        %v10423 = vadd.f32 %v10417, %v10422
        %v10424 = vadd.f32 %v10418, %v10422
        %v10425 = vadd.f32 %v10419, %v10422
        %v10426 = vadd.f32 %v10420, %v10422
        %v10427 = vmax.f32 %v10423, 0.0
        %v10428 = vmax.f32 %v10424, 0.0
        %v10429 = vmax.f32 %v10425, 0.0
        %v10430 = vmax.f32 %v10426, 0.0
        %s10431 = scalar_lea.vmem %s362, 96 [#allocation12]
        %10432 = vst.msk [vmem:[%s10431] sm:$0xff] %vm7182, %v10427
        %10433 = vst.msk [vmem:[%s10431 + $0x8] sm:$0xff] %vm7182, %v10428
        %10434 = vst.msk [vmem:[%s10431 + $0x10] sm:$0xff] %vm7182, %v10429
        %10435 = vst.msk [vmem:[%s10431 + $0x18] sm:$0xff] %vm7182, %v10430
        %s10436 = sand.u32 %s201, 1
        %s10437 = scalar_lea.sflag [#allocation4], %s10436
        %s10438 = sand.u32 %s201, 1
        %s10439 = smul.addr %s10438, 128
        %s10440 = scalar_lea.vmem [#allocation12], %s10439
        // Predicated region
        $region69: #{tpu_custom_call.1} parent=47 // pred_check
          %p10441 = pneg %p211
        $region70: #{tpu_custom_call.1} parent=47 // pred_check_branch
          %10443 = sbr.rel (%p10441) target = $region72
        $region71: #{tpu_custom_call.1} parent=47 // pred_region
          %s10444 = smul.u32 4, %s32
          %s10446 = ssub.s32 2048, 2048
          %10447 = vsyncadd %s10437, %s10446
          %s10448 = smul.addr %s31, 16
          %s10449 = sadd.s32 %s10444, %s10448
          %s10450 = smul.addr %s10449, 128
          %s10451 = scalar_lea.hbm %s7, %s10450
          %s10452 = sshll.u32 %s10440, 4
          %s10453 = int_to_ptr.vmem [resolvable:$true] %s10452
          %10458 = dma.vmem_to_hbm [thread:$0]  %s10453, 2048, %s10451, %s10437, 128, 128, 8
        $region72: #{tpu_custom_call.1} parent=47 // pred_fallthru
          _
      $region48: #{tpu_custom_call.1} parent=5 // pred_fallthru
        _
      %p10459 = scmp.le.s32.totalorder 2, %s22
      // Predicated region
      $region73: #{tpu_custom_call.1} parent=5 // pred_check
        %p10460 = pneg %p10459
      $region74: #{tpu_custom_call.1} parent=5 // pred_check_branch
        %10462 = sbr.rel (%p10460) target = $region76
      $region75: #{tpu_custom_call.1} parent=5 // pred_region
        %s10463 = ssub.s32 %s22, 2
        // Predicated region
        $region77: #{tpu_custom_call.1} parent=75 // pred_check
          %p10464 = pneg %p217
        $region78: #{tpu_custom_call.1} parent=75 // pred_check_branch
          %10466 = sbr.rel (%p10464) target = $region80
        $region79: #{tpu_custom_call.1} parent=75 // pred_region
          %s10467 = sand.u32 %s202, 1
          %s10468 = scalar_lea.sflag [#allocation4], %s10467
          %s10469 = sand.u32 %s202, 1
          %s10470 = smul.addr %s10469, 128
          %s10471 = scalar_lea.vmem [#allocation12], %s10470
          %10472 = dma.done %s10468, 2048
        $region80: #{tpu_custom_call.1} parent=75 // pred_fallthru
          _
      $region76: #{tpu_custom_call.1} parent=5 // pred_fallthru
        _
    $region6: #{tpu_custom_call.1} parent=1 // loop_footer
      %s26 = sadd.s32 1, %s22
    $region7: #{tpu_custom_call.1} parent=1 // loop_footer_branch
      %21 = sbr.rel target = $region3
    $region8: #{tpu_custom_call.1} parent=1 // loop_exit
      _
    %10473 = vsyncpa [#allocation3], 1
    %s10474 = scalar_lea.sflag [#allocation3], 1
    %10475 = vsyncpa %s10474, 1
    %10476 = vsyncpa [#allocation4], 1
    %s10477 = scalar_lea.sflag [#allocation4], 1
    %10478 = vsyncpa %s10477, 1
    %10479 = vsyncpa [#allocation5], 1
    %s10480 = scalar_lea.sflag [#allocation5], 1
    %10481 = vsyncpa %s10480, 1
    %10482 = vsyncpa [#allocation8], 1
    %10483 = vsyncpa [#allocation11], 1

</llo_original>
